<compile_context>
chip_gen: v7x
topology: tpu7x:2x2x1
jax: 0.10.0
libtpu: 0.0.40
codegen_flags: <defaults>
</compile_context>

<pallas_src>
import functools

import jax
import jax.numpy as jnp
from jax.experimental import pallas as pl
from jax.experimental.pallas import tpu as pltpu

LRELU_SLOPE = 0.2
BN_EPS = 1e-5


# ----------------------------------------------------------------- tile helpers
def _round_up(x, m):
    return ((x + m - 1) // m) * m


def _pick_lane_tile(dim, pref=256, align=128):
    """Tile for a lane-mapped dim (K or Cout): prefer 256 when it divides the
    128-padded dim, otherwise 128 (avoids extra zero-padding), otherwise the
    (small) padded dim itself."""
    dp = _round_up(dim, align)
    if dp <= pref:
        return dp, dp
    if dp % pref == 0:
        return pref, dp
    return align, dp


def _pick_m_tile(m, pref=256, align=8):
    dp = _round_up(m, align)
    if dp <= pref:
        return dp, dp
    return pref, _round_up(m, pref)


# ----------------------------------------------------- matmul + bias (+ LeakyReLU)
def _matmul_bias_kernel(x_ref, w_ref, b_ref, o_ref, acc_ref, *, fuse_lrelu):
    k = pl.program_id(2)

    @pl.when(k == 0)
    def _():
        acc_ref[...] = jnp.zeros_like(acc_ref)

    acc_ref[...] += jnp.dot(x_ref[...], w_ref[...],
                            preferred_element_type=jnp.float32)

    @pl.when(k == pl.num_programs(2) - 1)
    def _():
        y = acc_ref[...] + b_ref[...]
        if fuse_lrelu:
            y = jnp.where(y > 0, y, LRELU_SLOPE * y)
        o_ref[...] = y.astype(o_ref.dtype)


def matmul_bias_packed(xp, wp, bp, tm, tk, tn, fuse_lrelu=False):
    """xp:[Mp,Kp] bf16 @ wp:[Kp,Np] bf16 + bp:[1,Np] f32 -> [Mp,Np] f32."""
    Mp, Kp = xp.shape
    Np = wp.shape[1]
    kernel = functools.partial(_matmul_bias_kernel, fuse_lrelu=fuse_lrelu)
    return pl.pallas_call(
        kernel,
        out_shape=jax.ShapeDtypeStruct((Mp, Np), jnp.float32),
        grid_spec=pltpu.PrefetchScalarGridSpec(
            num_scalar_prefetch=0,
            grid=(Mp // tm, Np // tn, Kp // tk),
            in_specs=[
                pl.BlockSpec((tm, tk), lambda i, j, k: (i, k)),
                pl.BlockSpec((tk, tn), lambda i, j, k: (k, j)),
                pl.BlockSpec((1, tn), lambda i, j, k: (0, j)),
            ],
            out_specs=pl.BlockSpec((tm, tn), lambda i, j, k: (i, j)),
            scratch_shapes=[pltpu.VMEM((tm, tn), jnp.float32)],
        ),
        compiler_params=pltpu.CompilerParams(
            dimension_semantics=("parallel", "parallel", "arbitrary")),
    )(xp, wp, bp)


# --------------------------------------------- BatchNorm (batch stats) + LeakyReLU
def _bn_stats_kernel(y_ref, o_ref, sum_ref, sq_ref, *, m_valid, tm):
    i = pl.program_id(0)

    @pl.when(i == 0)
    def _():
        sum_ref[...] = jnp.zeros_like(sum_ref)
        sq_ref[...] = jnp.zeros_like(sq_ref)

    y = y_ref[...]
    row = jax.lax.broadcasted_iota(jnp.int32, y.shape, 0) + i * tm
    y = jnp.where(row < m_valid, y, 0.0)          # mask padded rows
    sum_ref[...] += jnp.sum(y, axis=0, keepdims=True)
    sq_ref[...] += jnp.sum(y * y, axis=0, keepdims=True)

    @pl.when(i == pl.num_programs(0) - 1)
    def _():
        o_ref[0:1, :] = sum_ref[...]
        o_ref[1:2, :] = sq_ref[...]


def _bn_apply_kernel(y_ref, stats_ref, g_ref, b_ref, o_ref, *, m_valid):
    y = y_ref[...]
    inv_m = 1.0 / m_valid
    mean = stats_ref[0:1, :] * inv_m
    var = stats_ref[1:2, :] * inv_m - mean * mean      # biased var (training mode)
    scale = g_ref[...] * jax.lax.rsqrt(var + BN_EPS)
    shift = b_ref[...] - mean * scale
    z = y * scale + shift
    o_ref[...] = jnp.where(z > 0, z, LRELU_SLOPE * z)


def bn_leaky_relu_tiled(yp, gamma_p, beta_p, m_valid, tm):
    """yp:[Mp,Cp] f32 (rows >= m_valid are padding). Training-mode BN + LeakyReLU."""
    Mp, Cp = yp.shape
    stats = pl.pallas_call(
        functools.partial(_bn_stats_kernel, m_valid=m_valid, tm=tm),
        out_shape=jax.ShapeDtypeStruct((2, Cp), jnp.float32),
        grid_spec=pltpu.PrefetchScalarGridSpec(
            num_scalar_prefetch=0,
            grid=(Mp // tm,),
            in_specs=[pl.BlockSpec((tm, Cp), lambda i: (i, 0))],
            out_specs=pl.BlockSpec((2, Cp), lambda i: (0, 0)),
            scratch_shapes=[pltpu.VMEM((1, Cp), jnp.float32),
                            pltpu.VMEM((1, Cp), jnp.float32)],
        ),
        compiler_params=pltpu.CompilerParams(
            dimension_semantics=("arbitrary",)),
    )(yp)

    return pl.pallas_call(
        functools.partial(_bn_apply_kernel, m_valid=m_valid),
        out_shape=jax.ShapeDtypeStruct((Mp, Cp), jnp.float32),
        grid_spec=pltpu.PrefetchScalarGridSpec(
            num_scalar_prefetch=0,
            grid=(Mp // tm,),
            in_specs=[pl.BlockSpec((tm, Cp), lambda i: (i, 0)),
                      pl.BlockSpec((2, Cp), lambda i: (0, 0)),
                      pl.BlockSpec((1, Cp), lambda i: (0, 0)),
                      pl.BlockSpec((1, Cp), lambda i: (0, 0))],
            out_specs=pl.BlockSpec((tm, Cp), lambda i: (i, 0)),
        ),
        compiler_params=pltpu.CompilerParams(
            dimension_semantics=("parallel",)),
    )(yp, stats, gamma_p, beta_p)


# -------------------------------------- fused AvgPool(1) + 1x1 Conv(2048->1) + Sigmoid
def _head_kernel(x_ref, w_ref, b_ref, o_ref):
    pooled = jnp.mean(x_ref[...], axis=1)                          # [N, C]
    logit = jnp.sum(pooled * w_ref[...], axis=1, keepdims=True) + b_ref[...]
    o_ref[...] = 0.5 * (jnp.tanh(0.5 * logit) + 1.0)               # robust sigmoid


def pooled_head(x_nhwc, w_row, b11):
    N, H, W, C = x_nhwc.shape
    x = x_nhwc.reshape(N, H * W, C)
    return pl.pallas_call(
        _head_kernel,
        out_shape=jax.ShapeDtypeStruct((N, 1), jnp.float32),
    )(x, w_row, b11)


# ------------------------------------------------------------------- conv glue
def im2col_bf16(x_nhwc, ksize, stride, pad):
    N, H, W, C = x_nhwc.shape
    x = x_nhwc.astype(jnp.bfloat16)          # half the HBM traffic of f32 patches
    xp = jnp.pad(x, ((0, 0), (pad, pad), (pad, pad), (0, 0)))
    Ho = (H + 2 * pad - ksize) // stride + 1
    Wo = (W + 2 * pad - ksize) // stride + 1
    cols = []
    for dy in range(ksize):
        for dx in range(ksize):
            cols.append(xp[:, dy:dy + Ho * stride:stride,
                           dx:dx + Wo * stride:stride, :])
    cols = jnp.concatenate(cols, axis=-1)                 # [N, Ho, Wo, k*k*C]
    return cols.reshape(N * Ho * Wo, ksize * ksize * C), Ho, Wo


def conv_layer(x_nhwc, layer, fuse_lrelu):
    N = x_nhwc.shape[0]
    patches, Ho, Wo = im2col_bf16(x_nhwc, 3, layer['stride'], 1)
    M, K = patches.shape
    tm, Mp = _pick_m_tile(M)
    Kp = layer['Kp']
    if (Mp, Kp) == (M, K):
        xp = patches
    else:
        xp = jnp.zeros((Mp, Kp), jnp.bfloat16).at[:M, :K].set(patches)
    yp = matmul_bias_packed(xp, layer['wp'], layer['bp'],
                            tm, layer['tk'], layer['tn'], fuse_lrelu=fuse_lrelu)
    return yp, (N, Ho, Wo, M, tm)


# ------------------------------------------------------------------ parameters
def pack_conv(w_oihw, b, gamma=None, beta=None, stride=1):
    """One-time weight packing: [Cout,Cin,kh,kw] -> bf16 [Kp, Np] (+ padded bias/BN)."""
    Cout, Cin, kh, kw = w_oihw.shape
    K = kh * kw * Cin
    tk, Kp = _pick_lane_tile(K)
    tn, Np = _pick_lane_tile(Cout)
    w2 = jnp.transpose(w_oihw, (2, 3, 1, 0)).reshape(K, Cout)      # (dy,dx,cin) order
    wp = jnp.zeros((Kp, Np), jnp.bfloat16).at[:K, :Cout].set(w2.astype(jnp.bfloat16))
    bp = jnp.zeros((1, Np), jnp.float32).at[0, :Cout].set(b)
    layer = dict(wp=wp, bp=bp, tk=tk, tn=tn, Kp=Kp, Np=Np, Cout=Cout, stride=stride)
    if gamma is not None:
        layer['gamma_p'] = jnp.zeros((1, Np), jnp.float32).at[0, :Cout].set(gamma)
        layer['beta_p'] = jnp.zeros((1, Np), jnp.float32).at[0, :Cout].set(beta)
    return layer


def init_params(key):
    cfg = [(9, 64, 1), (64, 128, 2), (128, 256, 2),
           (256, 512, 2), (512, 1024, 2), (1024, 2048, 2)]
    layers = []
    for idx, (cin, cout, stride) in enumerate(cfg):
        key, kw_, kb_ = jax.random.split(key, 3)
        fan_in = cin * 9
        w = jax.random.normal(kw_, (cout, cin, 3, 3), jnp.float32) / jnp.sqrt(fan_in)
        b = jax.random.normal(kb_, (cout,), jnp.float32) * 0.01
        if idx == 0:
            layers.append(pack_conv(w, b, stride=stride))
        else:
            layers.append(pack_conv(w, b,
                                    gamma=jnp.ones((cout,), jnp.float32),
                                    beta=jnp.zeros((cout,), jnp.float32),
                                    stride=stride))
    key, kw_, kb_ = jax.random.split(key, 3)
    w_fin = jax.random.normal(kw_, (1, 2048, 1, 1), jnp.float32) / jnp.sqrt(2048.0)
    b_fin = jax.random.normal(kb_, (1,), jnp.float32) * 0.01
    head_w = w_fin.reshape(1, 2048)
    head_b = b_fin.reshape(1, 1)
    return layers, head_w, head_b


# --------------------------------------------------------------------- forward
def discriminator_forward(x_nchw, packed_layers, head_w, head_b):
    x = jnp.transpose(x_nchw, (0, 2, 3, 1))                # NCHW -> NHWC, f32

    # layer 1: Conv(9->64, s=1, p=1) + LeakyReLU (bias + LeakyReLU fused in epilogue)
    layer = packed_layers[0]
    yp, (N, Ho, Wo, M, tm) = conv_layer(x, layer, fuse_lrelu=True)
    x = yp[:M, :layer['Cout']].reshape(N, Ho, Wo, layer['Cout'])

    # layers 2..6: Conv(s=2) + BatchNorm(batch stats) + LeakyReLU
    for layer in packed_layers[1:]:
        yp, (N, Ho, Wo, M, tm) = conv_layer(x, layer, fuse_lrelu=False)
        zp = bn_leaky_relu_tiled(yp, layer['gamma_p'], layer['beta_p'], M, tm)
        x = zp[:M, :layer['Cout']].reshape(N, Ho, Wo, layer['Cout'])

    # AdaptiveAvgPool2d(1) + Conv2d(2048->1, 1x1) + Sigmoid, in one kernel
    probs = pooled_head(x, head_w, head_b)                 # [N, 1]
    return probs.reshape(N, 1, 1, 1)                       # match PyTorch NCHW output


if __name__ == "__main__":
    key = jax.random.PRNGKey(0)
    kx, kp = jax.random.split(key)
    x = jax.random.normal(kx, (2, 9, 16, 16), jnp.float32)     # NCHW, like PyTorch
    layers, head_w, head_b = init_params(kp)

    fwd = jax.jit(functools.partial(discriminator_forward,
                                    packed_layers=layers,
                                    head_w=head_w, head_b=head_b))
    y = fwd(x)
    jax.block_until_ready(y)
    assert y.shape == (2, 1, 1, 1) and y.dtype == jnp.float32
    assert bool(jnp.all((y >= 0.0) & (y <= 1.0)))
    print("KERNEL_OK")
</pallas_src>

<mosaic_0001>
module attributes {stable_mosaic.version = 11 : i64} {
  func.func @_matmul_bias_kernel(%arg0: i32, %arg1: i32, %arg2: i32, %arg3: memref<256x128xbf16, #tpu.memory_space<vmem>>, %arg4: memref<128x128xbf16, #tpu.memory_space<vmem>>, %arg5: memref<1x128xf32, #tpu.memory_space<vmem>>, %arg6: memref<256x128xf32, #tpu.memory_space<vmem>>, %arg7: memref<256x128xf32, #tpu.memory_space<vmem>>) attributes {dimension_semantics = [#tpu.dimension_semantics<parallel>, #tpu.dimension_semantics<parallel>, #tpu.dimension_semantics<arbitrary>], iteration_bounds = array<i64: 2, 1, 1>, scalar_prefetch = 0 : i64, scratch_operands = 1 : i64, tpu.core_type = #tpu.core_type<tc>, window_params = [{transform_indices = @transform_0, window_bounds = array<i64: 256, 128>}, {transform_indices = @transform_1, window_bounds = array<i64: 128, 128>}, {transform_indices = @transform_2, window_bounds = array<i64: 1, 128>}, {transform_indices = @transform_3, window_bounds = array<i64: 256, 128>}]} {
    %c0_i32 = arith.constant 0 : i32
    %0 = arith.cmpi eq, %arg2, %c0_i32 : i32
    %1 = arith.extui %0 : i1 to i32
    %c0_i32_0 = arith.constant 0 : i32
    %2 = arith.cmpi ne, %1, %c0_i32_0 : i32
    scf.if %2 {
      %cst_10 = arith.constant 0.000000e+00 : f32
      %12 = vector.broadcast %cst_10 : f32 to vector<256x128xf32>
      %c0_11 = arith.constant 0 : index
      %c0_12 = arith.constant 0 : index
      %13 = vector.load %arg7[%c0_11, %c0_12] : memref<256x128xf32, #tpu.memory_space<vmem>>, vector<256x128xf32>
      tpu.vector_store %arg7[%c0_11, %c0_12], %12 {strides = array<i32>} : memref<256x128xf32, #tpu.memory_space<vmem>>, vector<256x128xf32>,
    } else {
    }
    %c0 = arith.constant 0 : index
    %c0_1 = arith.constant 0 : index
    %3 = vector.load %arg7[%c0, %c0_1] : memref<256x128xf32, #tpu.memory_space<vmem>>, vector<256x128xf32>
    %c0_2 = arith.constant 0 : index
    %c0_3 = arith.constant 0 : index
    %4 = vector.load %arg3[%c0_2, %c0_3] : memref<256x128xbf16, #tpu.memory_space<vmem>>, vector<256x128xbf16>
    %c0_4 = arith.constant 0 : index
    %c0_5 = arith.constant 0 : index
    %5 = vector.load %arg4[%c0_4, %c0_5] : memref<128x128xbf16, #tpu.memory_space<vmem>>, vector<128x128xbf16>
    %cst = arith.constant dense<0.000000e+00> : vector<256x128xf32>
    %6 = tpu.matmul %4, %5, %cst {dimension_numbers = #tpu.dot_dimension_numbers<[1], [0], [0], [1], [0, 0, 1, 1], [], []>} : vector<256x128xbf16>, vector<128x128xbf16>, vector<256x128xf32> -> vector<256x128xf32>
    %7 = arith.addf %3, %6 : vector<256x128xf32>
    %c0_6 = arith.constant 0 : index
    %c0_7 = arith.constant 0 : index
    %8 = vector.load %arg7[%c0_6, %c0_7] : memref<256x128xf32, #tpu.memory_space<vmem>>, vector<256x128xf32>
    tpu.vector_store %arg7[%c0_6, %c0_7], %7 {strides = array<i32>} : memref<256x128xf32, #tpu.memory_space<vmem>>, vector<256x128xf32>,
    %c0_i32_8 = arith.constant 0 : i32
    %9 = arith.cmpi eq, %arg2, %c0_i32_8 : i32
    %10 = arith.extui %9 : i1 to i32
    %c0_i32_9 = arith.constant 0 : i32
    %11 = arith.cmpi ne, %10, %c0_i32_9 : i32
    scf.if %11 {
      %c0_10 = arith.constant 0 : index
      %c0_11 = arith.constant 0 : index
      %12 = vector.load %arg7[%c0_10, %c0_11] : memref<256x128xf32, #tpu.memory_space<vmem>>, vector<256x128xf32>
      %c0_12 = arith.constant 0 : index
      %c0_13 = arith.constant 0 : index
      %13 = vector.load %arg5[%c0_12, %c0_13] : memref<1x128xf32, #tpu.memory_space<vmem>>, vector<1x128xf32>
      %14 = vector.broadcast %13 : vector<1x128xf32> to vector<256x128xf32>
      %15 = arith.addf %12, %14 : vector<256x128xf32>
      %cst_14 = arith.constant 0.000000e+00 : f32
      %16 = vector.broadcast %cst_14 : f32 to vector<256x128xf32>
      %17 = arith.cmpf ogt, %15, %16 : vector<256x128xf32>
      %cst_15 = arith.constant 2.000000e-01 : f32
      %18 = vector.broadcast %cst_15 : f32 to vector<256x128xf32>
      %19 = arith.mulf %18, %15 : vector<256x128xf32>
      %20 = arith.select %17, %15, %19 : vector<256x128xi1>, vector<256x128xf32>
      %c0_16 = arith.constant 0 : index
      %c0_17 = arith.constant 0 : index
      %21 = vector.load %arg6[%c0_16, %c0_17] : memref<256x128xf32, #tpu.memory_space<vmem>>, vector<256x128xf32>
      tpu.vector_store %arg6[%c0_16, %c0_17], %20 {strides = array<i32>} : memref<256x128xf32, #tpu.memory_space<vmem>>, vector<256x128xf32>,
    } else {
    }
    return
  }
  func.func @transform_0(%arg0: i32, %arg1: i32, %arg2: i32) -> (i32, i32) {
    %c0_i32 = arith.constant 0 : i32
    return %arg0, %arg2 : i32, i32
  }
  func.func @transform_1(%arg0: i32, %arg1: i32, %arg2: i32) -> (i32, i32) {
    %c0_i32 = arith.constant 0 : i32
    return %arg2, %arg1 : i32, i32
  }
  func.func @transform_2(%arg0: i32, %arg1: i32, %arg2: i32) -> (i32, i32) {
    %c0_i32 = arith.constant 0 : i32
    %c0_i32_0 = arith.constant 0 : i32
    return %c0_i32, %arg1 : i32, i32
  }
  func.func @transform_3(%arg0: i32, %arg1: i32, %arg2: i32) -> (i32, i32) {
    %c0_i32 = arith.constant 0 : i32
    return %arg0, %arg1 : i32, i32
  }
}

module attributes {stable_mosaic.version = 11 : i64} {
  func.func @_matmul_bias_kernel(%arg0: i32, %arg1: i32, %arg2: i32, %arg3: memref<128x128xbf16, #tpu.memory_space<vmem>>, %arg4: memref<128x128xbf16, #tpu.memory_space<vmem>>, %arg5: memref<1x128xf32, #tpu.memory_space<vmem>>, %arg6: memref<128x128xf32, #tpu.memory_space<vmem>>, %arg7: memref<128x128xf32, #tpu.memory_space<vmem>>) attributes {dimension_semantics = [#tpu.dimension_semantics<parallel>, #tpu.dimension_semantics<parallel>, #tpu.dimension_semantics<arbitrary>], iteration_bounds = array<i64: 1, 1, 5>, scalar_prefetch = 0 : i64, scratch_operands = 1 : i64, tpu.core_type = #tpu.core_type<tc>, window_params = [{transform_indices = @transform_0, window_bounds = array<i64: 128, 128>}, {transform_indices = @transform_1, window_bounds = array<i64: 128, 128>}, {transform_indices = @transform_2, window_bounds = array<i64: 1, 128>}, {transform_indices = @transform_3, window_bounds = array<i64: 128, 128>}]} {
    %c0_i32 = arith.constant 0 : i32
    %0 = arith.cmpi eq, %arg2, %c0_i32 : i32
    %1 = arith.extui %0 : i1 to i32
    %c0_i32_0 = arith.constant 0 : i32
    %2 = arith.cmpi ne, %1, %c0_i32_0 : i32
    scf.if %2 {
      %cst_9 = arith.constant 0.000000e+00 : f32
      %12 = vector.broadcast %cst_9 : f32 to vector<128x128xf32>
      %c0_10 = arith.constant 0 : index
      %c0_11 = arith.constant 0 : index
      %13 = vector.load %arg7[%c0_10, %c0_11] : memref<128x128xf32, #tpu.memory_space<vmem>>, vector<128x128xf32>
      tpu.vector_store %arg7[%c0_10, %c0_11], %12 {strides = array<i32>} : memref<128x128xf32, #tpu.memory_space<vmem>>, vector<128x128xf32>,
    } else {
    }
    %c0 = arith.constant 0 : index
    %c0_1 = arith.constant 0 : index
    %3 = vector.load %arg7[%c0, %c0_1] : memref<128x128xf32, #tpu.memory_space<vmem>>, vector<128x128xf32>
    %c0_2 = arith.constant 0 : index
    %c0_3 = arith.constant 0 : index
    %4 = vector.load %arg3[%c0_2, %c0_3] : memref<128x128xbf16, #tpu.memory_space<vmem>>, vector<128x128xbf16>
    %c0_4 = arith.constant 0 : index
    %c0_5 = arith.constant 0 : index
    %5 = vector.load %arg4[%c0_4, %c0_5] : memref<128x128xbf16, #tpu.memory_space<vmem>>, vector<128x128xbf16>
    %cst = arith.constant dense<0.000000e+00> : vector<128x128xf32>
    %6 = tpu.matmul %4, %5, %cst {dimension_numbers = #tpu.dot_dimension_numbers<[1], [0], [0], [1], [0, 0, 1, 1], [], []>} : vector<128x128xbf16>, vector<128x128xbf16>, vector<128x128xf32> -> vector<128x128xf32>
    %7 = arith.addf %3, %6 : vector<128x128xf32>
    %c0_6 = arith.constant 0 : index
    %c0_7 = arith.constant 0 : index
    %8 = vector.load %arg7[%c0_6, %c0_7] : memref<128x128xf32, #tpu.memory_space<vmem>>, vector<128x128xf32>
    tpu.vector_store %arg7[%c0_6, %c0_7], %7 {strides = array<i32>} : memref<128x128xf32, #tpu.memory_space<vmem>>, vector<128x128xf32>,
    %c4_i32 = arith.constant 4 : i32
    %9 = arith.cmpi eq, %arg2, %c4_i32 : i32
    %10 = arith.extui %9 : i1 to i32
    %c0_i32_8 = arith.constant 0 : i32
    %11 = arith.cmpi ne, %10, %c0_i32_8 : i32
    scf.if %11 {
      %c0_9 = arith.constant 0 : index
      %c0_10 = arith.constant 0 : index
      %12 = vector.load %arg7[%c0_9, %c0_10] : memref<128x128xf32, #tpu.memory_space<vmem>>, vector<128x128xf32>
      %c0_11 = arith.constant 0 : index
      %c0_12 = arith.constant 0 : index
      %13 = vector.load %arg5[%c0_11, %c0_12] : memref<1x128xf32, #tpu.memory_space<vmem>>, vector<1x128xf32>
      %14 = vector.broadcast %13 : vector<1x128xf32> to vector<128x128xf32>
      %15 = arith.addf %12, %14 : vector<128x128xf32>
      %c0_13 = arith.constant 0 : index
      %c0_14 = arith.constant 0 : index
      %16 = vector.load %arg6[%c0_13, %c0_14] : memref<128x128xf32, #tpu.memory_space<vmem>>, vector<128x128xf32>
      tpu.vector_store %arg6[%c0_13, %c0_14], %15 {strides = array<i32>} : memref<128x128xf32, #tpu.memory_space<vmem>>, vector<128x128xf32>,
    } else {
    }
    return
  }
  func.func @transform_0(%arg0: i32, %arg1: i32, %arg2: i32) -> (i32, i32) {
    %c0_i32 = arith.constant 0 : i32
    return %arg0, %arg2 : i32, i32
  }
  func.func @transform_1(%arg0: i32, %arg1: i32, %arg2: i32) -> (i32, i32) {
    %c0_i32 = arith.constant 0 : i32
    return %arg2, %arg1 : i32, i32
  }
  func.func @transform_2(%arg0: i32, %arg1: i32, %arg2: i32) -> (i32, i32) {
    %c0_i32 = arith.constant 0 : i32
    %c0_i32_0 = arith.constant 0 : i32
    return %c0_i32, %arg1 : i32, i32
  }
  func.func @transform_3(%arg0: i32, %arg1: i32, %arg2: i32) -> (i32, i32) {
    %c0_i32 = arith.constant 0 : i32
    return %arg0, %arg1 : i32, i32
  }
}

module attributes {stable_mosaic.version = 11 : i64} {
  func.func @_bn_stats_kernel(%arg0: i32, %arg1: memref<128x128xf32, #tpu.memory_space<vmem>>, %arg2: memref<2x128xf32, #tpu.memory_space<vmem>>, %arg3: memref<1x128xf32, #tpu.memory_space<vmem>>, %arg4: memref<1x128xf32, #tpu.memory_space<vmem>>) attributes {dimension_semantics = [#tpu.dimension_semantics<arbitrary>], iteration_bounds = array<i64: 1>, scalar_prefetch = 0 : i64, scratch_operands = 2 : i64, tpu.core_type = #tpu.core_type<tc>, window_params = [{transform_indices = @transform_0, window_bounds = array<i64: 128, 128>}, {pipeline_mode = #tpu.pipeline_mode<synchronous>, transform_indices = @transform_1, window_bounds = array<i64: 2, 128>}]} {
    %c0_i32 = arith.constant 0 : i32
    %0 = arith.cmpi eq, %arg0, %c0_i32 : i32
    %1 = arith.extui %0 : i1 to i32
    %c0_i32_0 = arith.constant 0 : i32
    %2 = arith.cmpi ne, %1, %c0_i32_0 : i32
    scf.if %2 {
      %cst_15 = arith.constant 0.000000e+00 : f32
      %26 = vector.broadcast %cst_15 : f32 to vector<1x128xf32>
      %c0_16 = arith.constant 0 : index
      %c0_17 = arith.constant 0 : index
      %27 = vector.load %arg3[%c0_16, %c0_17] : memref<1x128xf32, #tpu.memory_space<vmem>>, vector<1x128xf32>
      tpu.vector_store %arg3[%c0_16, %c0_17], %26 {strides = array<i32>} : memref<1x128xf32, #tpu.memory_space<vmem>>, vector<1x128xf32>,
      %cst_18 = arith.constant 0.000000e+00 : f32
      %28 = vector.broadcast %cst_18 : f32 to vector<1x128xf32>
      %c0_19 = arith.constant 0 : index
      %c0_20 = arith.constant 0 : index
      %29 = vector.load %arg4[%c0_19, %c0_20] : memref<1x128xf32, #tpu.memory_space<vmem>>, vector<1x128xf32>
      tpu.vector_store %arg4[%c0_19, %c0_20], %28 {strides = array<i32>} : memref<1x128xf32, #tpu.memory_space<vmem>>, vector<1x128xf32>,
    } else {
    }
    %c0 = arith.constant 0 : index
    %c0_1 = arith.constant 0 : index
    %3 = vector.load %arg1[%c0, %c0_1] : memref<128x128xf32, #tpu.memory_space<vmem>>, vector<128x128xf32>
    %4 = tpu.iota {dimensions = array<i32: 0>} : vector<128x128xi32>
    %c128_i32 = arith.constant 128 : i32
    %5 = arith.muli %arg0, %c128_i32 : i32
    %6 = vector.broadcast %5 : i32 to vector<128x128xi32>
    %7 = arith.addi %4, %6 : vector<128x128xi32>
    %c128_i32_2 = arith.constant 128 : i32
    %8 = vector.broadcast %c128_i32_2 : i32 to vector<128x128xi32>
    %9 = arith.cmpi slt, %7, %8 : vector<128x128xi32>
    %cst = arith.constant 0.000000e+00 : f32
    %10 = vector.broadcast %cst : f32 to vector<128x128xf32>
    %11 = arith.select %9, %3, %10 : vector<128x128xi1>, vector<128x128xf32>
    %c0_3 = arith.constant 0 : index
    %c0_4 = arith.constant 0 : index
    %12 = vector.load %arg3[%c0_3, %c0_4] : memref<1x128xf32, #tpu.memory_space<vmem>>, vector<1x128xf32>
    %cst_5 = arith.constant dense<0.000000e+00> : vector<128xf32>
    %13 = vector.multi_reduction <add>, %11, %cst_5 [0] : vector<128x128xf32> to vector<128xf32>
    %14 = vector.shape_cast %13 : vector<128xf32> to vector<1x128xf32>
    %15 = arith.addf %12, %14 : vector<1x128xf32>
    %c0_6 = arith.constant 0 : index
    %c0_7 = arith.constant 0 : index
    %16 = vector.load %arg3[%c0_6, %c0_7] : memref<1x128xf32, #tpu.memory_space<vmem>>, vector<1x128xf32>
    tpu.vector_store %arg3[%c0_6, %c0_7], %15 {strides = array<i32>} : memref<1x128xf32, #tpu.memory_space<vmem>>, vector<1x128xf32>,
    %c0_8 = arith.constant 0 : index
    %c0_9 = arith.constant 0 : index
    %17 = vector.load %arg4[%c0_8, %c0_9] : memref<1x128xf32, #tpu.memory_space<vmem>>, vector<1x128xf32>
    %18 = arith.mulf %11, %11 : vector<128x128xf32>
    %cst_10 = arith.constant dense<0.000000e+00> : vector<128xf32>
    %19 = vector.multi_reduction <add>, %18, %cst_10 [0] : vector<128x128xf32> to vector<128xf32>
    %20 = vector.shape_cast %19 : vector<128xf32> to vector<1x128xf32>
    %21 = arith.addf %17, %20 : vector<1x128xf32>
    %c0_11 = arith.constant 0 : index
    %c0_12 = arith.constant 0 : index
    %22 = vector.load %arg4[%c0_11, %c0_12] : memref<1x128xf32, #tpu.memory_space<vmem>>, vector<1x128xf32>
    tpu.vector_store %arg4[%c0_11, %c0_12], %21 {strides = array<i32>} : memref<1x128xf32, #tpu.memory_space<vmem>>, vector<1x128xf32>,
    %c0_i32_13 = arith.constant 0 : i32
    %23 = arith.cmpi eq, %arg0, %c0_i32_13 : i32
    %24 = arith.extui %23 : i1 to i32
    %c0_i32_14 = arith.constant 0 : i32
    %25 = arith.cmpi ne, %24, %c0_i32_14 : i32
    scf.if %25 {
      %c0_15 = arith.constant 0 : index
      %c0_16 = arith.constant 0 : index
      %26 = vector.load %arg3[%c0_15, %c0_16] : memref<1x128xf32, #tpu.memory_space<vmem>>, vector<1x128xf32>
      %c0_17 = arith.constant 0 : index
      %c0_18 = arith.constant 0 : index
      %27 = vector.load %arg2[%c0_17, %c0_18] : memref<2x128xf32, #tpu.memory_space<vmem>>, vector<1x128xf32>
      tpu.vector_store %arg2[%c0_17, %c0_18], %26 {strides = array<i32>} : memref<2x128xf32, #tpu.memory_space<vmem>>, vector<1x128xf32>,
      %c0_19 = arith.constant 0 : index
      %c0_20 = arith.constant 0 : index
      %28 = vector.load %arg4[%c0_19, %c0_20] : memref<1x128xf32, #tpu.memory_space<vmem>>, vector<1x128xf32>
      %c1 = arith.constant 1 : index
      %c0_21 = arith.constant 0 : index
      %29 = vector.load %arg2[%c1, %c0_21] : memref<2x128xf32, #tpu.memory_space<vmem>>, vector<1x128xf32>
      tpu.vector_store %arg2[%c1, %c0_21], %28 {strides = array<i32>} : memref<2x128xf32, #tpu.memory_space<vmem>>, vector<1x128xf32>,
    } else {
    }
    return
  }
  func.func @transform_0(%arg0: i32) -> (i32, i32) {
    %c0_i32 = arith.constant 0 : i32
    %c0_i32_0 = arith.constant 0 : i32
    return %arg0, %c0_i32 : i32, i32
  }
  func.func @transform_1(%arg0: i32) -> (i32, i32) {
    %c0_i32 = arith.constant 0 : i32
    %c0_i32_0 = arith.constant 0 : i32
    %c0_i32_1 = arith.constant 0 : i32
    return %c0_i32, %c0_i32_0 : i32, i32
  }
}

module attributes {stable_mosaic.version = 11 : i64} {
  func.func @_bn_apply_kernel(%arg0: i32, %arg1: memref<128x128xf32, #tpu.memory_space<vmem>>, %arg2: memref<2x128xf32, #tpu.memory_space<vmem>>, %arg3: memref<1x128xf32, #tpu.memory_space<vmem>>, %arg4: memref<1x128xf32, #tpu.memory_space<vmem>>, %arg5: memref<128x128xf32, #tpu.memory_space<vmem>>) attributes {dimension_semantics = [#tpu.dimension_semantics<parallel>], iteration_bounds = array<i64: 1>, scalar_prefetch = 0 : i64, scratch_operands = 0 : i64, tpu.core_type = #tpu.core_type<tc>, window_params = [{transform_indices = @transform_0, window_bounds = array<i64: 128, 128>}, {pipeline_mode = #tpu.pipeline_mode<synchronous>, transform_indices = @transform_1, window_bounds = array<i64: 2, 128>}, {pipeline_mode = #tpu.pipeline_mode<synchronous>, transform_indices = @transform_2, window_bounds = array<i64: 1, 128>}, {pipeline_mode = #tpu.pipeline_mode<synchronous>, transform_indices = @transform_3, window_bounds = array<i64: 1, 128>}, {transform_indices = @transform_4, window_bounds = array<i64: 128, 128>}]} {
    %c0 = arith.constant 0 : index
    %c0_0 = arith.constant 0 : index
    %0 = vector.load %arg1[%c0, %c0_0] : memref<128x128xf32, #tpu.memory_space<vmem>>, vector<128x128xf32>
    %c0_1 = arith.constant 0 : index
    %c0_2 = arith.constant 0 : index
    %1 = vector.load %arg2[%c0_1, %c0_2] : memref<2x128xf32, #tpu.memory_space<vmem>>, vector<1x128xf32>
    %cst = arith.constant 7.812500e-03 : f32
    %2 = vector.broadcast %cst : f32 to vector<1x128xf32>
    %3 = arith.mulf %1, %2 : vector<1x128xf32>
    %c1 = arith.constant 1 : index
    %c0_3 = arith.constant 0 : index
    %4 = vector.load %arg2[%c1, %c0_3] : memref<2x128xf32, #tpu.memory_space<vmem>>, vector<1x128xf32>
    %cst_4 = arith.constant 7.812500e-03 : f32
    %5 = vector.broadcast %cst_4 : f32 to vector<1x128xf32>
    %6 = arith.mulf %4, %5 : vector<1x128xf32>
    %7 = arith.mulf %3, %3 : vector<1x128xf32>
    %8 = arith.subf %6, %7 : vector<1x128xf32>
    %c0_5 = arith.constant 0 : index
    %c0_6 = arith.constant 0 : index
    %9 = vector.load %arg3[%c0_5, %c0_6] : memref<1x128xf32, #tpu.memory_space<vmem>>, vector<1x128xf32>
    %cst_7 = arith.constant 9.99999974E-6 : f32
    %10 = vector.broadcast %cst_7 : f32 to vector<1x128xf32>
    %11 = arith.addf %8, %10 : vector<1x128xf32>
    %12 = math.rsqrt %11 : vector<1x128xf32>
    %13 = arith.mulf %9, %12 : vector<1x128xf32>
    %c0_8 = arith.constant 0 : index
    %c0_9 = arith.constant 0 : index
    %14 = vector.load %arg4[%c0_8, %c0_9] : memref<1x128xf32, #tpu.memory_space<vmem>>, vector<1x128xf32>
    %15 = arith.mulf %3, %13 : vector<1x128xf32>
    %16 = arith.subf %14, %15 : vector<1x128xf32>
    %17 = vector.broadcast %13 : vector<1x128xf32> to vector<128x128xf32>
    %18 = arith.mulf %0, %17 : vector<128x128xf32>
    %19 = vector.broadcast %16 : vector<1x128xf32> to vector<128x128xf32>
    %20 = arith.addf %18, %19 : vector<128x128xf32>
    %cst_10 = arith.constant 0.000000e+00 : f32
    %21 = vector.broadcast %cst_10 : f32 to vector<128x128xf32>
    %22 = arith.cmpf ogt, %20, %21 : vector<128x128xf32>
    %cst_11 = arith.constant 2.000000e-01 : f32
    %23 = vector.broadcast %cst_11 : f32 to vector<128x128xf32>
    %24 = arith.mulf %23, %20 : vector<128x128xf32>
    %25 = arith.select %22, %20, %24 : vector<128x128xi1>, vector<128x128xf32>
    %c0_12 = arith.constant 0 : index
    %c0_13 = arith.constant 0 : index
    %26 = vector.load %arg5[%c0_12, %c0_13] : memref<128x128xf32, #tpu.memory_space<vmem>>, vector<128x128xf32>
    tpu.vector_store %arg5[%c0_12, %c0_13], %25 {strides = array<i32>} : memref<128x128xf32, #tpu.memory_space<vmem>>, vector<128x128xf32>,
    return
  }
  func.func @transform_0(%arg0: i32) -> (i32, i32) {
    %c0_i32 = arith.constant 0 : i32
    %c0_i32_0 = arith.constant 0 : i32
    return %arg0, %c0_i32 : i32, i32
  }
  func.func @transform_1(%arg0: i32) -> (i32, i32) {
    %c0_i32 = arith.constant 0 : i32
    %c0_i32_0 = arith.constant 0 : i32
    %c0_i32_1 = arith.constant 0 : i32
    return %c0_i32, %c0_i32_0 : i32, i32
  }
  func.func @transform_2(%arg0: i32) -> (i32, i32) {
    %c0_i32 = arith.constant 0 : i32
    %c0_i32_0 = arith.constant 0 : i32
    %c0_i32_1 = arith.constant 0 : i32
    return %c0_i32, %c0_i32_0 : i32, i32
  }
  func.func @transform_3(%arg0: i32) -> (i32, i32) {
    %c0_i32 = arith.constant 0 : i32
    %c0_i32_0 = arith.constant 0 : i32
    %c0_i32_1 = arith.constant 0 : i32
    return %c0_i32, %c0_i32_0 : i32, i32
  }
  func.func @transform_4(%arg0: i32) -> (i32, i32) {
    %c0_i32 = arith.constant 0 : i32
    %c0_i32_0 = arith.constant 0 : i32
    return %arg0, %c0_i32 : i32, i32
  }
}

module attributes {stable_mosaic.version = 11 : i64} {
  func.func @_matmul_bias_kernel(%arg0: i32, %arg1: i32, %arg2: i32, %arg3: memref<32x128xbf16, #tpu.memory_space<vmem>>, %arg4: memref<128x256xbf16, #tpu.memory_space<vmem>>, %arg5: memref<1x256xf32, #tpu.memory_space<vmem>>, %arg6: memref<32x256xf32, #tpu.memory_space<vmem>>, %arg7: memref<32x256xf32, #tpu.memory_space<vmem>>) attributes {dimension_semantics = [#tpu.dimension_semantics<parallel>, #tpu.dimension_semantics<parallel>, #tpu.dimension_semantics<arbitrary>], iteration_bounds = array<i64: 1, 1, 9>, scalar_prefetch = 0 : i64, scratch_operands = 1 : i64, tpu.core_type = #tpu.core_type<tc>, window_params = [{transform_indices = @transform_0, window_bounds = array<i64: 32, 128>}, {transform_indices = @transform_1, window_bounds = array<i64: 128, 256>}, {transform_indices = @transform_2, window_bounds = array<i64: 1, 256>}, {transform_indices = @transform_3, window_bounds = array<i64: 32, 256>}]} {
    %c0_i32 = arith.constant 0 : i32
    %0 = arith.cmpi eq, %arg2, %c0_i32 : i32
    %1 = arith.extui %0 : i1 to i32
    %c0_i32_0 = arith.constant 0 : i32
    %2 = arith.cmpi ne, %1, %c0_i32_0 : i32
    scf.if %2 {
      %cst_9 = arith.constant 0.000000e+00 : f32
      %12 = vector.broadcast %cst_9 : f32 to vector<32x256xf32>
      %c0_10 = arith.constant 0 : index
      %c0_11 = arith.constant 0 : index
      %13 = vector.load %arg7[%c0_10, %c0_11] : memref<32x256xf32, #tpu.memory_space<vmem>>, vector<32x256xf32>
      tpu.vector_store %arg7[%c0_10, %c0_11], %12 {strides = array<i32>} : memref<32x256xf32, #tpu.memory_space<vmem>>, vector<32x256xf32>,
    } else {
    }
    %c0 = arith.constant 0 : index
    %c0_1 = arith.constant 0 : index
    %3 = vector.load %arg7[%c0, %c0_1] : memref<32x256xf32, #tpu.memory_space<vmem>>, vector<32x256xf32>
    %c0_2 = arith.constant 0 : index
    %c0_3 = arith.constant 0 : index
    %4 = vector.load %arg3[%c0_2, %c0_3] : memref<32x128xbf16, #tpu.memory_space<vmem>>, vector<32x128xbf16>
    %c0_4 = arith.constant 0 : index
    %c0_5 = arith.constant 0 : index
    %5 = vector.load %arg4[%c0_4, %c0_5] : memref<128x256xbf16, #tpu.memory_space<vmem>>, vector<128x256xbf16>
    %cst = arith.constant dense<0.000000e+00> : vector<32x256xf32>
    %6 = tpu.matmul %4, %5, %cst {dimension_numbers = #tpu.dot_dimension_numbers<[1], [0], [0], [1], [0, 0, 1, 1], [], []>} : vector<32x128xbf16>, vector<128x256xbf16>, vector<32x256xf32> -> vector<32x256xf32>
    %7 = arith.addf %3, %6 : vector<32x256xf32>
    %c0_6 = arith.constant 0 : index
    %c0_7 = arith.constant 0 : index
    %8 = vector.load %arg7[%c0_6, %c0_7] : memref<32x256xf32, #tpu.memory_space<vmem>>, vector<32x256xf32>
    tpu.vector_store %arg7[%c0_6, %c0_7], %7 {strides = array<i32>} : memref<32x256xf32, #tpu.memory_space<vmem>>, vector<32x256xf32>,
    %c8_i32 = arith.constant 8 : i32
    %9 = arith.cmpi eq, %arg2, %c8_i32 : i32
    %10 = arith.extui %9 : i1 to i32
    %c0_i32_8 = arith.constant 0 : i32
    %11 = arith.cmpi ne, %10, %c0_i32_8 : i32
    scf.if %11 {
      %c0_9 = arith.constant 0 : index
      %c0_10 = arith.constant 0 : index
      %12 = vector.load %arg7[%c0_9, %c0_10] : memref<32x256xf32, #tpu.memory_space<vmem>>, vector<32x256xf32>
      %c0_11 = arith.constant 0 : index
      %c0_12 = arith.constant 0 : index
      %13 = vector.load %arg5[%c0_11, %c0_12] : memref<1x256xf32, #tpu.memory_space<vmem>>, vector<1x256xf32>
      %14 = vector.broadcast %13 : vector<1x256xf32> to vector<32x256xf32>
      %15 = arith.addf %12, %14 : vector<32x256xf32>
      %c0_13 = arith.constant 0 : index
      %c0_14 = arith.constant 0 : index
      %16 = vector.load %arg6[%c0_13, %c0_14] : memref<32x256xf32, #tpu.memory_space<vmem>>, vector<32x256xf32>
      tpu.vector_store %arg6[%c0_13, %c0_14], %15 {strides = array<i32>} : memref<32x256xf32, #tpu.memory_space<vmem>>, vector<32x256xf32>,
    } else {
    }
    return
  }
  func.func @transform_0(%arg0: i32, %arg1: i32, %arg2: i32) -> (i32, i32) {
    %c0_i32 = arith.constant 0 : i32
    return %arg0, %arg2 : i32, i32
  }
  func.func @transform_1(%arg0: i32, %arg1: i32, %arg2: i32) -> (i32, i32) {
    %c0_i32 = arith.constant 0 : i32
    return %arg2, %arg1 : i32, i32
  }
  func.func @transform_2(%arg0: i32, %arg1: i32, %arg2: i32) -> (i32, i32) {
    %c0_i32 = arith.constant 0 : i32
    %c0_i32_0 = arith.constant 0 : i32
    return %c0_i32, %arg1 : i32, i32
  }
  func.func @transform_3(%arg0: i32, %arg1: i32, %arg2: i32) -> (i32, i32) {
    %c0_i32 = arith.constant 0 : i32
    return %arg0, %arg1 : i32, i32
  }
}

module attributes {stable_mosaic.version = 11 : i64} {
  func.func @_bn_stats_kernel(%arg0: i32, %arg1: memref<32x256xf32, #tpu.memory_space<vmem>>, %arg2: memref<2x256xf32, #tpu.memory_space<vmem>>, %arg3: memref<1x256xf32, #tpu.memory_space<vmem>>, %arg4: memref<1x256xf32, #tpu.memory_space<vmem>>) attributes {dimension_semantics = [#tpu.dimension_semantics<arbitrary>], iteration_bounds = array<i64: 1>, scalar_prefetch = 0 : i64, scratch_operands = 2 : i64, tpu.core_type = #tpu.core_type<tc>, window_params = [{transform_indices = @transform_0, window_bounds = array<i64: 32, 256>}, {pipeline_mode = #tpu.pipeline_mode<synchronous>, transform_indices = @transform_1, window_bounds = array<i64: 2, 256>}]} {
    %c0_i32 = arith.constant 0 : i32
    %0 = arith.cmpi eq, %arg0, %c0_i32 : i32
    %1 = arith.extui %0 : i1 to i32
    %c0_i32_0 = arith.constant 0 : i32
    %2 = arith.cmpi ne, %1, %c0_i32_0 : i32
    scf.if %2 {
      %cst_15 = arith.constant 0.000000e+00 : f32
      %26 = vector.broadcast %cst_15 : f32 to vector<1x256xf32>
      %c0_16 = arith.constant 0 : index
      %c0_17 = arith.constant 0 : index
      %27 = vector.load %arg3[%c0_16, %c0_17] : memref<1x256xf32, #tpu.memory_space<vmem>>, vector<1x256xf32>
      tpu.vector_store %arg3[%c0_16, %c0_17], %26 {strides = array<i32>} : memref<1x256xf32, #tpu.memory_space<vmem>>, vector<1x256xf32>,
      %cst_18 = arith.constant 0.000000e+00 : f32
      %28 = vector.broadcast %cst_18 : f32 to vector<1x256xf32>
      %c0_19 = arith.constant 0 : index
      %c0_20 = arith.constant 0 : index
      %29 = vector.load %arg4[%c0_19, %c0_20] : memref<1x256xf32, #tpu.memory_space<vmem>>, vector<1x256xf32>
      tpu.vector_store %arg4[%c0_19, %c0_20], %28 {strides = array<i32>} : memref<1x256xf32, #tpu.memory_space<vmem>>, vector<1x256xf32>,
    } else {
    }
    %c0 = arith.constant 0 : index
    %c0_1 = arith.constant 0 : index
    %3 = vector.load %arg1[%c0, %c0_1] : memref<32x256xf32, #tpu.memory_space<vmem>>, vector<32x256xf32>
    %4 = tpu.iota {dimensions = array<i32: 0>} : vector<32x256xi32>
    %c32_i32 = arith.constant 32 : i32
    %5 = arith.muli %arg0, %c32_i32 : i32
    %6 = vector.broadcast %5 : i32 to vector<32x256xi32>
    %7 = arith.addi %4, %6 : vector<32x256xi32>
    %c32_i32_2 = arith.constant 32 : i32
    %8 = vector.broadcast %c32_i32_2 : i32 to vector<32x256xi32>
    %9 = arith.cmpi slt, %7, %8 : vector<32x256xi32>
    %cst = arith.constant 0.000000e+00 : f32
    %10 = vector.broadcast %cst : f32 to vector<32x256xf32>
    %11 = arith.select %9, %3, %10 : vector<32x256xi1>, vector<32x256xf32>
    %c0_3 = arith.constant 0 : index
    %c0_4 = arith.constant 0 : index
    %12 = vector.load %arg3[%c0_3, %c0_4] : memref<1x256xf32, #tpu.memory_space<vmem>>, vector<1x256xf32>
    %cst_5 = arith.constant dense<0.000000e+00> : vector<256xf32>
    %13 = vector.multi_reduction <add>, %11, %cst_5 [0] : vector<32x256xf32> to vector<256xf32>
    %14 = vector.shape_cast %13 : vector<256xf32> to vector<1x256xf32>
    %15 = arith.addf %12, %14 : vector<1x256xf32>
    %c0_6 = arith.constant 0 : index
    %c0_7 = arith.constant 0 : index
    %16 = vector.load %arg3[%c0_6, %c0_7] : memref<1x256xf32, #tpu.memory_space<vmem>>, vector<1x256xf32>
    tpu.vector_store %arg3[%c0_6, %c0_7], %15 {strides = array<i32>} : memref<1x256xf32, #tpu.memory_space<vmem>>, vector<1x256xf32>,
    %c0_8 = arith.constant 0 : index
    %c0_9 = arith.constant 0 : index
    %17 = vector.load %arg4[%c0_8, %c0_9] : memref<1x256xf32, #tpu.memory_space<vmem>>, vector<1x256xf32>
    %18 = arith.mulf %11, %11 : vector<32x256xf32>
    %cst_10 = arith.constant dense<0.000000e+00> : vector<256xf32>
    %19 = vector.multi_reduction <add>, %18, %cst_10 [0] : vector<32x256xf32> to vector<256xf32>
    %20 = vector.shape_cast %19 : vector<256xf32> to vector<1x256xf32>
    %21 = arith.addf %17, %20 : vector<1x256xf32>
    %c0_11 = arith.constant 0 : index
    %c0_12 = arith.constant 0 : index
    %22 = vector.load %arg4[%c0_11, %c0_12] : memref<1x256xf32, #tpu.memory_space<vmem>>, vector<1x256xf32>
    tpu.vector_store %arg4[%c0_11, %c0_12], %21 {strides = array<i32>} : memref<1x256xf32, #tpu.memory_space<vmem>>, vector<1x256xf32>,
    %c0_i32_13 = arith.constant 0 : i32
    %23 = arith.cmpi eq, %arg0, %c0_i32_13 : i32
    %24 = arith.extui %23 : i1 to i32
    %c0_i32_14 = arith.constant 0 : i32
    %25 = arith.cmpi ne, %24, %c0_i32_14 : i32
    scf.if %25 {
      %c0_15 = arith.constant 0 : index
      %c0_16 = arith.constant 0 : index
      %26 = vector.load %arg3[%c0_15, %c0_16] : memref<1x256xf32, #tpu.memory_space<vmem>>, vector<1x256xf32>
      %c0_17 = arith.constant 0 : index
      %c0_18 = arith.constant 0 : index
      %27 = vector.load %arg2[%c0_17, %c0_18] : memref<2x256xf32, #tpu.memory_space<vmem>>, vector<1x256xf32>
      tpu.vector_store %arg2[%c0_17, %c0_18], %26 {strides = array<i32>} : memref<2x256xf32, #tpu.memory_space<vmem>>, vector<1x256xf32>,
      %c0_19 = arith.constant 0 : index
      %c0_20 = arith.constant 0 : index
      %28 = vector.load %arg4[%c0_19, %c0_20] : memref<1x256xf32, #tpu.memory_space<vmem>>, vector<1x256xf32>
      %c1 = arith.constant 1 : index
      %c0_21 = arith.constant 0 : index
      %29 = vector.load %arg2[%c1, %c0_21] : memref<2x256xf32, #tpu.memory_space<vmem>>, vector<1x256xf32>
      tpu.vector_store %arg2[%c1, %c0_21], %28 {strides = array<i32>} : memref<2x256xf32, #tpu.memory_space<vmem>>, vector<1x256xf32>,
    } else {
    }
    return
  }
  func.func @transform_0(%arg0: i32) -> (i32, i32) {
    %c0_i32 = arith.constant 0 : i32
    %c0_i32_0 = arith.constant 0 : i32
    return %arg0, %c0_i32 : i32, i32
  }
  func.func @transform_1(%arg0: i32) -> (i32, i32) {
    %c0_i32 = arith.constant 0 : i32
    %c0_i32_0 = arith.constant 0 : i32
    %c0_i32_1 = arith.constant 0 : i32
    return %c0_i32, %c0_i32_0 : i32, i32
  }
}

module attributes {stable_mosaic.version = 11 : i64} {
  func.func @_bn_apply_kernel(%arg0: i32, %arg1: memref<32x256xf32, #tpu.memory_space<vmem>>, %arg2: memref<2x256xf32, #tpu.memory_space<vmem>>, %arg3: memref<1x256xf32, #tpu.memory_space<vmem>>, %arg4: memref<1x256xf32, #tpu.memory_space<vmem>>, %arg5: memref<32x256xf32, #tpu.memory_space<vmem>>) attributes {dimension_semantics = [#tpu.dimension_semantics<parallel>], iteration_bounds = array<i64: 1>, scalar_prefetch = 0 : i64, scratch_operands = 0 : i64, tpu.core_type = #tpu.core_type<tc>, window_params = [{transform_indices = @transform_0, window_bounds = array<i64: 32, 256>}, {pipeline_mode = #tpu.pipeline_mode<synchronous>, transform_indices = @transform_1, window_bounds = array<i64: 2, 256>}, {pipeline_mode = #tpu.pipeline_mode<synchronous>, transform_indices = @transform_2, window_bounds = array<i64: 1, 256>}, {pipeline_mode = #tpu.pipeline_mode<synchronous>, transform_indices = @transform_3, window_bounds = array<i64: 1, 256>}, {transform_indices = @transform_4, window_bounds = array<i64: 32, 256>}]} {
    %c0 = arith.constant 0 : index
    %c0_0 = arith.constant 0 : index
    %0 = vector.load %arg1[%c0, %c0_0] : memref<32x256xf32, #tpu.memory_space<vmem>>, vector<32x256xf32>
    %c0_1 = arith.constant 0 : index
    %c0_2 = arith.constant 0 : index
    %1 = vector.load %arg2[%c0_1, %c0_2] : memref<2x256xf32, #tpu.memory_space<vmem>>, vector<1x256xf32>
    %cst = arith.constant 3.125000e-02 : f32
    %2 = vector.broadcast %cst : f32 to vector<1x256xf32>
    %3 = arith.mulf %1, %2 : vector<1x256xf32>
    %c1 = arith.constant 1 : index
    %c0_3 = arith.constant 0 : index
    %4 = vector.load %arg2[%c1, %c0_3] : memref<2x256xf32, #tpu.memory_space<vmem>>, vector<1x256xf32>
    %cst_4 = arith.constant 3.125000e-02 : f32
    %5 = vector.broadcast %cst_4 : f32 to vector<1x256xf32>
    %6 = arith.mulf %4, %5 : vector<1x256xf32>
    %7 = arith.mulf %3, %3 : vector<1x256xf32>
    %8 = arith.subf %6, %7 : vector<1x256xf32>
    %c0_5 = arith.constant 0 : index
    %c0_6 = arith.constant 0 : index
    %9 = vector.load %arg3[%c0_5, %c0_6] : memref<1x256xf32, #tpu.memory_space<vmem>>, vector<1x256xf32>
    %cst_7 = arith.constant 9.99999974E-6 : f32
    %10 = vector.broadcast %cst_7 : f32 to vector<1x256xf32>
    %11 = arith.addf %8, %10 : vector<1x256xf32>
    %12 = math.rsqrt %11 : vector<1x256xf32>
    %13 = arith.mulf %9, %12 : vector<1x256xf32>
    %c0_8 = arith.constant 0 : index
    %c0_9 = arith.constant 0 : index
    %14 = vector.load %arg4[%c0_8, %c0_9] : memref<1x256xf32, #tpu.memory_space<vmem>>, vector<1x256xf32>
    %15 = arith.mulf %3, %13 : vector<1x256xf32>
    %16 = arith.subf %14, %15 : vector<1x256xf32>
    %17 = vector.broadcast %13 : vector<1x256xf32> to vector<32x256xf32>
    %18 = arith.mulf %0, %17 : vector<32x256xf32>
    %19 = vector.broadcast %16 : vector<1x256xf32> to vector<32x256xf32>
    %20 = arith.addf %18, %19 : vector<32x256xf32>
    %cst_10 = arith.constant 0.000000e+00 : f32
    %21 = vector.broadcast %cst_10 : f32 to vector<32x256xf32>
    %22 = arith.cmpf ogt, %20, %21 : vector<32x256xf32>
    %cst_11 = arith.constant 2.000000e-01 : f32
    %23 = vector.broadcast %cst_11 : f32 to vector<32x256xf32>
    %24 = arith.mulf %23, %20 : vector<32x256xf32>
    %25 = arith.select %22, %20, %24 : vector<32x256xi1>, vector<32x256xf32>
    %c0_12 = arith.constant 0 : index
    %c0_13 = arith.constant 0 : index
    %26 = vector.load %arg5[%c0_12, %c0_13] : memref<32x256xf32, #tpu.memory_space<vmem>>, vector<32x256xf32>
    tpu.vector_store %arg5[%c0_12, %c0_13], %25 {strides = array<i32>} : memref<32x256xf32, #tpu.memory_space<vmem>>, vector<32x256xf32>,
    return
  }
  func.func @transform_0(%arg0: i32) -> (i32, i32) {
    %c0_i32 = arith.constant 0 : i32
    %c0_i32_0 = arith.constant 0 : i32
    return %arg0, %c0_i32 : i32, i32
  }
  func.func @transform_1(%arg0: i32) -> (i32, i32) {
    %c0_i32 = arith.constant 0 : i32
    %c0_i32_0 = arith.constant 0 : i32
    %c0_i32_1 = arith.constant 0 : i32
    return %c0_i32, %c0_i32_0 : i32, i32
  }
  func.func @transform_2(%arg0: i32) -> (i32, i32) {
    %c0_i32 = arith.constant 0 : i32
    %c0_i32_0 = arith.constant 0 : i32
    %c0_i32_1 = arith.constant 0 : i32
    return %c0_i32, %c0_i32_0 : i32, i32
  }
  func.func @transform_3(%arg0: i32) -> (i32, i32) {
    %c0_i32 = arith.constant 0 : i32
    %c0_i32_0 = arith.constant 0 : i32
    %c0_i32_1 = arith.constant 0 : i32
    return %c0_i32, %c0_i32_0 : i32, i32
  }
  func.func @transform_4(%arg0: i32) -> (i32, i32) {
    %c0_i32 = arith.constant 0 : i32
    %c0_i32_0 = arith.constant 0 : i32
    return %arg0, %c0_i32 : i32, i32
  }
}

module attributes {stable_mosaic.version = 11 : i64} {
  func.func @_bn_stats_kernel(%arg0: i32, %arg1: memref<8x512xf32, #tpu.memory_space<vmem>>, %arg2: memref<2x512xf32, #tpu.memory_space<vmem>>, %arg3: memref<1x512xf32, #tpu.memory_space<vmem>>, %arg4: memref<1x512xf32, #tpu.memory_space<vmem>>) attributes {dimension_semantics = [#tpu.dimension_semantics<arbitrary>], iteration_bounds = array<i64: 1>, scalar_prefetch = 0 : i64, scratch_operands = 2 : i64, tpu.core_type = #tpu.core_type<tc>, window_params = [{transform_indices = @transform_0, window_bounds = array<i64: 8, 512>}, {pipeline_mode = #tpu.pipeline_mode<synchronous>, transform_indices = @transform_1, window_bounds = array<i64: 2, 512>}]} {
    %c0_i32 = arith.constant 0 : i32
    %0 = arith.cmpi eq, %arg0, %c0_i32 : i32
    %1 = arith.extui %0 : i1 to i32
    %c0_i32_0 = arith.constant 0 : i32
    %2 = arith.cmpi ne, %1, %c0_i32_0 : i32
    scf.if %2 {
      %cst_15 = arith.constant 0.000000e+00 : f32
      %26 = vector.broadcast %cst_15 : f32 to vector<1x512xf32>
      %c0_16 = arith.constant 0 : index
      %c0_17 = arith.constant 0 : index
      %27 = vector.load %arg3[%c0_16, %c0_17] : memref<1x512xf32, #tpu.memory_space<vmem>>, vector<1x512xf32>
      tpu.vector_store %arg3[%c0_16, %c0_17], %26 {strides = array<i32>} : memref<1x512xf32, #tpu.memory_space<vmem>>, vector<1x512xf32>,
      %cst_18 = arith.constant 0.000000e+00 : f32
      %28 = vector.broadcast %cst_18 : f32 to vector<1x512xf32>
      %c0_19 = arith.constant 0 : index
      %c0_20 = arith.constant 0 : index
      %29 = vector.load %arg4[%c0_19, %c0_20] : memref<1x512xf32, #tpu.memory_space<vmem>>, vector<1x512xf32>
      tpu.vector_store %arg4[%c0_19, %c0_20], %28 {strides = array<i32>} : memref<1x512xf32, #tpu.memory_space<vmem>>, vector<1x512xf32>,
    } else {
    }
    %c0 = arith.constant 0 : index
    %c0_1 = arith.constant 0 : index
    %3 = vector.load %arg1[%c0, %c0_1] : memref<8x512xf32, #tpu.memory_space<vmem>>, vector<8x512xf32>
    %4 = tpu.iota {dimensions = array<i32: 0>} : vector<8x512xi32>
    %c8_i32 = arith.constant 8 : i32
    %5 = arith.muli %arg0, %c8_i32 : i32
    %6 = vector.broadcast %5 : i32 to vector<8x512xi32>
    %7 = arith.addi %4, %6 : vector<8x512xi32>
    %c8_i32_2 = arith.constant 8 : i32
    %8 = vector.broadcast %c8_i32_2 : i32 to vector<8x512xi32>
    %9 = arith.cmpi slt, %7, %8 : vector<8x512xi32>
    %cst = arith.constant 0.000000e+00 : f32
    %10 = vector.broadcast %cst : f32 to vector<8x512xf32>
    %11 = arith.select %9, %3, %10 : vector<8x512xi1>, vector<8x512xf32>
    %c0_3 = arith.constant 0 : index
    %c0_4 = arith.constant 0 : index
    %12 = vector.load %arg3[%c0_3, %c0_4] : memref<1x512xf32, #tpu.memory_space<vmem>>, vector<1x512xf32>
    %cst_5 = arith.constant dense<0.000000e+00> : vector<512xf32>
    %13 = vector.multi_reduction <add>, %11, %cst_5 [0] : vector<8x512xf32> to vector<512xf32>
    %14 = vector.shape_cast %13 : vector<512xf32> to vector<1x512xf32>
    %15 = arith.addf %12, %14 : vector<1x512xf32>
    %c0_6 = arith.constant 0 : index
    %c0_7 = arith.constant 0 : index
    %16 = vector.load %arg3[%c0_6, %c0_7] : memref<1x512xf32, #tpu.memory_space<vmem>>, vector<1x512xf32>
    tpu.vector_store %arg3[%c0_6, %c0_7], %15 {strides = array<i32>} : memref<1x512xf32, #tpu.memory_space<vmem>>, vector<1x512xf32>,
    %c0_8 = arith.constant 0 : index
    %c0_9 = arith.constant 0 : index
    %17 = vector.load %arg4[%c0_8, %c0_9] : memref<1x512xf32, #tpu.memory_space<vmem>>, vector<1x512xf32>
    %18 = arith.mulf %11, %11 : vector<8x512xf32>
    %cst_10 = arith.constant dense<0.000000e+00> : vector<512xf32>
    %19 = vector.multi_reduction <add>, %18, %cst_10 [0] : vector<8x512xf32> to vector<512xf32>
    %20 = vector.shape_cast %19 : vector<512xf32> to vector<1x512xf32>
    %21 = arith.addf %17, %20 : vector<1x512xf32>
    %c0_11 = arith.constant 0 : index
    %c0_12 = arith.constant 0 : index
    %22 = vector.load %arg4[%c0_11, %c0_12] : memref<1x512xf32, #tpu.memory_space<vmem>>, vector<1x512xf32>
    tpu.vector_store %arg4[%c0_11, %c0_12], %21 {strides = array<i32>} : memref<1x512xf32, #tpu.memory_space<vmem>>, vector<1x512xf32>,
    %c0_i32_13 = arith.constant 0 : i32
    %23 = arith.cmpi eq, %arg0, %c0_i32_13 : i32
    %24 = arith.extui %23 : i1 to i32
    %c0_i32_14 = arith.constant 0 : i32
    %25 = arith.cmpi ne, %24, %c0_i32_14 : i32
    scf.if %25 {
      %c0_15 = arith.constant 0 : index
      %c0_16 = arith.constant 0 : index
      %26 = vector.load %arg3[%c0_15, %c0_16] : memref<1x512xf32, #tpu.memory_space<vmem>>, vector<1x512xf32>
      %c0_17 = arith.constant 0 : index
      %c0_18 = arith.constant 0 : index
      %27 = vector.load %arg2[%c0_17, %c0_18] : memref<2x512xf32, #tpu.memory_space<vmem>>, vector<1x512xf32>
      tpu.vector_store %arg2[%c0_17, %c0_18], %26 {strides = array<i32>} : memref<2x512xf32, #tpu.memory_space<vmem>>, vector<1x512xf32>,
      %c0_19 = arith.constant 0 : index
      %c0_20 = arith.constant 0 : index
      %28 = vector.load %arg4[%c0_19, %c0_20] : memref<1x512xf32, #tpu.memory_space<vmem>>, vector<1x512xf32>
      %c1 = arith.constant 1 : index
      %c0_21 = arith.constant 0 : index
      %29 = vector.load %arg2[%c1, %c0_21] : memref<2x512xf32, #tpu.memory_space<vmem>>, vector<1x512xf32>
      tpu.vector_store %arg2[%c1, %c0_21], %28 {strides = array<i32>} : memref<2x512xf32, #tpu.memory_space<vmem>>, vector<1x512xf32>,
    } else {
    }
    return
  }
  func.func @transform_0(%arg0: i32) -> (i32, i32) {
    %c0_i32 = arith.constant 0 : i32
    %c0_i32_0 = arith.constant 0 : i32
    return %arg0, %c0_i32 : i32, i32
  }
  func.func @transform_1(%arg0: i32) -> (i32, i32) {
    %c0_i32 = arith.constant 0 : i32
    %c0_i32_0 = arith.constant 0 : i32
    %c0_i32_1 = arith.constant 0 : i32
    return %c0_i32, %c0_i32_0 : i32, i32
  }
}

module attributes {stable_mosaic.version = 11 : i64} {
  func.func @_matmul_bias_kernel(%arg0: i32, %arg1: i32, %arg2: i32, %arg3: memref<8x256xbf16, #tpu.memory_space<vmem>>, %arg4: memref<256x256xbf16, #tpu.memory_space<vmem>>, %arg5: memref<1x256xf32, #tpu.memory_space<vmem>>, %arg6: memref<8x256xf32, #tpu.memory_space<vmem>>, %arg7: memref<8x256xf32, #tpu.memory_space<vmem>>) attributes {dimension_semantics = [#tpu.dimension_semantics<parallel>, #tpu.dimension_semantics<parallel>, #tpu.dimension_semantics<arbitrary>], iteration_bounds = array<i64: 1, 2, 9>, scalar_prefetch = 0 : i64, scratch_operands = 1 : i64, tpu.core_type = #tpu.core_type<tc>, window_params = [{transform_indices = @transform_0, window_bounds = array<i64: 8, 256>}, {transform_indices = @transform_1, window_bounds = array<i64: 256, 256>}, {transform_indices = @transform_2, window_bounds = array<i64: 1, 256>}, {transform_indices = @transform_3, window_bounds = array<i64: 8, 256>}]} {
    %c0_i32 = arith.constant 0 : i32
    %0 = arith.cmpi eq, %arg2, %c0_i32 : i32
    %1 = arith.extui %0 : i1 to i32
    %c0_i32_0 = arith.constant 0 : i32
    %2 = arith.cmpi ne, %1, %c0_i32_0 : i32
    scf.if %2 {
      %cst_9 = arith.constant 0.000000e+00 : f32
      %12 = vector.broadcast %cst_9 : f32 to vector<8x256xf32>
      %c0_10 = arith.constant 0 : index
      %c0_11 = arith.constant 0 : index
      %13 = vector.load %arg7[%c0_10, %c0_11] : memref<8x256xf32, #tpu.memory_space<vmem>>, vector<8x256xf32>
      tpu.vector_store %arg7[%c0_10, %c0_11], %12 {strides = array<i32>} : memref<8x256xf32, #tpu.memory_space<vmem>>, vector<8x256xf32>,
    } else {
    }
    %c0 = arith.constant 0 : index
    %c0_1 = arith.constant 0 : index
    %3 = vector.load %arg7[%c0, %c0_1] : memref<8x256xf32, #tpu.memory_space<vmem>>, vector<8x256xf32>
    %c0_2 = arith.constant 0 : index
    %c0_3 = arith.constant 0 : index
    %4 = vector.load %arg3[%c0_2, %c0_3] : memref<8x256xbf16, #tpu.memory_space<vmem>>, vector<8x256xbf16>
    %c0_4 = arith.constant 0 : index
    %c0_5 = arith.constant 0 : index
    %5 = vector.load %arg4[%c0_4, %c0_5] : memref<256x256xbf16, #tpu.memory_space<vmem>>, vector<256x256xbf16>
    %cst = arith.constant dense<0.000000e+00> : vector<8x256xf32>
    %6 = tpu.matmul %4, %5, %cst {dimension_numbers = #tpu.dot_dimension_numbers<[1], [0], [0], [1], [0, 0, 1, 1], [], []>} : vector<8x256xbf16>, vector<256x256xbf16>, vector<8x256xf32> -> vector<8x256xf32>
    %7 = arith.addf %3, %6 : vector<8x256xf32>
    %c0_6 = arith.constant 0 : index
    %c0_7 = arith.constant 0 : index
    %8 = vector.load %arg7[%c0_6, %c0_7] : memref<8x256xf32, #tpu.memory_space<vmem>>, vector<8x256xf32>
    tpu.vector_store %arg7[%c0_6, %c0_7], %7 {strides = array<i32>} : memref<8x256xf32, #tpu.memory_space<vmem>>, vector<8x256xf32>,
    %c8_i32 = arith.constant 8 : i32
    %9 = arith.cmpi eq, %arg2, %c8_i32 : i32
    %10 = arith.extui %9 : i1 to i32
    %c0_i32_8 = arith.constant 0 : i32
    %11 = arith.cmpi ne, %10, %c0_i32_8 : i32
    scf.if %11 {
      %c0_9 = arith.constant 0 : index
      %c0_10 = arith.constant 0 : index
      %12 = vector.load %arg7[%c0_9, %c0_10] : memref<8x256xf32, #tpu.memory_space<vmem>>, vector<8x256xf32>
      %c0_11 = arith.constant 0 : index
      %c0_12 = arith.constant 0 : index
      %13 = vector.load %arg5[%c0_11, %c0_12] : memref<1x256xf32, #tpu.memory_space<vmem>>, vector<1x256xf32>
      %14 = vector.broadcast %13 : vector<1x256xf32> to vector<8x256xf32>
      %15 = arith.addf %12, %14 : vector<8x256xf32>
      %c0_13 = arith.constant 0 : index
      %c0_14 = arith.constant 0 : index
      %16 = vector.load %arg6[%c0_13, %c0_14] : memref<8x256xf32, #tpu.memory_space<vmem>>, vector<8x256xf32>
      tpu.vector_store %arg6[%c0_13, %c0_14], %15 {strides = array<i32>} : memref<8x256xf32, #tpu.memory_space<vmem>>, vector<8x256xf32>,
    } else {
    }
    return
  }
  func.func @transform_0(%arg0: i32, %arg1: i32, %arg2: i32) -> (i32, i32) {
    %c0_i32 = arith.constant 0 : i32
    return %arg0, %arg2 : i32, i32
  }
  func.func @transform_1(%arg0: i32, %arg1: i32, %arg2: i32) -> (i32, i32) {
    %c0_i32 = arith.constant 0 : i32
    return %arg2, %arg1 : i32, i32
  }
  func.func @transform_2(%arg0: i32, %arg1: i32, %arg2: i32) -> (i32, i32) {
    %c0_i32 = arith.constant 0 : i32
    %c0_i32_0 = arith.constant 0 : i32
    return %c0_i32, %arg1 : i32, i32
  }
  func.func @transform_3(%arg0: i32, %arg1: i32, %arg2: i32) -> (i32, i32) {
    %c0_i32 = arith.constant 0 : i32
    return %arg0, %arg1 : i32, i32
  }
}

module attributes {stable_mosaic.version = 11 : i64} {
  func.func @_bn_apply_kernel(%arg0: i32, %arg1: memref<8x512xf32, #tpu.memory_space<vmem>>, %arg2: memref<2x512xf32, #tpu.memory_space<vmem>>, %arg3: memref<1x512xf32, #tpu.memory_space<vmem>>, %arg4: memref<1x512xf32, #tpu.memory_space<vmem>>, %arg5: memref<8x512xf32, #tpu.memory_space<vmem>>) attributes {dimension_semantics = [#tpu.dimension_semantics<parallel>], iteration_bounds = array<i64: 1>, scalar_prefetch = 0 : i64, scratch_operands = 0 : i64, tpu.core_type = #tpu.core_type<tc>, window_params = [{transform_indices = @transform_0, window_bounds = array<i64: 8, 512>}, {pipeline_mode = #tpu.pipeline_mode<synchronous>, transform_indices = @transform_1, window_bounds = array<i64: 2, 512>}, {pipeline_mode = #tpu.pipeline_mode<synchronous>, transform_indices = @transform_2, window_bounds = array<i64: 1, 512>}, {pipeline_mode = #tpu.pipeline_mode<synchronous>, transform_indices = @transform_3, window_bounds = array<i64: 1, 512>}, {transform_indices = @transform_4, window_bounds = array<i64: 8, 512>}]} {
    %c0 = arith.constant 0 : index
    %c0_0 = arith.constant 0 : index
    %0 = vector.load %arg1[%c0, %c0_0] : memref<8x512xf32, #tpu.memory_space<vmem>>, vector<8x512xf32>
    %c0_1 = arith.constant 0 : index
    %c0_2 = arith.constant 0 : index
    %1 = vector.load %arg2[%c0_1, %c0_2] : memref<2x512xf32, #tpu.memory_space<vmem>>, vector<1x512xf32>
    %cst = arith.constant 1.250000e-01 : f32
    %2 = vector.broadcast %cst : f32 to vector<1x512xf32>
    %3 = arith.mulf %1, %2 : vector<1x512xf32>
    %c1 = arith.constant 1 : index
    %c0_3 = arith.constant 0 : index
    %4 = vector.load %arg2[%c1, %c0_3] : memref<2x512xf32, #tpu.memory_space<vmem>>, vector<1x512xf32>
    %cst_4 = arith.constant 1.250000e-01 : f32
    %5 = vector.broadcast %cst_4 : f32 to vector<1x512xf32>
    %6 = arith.mulf %4, %5 : vector<1x512xf32>
    %7 = arith.mulf %3, %3 : vector<1x512xf32>
    %8 = arith.subf %6, %7 : vector<1x512xf32>
    %c0_5 = arith.constant 0 : index
    %c0_6 = arith.constant 0 : index
    %9 = vector.load %arg3[%c0_5, %c0_6] : memref<1x512xf32, #tpu.memory_space<vmem>>, vector<1x512xf32>
    %cst_7 = arith.constant 9.99999974E-6 : f32
    %10 = vector.broadcast %cst_7 : f32 to vector<1x512xf32>
    %11 = arith.addf %8, %10 : vector<1x512xf32>
    %12 = math.rsqrt %11 : vector<1x512xf32>
    %13 = arith.mulf %9, %12 : vector<1x512xf32>
    %c0_8 = arith.constant 0 : index
    %c0_9 = arith.constant 0 : index
    %14 = vector.load %arg4[%c0_8, %c0_9] : memref<1x512xf32, #tpu.memory_space<vmem>>, vector<1x512xf32>
    %15 = arith.mulf %3, %13 : vector<1x512xf32>
    %16 = arith.subf %14, %15 : vector<1x512xf32>
    %17 = vector.broadcast %13 : vector<1x512xf32> to vector<8x512xf32>
    %18 = arith.mulf %0, %17 : vector<8x512xf32>
    %19 = vector.broadcast %16 : vector<1x512xf32> to vector<8x512xf32>
    %20 = arith.addf %18, %19 : vector<8x512xf32>
    %cst_10 = arith.constant 0.000000e+00 : f32
    %21 = vector.broadcast %cst_10 : f32 to vector<8x512xf32>
    %22 = arith.cmpf ogt, %20, %21 : vector<8x512xf32>
    %cst_11 = arith.constant 2.000000e-01 : f32
    %23 = vector.broadcast %cst_11 : f32 to vector<8x512xf32>
    %24 = arith.mulf %23, %20 : vector<8x512xf32>
    %25 = arith.select %22, %20, %24 : vector<8x512xi1>, vector<8x512xf32>
    %c0_12 = arith.constant 0 : index
    %c0_13 = arith.constant 0 : index
    %26 = vector.load %arg5[%c0_12, %c0_13] : memref<8x512xf32, #tpu.memory_space<vmem>>, vector<8x512xf32>
    tpu.vector_store %arg5[%c0_12, %c0_13], %25 {strides = array<i32>} : memref<8x512xf32, #tpu.memory_space<vmem>>, vector<8x512xf32>,
    return
  }
  func.func @transform_0(%arg0: i32) -> (i32, i32) {
    %c0_i32 = arith.constant 0 : i32
    %c0_i32_0 = arith.constant 0 : i32
    return %arg0, %c0_i32 : i32, i32
  }
  func.func @transform_1(%arg0: i32) -> (i32, i32) {
    %c0_i32 = arith.constant 0 : i32
    %c0_i32_0 = arith.constant 0 : i32
    %c0_i32_1 = arith.constant 0 : i32
    return %c0_i32, %c0_i32_0 : i32, i32
  }
  func.func @transform_2(%arg0: i32) -> (i32, i32) {
    %c0_i32 = arith.constant 0 : i32
    %c0_i32_0 = arith.constant 0 : i32
    %c0_i32_1 = arith.constant 0 : i32
    return %c0_i32, %c0_i32_0 : i32, i32
  }
  func.func @transform_3(%arg0: i32) -> (i32, i32) {
    %c0_i32 = arith.constant 0 : i32
    %c0_i32_0 = arith.constant 0 : i32
    %c0_i32_1 = arith.constant 0 : i32
    return %c0_i32, %c0_i32_0 : i32, i32
  }
  func.func @transform_4(%arg0: i32) -> (i32, i32) {
    %c0_i32 = arith.constant 0 : i32
    %c0_i32_0 = arith.constant 0 : i32
    return %arg0, %c0_i32 : i32, i32
  }
}

module attributes {stable_mosaic.version = 11 : i64} {
  func.func @_matmul_bias_kernel(%arg0: i32, %arg1: i32, %arg2: i32, %arg3: memref<8x256xbf16, #tpu.memory_space<vmem>>, %arg4: memref<256x256xbf16, #tpu.memory_space<vmem>>, %arg5: memref<1x256xf32, #tpu.memory_space<vmem>>, %arg6: memref<8x256xf32, #tpu.memory_space<vmem>>, %arg7: memref<8x256xf32, #tpu.memory_space<vmem>>) attributes {dimension_semantics = [#tpu.dimension_semantics<parallel>, #tpu.dimension_semantics<parallel>, #tpu.dimension_semantics<arbitrary>], iteration_bounds = array<i64: 1, 4, 18>, scalar_prefetch = 0 : i64, scratch_operands = 1 : i64, tpu.core_type = #tpu.core_type<tc>, window_params = [{transform_indices = @transform_0, window_bounds = array<i64: 8, 256>}, {transform_indices = @transform_1, window_bounds = array<i64: 256, 256>}, {transform_indices = @transform_2, window_bounds = array<i64: 1, 256>}, {transform_indices = @transform_3, window_bounds = array<i64: 8, 256>}]} {
    %c0_i32 = arith.constant 0 : i32
    %0 = arith.cmpi eq, %arg2, %c0_i32 : i32
    %1 = arith.extui %0 : i1 to i32
    %c0_i32_0 = arith.constant 0 : i32
    %2 = arith.cmpi ne, %1, %c0_i32_0 : i32
    scf.if %2 {
      %cst_9 = arith.constant 0.000000e+00 : f32
      %12 = vector.broadcast %cst_9 : f32 to vector<8x256xf32>
      %c0_10 = arith.constant 0 : index
      %c0_11 = arith.constant 0 : index
      %13 = vector.load %arg7[%c0_10, %c0_11] : memref<8x256xf32, #tpu.memory_space<vmem>>, vector<8x256xf32>
      tpu.vector_store %arg7[%c0_10, %c0_11], %12 {strides = array<i32>} : memref<8x256xf32, #tpu.memory_space<vmem>>, vector<8x256xf32>,
    } else {
    }
    %c0 = arith.constant 0 : index
    %c0_1 = arith.constant 0 : index
    %3 = vector.load %arg7[%c0, %c0_1] : memref<8x256xf32, #tpu.memory_space<vmem>>, vector<8x256xf32>
    %c0_2 = arith.constant 0 : index
    %c0_3 = arith.constant 0 : index
    %4 = vector.load %arg3[%c0_2, %c0_3] : memref<8x256xbf16, #tpu.memory_space<vmem>>, vector<8x256xbf16>
    %c0_4 = arith.constant 0 : index
    %c0_5 = arith.constant 0 : index
    %5 = vector.load %arg4[%c0_4, %c0_5] : memref<256x256xbf16, #tpu.memory_space<vmem>>, vector<256x256xbf16>
    %cst = arith.constant dense<0.000000e+00> : vector<8x256xf32>
    %6 = tpu.matmul %4, %5, %cst {dimension_numbers = #tpu.dot_dimension_numbers<[1], [0], [0], [1], [0, 0, 1, 1], [], []>} : vector<8x256xbf16>, vector<256x256xbf16>, vector<8x256xf32> -> vector<8x256xf32>
    %7 = arith.addf %3, %6 : vector<8x256xf32>
    %c0_6 = arith.constant 0 : index
    %c0_7 = arith.constant 0 : index
    %8 = vector.load %arg7[%c0_6, %c0_7] : memref<8x256xf32, #tpu.memory_space<vmem>>, vector<8x256xf32>
    tpu.vector_store %arg7[%c0_6, %c0_7], %7 {strides = array<i32>} : memref<8x256xf32, #tpu.memory_space<vmem>>, vector<8x256xf32>,
    %c17_i32 = arith.constant 17 : i32
    %9 = arith.cmpi eq, %arg2, %c17_i32 : i32
    %10 = arith.extui %9 : i1 to i32
    %c0_i32_8 = arith.constant 0 : i32
    %11 = arith.cmpi ne, %10, %c0_i32_8 : i32
    scf.if %11 {
      %c0_9 = arith.constant 0 : index
      %c0_10 = arith.constant 0 : index
      %12 = vector.load %arg7[%c0_9, %c0_10] : memref<8x256xf32, #tpu.memory_space<vmem>>, vector<8x256xf32>
      %c0_11 = arith.constant 0 : index
      %c0_12 = arith.constant 0 : index
      %13 = vector.load %arg5[%c0_11, %c0_12] : memref<1x256xf32, #tpu.memory_space<vmem>>, vector<1x256xf32>
      %14 = vector.broadcast %13 : vector<1x256xf32> to vector<8x256xf32>
      %15 = arith.addf %12, %14 : vector<8x256xf32>
      %c0_13 = arith.constant 0 : index
      %c0_14 = arith.constant 0 : index
      %16 = vector.load %arg6[%c0_13, %c0_14] : memref<8x256xf32, #tpu.memory_space<vmem>>, vector<8x256xf32>
      tpu.vector_store %arg6[%c0_13, %c0_14], %15 {strides = array<i32>} : memref<8x256xf32, #tpu.memory_space<vmem>>, vector<8x256xf32>,
    } else {
    }
    return
  }
  func.func @transform_0(%arg0: i32, %arg1: i32, %arg2: i32) -> (i32, i32) {
    %c0_i32 = arith.constant 0 : i32
    return %arg0, %arg2 : i32, i32
  }
  func.func @transform_1(%arg0: i32, %arg1: i32, %arg2: i32) -> (i32, i32) {
    %c0_i32 = arith.constant 0 : i32
    return %arg2, %arg1 : i32, i32
  }
  func.func @transform_2(%arg0: i32, %arg1: i32, %arg2: i32) -> (i32, i32) {
    %c0_i32 = arith.constant 0 : i32
    %c0_i32_0 = arith.constant 0 : i32
    return %c0_i32, %arg1 : i32, i32
  }
  func.func @transform_3(%arg0: i32, %arg1: i32, %arg2: i32) -> (i32, i32) {
    %c0_i32 = arith.constant 0 : i32
    return %arg0, %arg1 : i32, i32
  }
}

module attributes {stable_mosaic.version = 11 : i64} {
  func.func @_bn_stats_kernel(%arg0: i32, %arg1: memref<8x1024xf32, #tpu.memory_space<vmem>>, %arg2: memref<2x1024xf32, #tpu.memory_space<vmem>>, %arg3: memref<1x1024xf32, #tpu.memory_space<vmem>>, %arg4: memref<1x1024xf32, #tpu.memory_space<vmem>>) attributes {dimension_semantics = [#tpu.dimension_semantics<arbitrary>], iteration_bounds = array<i64: 1>, scalar_prefetch = 0 : i64, scratch_operands = 2 : i64, tpu.core_type = #tpu.core_type<tc>, window_params = [{transform_indices = @transform_0, window_bounds = array<i64: 8, 1024>}, {pipeline_mode = #tpu.pipeline_mode<synchronous>, transform_indices = @transform_1, window_bounds = array<i64: 2, 1024>}]} {
    %c0_i32 = arith.constant 0 : i32
    %0 = arith.cmpi eq, %arg0, %c0_i32 : i32
    %1 = arith.extui %0 : i1 to i32
    %c0_i32_0 = arith.constant 0 : i32
    %2 = arith.cmpi ne, %1, %c0_i32_0 : i32
    scf.if %2 {
      %cst_14 = arith.constant 0.000000e+00 : f32
      %26 = vector.broadcast %cst_14 : f32 to vector<1x1024xf32>
      %c0_15 = arith.constant 0 : index
      %c0_16 = arith.constant 0 : index
      %27 = vector.load %arg3[%c0_15, %c0_16] : memref<1x1024xf32, #tpu.memory_space<vmem>>, vector<1x1024xf32>
      tpu.vector_store %arg3[%c0_15, %c0_16], %26 {strides = array<i32>} : memref<1x1024xf32, #tpu.memory_space<vmem>>, vector<1x1024xf32>,
      %cst_17 = arith.constant 0.000000e+00 : f32
      %28 = vector.broadcast %cst_17 : f32 to vector<1x1024xf32>
      %c0_18 = arith.constant 0 : index
      %c0_19 = arith.constant 0 : index
      %29 = vector.load %arg4[%c0_18, %c0_19] : memref<1x1024xf32, #tpu.memory_space<vmem>>, vector<1x1024xf32>
      tpu.vector_store %arg4[%c0_18, %c0_19], %28 {strides = array<i32>} : memref<1x1024xf32, #tpu.memory_space<vmem>>, vector<1x1024xf32>,
    } else {
    }
    %c0 = arith.constant 0 : index
    %c0_1 = arith.constant 0 : index
    %3 = vector.load %arg1[%c0, %c0_1] : memref<8x1024xf32, #tpu.memory_space<vmem>>, vector<8x1024xf32>
    %4 = tpu.iota {dimensions = array<i32: 0>} : vector<8x1024xi32>
    %c8_i32 = arith.constant 8 : i32
    %5 = arith.muli %arg0, %c8_i32 : i32
    %6 = vector.broadcast %5 : i32 to vector<8x1024xi32>
    %7 = arith.addi %4, %6 : vector<8x1024xi32>
    %c2_i32 = arith.constant 2 : i32
    %8 = vector.broadcast %c2_i32 : i32 to vector<8x1024xi32>
    %9 = arith.cmpi slt, %7, %8 : vector<8x1024xi32>
    %cst = arith.constant 0.000000e+00 : f32
    %10 = vector.broadcast %cst : f32 to vector<8x1024xf32>
    %11 = arith.select %9, %3, %10 : vector<8x1024xi1>, vector<8x1024xf32>
    %c0_2 = arith.constant 0 : index
    %c0_3 = arith.constant 0 : index
    %12 = vector.load %arg3[%c0_2, %c0_3] : memref<1x1024xf32, #tpu.memory_space<vmem>>, vector<1x1024xf32>
    %cst_4 = arith.constant dense<0.000000e+00> : vector<1024xf32>
    %13 = vector.multi_reduction <add>, %11, %cst_4 [0] : vector<8x1024xf32> to vector<1024xf32>
    %14 = vector.shape_cast %13 : vector<1024xf32> to vector<1x1024xf32>
    %15 = arith.addf %12, %14 : vector<1x1024xf32>
    %c0_5 = arith.constant 0 : index
    %c0_6 = arith.constant 0 : index
    %16 = vector.load %arg3[%c0_5, %c0_6] : memref<1x1024xf32, #tpu.memory_space<vmem>>, vector<1x1024xf32>
    tpu.vector_store %arg3[%c0_5, %c0_6], %15 {strides = array<i32>} : memref<1x1024xf32, #tpu.memory_space<vmem>>, vector<1x1024xf32>,
    %c0_7 = arith.constant 0 : index
    %c0_8 = arith.constant 0 : index
    %17 = vector.load %arg4[%c0_7, %c0_8] : memref<1x1024xf32, #tpu.memory_space<vmem>>, vector<1x1024xf32>
    %18 = arith.mulf %11, %11 : vector<8x1024xf32>
    %cst_9 = arith.constant dense<0.000000e+00> : vector<1024xf32>
    %19 = vector.multi_reduction <add>, %18, %cst_9 [0] : vector<8x1024xf32> to vector<1024xf32>
    %20 = vector.shape_cast %19 : vector<1024xf32> to vector<1x1024xf32>
    %21 = arith.addf %17, %20 : vector<1x1024xf32>
    %c0_10 = arith.constant 0 : index
    %c0_11 = arith.constant 0 : index
    %22 = vector.load %arg4[%c0_10, %c0_11] : memref<1x1024xf32, #tpu.memory_space<vmem>>, vector<1x1024xf32>
    tpu.vector_store %arg4[%c0_10, %c0_11], %21 {strides = array<i32>} : memref<1x1024xf32, #tpu.memory_space<vmem>>, vector<1x1024xf32>,
    %c0_i32_12 = arith.constant 0 : i32
    %23 = arith.cmpi eq, %arg0, %c0_i32_12 : i32
    %24 = arith.extui %23 : i1 to i32
    %c0_i32_13 = arith.constant 0 : i32
    %25 = arith.cmpi ne, %24, %c0_i32_13 : i32
    scf.if %25 {
      %c0_14 = arith.constant 0 : index
      %c0_15 = arith.constant 0 : index
      %26 = vector.load %arg3[%c0_14, %c0_15] : memref<1x1024xf32, #tpu.memory_space<vmem>>, vector<1x1024xf32>
      %c0_16 = arith.constant 0 : index
      %c0_17 = arith.constant 0 : index
      %27 = vector.load %arg2[%c0_16, %c0_17] : memref<2x1024xf32, #tpu.memory_space<vmem>>, vector<1x1024xf32>
      tpu.vector_store %arg2[%c0_16, %c0_17], %26 {strides = array<i32>} : memref<2x1024xf32, #tpu.memory_space<vmem>>, vector<1x1024xf32>,
      %c0_18 = arith.constant 0 : index
      %c0_19 = arith.constant 0 : index
      %28 = vector.load %arg4[%c0_18, %c0_19] : memref<1x1024xf32, #tpu.memory_space<vmem>>, vector<1x1024xf32>
      %c1 = arith.constant 1 : index
      %c0_20 = arith.constant 0 : index
      %29 = vector.load %arg2[%c1, %c0_20] : memref<2x1024xf32, #tpu.memory_space<vmem>>, vector<1x1024xf32>
      tpu.vector_store %arg2[%c1, %c0_20], %28 {strides = array<i32>} : memref<2x1024xf32, #tpu.memory_space<vmem>>, vector<1x1024xf32>,
    } else {
    }
    return
  }
  func.func @transform_0(%arg0: i32) -> (i32, i32) {
    %c0_i32 = arith.constant 0 : i32
    %c0_i32_0 = arith.constant 0 : i32
    return %arg0, %c0_i32 : i32, i32
  }
  func.func @transform_1(%arg0: i32) -> (i32, i32) {
    %c0_i32 = arith.constant 0 : i32
    %c0_i32_0 = arith.constant 0 : i32
    %c0_i32_1 = arith.constant 0 : i32
    return %c0_i32, %c0_i32_0 : i32, i32
  }
}

module attributes {stable_mosaic.version = 11 : i64} {
  func.func @_bn_apply_kernel(%arg0: i32, %arg1: memref<8x1024xf32, #tpu.memory_space<vmem>>, %arg2: memref<2x1024xf32, #tpu.memory_space<vmem>>, %arg3: memref<1x1024xf32, #tpu.memory_space<vmem>>, %arg4: memref<1x1024xf32, #tpu.memory_space<vmem>>, %arg5: memref<8x1024xf32, #tpu.memory_space<vmem>>) attributes {dimension_semantics = [#tpu.dimension_semantics<parallel>], iteration_bounds = array<i64: 1>, scalar_prefetch = 0 : i64, scratch_operands = 0 : i64, tpu.core_type = #tpu.core_type<tc>, window_params = [{transform_indices = @transform_0, window_bounds = array<i64: 8, 1024>}, {pipeline_mode = #tpu.pipeline_mode<synchronous>, transform_indices = @transform_1, window_bounds = array<i64: 2, 1024>}, {pipeline_mode = #tpu.pipeline_mode<synchronous>, transform_indices = @transform_2, window_bounds = array<i64: 1, 1024>}, {pipeline_mode = #tpu.pipeline_mode<synchronous>, transform_indices = @transform_3, window_bounds = array<i64: 1, 1024>}, {transform_indices = @transform_4, window_bounds = array<i64: 8, 1024>}]} {
    %c0 = arith.constant 0 : index
    %c0_0 = arith.constant 0 : index
    %0 = vector.load %arg1[%c0, %c0_0] : memref<8x1024xf32, #tpu.memory_space<vmem>>, vector<8x1024xf32>
    %c0_1 = arith.constant 0 : index
    %c0_2 = arith.constant 0 : index
    %1 = vector.load %arg2[%c0_1, %c0_2] : memref<2x1024xf32, #tpu.memory_space<vmem>>, vector<1x1024xf32>
    %cst = arith.constant 5.000000e-01 : f32
    %2 = vector.broadcast %cst : f32 to vector<1x1024xf32>
    %3 = arith.mulf %1, %2 : vector<1x1024xf32>
    %c1 = arith.constant 1 : index
    %c0_3 = arith.constant 0 : index
    %4 = vector.load %arg2[%c1, %c0_3] : memref<2x1024xf32, #tpu.memory_space<vmem>>, vector<1x1024xf32>
    %cst_4 = arith.constant 5.000000e-01 : f32
    %5 = vector.broadcast %cst_4 : f32 to vector<1x1024xf32>
    %6 = arith.mulf %4, %5 : vector<1x1024xf32>
    %7 = arith.mulf %3, %3 : vector<1x1024xf32>
    %8 = arith.subf %6, %7 : vector<1x1024xf32>
    %c0_5 = arith.constant 0 : index
    %c0_6 = arith.constant 0 : index
    %9 = vector.load %arg3[%c0_5, %c0_6] : memref<1x1024xf32, #tpu.memory_space<vmem>>, vector<1x1024xf32>
    %cst_7 = arith.constant 9.99999974E-6 : f32
    %10 = vector.broadcast %cst_7 : f32 to vector<1x1024xf32>
    %11 = arith.addf %8, %10 : vector<1x1024xf32>
    %12 = math.rsqrt %11 : vector<1x1024xf32>
    %13 = arith.mulf %9, %12 : vector<1x1024xf32>
    %c0_8 = arith.constant 0 : index
    %c0_9 = arith.constant 0 : index
    %14 = vector.load %arg4[%c0_8, %c0_9] : memref<1x1024xf32, #tpu.memory_space<vmem>>, vector<1x1024xf32>
    %15 = arith.mulf %3, %13 : vector<1x1024xf32>
    %16 = arith.subf %14, %15 : vector<1x1024xf32>
    %17 = vector.broadcast %13 : vector<1x1024xf32> to vector<8x1024xf32>
    %18 = arith.mulf %0, %17 : vector<8x1024xf32>
    %19 = vector.broadcast %16 : vector<1x1024xf32> to vector<8x1024xf32>
    %20 = arith.addf %18, %19 : vector<8x1024xf32>
    %cst_10 = arith.constant 0.000000e+00 : f32
    %21 = vector.broadcast %cst_10 : f32 to vector<8x1024xf32>
    %22 = arith.cmpf ogt, %20, %21 : vector<8x1024xf32>
    %cst_11 = arith.constant 2.000000e-01 : f32
    %23 = vector.broadcast %cst_11 : f32 to vector<8x1024xf32>
    %24 = arith.mulf %23, %20 : vector<8x1024xf32>
    %25 = arith.select %22, %20, %24 : vector<8x1024xi1>, vector<8x1024xf32>
    %c0_12 = arith.constant 0 : index
    %c0_13 = arith.constant 0 : index
    %26 = vector.load %arg5[%c0_12, %c0_13] : memref<8x1024xf32, #tpu.memory_space<vmem>>, vector<8x1024xf32>
    tpu.vector_store %arg5[%c0_12, %c0_13], %25 {strides = array<i32>} : memref<8x1024xf32, #tpu.memory_space<vmem>>, vector<8x1024xf32>,
    return
  }
  func.func @transform_0(%arg0: i32) -> (i32, i32) {
    %c0_i32 = arith.constant 0 : i32
    %c0_i32_0 = arith.constant 0 : i32
    return %arg0, %c0_i32 : i32, i32
  }
  func.func @transform_1(%arg0: i32) -> (i32, i32) {
    %c0_i32 = arith.constant 0 : i32
    %c0_i32_0 = arith.constant 0 : i32
    %c0_i32_1 = arith.constant 0 : i32
    return %c0_i32, %c0_i32_0 : i32, i32
  }
  func.func @transform_2(%arg0: i32) -> (i32, i32) {
    %c0_i32 = arith.constant 0 : i32
    %c0_i32_0 = arith.constant 0 : i32
    %c0_i32_1 = arith.constant 0 : i32
    return %c0_i32, %c0_i32_0 : i32, i32
  }
  func.func @transform_3(%arg0: i32) -> (i32, i32) {
    %c0_i32 = arith.constant 0 : i32
    %c0_i32_0 = arith.constant 0 : i32
    %c0_i32_1 = arith.constant 0 : i32
    return %c0_i32, %c0_i32_0 : i32, i32
  }
  func.func @transform_4(%arg0: i32) -> (i32, i32) {
    %c0_i32 = arith.constant 0 : i32
    %c0_i32_0 = arith.constant 0 : i32
    return %arg0, %c0_i32 : i32, i32
  }
}

module attributes {stable_mosaic.version = 11 : i64} {
  func.func @_matmul_bias_kernel(%arg0: i32, %arg1: i32, %arg2: i32, %arg3: memref<8x256xbf16, #tpu.memory_space<vmem>>, %arg4: memref<256x256xbf16, #tpu.memory_space<vmem>>, %arg5: memref<1x256xf32, #tpu.memory_space<vmem>>, %arg6: memref<8x256xf32, #tpu.memory_space<vmem>>, %arg7: memref<8x256xf32, #tpu.memory_space<vmem>>) attributes {dimension_semantics = [#tpu.dimension_semantics<parallel>, #tpu.dimension_semantics<parallel>, #tpu.dimension_semantics<arbitrary>], iteration_bounds = array<i64: 1, 8, 36>, scalar_prefetch = 0 : i64, scratch_operands = 1 : i64, tpu.core_type = #tpu.core_type<tc>, window_params = [{transform_indices = @transform_0, window_bounds = array<i64: 8, 256>}, {transform_indices = @transform_1, window_bounds = array<i64: 256, 256>}, {transform_indices = @transform_2, window_bounds = array<i64: 1, 256>}, {transform_indices = @transform_3, window_bounds = array<i64: 8, 256>}]} {
    %c0_i32 = arith.constant 0 : i32
    %0 = arith.cmpi eq, %arg2, %c0_i32 : i32
    %1 = arith.extui %0 : i1 to i32
    %c0_i32_0 = arith.constant 0 : i32
    %2 = arith.cmpi ne, %1, %c0_i32_0 : i32
    scf.if %2 {
      %cst_9 = arith.constant 0.000000e+00 : f32
      %12 = vector.broadcast %cst_9 : f32 to vector<8x256xf32>
      %c0_10 = arith.constant 0 : index
      %c0_11 = arith.constant 0 : index
      %13 = vector.load %arg7[%c0_10, %c0_11] : memref<8x256xf32, #tpu.memory_space<vmem>>, vector<8x256xf32>
      tpu.vector_store %arg7[%c0_10, %c0_11], %12 {strides = array<i32>} : memref<8x256xf32, #tpu.memory_space<vmem>>, vector<8x256xf32>,
    } else {
    }
    %c0 = arith.constant 0 : index
    %c0_1 = arith.constant 0 : index
    %3 = vector.load %arg7[%c0, %c0_1] : memref<8x256xf32, #tpu.memory_space<vmem>>, vector<8x256xf32>
    %c0_2 = arith.constant 0 : index
    %c0_3 = arith.constant 0 : index
    %4 = vector.load %arg3[%c0_2, %c0_3] : memref<8x256xbf16, #tpu.memory_space<vmem>>, vector<8x256xbf16>
    %c0_4 = arith.constant 0 : index
    %c0_5 = arith.constant 0 : index
    %5 = vector.load %arg4[%c0_4, %c0_5] : memref<256x256xbf16, #tpu.memory_space<vmem>>, vector<256x256xbf16>
    %cst = arith.constant dense<0.000000e+00> : vector<8x256xf32>
    %6 = tpu.matmul %4, %5, %cst {dimension_numbers = #tpu.dot_dimension_numbers<[1], [0], [0], [1], [0, 0, 1, 1], [], []>} : vector<8x256xbf16>, vector<256x256xbf16>, vector<8x256xf32> -> vector<8x256xf32>
    %7 = arith.addf %3, %6 : vector<8x256xf32>
    %c0_6 = arith.constant 0 : index
    %c0_7 = arith.constant 0 : index
    %8 = vector.load %arg7[%c0_6, %c0_7] : memref<8x256xf32, #tpu.memory_space<vmem>>, vector<8x256xf32>
    tpu.vector_store %arg7[%c0_6, %c0_7], %7 {strides = array<i32>} : memref<8x256xf32, #tpu.memory_space<vmem>>, vector<8x256xf32>,
    %c35_i32 = arith.constant 35 : i32
    %9 = arith.cmpi eq, %arg2, %c35_i32 : i32
    %10 = arith.extui %9 : i1 to i32
    %c0_i32_8 = arith.constant 0 : i32
    %11 = arith.cmpi ne, %10, %c0_i32_8 : i32
    scf.if %11 {
      %c0_9 = arith.constant 0 : index
      %c0_10 = arith.constant 0 : index
      %12 = vector.load %arg7[%c0_9, %c0_10] : memref<8x256xf32, #tpu.memory_space<vmem>>, vector<8x256xf32>
      %c0_11 = arith.constant 0 : index
      %c0_12 = arith.constant 0 : index
      %13 = vector.load %arg5[%c0_11, %c0_12] : memref<1x256xf32, #tpu.memory_space<vmem>>, vector<1x256xf32>
      %14 = vector.broadcast %13 : vector<1x256xf32> to vector<8x256xf32>
      %15 = arith.addf %12, %14 : vector<8x256xf32>
      %c0_13 = arith.constant 0 : index
      %c0_14 = arith.constant 0 : index
      %16 = vector.load %arg6[%c0_13, %c0_14] : memref<8x256xf32, #tpu.memory_space<vmem>>, vector<8x256xf32>
      tpu.vector_store %arg6[%c0_13, %c0_14], %15 {strides = array<i32>} : memref<8x256xf32, #tpu.memory_space<vmem>>, vector<8x256xf32>,
    } else {
    }
    return
  }
  func.func @transform_0(%arg0: i32, %arg1: i32, %arg2: i32) -> (i32, i32) {
    %c0_i32 = arith.constant 0 : i32
    return %arg0, %arg2 : i32, i32
  }
  func.func @transform_1(%arg0: i32, %arg1: i32, %arg2: i32) -> (i32, i32) {
    %c0_i32 = arith.constant 0 : i32
    return %arg2, %arg1 : i32, i32
  }
  func.func @transform_2(%arg0: i32, %arg1: i32, %arg2: i32) -> (i32, i32) {
    %c0_i32 = arith.constant 0 : i32
    %c0_i32_0 = arith.constant 0 : i32
    return %c0_i32, %arg1 : i32, i32
  }
  func.func @transform_3(%arg0: i32, %arg1: i32, %arg2: i32) -> (i32, i32) {
    %c0_i32 = arith.constant 0 : i32
    return %arg0, %arg1 : i32, i32
  }
}

module attributes {stable_mosaic.version = 11 : i64} {
  func.func @_bn_stats_kernel(%arg0: i32, %arg1: memref<8x2048xf32, #tpu.memory_space<vmem>>, %arg2: memref<2x2048xf32, #tpu.memory_space<vmem>>, %arg3: memref<1x2048xf32, #tpu.memory_space<vmem>>, %arg4: memref<1x2048xf32, #tpu.memory_space<vmem>>) attributes {dimension_semantics = [#tpu.dimension_semantics<arbitrary>], iteration_bounds = array<i64: 1>, scalar_prefetch = 0 : i64, scratch_operands = 2 : i64, tpu.core_type = #tpu.core_type<tc>, window_params = [{transform_indices = @transform_0, window_bounds = array<i64: 8, 2048>}, {pipeline_mode = #tpu.pipeline_mode<synchronous>, transform_indices = @transform_1, window_bounds = array<i64: 2, 2048>}]} {
    %c0_i32 = arith.constant 0 : i32
    %0 = arith.cmpi eq, %arg0, %c0_i32 : i32
    %1 = arith.extui %0 : i1 to i32
    %c0_i32_0 = arith.constant 0 : i32
    %2 = arith.cmpi ne, %1, %c0_i32_0 : i32
    scf.if %2 {
      %cst_14 = arith.constant 0.000000e+00 : f32
      %26 = vector.broadcast %cst_14 : f32 to vector<1x2048xf32>
      %c0_15 = arith.constant 0 : index
      %c0_16 = arith.constant 0 : index
      %27 = vector.load %arg3[%c0_15, %c0_16] : memref<1x2048xf32, #tpu.memory_space<vmem>>, vector<1x2048xf32>
      tpu.vector_store %arg3[%c0_15, %c0_16], %26 {strides = array<i32>} : memref<1x2048xf32, #tpu.memory_space<vmem>>, vector<1x2048xf32>,
      %cst_17 = arith.constant 0.000000e+00 : f32
      %28 = vector.broadcast %cst_17 : f32 to vector<1x2048xf32>
      %c0_18 = arith.constant 0 : index
      %c0_19 = arith.constant 0 : index
      %29 = vector.load %arg4[%c0_18, %c0_19] : memref<1x2048xf32, #tpu.memory_space<vmem>>, vector<1x2048xf32>
      tpu.vector_store %arg4[%c0_18, %c0_19], %28 {strides = array<i32>} : memref<1x2048xf32, #tpu.memory_space<vmem>>, vector<1x2048xf32>,
    } else {
    }
    %c0 = arith.constant 0 : index
    %c0_1 = arith.constant 0 : index
    %3 = vector.load %arg1[%c0, %c0_1] : memref<8x2048xf32, #tpu.memory_space<vmem>>, vector<8x2048xf32>
    %4 = tpu.iota {dimensions = array<i32: 0>} : vector<8x2048xi32>
    %c8_i32 = arith.constant 8 : i32
    %5 = arith.muli %arg0, %c8_i32 : i32
    %6 = vector.broadcast %5 : i32 to vector<8x2048xi32>
    %7 = arith.addi %4, %6 : vector<8x2048xi32>
    %c2_i32 = arith.constant 2 : i32
    %8 = vector.broadcast %c2_i32 : i32 to vector<8x2048xi32>
    %9 = arith.cmpi slt, %7, %8 : vector<8x2048xi32>
    %cst = arith.constant 0.000000e+00 : f32
    %10 = vector.broadcast %cst : f32 to vector<8x2048xf32>
    %11 = arith.select %9, %3, %10 : vector<8x2048xi1>, vector<8x2048xf32>
    %c0_2 = arith.constant 0 : index
    %c0_3 = arith.constant 0 : index
    %12 = vector.load %arg3[%c0_2, %c0_3] : memref<1x2048xf32, #tpu.memory_space<vmem>>, vector<1x2048xf32>
    %cst_4 = arith.constant dense<0.000000e+00> : vector<2048xf32>
    %13 = vector.multi_reduction <add>, %11, %cst_4 [0] : vector<8x2048xf32> to vector<2048xf32>
    %14 = vector.shape_cast %13 : vector<2048xf32> to vector<1x2048xf32>
    %15 = arith.addf %12, %14 : vector<1x2048xf32>
    %c0_5 = arith.constant 0 : index
    %c0_6 = arith.constant 0 : index
    %16 = vector.load %arg3[%c0_5, %c0_6] : memref<1x2048xf32, #tpu.memory_space<vmem>>, vector<1x2048xf32>
    tpu.vector_store %arg3[%c0_5, %c0_6], %15 {strides = array<i32>} : memref<1x2048xf32, #tpu.memory_space<vmem>>, vector<1x2048xf32>,
    %c0_7 = arith.constant 0 : index
    %c0_8 = arith.constant 0 : index
    %17 = vector.load %arg4[%c0_7, %c0_8] : memref<1x2048xf32, #tpu.memory_space<vmem>>, vector<1x2048xf32>
    %18 = arith.mulf %11, %11 : vector<8x2048xf32>
    %cst_9 = arith.constant dense<0.000000e+00> : vector<2048xf32>
    %19 = vector.multi_reduction <add>, %18, %cst_9 [0] : vector<8x2048xf32> to vector<2048xf32>
    %20 = vector.shape_cast %19 : vector<2048xf32> to vector<1x2048xf32>
    %21 = arith.addf %17, %20 : vector<1x2048xf32>
    %c0_10 = arith.constant 0 : index
    %c0_11 = arith.constant 0 : index
    %22 = vector.load %arg4[%c0_10, %c0_11] : memref<1x2048xf32, #tpu.memory_space<vmem>>, vector<1x2048xf32>
    tpu.vector_store %arg4[%c0_10, %c0_11], %21 {strides = array<i32>} : memref<1x2048xf32, #tpu.memory_space<vmem>>, vector<1x2048xf32>,
    %c0_i32_12 = arith.constant 0 : i32
    %23 = arith.cmpi eq, %arg0, %c0_i32_12 : i32
    %24 = arith.extui %23 : i1 to i32
    %c0_i32_13 = arith.constant 0 : i32
    %25 = arith.cmpi ne, %24, %c0_i32_13 : i32
    scf.if %25 {
      %c0_14 = arith.constant 0 : index
      %c0_15 = arith.constant 0 : index
      %26 = vector.load %arg3[%c0_14, %c0_15] : memref<1x2048xf32, #tpu.memory_space<vmem>>, vector<1x2048xf32>
      %c0_16 = arith.constant 0 : index
      %c0_17 = arith.constant 0 : index
      %27 = vector.load %arg2[%c0_16, %c0_17] : memref<2x2048xf32, #tpu.memory_space<vmem>>, vector<1x2048xf32>
      tpu.vector_store %arg2[%c0_16, %c0_17], %26 {strides = array<i32>} : memref<2x2048xf32, #tpu.memory_space<vmem>>, vector<1x2048xf32>,
      %c0_18 = arith.constant 0 : index
      %c0_19 = arith.constant 0 : index
      %28 = vector.load %arg4[%c0_18, %c0_19] : memref<1x2048xf32, #tpu.memory_space<vmem>>, vector<1x2048xf32>
      %c1 = arith.constant 1 : index
      %c0_20 = arith.constant 0 : index
      %29 = vector.load %arg2[%c1, %c0_20] : memref<2x2048xf32, #tpu.memory_space<vmem>>, vector<1x2048xf32>
      tpu.vector_store %arg2[%c1, %c0_20], %28 {strides = array<i32>} : memref<2x2048xf32, #tpu.memory_space<vmem>>, vector<1x2048xf32>,
    } else {
    }
    return
  }
  func.func @transform_0(%arg0: i32) -> (i32, i32) {
    %c0_i32 = arith.constant 0 : i32
    %c0_i32_0 = arith.constant 0 : i32
    return %arg0, %c0_i32 : i32, i32
  }
  func.func @transform_1(%arg0: i32) -> (i32, i32) {
    %c0_i32 = arith.constant 0 : i32
    %c0_i32_0 = arith.constant 0 : i32
    %c0_i32_1 = arith.constant 0 : i32
    return %c0_i32, %c0_i32_0 : i32, i32
  }
}

module attributes {stable_mosaic.version = 11 : i64} {
  func.func @_bn_apply_kernel(%arg0: i32, %arg1: memref<8x2048xf32, #tpu.memory_space<vmem>>, %arg2: memref<2x2048xf32, #tpu.memory_space<vmem>>, %arg3: memref<1x2048xf32, #tpu.memory_space<vmem>>, %arg4: memref<1x2048xf32, #tpu.memory_space<vmem>>, %arg5: memref<8x2048xf32, #tpu.memory_space<vmem>>) attributes {dimension_semantics = [#tpu.dimension_semantics<parallel>], iteration_bounds = array<i64: 1>, scalar_prefetch = 0 : i64, scratch_operands = 0 : i64, tpu.core_type = #tpu.core_type<tc>, window_params = [{transform_indices = @transform_0, window_bounds = array<i64: 8, 2048>}, {pipeline_mode = #tpu.pipeline_mode<synchronous>, transform_indices = @transform_1, window_bounds = array<i64: 2, 2048>}, {pipeline_mode = #tpu.pipeline_mode<synchronous>, transform_indices = @transform_2, window_bounds = array<i64: 1, 2048>}, {pipeline_mode = #tpu.pipeline_mode<synchronous>, transform_indices = @transform_3, window_bounds = array<i64: 1, 2048>}, {transform_indices = @transform_4, window_bounds = array<i64: 8, 2048>}]} {
    %c0 = arith.constant 0 : index
    %c0_0 = arith.constant 0 : index
    %0 = vector.load %arg1[%c0, %c0_0] : memref<8x2048xf32, #tpu.memory_space<vmem>>, vector<8x2048xf32>
    %c0_1 = arith.constant 0 : index
    %c0_2 = arith.constant 0 : index
    %1 = vector.load %arg2[%c0_1, %c0_2] : memref<2x2048xf32, #tpu.memory_space<vmem>>, vector<1x2048xf32>
    %cst = arith.constant 5.000000e-01 : f32
    %2 = vector.broadcast %cst : f32 to vector<1x2048xf32>
    %3 = arith.mulf %1, %2 : vector<1x2048xf32>
    %c1 = arith.constant 1 : index
    %c0_3 = arith.constant 0 : index
    %4 = vector.load %arg2[%c1, %c0_3] : memref<2x2048xf32, #tpu.memory_space<vmem>>, vector<1x2048xf32>
    %cst_4 = arith.constant 5.000000e-01 : f32
    %5 = vector.broadcast %cst_4 : f32 to vector<1x2048xf32>
    %6 = arith.mulf %4, %5 : vector<1x2048xf32>
    %7 = arith.mulf %3, %3 : vector<1x2048xf32>
    %8 = arith.subf %6, %7 : vector<1x2048xf32>
    %c0_5 = arith.constant 0 : index
    %c0_6 = arith.constant 0 : index
    %9 = vector.load %arg3[%c0_5, %c0_6] : memref<1x2048xf32, #tpu.memory_space<vmem>>, vector<1x2048xf32>
    %cst_7 = arith.constant 9.99999974E-6 : f32
    %10 = vector.broadcast %cst_7 : f32 to vector<1x2048xf32>
    %11 = arith.addf %8, %10 : vector<1x2048xf32>
    %12 = math.rsqrt %11 : vector<1x2048xf32>
    %13 = arith.mulf %9, %12 : vector<1x2048xf32>
    %c0_8 = arith.constant 0 : index
    %c0_9 = arith.constant 0 : index
    %14 = vector.load %arg4[%c0_8, %c0_9] : memref<1x2048xf32, #tpu.memory_space<vmem>>, vector<1x2048xf32>
    %15 = arith.mulf %3, %13 : vector<1x2048xf32>
    %16 = arith.subf %14, %15 : vector<1x2048xf32>
    %17 = vector.broadcast %13 : vector<1x2048xf32> to vector<8x2048xf32>
    %18 = arith.mulf %0, %17 : vector<8x2048xf32>
    %19 = vector.broadcast %16 : vector<1x2048xf32> to vector<8x2048xf32>
    %20 = arith.addf %18, %19 : vector<8x2048xf32>
    %cst_10 = arith.constant 0.000000e+00 : f32
    %21 = vector.broadcast %cst_10 : f32 to vector<8x2048xf32>
    %22 = arith.cmpf ogt, %20, %21 : vector<8x2048xf32>
    %cst_11 = arith.constant 2.000000e-01 : f32
    %23 = vector.broadcast %cst_11 : f32 to vector<8x2048xf32>
    %24 = arith.mulf %23, %20 : vector<8x2048xf32>
    %25 = arith.select %22, %20, %24 : vector<8x2048xi1>, vector<8x2048xf32>
    %c0_12 = arith.constant 0 : index
    %c0_13 = arith.constant 0 : index
    %26 = vector.load %arg5[%c0_12, %c0_13] : memref<8x2048xf32, #tpu.memory_space<vmem>>, vector<8x2048xf32>
    tpu.vector_store %arg5[%c0_12, %c0_13], %25 {strides = array<i32>} : memref<8x2048xf32, #tpu.memory_space<vmem>>, vector<8x2048xf32>,
    return
  }
  func.func @transform_0(%arg0: i32) -> (i32, i32) {
    %c0_i32 = arith.constant 0 : i32
    %c0_i32_0 = arith.constant 0 : i32
    return %arg0, %c0_i32 : i32, i32
  }
  func.func @transform_1(%arg0: i32) -> (i32, i32) {
    %c0_i32 = arith.constant 0 : i32
    %c0_i32_0 = arith.constant 0 : i32
    %c0_i32_1 = arith.constant 0 : i32
    return %c0_i32, %c0_i32_0 : i32, i32
  }
  func.func @transform_2(%arg0: i32) -> (i32, i32) {
    %c0_i32 = arith.constant 0 : i32
    %c0_i32_0 = arith.constant 0 : i32
    %c0_i32_1 = arith.constant 0 : i32
    return %c0_i32, %c0_i32_0 : i32, i32
  }
  func.func @transform_3(%arg0: i32) -> (i32, i32) {
    %c0_i32 = arith.constant 0 : i32
    %c0_i32_0 = arith.constant 0 : i32
    %c0_i32_1 = arith.constant 0 : i32
    return %c0_i32, %c0_i32_0 : i32, i32
  }
  func.func @transform_4(%arg0: i32) -> (i32, i32) {
    %c0_i32 = arith.constant 0 : i32
    %c0_i32_0 = arith.constant 0 : i32
    return %arg0, %c0_i32 : i32, i32
  }
}

module attributes {stable_mosaic.version = 11 : i64} {
  func.func @_head_kernel(%arg0: memref<2x1x2048xf32, #tpu.memory_space<vmem>>, %arg1: memref<1x2048xf32, #tpu.memory_space<vmem>>, %arg2: memref<1x1xf32, #tpu.memory_space<vmem>>, %arg3: memref<2x1xf32, #tpu.memory_space<vmem>>) attributes {dimension_semantics = [], scalar_prefetch = 0 : i64, scratch_operands = 0 : i64, tpu.core_type = #tpu.core_type<tc>} {
    %c0 = arith.constant 0 : index
    %c0_0 = arith.constant 0 : index
    %c0_1 = arith.constant 0 : index
    %0 = vector.load %arg0[%c0, %c0_0, %c0_1] : memref<2x1x2048xf32, #tpu.memory_space<vmem>>, vector<2x1x2048xf32>
    %cst = arith.constant dense<0.000000e+00> : vector<2x2048xf32>
    %1 = vector.multi_reduction <add>, %0, %cst [1] : vector<2x1x2048xf32> to vector<2x2048xf32>
    %cst_2 = arith.constant 1.000000e+00 : f32
    %2 = vector.broadcast %cst_2 : f32 to vector<2x2048xf32>
    %3 = arith.divf %1, %2 : vector<2x2048xf32>
    %c0_3 = arith.constant 0 : index
    %c0_4 = arith.constant 0 : index
    %4 = vector.load %arg1[%c0_3, %c0_4] : memref<1x2048xf32, #tpu.memory_space<vmem>>, vector<1x2048xf32>
    %5 = vector.broadcast %4 : vector<1x2048xf32> to vector<2x2048xf32>
    %6 = arith.mulf %3, %5 : vector<2x2048xf32>
    %cst_5 = arith.constant dense<0.000000e+00> : vector<2xf32>
    %7 = vector.multi_reduction <add>, %6, %cst_5 [1] : vector<2x2048xf32> to vector<2xf32>
    %8 = vector.shape_cast %7 : vector<2xf32> to vector<2x1xf32>
    %c0_6 = arith.constant 0 : index
    %c0_7 = arith.constant 0 : index
    %9 = vector.load %arg2[%c0_6, %c0_7] : memref<1x1xf32, #tpu.memory_space<vmem>>, vector<1x1xf32>
    %10 = vector.broadcast %9 : vector<1x1xf32> to vector<2x1xf32>
    %11 = arith.addf %8, %10 : vector<2x1xf32>
    %cst_8 = arith.constant 5.000000e-01 : f32
    %12 = vector.broadcast %cst_8 : f32 to vector<2x1xf32>
    %13 = arith.mulf %12, %11 : vector<2x1xf32>
    %14 = math.tanh %13 : vector<2x1xf32>
    %cst_9 = arith.constant 1.000000e+00 : f32
    %15 = vector.broadcast %cst_9 : f32 to vector<2x1xf32>
    %16 = arith.addf %14, %15 : vector<2x1xf32>
    %cst_10 = arith.constant 5.000000e-01 : f32
    %17 = vector.broadcast %cst_10 : f32 to vector<2x1xf32>
    %18 = arith.mulf %17, %16 : vector<2x1xf32>
    %c0_11 = arith.constant 0 : index
    %c0_12 = arith.constant 0 : index
    %19 = vector.load %arg3[%c0_11, %c0_12] : memref<2x1xf32, #tpu.memory_space<vmem>>, vector<2x1xf32>
    tpu.vector_store %arg3[%c0_11, %c0_12], %18 {strides = array<i32>} : memref<2x1xf32, #tpu.memory_space<vmem>>, vector<2x1xf32>,
    return
  }
}

</mosaic_0001>

<llo_original>
// kernel: discriminator_forward.17
$region0: #{discriminator_forward.17}
  #allocation0 [shape = 'u32[]', space=smem, size = 0x4, offset = 0x4, fixed_abs, tag = 'smem constant byte address 0x4 - core index']
  #allocation1 [shape = 'u32[144,128]{1,0:T(1,128)}', space=vmem, size = 0x12000, scoped, tag = 'internal scratch']
  #allocation2 [shape = 'f32[256,128]{1,0:T(8,128)}', space=vmem, size = 0x20000, scoped, tag = 'scratch operand']
  %s0 = inlined_call_operand.vmem [shape: bf16[512,128], index: 0, kind: input, shape index: {}]
  %s1 = inlined_call_operand.hbm [shape: bf16[128,128], index: 1, kind: input, shape index: {}]
  %s2 = inlined_call_operand.hbm [shape: f32[1,128], index: 2, kind: input, shape index: {}]
  %s3 = inlined_call_operand.vmem [shape: f32[512,128], index: 3, kind: output, shape index: {}]
  %s4 = sld [smem:[#allocation0]]
  $region61: #{discriminator_forward.17} parent=0
    _
  %s6 = ssub.s32 1, %s4
  %s7 = scalar_select 0, %s6, %s4
  $region1: #{discriminator_forward.17} parent=0
    #allocation3 [shape = 'u8[32768]{0}', space=vmem, size = 0x8000, scoped, tag = 'input window, operand 1, single buffered']
    #allocation4 [shape = 's32[2]{0}', space=sflag, size = 0x8, scoped, tag = 'scoped memory for discriminator_forward.17']
    #allocation5 [shape = 'u8[512]{0}', space=vmem, size = 0x400, scoped, tag = 'input window, operand 2, single buffered']
    #allocation6 [shape = 's32[1]{0}', space=sflag, size = 0x4, scoped, tag = 'scoped memory for discriminator_forward.17']
    %8 = vsyncpa [#allocation4], 0
    %9 = vsyncpa [#allocation6], 0
    loop: start=0, step=1, limit=4
    $region2: #{discriminator_forward.17} parent=1 // loop_pre_header
      _
    $region3: #{discriminator_forward.17} parent=1 // loop_header
      %s11 = sphi 0, %s15
      %p12 = scmp.ge.s32.totalorder %s11, 4
      %s18 = sphi 0, %s37
      %s19 = sphi 0, %s33
      %s20 = sphi 0, %s29
      %s21 = sphi 0, %s18
      %s22 = sphi 0, %s19
      %s23 = sphi 0, %s20
      %s24 = sphi 0, %s21
      %s25 = sphi 0, %s22
      %s26 = sphi 0, %s23
      %s42 = sphi 0, %s44
      %s45 = sphi 0, %s42
      %s46 = sphi 0, %s45
      %s62 = sphi 0, %s46
      %s70 = sphi 0, %s72
      %s73 = sphi 0, %s70
      %s74 = sphi 0, %s73
      %s90 = sphi 0, %s74
      %s96 = sphi 0, %s98
      %s99 = sphi 0, %s96
      %s100 = sphi 0, %s99
      %s116 = sphi 0, %s100
      %s124 = sphi 0, %s126
      %s127 = sphi 0, %s124
      %s128 = sphi 0, %s127
      %s144 = sphi 0, %s128
    $region4: #{discriminator_forward.17} parent=1 // loop_header_branch
      %14 = sbr.rel (%p12) target = $region8
    $region5: #{discriminator_forward.17} parent=1 // loop_body
      %s16 = ssub.s32 %s11, 1
      %s17 = ssub.s32 %s11, 2
      %s27 = sadd.s32 1, %s20
      %p28 = scmp.ge.s32.totalorder %s27, 1
      %s29 = scalar_select %p28, 0, %s27
      %s30 = sadd.s32 1, %s19
      %s31 = scalar_select %p28, %s30, %s19
      %p32 = scmp.ge.s32.totalorder %s31, 1
      %s33 = scalar_select %p32, 0, %s31
      %s34 = sadd.s32 1, %s18
      %s35 = scalar_select %p32, %s34, %s18
      %p36 = scmp.ge.s32.totalorder %s35, 2
      %s37 = scalar_select %p36, 0, %s35
      %s38 = ssub.s32 %s18, %s37
      %s39 = ssub.s32 %s20, %s29
      %s40 = sor.u32 %s38, %s39
      %p41 = scmp.eq.s32.totalorder %s40, 0
      %s43 = sadd.s32 %s42, 1
      %s44 = scalar_select %p41, %s42, %s43
      %p47 = pneg %p41
      %p48 = scmp.eq.s32.totalorder %s11, 1
      %p49 = por %p47, %p48
      %p50 = scmp.ne.s32.totalorder %s42, %s45
      %p51 = scmp.eq.s32.totalorder %s11, 0
      %p52 = por %p50, %p51
      %p53 = scmp.ne.s32.totalorder %s42, %s45
      %p54 = scmp.eq.s32.totalorder %s16, 1
      %p55 = por %p53, %p54
      %p56 = scmp.ne.s32.totalorder %s45, %s46
      %p57 = scmp.eq.s32.totalorder %s16, 0
      %p58 = por %p56, %p57
      %p59 = scmp.ne.s32.totalorder %s45, %s46
      %p60 = scmp.eq.s32.totalorder %s17, 1
      %p61 = por %p59, %p60
      %p63 = scmp.ne.s32.totalorder %s46, %s62
      %p64 = scmp.eq.s32.totalorder %s17, 0
      %p65 = por %p63, %p64
      %s66 = ssub.s32 %s20, %s29
      %s67 = ssub.s32 %s19, %s33
      %s68 = sor.u32 %s66, %s67
      %p69 = scmp.eq.s32.totalorder %s68, 0
      %s71 = sadd.s32 %s70, 1
      %s72 = scalar_select %p69, %s70, %s71
      %p75 = pneg %p69
      %p76 = scmp.eq.s32.totalorder %s11, 1
      %p77 = por %p75, %p76
      %p78 = scmp.ne.s32.totalorder %s70, %s73
      %p79 = scmp.eq.s32.totalorder %s11, 0
      %p80 = por %p78, %p79
      %p81 = scmp.ne.s32.totalorder %s70, %s73
      %p82 = scmp.eq.s32.totalorder %s16, 1
      %p83 = por %p81, %p82
      %p84 = scmp.ne.s32.totalorder %s73, %s74
      %p85 = scmp.eq.s32.totalorder %s16, 0
      %p86 = por %p84, %p85
      %p87 = scmp.ne.s32.totalorder %s73, %s74
      %p88 = scmp.eq.s32.totalorder %s17, 1
      %p89 = por %p87, %p88
      %p91 = scmp.ne.s32.totalorder %s74, %s90
      %p92 = scmp.eq.s32.totalorder %s17, 0
      %p93 = por %p91, %p92
      %s94 = ssub.s32 %s19, %s33
      %p95 = scmp.eq.s32.totalorder %s94, 0
      %s97 = sadd.s32 %s96, 1
      %s98 = scalar_select %p95, %s96, %s97
      %p101 = pneg %p95
      %p102 = scmp.eq.s32.totalorder %s11, 1
      %p103 = por %p101, %p102
      %p104 = scmp.ne.s32.totalorder %s96, %s99
      %p105 = scmp.eq.s32.totalorder %s11, 0
      %p106 = por %p104, %p105
      %p107 = scmp.ne.s32.totalorder %s96, %s99
      %p108 = scmp.eq.s32.totalorder %s16, 1
      %p109 = por %p107, %p108
      %p110 = scmp.ne.s32.totalorder %s99, %s100
      %p111 = scmp.eq.s32.totalorder %s16, 0
      %p112 = por %p110, %p111
      %p113 = scmp.ne.s32.totalorder %s99, %s100
      %p114 = scmp.eq.s32.totalorder %s17, 1
      %p115 = por %p113, %p114
      %p117 = scmp.ne.s32.totalorder %s100, %s116
      %p118 = scmp.eq.s32.totalorder %s17, 0
      %p119 = por %p117, %p118
      %s120 = ssub.s32 %s18, %s37
      %s121 = ssub.s32 %s19, %s33
      %s122 = sor.u32 %s120, %s121
      %p123 = scmp.eq.s32.totalorder %s122, 0
      %s125 = sadd.s32 %s124, 1
      %s126 = scalar_select %p123, %s124, %s125
      %p129 = pneg %p123
      %p130 = scmp.eq.s32.totalorder %s11, 1
      %p131 = por %p129, %p130
      %p132 = scmp.ne.s32.totalorder %s124, %s127
      %p133 = scmp.eq.s32.totalorder %s11, 0
      %p134 = por %p132, %p133
      %p135 = scmp.ne.s32.totalorder %s124, %s127
      %p136 = scmp.eq.s32.totalorder %s16, 1
      %p137 = por %p135, %p136
      %p138 = scmp.ne.s32.totalorder %s127, %s128
      %p139 = scmp.eq.s32.totalorder %s16, 0
      %p140 = por %p138, %p139
      %p141 = scmp.ne.s32.totalorder %s127, %s128
      %p142 = scmp.eq.s32.totalorder %s17, 1
      %p143 = por %p141, %p142
      %p145 = scmp.ne.s32.totalorder %s128, %s144
      %p146 = scmp.eq.s32.totalorder %s17, 0
      %p147 = por %p145, %p146
      %p148 = scmp.le.s32.totalorder 1, %s11
      %p149 = scmp.lt.s32.totalorder %s11, 3
      %p150 = pnand %p148, %p149
      %p151 = pneg %p150
      // Predicated region
      $region9: #{discriminator_forward.17} parent=5 // pred_check
        _
      $region10: #{discriminator_forward.17} parent=5 // pred_check_branch
        %153 = sbr.rel (%p150) target = $region12
      $region11: #{discriminator_forward.17} parent=5 // pred_region
        %s154 = ssub.s32 %s11, 1
        // Predicated region
        $region13: #{discriminator_forward.17} parent=11 // pred_check
          %p155 = pneg %p86
        $region14: #{discriminator_forward.17} parent=11 // pred_check_branch
          %157 = sbr.rel (%p155) target = $region16
        $region15: #{discriminator_forward.17} parent=11 // pred_region
          %s158 = smul.u32 16, %s23
          %s160 = ssub.s32 1024, 1024
          %161 = vsyncadd [#allocation4], %s160
          %s162 = sadd.s32 %s22, %s158
          %s163 = smul.addr %s162, 64
          %s164 = scalar_lea.hbm %s1, %s163
          %s165 = sshll.u32 [#allocation3], 4
          %s166 = int_to_ptr.vmem [resolvable:$true] %s165
          %171 = dma.hbm_to_vmem [thread:$0]  %s164, 1024, %s166, [#allocation4], 64, 64, 4
        $region16: #{discriminator_forward.17} parent=11 // pred_fallthru
          _
        // Predicated region
        $region17: #{discriminator_forward.17} parent=11 // pred_check
          %p172 = pneg %p112
        $region18: #{discriminator_forward.17} parent=11 // pred_check_branch
          %174 = sbr.rel (%p172) target = $region20
        $region19: #{discriminator_forward.17} parent=11 // pred_region
          %s176 = ssub.s32 16, 16
          %177 = vsyncadd [#allocation6], %s176
          %s178 = smul.addr %s22, 16
          %s179 = scalar_lea.hbm %s2, %s178
          %s181 = sshll.u32 [#allocation5], 4
          %s182 = int_to_ptr.vmem [resolvable:$true] %s181
          %184 = dma.hbm_to_vmem [thread:$0]  %s179, 16, %s182, [#allocation6]
        $region20: #{discriminator_forward.17} parent=11 // pred_fallthru
          _
      $region12: #{discriminator_forward.17} parent=5 // pred_fallthru
        _
      %p185 = scmp.lt.s32.totalorder %s11, 2
      // Predicated region
      $region21: #{discriminator_forward.17} parent=5 // pred_check
        %p186 = pneg %p185
      $region22: #{discriminator_forward.17} parent=5 // pred_check_branch
        %188 = sbr.rel (%p186) target = $region24
      $region23: #{discriminator_forward.17} parent=5 // pred_region
        // Predicated region
        $region25: #{discriminator_forward.17} parent=23 // pred_check
          %p189 = pneg %p52
        $region26: #{discriminator_forward.17} parent=23 // pred_check_branch
          %191 = sbr.rel (%p189) target = $region28
        $region27: #{discriminator_forward.17} parent=23 // pred_region
          %s192 = smul.u32 32, %s18
          %p193 = scmp.lt.s32.totalorder %s192, 63
          %s194 = scalar_select %p193, %s192, 63
          %p195 = scmp.lt.s32.totalorder %s20, 0
          %s196 = scalar_select %p195, %s20, 0
          %s197 = sadd.s32 %s196, %s194
          %s198 = smul.addr %s197, 4
          %s199 = scalar_lea.vmem %s0, %s198
          %s200 = smul.u32 32, %s18
        $region28: #{discriminator_forward.17} parent=23 // pred_fallthru
          _
      $region24: #{discriminator_forward.17} parent=5 // pred_fallthru
        _
      %p201 = scmp.le.s32.totalorder 1, %s11
      %p202 = scmp.lt.s32.totalorder %s11, 3
      %p203 = pnand %p201, %p202
      %p204 = pneg %p203
      // Predicated region
      $region29: #{discriminator_forward.17} parent=5 // pred_check
        _
      $region30: #{discriminator_forward.17} parent=5 // pred_check_branch
        %206 = sbr.rel (%p203) target = $region32
      $region31: #{discriminator_forward.17} parent=5 // pred_region
        %s207 = ssub.s32 %s11, 1
        // Predicated region
        $region33: #{discriminator_forward.17} parent=31 // pred_check
          %p208 = pneg %p86
        $region34: #{discriminator_forward.17} parent=31 // pred_check_branch
          %210 = sbr.rel (%p208) target = $region36
        $region35: #{discriminator_forward.17} parent=31 // pred_region
          %211 = dma.done [#allocation4], 1024
        $region36: #{discriminator_forward.17} parent=31 // pred_fallthru
          _
        // Predicated region
        $region37: #{discriminator_forward.17} parent=31 // pred_check
          %p212 = pneg %p112
        $region38: #{discriminator_forward.17} parent=31 // pred_check_branch
          %214 = sbr.rel (%p212) target = $region40
        $region39: #{discriminator_forward.17} parent=31 // pred_region
          %215 = dma.done [#allocation6], 16
        $region40: #{discriminator_forward.17} parent=31 // pred_fallthru
          _
        %s216 = smul.u32 32, %s21
        %p217 = scmp.lt.s32.totalorder %s216, 63
        %s218 = scalar_select %p217, %s216, 63
        %p219 = scmp.lt.s32.totalorder %s23, 0
        %s220 = scalar_select %p219, %s23, 0
        %s221 = sadd.s32 %s220, %s218
        %s222 = smul.addr %s221, 4
        %s223 = scalar_lea.vmem %s0, %s222
        %p224 = pneg %p58
        %p225 = pneg %p55
        %p226 = pneg %p86
        %p227 = pneg %p83
        %p228 = pneg %p112
        %p229 = pneg %p109
        %p230 = pneg %p140
        %p231 = pneg %p137
        %s232 = smul.u32 32, %s21
        %p233 = scmp.lt.s32.totalorder %s232, 63
        %s234 = scalar_select %p233, %s232, 63
        %p235 = scmp.lt.s32.totalorder %s22, 0
        %s236 = scalar_select %p235, %s22, 0
        %s237 = sadd.s32 %s236, %s234
        %s238 = smul.addr %s237, 8
        %s239 = scalar_lea.vmem %s3, %s238
        %s240 = smul.u32 32, %s21
        %p241 = scmp.lt.s32.totalorder %s240, 63
        %s242 = scalar_select %p241, %s240, 63
        %p243 = scmp.lt.s32.totalorder %s23, 0
        %s244 = scalar_select %p243, %s23, 0
        %s245 = sadd.s32 %s244, %s242
        %s246 = smul.addr %s245, 4
        %s247 = scalar_lea.vmem %s0, %s246
        %s248 = smul.u32 32, %s21
        %s249 = smul.u32 16, %s23
        %s250 = smul.u32 32, %s21
        %p251 = scmp.lt.s32.totalorder %s250, 63
        %s252 = scalar_select %p251, %s250, 63
        %p253 = scmp.lt.s32.totalorder %s22, 0
        %s254 = scalar_select %p253, %s22, 0
        %s255 = sadd.s32 %s254, %s252
        %s256 = smul.addr %s255, 8
        %s257 = scalar_lea.vmem %s3, %s256
        %s258 = smul.u32 32, %s21
        %p260 = scmp.eq.s32.totalorder %s23, 0
        // Predicated region
        $region41: #{discriminator_forward.17} parent=31 // pred_check
          %p261 = pneg %p260
        $region42: #{discriminator_forward.17} parent=31 // pred_check_branch
          %263 = sbr.rel (%p261) target = $region44
        $region43: #{discriminator_forward.17} parent=31 // pred_region
          %264 = vst [vmem:[#allocation2] sm:$0xff] 0.0
          %265 = vst [vmem:[#allocation2 + $0x8] sm:$0xff] 0.0
          %266 = vst [vmem:[#allocation2 + $0x10] sm:$0xff] 0.0
          %267 = vst [vmem:[#allocation2 + $0x18] sm:$0xff] 0.0
          %268 = vst [vmem:[#allocation2 + $0x20] sm:$0xff] 0.0
          %269 = vst [vmem:[#allocation2 + $0x28] sm:$0xff] 0.0
          %270 = vst [vmem:[#allocation2 + $0x30] sm:$0xff] 0.0
          %271 = vst [vmem:[#allocation2 + $0x38] sm:$0xff] 0.0
          %272 = vst [vmem:[#allocation2 + $0x40] sm:$0xff] 0.0
          %273 = vst [vmem:[#allocation2 + $0x48] sm:$0xff] 0.0
          %274 = vst [vmem:[#allocation2 + $0x50] sm:$0xff] 0.0
          %275 = vst [vmem:[#allocation2 + $0x58] sm:$0xff] 0.0
          %276 = vst [vmem:[#allocation2 + $0x60] sm:$0xff] 0.0
          %277 = vst [vmem:[#allocation2 + $0x68] sm:$0xff] 0.0
          %278 = vst [vmem:[#allocation2 + $0x70] sm:$0xff] 0.0
          %279 = vst [vmem:[#allocation2 + $0x78] sm:$0xff] 0.0
          %280 = vst [vmem:[#allocation2 + $0x80] sm:$0xff] 0.0
          %281 = vst [vmem:[#allocation2 + $0x88] sm:$0xff] 0.0
          %282 = vst [vmem:[#allocation2 + $0x90] sm:$0xff] 0.0
          %283 = vst [vmem:[#allocation2 + $0x98] sm:$0xff] 0.0
          %284 = vst [vmem:[#allocation2 + $0xa0] sm:$0xff] 0.0
          %285 = vst [vmem:[#allocation2 + $0xa8] sm:$0xff] 0.0
          %286 = vst [vmem:[#allocation2 + $0xb0] sm:$0xff] 0.0
          %287 = vst [vmem:[#allocation2 + $0xb8] sm:$0xff] 0.0
          %288 = vst [vmem:[#allocation2 + $0xc0] sm:$0xff] 0.0
          %289 = vst [vmem:[#allocation2 + $0xc8] sm:$0xff] 0.0
          %290 = vst [vmem:[#allocation2 + $0xd0] sm:$0xff] 0.0
          %291 = vst [vmem:[#allocation2 + $0xd8] sm:$0xff] 0.0
          %292 = vst [vmem:[#allocation2 + $0xe0] sm:$0xff] 0.0
          %293 = vst [vmem:[#allocation2 + $0xe8] sm:$0xff] 0.0
          %294 = vst [vmem:[#allocation2 + $0xf0] sm:$0xff] 0.0
          %295 = vst [vmem:[#allocation2 + $0xf8] sm:$0xff] 0.0
        $region44: #{discriminator_forward.17} parent=31 // pred_fallthru
          _
        %v296 = vld [vmem:[#allocation2] sm:$0xff]
        %v297 = vld [vmem:[#allocation2 + $0x8] sm:$0xff]
        %v298 = vld [vmem:[#allocation2 + $0x10] sm:$0xff]
        %v299 = vld [vmem:[#allocation2 + $0x18] sm:$0xff]
        %v300 = vld [vmem:[#allocation2 + $0x20] sm:$0xff]
        %v301 = vld [vmem:[#allocation2 + $0x28] sm:$0xff]
        %v302 = vld [vmem:[#allocation2 + $0x30] sm:$0xff]
        %v303 = vld [vmem:[#allocation2 + $0x38] sm:$0xff]
        %v304 = vld [vmem:[#allocation2 + $0x40] sm:$0xff]
        %v305 = vld [vmem:[#allocation2 + $0x48] sm:$0xff]
        %v306 = vld [vmem:[#allocation2 + $0x50] sm:$0xff]
        %v307 = vld [vmem:[#allocation2 + $0x58] sm:$0xff]
        %v308 = vld [vmem:[#allocation2 + $0x60] sm:$0xff]
        %v309 = vld [vmem:[#allocation2 + $0x68] sm:$0xff]
        %v310 = vld [vmem:[#allocation2 + $0x70] sm:$0xff]
        %v311 = vld [vmem:[#allocation2 + $0x78] sm:$0xff]
        %v312 = vld [vmem:[#allocation2 + $0x80] sm:$0xff]
        %v313 = vld [vmem:[#allocation2 + $0x88] sm:$0xff]
        %v314 = vld [vmem:[#allocation2 + $0x90] sm:$0xff]
        %v315 = vld [vmem:[#allocation2 + $0x98] sm:$0xff]
        %v316 = vld [vmem:[#allocation2 + $0xa0] sm:$0xff]
        %v317 = vld [vmem:[#allocation2 + $0xa8] sm:$0xff]
        %v318 = vld [vmem:[#allocation2 + $0xb0] sm:$0xff]
        %v319 = vld [vmem:[#allocation2 + $0xb8] sm:$0xff]
        %v320 = vld [vmem:[#allocation2 + $0xc0] sm:$0xff]
        %v321 = vld [vmem:[#allocation2 + $0xc8] sm:$0xff]
        %v322 = vld [vmem:[#allocation2 + $0xd0] sm:$0xff]
        %v323 = vld [vmem:[#allocation2 + $0xd8] sm:$0xff]
        %v324 = vld [vmem:[#allocation2 + $0xe0] sm:$0xff]
        %v325 = vld [vmem:[#allocation2 + $0xe8] sm:$0xff]
        %v326 = vld [vmem:[#allocation2 + $0xf0] sm:$0xff]
        %v327 = vld [vmem:[#allocation2 + $0xf8] sm:$0xff]
        %v328 = vld [vmem:[%s247] sm:$0xf]
        %v329 = vld [vmem:[%s247 + $0x4] sm:$0xf]
        %v330 = vld [vmem:[%s247 + $0x8] sm:$0xf]
        %v331 = vld [vmem:[%s247 + $0xc] sm:$0xf]
        %v332 = vld [vmem:[%s247 + $0x10] sm:$0xf]
        %v333 = vld [vmem:[%s247 + $0x14] sm:$0xf]
        %v334 = vld [vmem:[%s247 + $0x18] sm:$0xf]
        %v335 = vld [vmem:[%s247 + $0x1c] sm:$0xf]
        %v336 = vld [vmem:[%s247 + $0x20] sm:$0xf]
        %v337 = vld [vmem:[%s247 + $0x24] sm:$0xf]
        %v338 = vld [vmem:[%s247 + $0x28] sm:$0xf]
        %v339 = vld [vmem:[%s247 + $0x2c] sm:$0xf]
        %v340 = vld [vmem:[%s247 + $0x30] sm:$0xf]
        %v341 = vld [vmem:[%s247 + $0x34] sm:$0xf]
        %v342 = vld [vmem:[%s247 + $0x38] sm:$0xf]
        %v343 = vld [vmem:[%s247 + $0x3c] sm:$0xf]
        %v344 = vld [vmem:[%s247 + $0x40] sm:$0xf]
        %v345 = vld [vmem:[%s247 + $0x44] sm:$0xf]
        %v346 = vld [vmem:[%s247 + $0x48] sm:$0xf]
        %v347 = vld [vmem:[%s247 + $0x4c] sm:$0xf]
        %v348 = vld [vmem:[%s247 + $0x50] sm:$0xf]
        %v349 = vld [vmem:[%s247 + $0x54] sm:$0xf]
        %v350 = vld [vmem:[%s247 + $0x58] sm:$0xf]
        %v351 = vld [vmem:[%s247 + $0x5c] sm:$0xf]
        %v352 = vld [vmem:[%s247 + $0x60] sm:$0xf]
        %v353 = vld [vmem:[%s247 + $0x64] sm:$0xf]
        %v354 = vld [vmem:[%s247 + $0x68] sm:$0xf]
        %v355 = vld [vmem:[%s247 + $0x6c] sm:$0xf]
        %v356 = vld [vmem:[%s247 + $0x70] sm:$0xf]
        %v357 = vld [vmem:[%s247 + $0x74] sm:$0xf]
        %v358 = vld [vmem:[%s247 + $0x78] sm:$0xf]
        %v359 = vld [vmem:[%s247 + $0x7c] sm:$0xf]
        %v360 = vld [vmem:[#allocation3] sm:$0xf]
        %v361 = vld [vmem:[#allocation3 + $0x4] sm:$0xf]
        %v362 = vld [vmem:[#allocation3 + $0x8] sm:$0xf]
        %v363 = vld [vmem:[#allocation3 + $0xc] sm:$0xf]
        %v364 = vld [vmem:[#allocation3 + $0x10] sm:$0xf]
        %v365 = vld [vmem:[#allocation3 + $0x14] sm:$0xf]
        %v366 = vld [vmem:[#allocation3 + $0x18] sm:$0xf]
        %v367 = vld [vmem:[#allocation3 + $0x1c] sm:$0xf]
        %v368 = vld [vmem:[#allocation3 + $0x20] sm:$0xf]
        %v369 = vld [vmem:[#allocation3 + $0x24] sm:$0xf]
        %v370 = vld [vmem:[#allocation3 + $0x28] sm:$0xf]
        %v371 = vld [vmem:[#allocation3 + $0x2c] sm:$0xf]
        %v372 = vld [vmem:[#allocation3 + $0x30] sm:$0xf]
        %v373 = vld [vmem:[#allocation3 + $0x34] sm:$0xf]
        %v374 = vld [vmem:[#allocation3 + $0x38] sm:$0xf]
        %v375 = vld [vmem:[#allocation3 + $0x3c] sm:$0xf]
        %v408 = vunpack.c.l.b16 %v328
        %v409 = vunpack.c.l.b16 %v329
        %v410 = vunpack.c.l.b16 %v330
        %v411 = vunpack.c.l.b16 %v331
        %v412 = vunpack.c.l.b16 %v332
        %v413 = vunpack.c.l.b16 %v333
        %v414 = vunpack.c.l.b16 %v334
        %v415 = vunpack.c.l.b16 %v335
        %v416 = vunpack.c.l.b16 %v336
        %v417 = vunpack.c.l.b16 %v337
        %v418 = vunpack.c.l.b16 %v338
        %v419 = vunpack.c.l.b16 %v339
        %v420 = vunpack.c.l.b16 %v340
        %v421 = vunpack.c.l.b16 %v341
        %v422 = vunpack.c.l.b16 %v342
        %v423 = vunpack.c.l.b16 %v343
        %v424 = vunpack.c.l.b16 %v344
        %v425 = vunpack.c.l.b16 %v345
        %v426 = vunpack.c.l.b16 %v346
        %v427 = vunpack.c.l.b16 %v347
        %v428 = vunpack.c.l.b16 %v348
        %v429 = vunpack.c.l.b16 %v349
        %v430 = vunpack.c.l.b16 %v350
        %v431 = vunpack.c.l.b16 %v351
        %v432 = vunpack.c.l.b16 %v352
        %v433 = vunpack.c.l.b16 %v353
        %v434 = vunpack.c.l.b16 %v354
        %v435 = vunpack.c.l.b16 %v355
        %v436 = vunpack.c.l.b16 %v356
        %v437 = vunpack.c.l.b16 %v357
        %v438 = vunpack.c.l.b16 %v358
        %v439 = vunpack.c.l.b16 %v359
        %v440 = vpack.c.b16 %v409, %v408
        %v441 = vpack.c.b16 %v411, %v410
        %v442 = vpack.c.b16 %v413, %v412
        %v443 = vpack.c.b16 %v415, %v414
        %v444 = vpack.c.b16 %v417, %v416
        %v445 = vpack.c.b16 %v419, %v418
        %v446 = vpack.c.b16 %v421, %v420
        %v447 = vpack.c.b16 %v423, %v422
        %v448 = vpack.c.b16 %v425, %v424
        %v449 = vpack.c.b16 %v427, %v426
        %v450 = vpack.c.b16 %v429, %v428
        %v451 = vpack.c.b16 %v431, %v430
        %v452 = vpack.c.b16 %v433, %v432
        %v453 = vpack.c.b16 %v435, %v434
        %v454 = vpack.c.b16 %v437, %v436
        %v455 = vpack.c.b16 %v439, %v438
        %v488 = vunpack.c.l.b16 %v360
        %v489 = vunpack.c.l.b16 %v361
        %v490 = vunpack.c.l.b16 %v362
        %v491 = vunpack.c.l.b16 %v363
        %v492 = vunpack.c.l.b16 %v364
        %v493 = vunpack.c.l.b16 %v365
        %v494 = vunpack.c.l.b16 %v366
        %v495 = vunpack.c.l.b16 %v367
        %v496 = vunpack.c.l.b16 %v368
        %v497 = vunpack.c.l.b16 %v369
        %v498 = vunpack.c.l.b16 %v370
        %v499 = vunpack.c.l.b16 %v371
        %v500 = vunpack.c.l.b16 %v372
        %v501 = vunpack.c.l.b16 %v373
        %v502 = vunpack.c.l.b16 %v374
        %v503 = vunpack.c.l.b16 %v375
        %v504 = vpack.c.b16 %v489, %v488
        %v505 = vpack.c.b16 %v491, %v490
        %v506 = vpack.c.b16 %v493, %v492
        %v507 = vpack.c.b16 %v495, %v494
        %v508 = vpack.c.b16 %v497, %v496
        %v509 = vpack.c.b16 %v499, %v498
        %v510 = vpack.c.b16 %v501, %v500
        %v511 = vpack.c.b16 %v503, %v502
        %520 = vmatprep.subr.bf16.mxu0 0
        %521 = vmatpush1.bf16.msra.mxu0 %v504
        %522 = vmatprep.subr.bf16.mxu0 0
        %523 = vmatpush1.bf16.msra.mxu0 %v505
        %524 = vmatprep.subr.bf16.mxu0 0
        %525 = vmatpush1.bf16.msra.mxu0 %v506
        %526 = vmatprep.subr.bf16.mxu0 0
        %527 = vmatpush1.bf16.msra.mxu0 %v507
        %528 = vmatprep.subr.bf16.mxu0 0
        %529 = vmatpush1.bf16.msra.mxu0 %v508
        %530 = vmatprep.subr.bf16.mxu0 0
        %531 = vmatpush1.bf16.msra.mxu0 %v509
        %532 = vmatprep.subr.bf16.mxu0 0
        %533 = vmatpush1.bf16.msra.mxu0 %v510
        %534 = vmatprep.subr.bf16.mxu0 0
        %535 = vmatpush1.bf16.msra.mxu0 %v511
        %536 = vmatprep.subr.bf16.mxu0 0
        %537 = vmatpush1.bf16.msra.mxu0 0
        %538 = vmatprep.subr.bf16.mxu0 0
        %539 = vmatpush1.bf16.msra.mxu0 0
        %540 = vmatprep.subr.bf16.mxu0 0
        %541 = vmatpush1.bf16.msra.mxu0 0
        %542 = vmatprep.subr.bf16.mxu0 0
        %543 = vmatpush1.bf16.msra.mxu0 0
        %544 = vmatprep.subr.bf16.mxu0 0
        %545 = vmatpush1.bf16.msra.mxu0 0
        %546 = vmatprep.subr.bf16.mxu0 0
        %547 = vmatpush1.bf16.msra.mxu0 0
        %548 = vmatprep.subr.bf16.mxu0 0
        %549 = vmatpush1.bf16.msra.mxu0 0
        %550 = vmatprep.subr.bf16.mxu0 0
        %551 = vmatpush1.bf16.msra.mxu0 0
        %552 = vmatprep.mubr.bf16.mxu0 0
        %553 = vmatmul.mubr.bf16.gmra.mrb[0].mxu0 %v440
        %v554 = vpop.f32.mrb[0].mxu0
        %v555 = vadd.f32 0.0, %v554
        %v556 = vpop.f32.mrb[0].mxu0
        %v557 = vpop.f32.mrb[0].mxu0
        %v558 = vadd.f32 0.0, %v557
        %v559 = vpop.f32.mrb[0].mxu0
        %560 = vmatprep.mubr.bf16.mxu0 0
        %561 = vmatmul.mubr.bf16.gmra.mrb[0].mxu0 %v441
        %v562 = vpop.f32.mrb[0].mxu0
        %v563 = vadd.f32 0.0, %v562
        %v564 = vpop.f32.mrb[0].mxu0
        %v565 = vpop.f32.mrb[0].mxu0
        %v566 = vadd.f32 0.0, %v565
        %v567 = vpop.f32.mrb[0].mxu0
        %568 = vmatprep.mubr.bf16.mxu0 0
        %569 = vmatmul.mubr.bf16.gmra.mrb[0].mxu0 %v442
        %v570 = vpop.f32.mrb[0].mxu0
        %v571 = vadd.f32 0.0, %v570
        %v572 = vpop.f32.mrb[0].mxu0
        %v573 = vpop.f32.mrb[0].mxu0
        %v574 = vadd.f32 0.0, %v573
        %v575 = vpop.f32.mrb[0].mxu0
        %576 = vmatprep.mubr.bf16.mxu0 0
        %577 = vmatmul.mubr.bf16.gmra.mrb[0].mxu0 %v443
        %v578 = vpop.f32.mrb[0].mxu0
        %v579 = vadd.f32 0.0, %v578
        %v580 = vpop.f32.mrb[0].mxu0
        %v581 = vpop.f32.mrb[0].mxu0
        %v582 = vadd.f32 0.0, %v581
        %v583 = vpop.f32.mrb[0].mxu0
        %584 = vmatprep.mubr.bf16.mxu0 0
        %585 = vmatmul.mubr.bf16.gmra.mrb[0].mxu0 %v444
        %v586 = vpop.f32.mrb[0].mxu0
        %v587 = vadd.f32 0.0, %v586
        %v588 = vpop.f32.mrb[0].mxu0
        %v589 = vpop.f32.mrb[0].mxu0
        %v590 = vadd.f32 0.0, %v589
        %v591 = vpop.f32.mrb[0].mxu0
        %592 = vmatprep.mubr.bf16.mxu0 0
        %593 = vmatmul.mubr.bf16.gmra.mrb[0].mxu0 %v445
        %v594 = vpop.f32.mrb[0].mxu0
        %v595 = vadd.f32 0.0, %v594
        %v596 = vpop.f32.mrb[0].mxu0
        %v597 = vpop.f32.mrb[0].mxu0
        %v598 = vadd.f32 0.0, %v597
        %v599 = vpop.f32.mrb[0].mxu0
        %600 = vmatprep.mubr.bf16.mxu0 0
        %601 = vmatmul.mubr.bf16.gmra.mrb[0].mxu0 %v446
        %v602 = vpop.f32.mrb[0].mxu0
        %v603 = vadd.f32 0.0, %v602
        %v604 = vpop.f32.mrb[0].mxu0
        %v605 = vpop.f32.mrb[0].mxu0
        %v606 = vadd.f32 0.0, %v605
        %v607 = vpop.f32.mrb[0].mxu0
        %608 = vmatprep.mubr.bf16.mxu0 0
        %609 = vmatmul.mubr.bf16.gmra.mrb[0].mxu0 %v447
        %v610 = vpop.f32.mrb[0].mxu0
        %v611 = vadd.f32 0.0, %v610
        %v612 = vpop.f32.mrb[0].mxu0
        %v613 = vpop.f32.mrb[0].mxu0
        %v614 = vadd.f32 0.0, %v613
        %v615 = vpop.f32.mrb[0].mxu0
        %616 = vmatprep.mubr.bf16.mxu0 0
        %617 = vmatmul.mubr.bf16.gmra.mrb[0].mxu0 %v448
        %v618 = vpop.f32.mrb[0].mxu0
        %v619 = vadd.f32 0.0, %v618
        %v620 = vpop.f32.mrb[0].mxu0
        %v621 = vpop.f32.mrb[0].mxu0
        %v622 = vadd.f32 0.0, %v621
        %v623 = vpop.f32.mrb[0].mxu0
        %624 = vmatprep.mubr.bf16.mxu0 0
        %625 = vmatmul.mubr.bf16.gmra.mrb[0].mxu0 %v449
        %v626 = vpop.f32.mrb[0].mxu0
        %v627 = vadd.f32 0.0, %v626
        %v628 = vpop.f32.mrb[0].mxu0
        %v629 = vpop.f32.mrb[0].mxu0
        %v630 = vadd.f32 0.0, %v629
        %v631 = vpop.f32.mrb[0].mxu0
        %632 = vmatprep.mubr.bf16.mxu0 0
        %633 = vmatmul.mubr.bf16.gmra.mrb[0].mxu0 %v450
        %v634 = vpop.f32.mrb[0].mxu0
        %v635 = vadd.f32 0.0, %v634
        %v636 = vpop.f32.mrb[0].mxu0
        %v637 = vpop.f32.mrb[0].mxu0
        %v638 = vadd.f32 0.0, %v637
        %v639 = vpop.f32.mrb[0].mxu0
        %640 = vmatprep.mubr.bf16.mxu0 0
        %641 = vmatmul.mubr.bf16.gmra.mrb[0].mxu0 %v451
        %v642 = vpop.f32.mrb[0].mxu0
        %v643 = vadd.f32 0.0, %v642
        %v644 = vpop.f32.mrb[0].mxu0
        %v645 = vpop.f32.mrb[0].mxu0
        %v646 = vadd.f32 0.0, %v645
        %v647 = vpop.f32.mrb[0].mxu0
        %648 = vmatprep.mubr.bf16.mxu0 0
        %649 = vmatmul.mubr.bf16.gmra.mrb[0].mxu0 %v452
        %v650 = vpop.f32.mrb[0].mxu0
        %v651 = vadd.f32 0.0, %v650
        %v652 = vpop.f32.mrb[0].mxu0
        %v653 = vpop.f32.mrb[0].mxu0
        %v654 = vadd.f32 0.0, %v653
        %v655 = vpop.f32.mrb[0].mxu0
        %656 = vmatprep.mubr.bf16.mxu0 0
        %657 = vmatmul.mubr.bf16.gmra.mrb[0].mxu0 %v453
        %v658 = vpop.f32.mrb[0].mxu0
        %v659 = vadd.f32 0.0, %v658
        %v660 = vpop.f32.mrb[0].mxu0
        %v661 = vpop.f32.mrb[0].mxu0
        %v662 = vadd.f32 0.0, %v661
        %v663 = vpop.f32.mrb[0].mxu0
        %664 = vmatprep.mubr.bf16.mxu0 0
        %665 = vmatmul.mubr.bf16.gmra.mrb[0].mxu0 %v454
        %v666 = vpop.f32.mrb[0].mxu0
        %v667 = vadd.f32 0.0, %v666
        %v668 = vpop.f32.mrb[0].mxu0
        %v669 = vpop.f32.mrb[0].mxu0
        %v670 = vadd.f32 0.0, %v669
        %v671 = vpop.f32.mrb[0].mxu0
        %672 = vmatprep.mubr.bf16.mxu0 0
        %673 = vmatmul.mubr.bf16.gmra.mrb[0].mxu0 %v455
        %v674 = vpop.f32.mrb[0].mxu0
        %v675 = vadd.f32 0.0, %v674
        %v676 = vpop.f32.mrb[0].mxu0
        %v677 = vpop.f32.mrb[0].mxu0
        %v678 = vadd.f32 0.0, %v677
        %v679 = vpop.f32.mrb[0].mxu0
        %680 = vdwg.mxu0
        %v681 = vadd.f32 %v296, %v555
        %v682 = vadd.f32 %v297, %v558
        %v683 = vadd.f32 %v298, %v563
        %v684 = vadd.f32 %v299, %v566
        %v685 = vadd.f32 %v300, %v571
        %v686 = vadd.f32 %v301, %v574
        %v687 = vadd.f32 %v302, %v579
        %v688 = vadd.f32 %v303, %v582
        %v689 = vadd.f32 %v304, %v587
        %v690 = vadd.f32 %v305, %v590
        %v691 = vadd.f32 %v306, %v595
        %v692 = vadd.f32 %v307, %v598
        %v693 = vadd.f32 %v308, %v603
        %v694 = vadd.f32 %v309, %v606
        %v695 = vadd.f32 %v310, %v611
        %v696 = vadd.f32 %v311, %v614
        %v697 = vadd.f32 %v312, %v619
        %v698 = vadd.f32 %v313, %v622
        %v699 = vadd.f32 %v314, %v627
        %v700 = vadd.f32 %v315, %v630
        %v701 = vadd.f32 %v316, %v635
        %v702 = vadd.f32 %v317, %v638
        %v703 = vadd.f32 %v318, %v643
        %v704 = vadd.f32 %v319, %v646
        %v705 = vadd.f32 %v320, %v651
        %v706 = vadd.f32 %v321, %v654
        %v707 = vadd.f32 %v322, %v659
        %v708 = vadd.f32 %v323, %v662
        %v709 = vadd.f32 %v324, %v667
        %v710 = vadd.f32 %v325, %v670
        %v711 = vadd.f32 %v326, %v675
        %v712 = vadd.f32 %v327, %v678
        %713 = vst [vmem:[#allocation2] sm:$0xff] %v681
        %714 = vst [vmem:[#allocation2 + $0x8] sm:$0xff] %v682
        %715 = vst [vmem:[#allocation2 + $0x10] sm:$0xff] %v683
        %716 = vst [vmem:[#allocation2 + $0x18] sm:$0xff] %v684
        %717 = vst [vmem:[#allocation2 + $0x20] sm:$0xff] %v685
        %718 = vst [vmem:[#allocation2 + $0x28] sm:$0xff] %v686
        %719 = vst [vmem:[#allocation2 + $0x30] sm:$0xff] %v687
        %720 = vst [vmem:[#allocation2 + $0x38] sm:$0xff] %v688
        %721 = vst [vmem:[#allocation2 + $0x40] sm:$0xff] %v689
        %722 = vst [vmem:[#allocation2 + $0x48] sm:$0xff] %v690
        %723 = vst [vmem:[#allocation2 + $0x50] sm:$0xff] %v691
        %724 = vst [vmem:[#allocation2 + $0x58] sm:$0xff] %v692
        %725 = vst [vmem:[#allocation2 + $0x60] sm:$0xff] %v693
        %726 = vst [vmem:[#allocation2 + $0x68] sm:$0xff] %v694
        %727 = vst [vmem:[#allocation2 + $0x70] sm:$0xff] %v695
        %728 = vst [vmem:[#allocation2 + $0x78] sm:$0xff] %v696
        %729 = vst [vmem:[#allocation2 + $0x80] sm:$0xff] %v697
        %730 = vst [vmem:[#allocation2 + $0x88] sm:$0xff] %v698
        %731 = vst [vmem:[#allocation2 + $0x90] sm:$0xff] %v699
        %732 = vst [vmem:[#allocation2 + $0x98] sm:$0xff] %v700
        %733 = vst [vmem:[#allocation2 + $0xa0] sm:$0xff] %v701
        %734 = vst [vmem:[#allocation2 + $0xa8] sm:$0xff] %v702
        %735 = vst [vmem:[#allocation2 + $0xb0] sm:$0xff] %v703
        %736 = vst [vmem:[#allocation2 + $0xb8] sm:$0xff] %v704
        %737 = vst [vmem:[#allocation2 + $0xc0] sm:$0xff] %v705
        %738 = vst [vmem:[#allocation2 + $0xc8] sm:$0xff] %v706
        %739 = vst [vmem:[#allocation2 + $0xd0] sm:$0xff] %v707
        %740 = vst [vmem:[#allocation2 + $0xd8] sm:$0xff] %v708
        %741 = vst [vmem:[#allocation2 + $0xe0] sm:$0xff] %v709
        %742 = vst [vmem:[#allocation2 + $0xe8] sm:$0xff] %v710
        %743 = vst [vmem:[#allocation2 + $0xf0] sm:$0xff] %v711
        %744 = vst [vmem:[#allocation2 + $0xf8] sm:$0xff] %v712
        // Predicated region
        $region45: #{discriminator_forward.17} parent=31 // pred_check
          %p745 = pneg %p260
        $region46: #{discriminator_forward.17} parent=31 // pred_check_branch
          %747 = sbr.rel (%p745) target = $region48
        $region47: #{discriminator_forward.17} parent=31 // pred_region
          %v748 = vld [vmem:[#allocation2] sm:$0xff]
          %v749 = vld [vmem:[#allocation2 + $0x8] sm:$0xff]
          %v750 = vld [vmem:[#allocation2 + $0x10] sm:$0xff]
          %v751 = vld [vmem:[#allocation2 + $0x18] sm:$0xff]
          %v752 = vld [vmem:[#allocation2 + $0x20] sm:$0xff]
          %v753 = vld [vmem:[#allocation2 + $0x28] sm:$0xff]
          %v754 = vld [vmem:[#allocation2 + $0x30] sm:$0xff]
          %v755 = vld [vmem:[#allocation2 + $0x38] sm:$0xff]
          %v756 = vld [vmem:[#allocation2 + $0x40] sm:$0xff]
          %v757 = vld [vmem:[#allocation2 + $0x48] sm:$0xff]
          %v758 = vld [vmem:[#allocation2 + $0x50] sm:$0xff]
          %v759 = vld [vmem:[#allocation2 + $0x58] sm:$0xff]
          %v760 = vld [vmem:[#allocation2 + $0x60] sm:$0xff]
          %v761 = vld [vmem:[#allocation2 + $0x68] sm:$0xff]
          %v762 = vld [vmem:[#allocation2 + $0x70] sm:$0xff]
          %v763 = vld [vmem:[#allocation2 + $0x78] sm:$0xff]
          %v764 = vld [vmem:[#allocation2 + $0x80] sm:$0xff]
          %v765 = vld [vmem:[#allocation2 + $0x88] sm:$0xff]
          %v766 = vld [vmem:[#allocation2 + $0x90] sm:$0xff]
          %v767 = vld [vmem:[#allocation2 + $0x98] sm:$0xff]
          %v768 = vld [vmem:[#allocation2 + $0xa0] sm:$0xff]
          %v769 = vld [vmem:[#allocation2 + $0xa8] sm:$0xff]
          %v770 = vld [vmem:[#allocation2 + $0xb0] sm:$0xff]
          %v771 = vld [vmem:[#allocation2 + $0xb8] sm:$0xff]
          %v772 = vld [vmem:[#allocation2 + $0xc0] sm:$0xff]
          %v773 = vld [vmem:[#allocation2 + $0xc8] sm:$0xff]
          %v774 = vld [vmem:[#allocation2 + $0xd0] sm:$0xff]
          %v775 = vld [vmem:[#allocation2 + $0xd8] sm:$0xff]
          %v776 = vld [vmem:[#allocation2 + $0xe0] sm:$0xff]
          %v777 = vld [vmem:[#allocation2 + $0xe8] sm:$0xff]
          %v778 = vld [vmem:[#allocation2 + $0xf0] sm:$0xff]
          %v779 = vld [vmem:[#allocation2 + $0xf8] sm:$0xff]
          %v780 = vld [vmem:[#allocation5] sm:$0x1]
          %v782 = vlaneseq
          %v783 = vshrl.u32 %v782, 7
          %v784 = vsub.s32 0, %v783
          %v785 = vrot.slane %v780, %v784
          %v787 = vadd.f32 %v748, %v785
          %v788 = vadd.f32 %v749, %v785
          %v789 = vadd.f32 %v750, %v785
          %v790 = vadd.f32 %v751, %v785
          %v791 = vadd.f32 %v752, %v785
          %v792 = vadd.f32 %v753, %v785
          %v793 = vadd.f32 %v754, %v785
          %v794 = vadd.f32 %v755, %v785
          %v795 = vadd.f32 %v756, %v785
          %v796 = vadd.f32 %v757, %v785
          %v797 = vadd.f32 %v758, %v785
          %v798 = vadd.f32 %v759, %v785
          %v799 = vadd.f32 %v760, %v785
          %v800 = vadd.f32 %v761, %v785
          %v801 = vadd.f32 %v762, %v785
          %v802 = vadd.f32 %v763, %v785
          %v803 = vadd.f32 %v764, %v785
          %v804 = vadd.f32 %v765, %v785
          %v805 = vadd.f32 %v766, %v785
          %v806 = vadd.f32 %v767, %v785
          %v807 = vadd.f32 %v768, %v785
          %v808 = vadd.f32 %v769, %v785
          %v809 = vadd.f32 %v770, %v785
          %v810 = vadd.f32 %v771, %v785
          %v811 = vadd.f32 %v772, %v785
          %v812 = vadd.f32 %v773, %v785
          %v813 = vadd.f32 %v774, %v785
          %v814 = vadd.f32 %v775, %v785
          %v815 = vadd.f32 %v776, %v785
          %v816 = vadd.f32 %v777, %v785
          %v817 = vadd.f32 %v778, %v785
          %v818 = vadd.f32 %v779, %v785
          %vm819 = vcmp.gt.f32.partialorder %v787, 0.0
          %vm820 = vcmp.gt.f32.partialorder %v788, 0.0
          %vm821 = vcmp.gt.f32.partialorder %v789, 0.0
          %vm822 = vcmp.gt.f32.partialorder %v790, 0.0
          %vm823 = vcmp.gt.f32.partialorder %v791, 0.0
          %vm824 = vcmp.gt.f32.partialorder %v792, 0.0
          %vm825 = vcmp.gt.f32.partialorder %v793, 0.0
          %vm826 = vcmp.gt.f32.partialorder %v794, 0.0
          %vm827 = vcmp.gt.f32.partialorder %v795, 0.0
          %vm828 = vcmp.gt.f32.partialorder %v796, 0.0
          %vm829 = vcmp.gt.f32.partialorder %v797, 0.0
          %vm830 = vcmp.gt.f32.partialorder %v798, 0.0
          %vm831 = vcmp.gt.f32.partialorder %v799, 0.0
          %vm832 = vcmp.gt.f32.partialorder %v800, 0.0
          %vm833 = vcmp.gt.f32.partialorder %v801, 0.0
          %vm834 = vcmp.gt.f32.partialorder %v802, 0.0
          %vm835 = vcmp.gt.f32.partialorder %v803, 0.0
          %vm836 = vcmp.gt.f32.partialorder %v804, 0.0
          %vm837 = vcmp.gt.f32.partialorder %v805, 0.0
          %vm838 = vcmp.gt.f32.partialorder %v806, 0.0
          %vm839 = vcmp.gt.f32.partialorder %v807, 0.0
          %vm840 = vcmp.gt.f32.partialorder %v808, 0.0
          %vm841 = vcmp.gt.f32.partialorder %v809, 0.0
          %vm842 = vcmp.gt.f32.partialorder %v810, 0.0
          %vm843 = vcmp.gt.f32.partialorder %v811, 0.0
          %vm844 = vcmp.gt.f32.partialorder %v812, 0.0
          %vm845 = vcmp.gt.f32.partialorder %v813, 0.0
          %vm846 = vcmp.gt.f32.partialorder %v814, 0.0
          %vm847 = vcmp.gt.f32.partialorder %v815, 0.0
          %vm848 = vcmp.gt.f32.partialorder %v816, 0.0
          %vm849 = vcmp.gt.f32.partialorder %v817, 0.0
          %vm850 = vcmp.gt.f32.partialorder %v818, 0.0
          %v851 = vmul.f32 %v787, 0.2
          %v852 = vmul.f32 %v788, 0.2
          %v853 = vmul.f32 %v789, 0.2
          %v854 = vmul.f32 %v790, 0.2
          %v855 = vmul.f32 %v791, 0.2
          %v856 = vmul.f32 %v792, 0.2
          %v857 = vmul.f32 %v793, 0.2
          %v858 = vmul.f32 %v794, 0.2
          %v859 = vmul.f32 %v795, 0.2
          %v860 = vmul.f32 %v796, 0.2
          %v861 = vmul.f32 %v797, 0.2
          %v862 = vmul.f32 %v798, 0.2
          %v863 = vmul.f32 %v799, 0.2
          %v864 = vmul.f32 %v800, 0.2
          %v865 = vmul.f32 %v801, 0.2
          %v866 = vmul.f32 %v802, 0.2
          %v867 = vmul.f32 %v803, 0.2
          %v868 = vmul.f32 %v804, 0.2
          %v869 = vmul.f32 %v805, 0.2
          %v870 = vmul.f32 %v806, 0.2
          %v871 = vmul.f32 %v807, 0.2
          %v872 = vmul.f32 %v808, 0.2
          %v873 = vmul.f32 %v809, 0.2
          %v874 = vmul.f32 %v810, 0.2
          %v875 = vmul.f32 %v811, 0.2
          %v876 = vmul.f32 %v812, 0.2
          %v877 = vmul.f32 %v813, 0.2
          %v878 = vmul.f32 %v814, 0.2
          %v879 = vmul.f32 %v815, 0.2
          %v880 = vmul.f32 %v816, 0.2
          %v881 = vmul.f32 %v817, 0.2
          %v882 = vmul.f32 %v818, 0.2
          %v883 = vsel %vm819, %v787, %v851
          %v884 = vsel %vm820, %v788, %v852
          %v885 = vsel %vm821, %v789, %v853
          %v886 = vsel %vm822, %v790, %v854
          %v887 = vsel %vm823, %v791, %v855
          %v888 = vsel %vm824, %v792, %v856
          %v889 = vsel %vm825, %v793, %v857
          %v890 = vsel %vm826, %v794, %v858
          %v891 = vsel %vm827, %v795, %v859
          %v892 = vsel %vm828, %v796, %v860
          %v893 = vsel %vm829, %v797, %v861
          %v894 = vsel %vm830, %v798, %v862
          %v895 = vsel %vm831, %v799, %v863
          %v896 = vsel %vm832, %v800, %v864
          %v897 = vsel %vm833, %v801, %v865
          %v898 = vsel %vm834, %v802, %v866
          %v899 = vsel %vm835, %v803, %v867
          %v900 = vsel %vm836, %v804, %v868
          %v901 = vsel %vm837, %v805, %v869
          %v902 = vsel %vm838, %v806, %v870
          %v903 = vsel %vm839, %v807, %v871
          %v904 = vsel %vm840, %v808, %v872
          %v905 = vsel %vm841, %v809, %v873
          %v906 = vsel %vm842, %v810, %v874
          %v907 = vsel %vm843, %v811, %v875
          %v908 = vsel %vm844, %v812, %v876
          %v909 = vsel %vm845, %v813, %v877
          %v910 = vsel %vm846, %v814, %v878
          %v911 = vsel %vm847, %v815, %v879
          %v912 = vsel %vm848, %v816, %v880
          %v913 = vsel %vm849, %v817, %v881
          %v914 = vsel %vm850, %v818, %v882
          %915 = vst [vmem:[%s257] sm:$0xff] %v883
          %916 = vst [vmem:[%s257 + $0x8] sm:$0xff] %v884
          %917 = vst [vmem:[%s257 + $0x10] sm:$0xff] %v885
          %918 = vst [vmem:[%s257 + $0x18] sm:$0xff] %v886
          %919 = vst [vmem:[%s257 + $0x20] sm:$0xff] %v887
          %920 = vst [vmem:[%s257 + $0x28] sm:$0xff] %v888
          %921 = vst [vmem:[%s257 + $0x30] sm:$0xff] %v889
          %922 = vst [vmem:[%s257 + $0x38] sm:$0xff] %v890
          %923 = vst [vmem:[%s257 + $0x40] sm:$0xff] %v891
          %924 = vst [vmem:[%s257 + $0x48] sm:$0xff] %v892
          %925 = vst [vmem:[%s257 + $0x50] sm:$0xff] %v893
          %926 = vst [vmem:[%s257 + $0x58] sm:$0xff] %v894
          %927 = vst [vmem:[%s257 + $0x60] sm:$0xff] %v895
          %928 = vst [vmem:[%s257 + $0x68] sm:$0xff] %v896
          %929 = vst [vmem:[%s257 + $0x70] sm:$0xff] %v897
          %930 = vst [vmem:[%s257 + $0x78] sm:$0xff] %v898
          %931 = vst [vmem:[%s257 + $0x80] sm:$0xff] %v899
          %932 = vst [vmem:[%s257 + $0x88] sm:$0xff] %v900
          %933 = vst [vmem:[%s257 + $0x90] sm:$0xff] %v901
          %934 = vst [vmem:[%s257 + $0x98] sm:$0xff] %v902
          %935 = vst [vmem:[%s257 + $0xa0] sm:$0xff] %v903
          %936 = vst [vmem:[%s257 + $0xa8] sm:$0xff] %v904
          %937 = vst [vmem:[%s257 + $0xb0] sm:$0xff] %v905
          %938 = vst [vmem:[%s257 + $0xb8] sm:$0xff] %v906
          %939 = vst [vmem:[%s257 + $0xc0] sm:$0xff] %v907
          %940 = vst [vmem:[%s257 + $0xc8] sm:$0xff] %v908
          %941 = vst [vmem:[%s257 + $0xd0] sm:$0xff] %v909
          %942 = vst [vmem:[%s257 + $0xd8] sm:$0xff] %v910
          %943 = vst [vmem:[%s257 + $0xe0] sm:$0xff] %v911
          %944 = vst [vmem:[%s257 + $0xe8] sm:$0xff] %v912
          %945 = vst [vmem:[%s257 + $0xf0] sm:$0xff] %v913
          %946 = vst [vmem:[%s257 + $0xf8] sm:$0xff] %v914
        $region48: #{discriminator_forward.17} parent=31 // pred_fallthru
          _
        %s947 = smul.u32 32, %s21
        %p948 = scmp.lt.s32.totalorder %s947, 63
        %s949 = scalar_select %p948, %s947, 63
        %p950 = scmp.lt.s32.totalorder %s22, 0
        %s951 = scalar_select %p950, %s22, 0
        %s952 = sadd.s32 %s951, %s949
        %s953 = smul.addr %s952, 8
        %s954 = scalar_lea.vmem %s3, %s953
        // Predicated region
        $region49: #{discriminator_forward.17} parent=31 // pred_check
          %p955 = pneg %p137
        $region50: #{discriminator_forward.17} parent=31 // pred_check_branch
          %957 = sbr.rel (%p955) target = $region52
        $region51: #{discriminator_forward.17} parent=31 // pred_region
          %s958 = smul.u32 32, %s21
        $region52: #{discriminator_forward.17} parent=31 // pred_fallthru
          _
      $region32: #{discriminator_forward.17} parent=5 // pred_fallthru
        _
      %p959 = scmp.le.s32.totalorder 2, %s11
      // Predicated region
      $region53: #{discriminator_forward.17} parent=5 // pred_check
        %p960 = pneg %p959
      $region54: #{discriminator_forward.17} parent=5 // pred_check_branch
        %962 = sbr.rel (%p960) target = $region56
      $region55: #{discriminator_forward.17} parent=5 // pred_region
        %s963 = ssub.s32 %s11, 2
        // Predicated region
        $region57: #{discriminator_forward.17} parent=55 // pred_check
          %p964 = pneg %p143
        $region58: #{discriminator_forward.17} parent=55 // pred_check_branch
          %966 = sbr.rel (%p964) target = $region60
        $region59: #{discriminator_forward.17} parent=55 // pred_region
          %s967 = smul.u32 32, %s24
          %p968 = scmp.lt.s32.totalorder %s967, 63
          %s969 = scalar_select %p968, %s967, 63
          %p970 = scmp.lt.s32.totalorder %s25, 0
          %s971 = scalar_select %p970, %s25, 0
          %s972 = sadd.s32 %s971, %s969
          %s973 = smul.addr %s972, 8
          %s974 = scalar_lea.vmem %s3, %s973
        $region60: #{discriminator_forward.17} parent=55 // pred_fallthru
          _
      $region56: #{discriminator_forward.17} parent=5 // pred_fallthru
        _
    $region6: #{discriminator_forward.17} parent=1 // loop_footer
      %s15 = sadd.s32 1, %s11
    $region7: #{discriminator_forward.17} parent=1 // loop_footer_branch
      %10 = sbr.rel target = $region3
    $region8: #{discriminator_forward.17} parent=1 // loop_exit
      _
    %975 = vsyncpa [#allocation4], 1
    %s976 = scalar_lea.sflag [#allocation4], 1
    %977 = vsyncpa %s976, 1
    %978 = vsyncpa [#allocation6], 1

// kernel: discriminator_forward.18
$region0: #{discriminator_forward.18}
  #allocation0 [shape = 'u32[]', space=smem, size = 0x4, offset = 0x4, fixed_abs, tag = 'smem constant byte address 0x4 - core index']
  #allocation1 [shape = 'u32[144,128]{1,0:T(1,128)}', space=vmem, size = 0x12000, scoped, tag = 'internal scratch']
  #allocation2 [shape = 'f32[128,128]{1,0:T(8,128)}', space=vmem, size = 0x10000, scoped, tag = 'scratch operand']
  %s0 = inlined_call_operand.vmem [shape: bf16[128,640], index: 0, kind: input, shape index: {}]
  %s1 = inlined_call_operand.hbm [shape: bf16[640,128], index: 1, kind: input, shape index: {}]
  %s2 = inlined_call_operand.hbm [shape: f32[1,128], index: 2, kind: input, shape index: {}]
  %s3 = inlined_call_operand.vmem [shape: f32[128,128], index: 3, kind: output, shape index: {}]
  %s4 = sld [smem:[#allocation0]]
  $region102: #{discriminator_forward.18} parent=0
    _
  %s6 = ssub.s32 1, %s4
  %s7 = scalar_select 0, %s6, %s4
  $region1: #{discriminator_forward.18} parent=0
    #allocation3 [shape = 'u8[65536]{0}', space=vmem, size = 0x10000, scoped, tag = 'input window, operand 0']
    #allocation4 [shape = 'u8[65536]{0}', space=vmem, size = 0x10000, scoped, tag = 'input window, operand 1']
    #allocation5 [shape = 's32[2]{0}', space=sflag, size = 0x8, scoped, tag = 'scoped memory for discriminator_forward.18']
    #allocation6 [shape = 'u8[512]{0}', space=vmem, size = 0x400, scoped, tag = 'input window, operand 2, single buffered']
    #allocation7 [shape = 's32[1]{0}', space=sflag, size = 0x4, scoped, tag = 'scoped memory for discriminator_forward.18']
    %8 = vsyncpa [#allocation5], 0
    %s9 = scalar_lea.sflag [#allocation5], 1
    %10 = vsyncpa %s9, 0
    %11 = vsyncpa [#allocation7], 0
    loop: start=0, step=1, limit=7
    $region2: #{discriminator_forward.18} parent=1 // loop_pre_header
      _
    $region3: #{discriminator_forward.18} parent=1 // loop_header
      %s13 = sphi 0, %s17
      %p14 = scmp.ge.s32.totalorder %s13, 7
      %s20 = sphi 0, %s39
      %s21 = sphi 0, %s35
      %s22 = sphi 0, %s31
      %s23 = sphi 0, %s20
      %s24 = sphi 0, %s21
      %s25 = sphi 0, %s22
      %s26 = sphi 0, %s23
      %s27 = sphi 0, %s24
      %s28 = sphi 0, %s25
      %s44 = sphi 0, %s46
      %s47 = sphi 0, %s44
      %s48 = sphi 0, %s47
      %s64 = sphi 0, %s48
      %s72 = sphi 0, %s74
      %s75 = sphi 0, %s72
      %s76 = sphi 0, %s75
      %s92 = sphi 0, %s76
      %s98 = sphi 0, %s100
      %s101 = sphi 0, %s98
      %s102 = sphi 0, %s101
      %s118 = sphi 0, %s102
      %s126 = sphi 0, %s128
      %s129 = sphi 0, %s126
      %s130 = sphi 0, %s129
      %s146 = sphi 0, %s130
    $region4: #{discriminator_forward.18} parent=1 // loop_header_branch
      %16 = sbr.rel (%p14) target = $region8
    $region5: #{discriminator_forward.18} parent=1 // loop_body
      %s18 = ssub.s32 %s13, 1
      %s19 = ssub.s32 %s13, 2
      %s29 = sadd.s32 1, %s22
      %p30 = scmp.ge.s32.totalorder %s29, 5
      %s31 = scalar_select %p30, 0, %s29
      %s32 = sadd.s32 1, %s21
      %s33 = scalar_select %p30, %s32, %s21
      %p34 = scmp.ge.s32.totalorder %s33, 1
      %s35 = scalar_select %p34, 0, %s33
      %s36 = sadd.s32 1, %s20
      %s37 = scalar_select %p34, %s36, %s20
      %p38 = scmp.ge.s32.totalorder %s37, 1
      %s39 = scalar_select %p38, 0, %s37
      %s40 = ssub.s32 %s20, %s39
      %s41 = ssub.s32 %s22, %s31
      %s42 = sor.u32 %s40, %s41
      %p43 = scmp.eq.s32.totalorder %s42, 0
      %s45 = sadd.s32 %s44, 1
      %s46 = scalar_select %p43, %s44, %s45
      %p49 = pneg %p43
      %p50 = scmp.eq.s32.totalorder %s13, 4
      %p51 = por %p49, %p50
      %p52 = scmp.ne.s32.totalorder %s44, %s47
      %p53 = scmp.eq.s32.totalorder %s13, 0
      %p54 = por %p52, %p53
      %p55 = scmp.ne.s32.totalorder %s44, %s47
      %p56 = scmp.eq.s32.totalorder %s18, 4
      %p57 = por %p55, %p56
      %p58 = scmp.ne.s32.totalorder %s47, %s48
      %p59 = scmp.eq.s32.totalorder %s18, 0
      %p60 = por %p58, %p59
      %p61 = scmp.ne.s32.totalorder %s47, %s48
      %p62 = scmp.eq.s32.totalorder %s19, 4
      %p63 = por %p61, %p62
      %p65 = scmp.ne.s32.totalorder %s48, %s64
      %p66 = scmp.eq.s32.totalorder %s19, 0
      %p67 = por %p65, %p66
      %s68 = ssub.s32 %s22, %s31
      %s69 = ssub.s32 %s21, %s35
      %s70 = sor.u32 %s68, %s69
      %p71 = scmp.eq.s32.totalorder %s70, 0
      %s73 = sadd.s32 %s72, 1
      %s74 = scalar_select %p71, %s72, %s73
      %p77 = pneg %p71
      %p78 = scmp.eq.s32.totalorder %s13, 4
      %p79 = por %p77, %p78
      %p80 = scmp.ne.s32.totalorder %s72, %s75
      %p81 = scmp.eq.s32.totalorder %s13, 0
      %p82 = por %p80, %p81
      %p83 = scmp.ne.s32.totalorder %s72, %s75
      %p84 = scmp.eq.s32.totalorder %s18, 4
      %p85 = por %p83, %p84
      %p86 = scmp.ne.s32.totalorder %s75, %s76
      %p87 = scmp.eq.s32.totalorder %s18, 0
      %p88 = por %p86, %p87
      %p89 = scmp.ne.s32.totalorder %s75, %s76
      %p90 = scmp.eq.s32.totalorder %s19, 4
      %p91 = por %p89, %p90
      %p93 = scmp.ne.s32.totalorder %s76, %s92
      %p94 = scmp.eq.s32.totalorder %s19, 0
      %p95 = por %p93, %p94
      %s96 = ssub.s32 %s21, %s35
      %p97 = scmp.eq.s32.totalorder %s96, 0
      %s99 = sadd.s32 %s98, 1
      %s100 = scalar_select %p97, %s98, %s99
      %p103 = pneg %p97
      %p104 = scmp.eq.s32.totalorder %s13, 4
      %p105 = por %p103, %p104
      %p106 = scmp.ne.s32.totalorder %s98, %s101
      %p107 = scmp.eq.s32.totalorder %s13, 0
      %p108 = por %p106, %p107
      %p109 = scmp.ne.s32.totalorder %s98, %s101
      %p110 = scmp.eq.s32.totalorder %s18, 4
      %p111 = por %p109, %p110
      %p112 = scmp.ne.s32.totalorder %s101, %s102
      %p113 = scmp.eq.s32.totalorder %s18, 0
      %p114 = por %p112, %p113
      %p115 = scmp.ne.s32.totalorder %s101, %s102
      %p116 = scmp.eq.s32.totalorder %s19, 4
      %p117 = por %p115, %p116
      %p119 = scmp.ne.s32.totalorder %s102, %s118
      %p120 = scmp.eq.s32.totalorder %s19, 0
      %p121 = por %p119, %p120
      %s122 = ssub.s32 %s20, %s39
      %s123 = ssub.s32 %s21, %s35
      %s124 = sor.u32 %s122, %s123
      %p125 = scmp.eq.s32.totalorder %s124, 0
      %s127 = sadd.s32 %s126, 1
      %s128 = scalar_select %p125, %s126, %s127
      %p131 = pneg %p125
      %p132 = scmp.eq.s32.totalorder %s13, 4
      %p133 = por %p131, %p132
      %p134 = scmp.ne.s32.totalorder %s126, %s129
      %p135 = scmp.eq.s32.totalorder %s13, 0
      %p136 = por %p134, %p135
      %p137 = scmp.ne.s32.totalorder %s126, %s129
      %p138 = scmp.eq.s32.totalorder %s18, 4
      %p139 = por %p137, %p138
      %p140 = scmp.ne.s32.totalorder %s129, %s130
      %p141 = scmp.eq.s32.totalorder %s18, 0
      %p142 = por %p140, %p141
      %p143 = scmp.ne.s32.totalorder %s129, %s130
      %p144 = scmp.eq.s32.totalorder %s19, 4
      %p145 = por %p143, %p144
      %p147 = scmp.ne.s32.totalorder %s130, %s146
      %p148 = scmp.eq.s32.totalorder %s19, 0
      %p149 = por %p147, %p148
      %p150 = scmp.le.s32.totalorder 1, %s13
      %p151 = scmp.lt.s32.totalorder %s13, 6
      %p152 = pnand %p150, %p151
      %p153 = pneg %p152
      // Predicated region
      $region9: #{discriminator_forward.18} parent=5 // pred_check
        _
      $region10: #{discriminator_forward.18} parent=5 // pred_check_branch
        %155 = sbr.rel (%p152) target = $region12
      $region11: #{discriminator_forward.18} parent=5 // pred_region
        %s156 = ssub.s32 %s13, 1
        // Predicated region
        $region13: #{discriminator_forward.18} parent=11 // pred_check
          %p157 = pneg %p114
        $region14: #{discriminator_forward.18} parent=11 // pred_check_branch
          %159 = sbr.rel (%p157) target = $region16
        $region15: #{discriminator_forward.18} parent=11 // pred_region
          %s161 = ssub.s32 16, 16
          %162 = vsyncadd [#allocation7], %s161
          %s163 = smul.addr %s24, 16
          %s164 = scalar_lea.hbm %s2, %s163
          %s166 = sshll.u32 [#allocation6], 4
          %s167 = int_to_ptr.vmem [resolvable:$true] %s166
          %169 = dma.hbm_to_vmem [thread:$0]  %s164, 16, %s167, [#allocation7]
        $region16: #{discriminator_forward.18} parent=11 // pred_fallthru
          _
      $region12: #{discriminator_forward.18} parent=5 // pred_fallthru
        _
      %p170 = scmp.lt.s32.totalorder %s13, 5
      // Predicated region
      $region17: #{discriminator_forward.18} parent=5 // pred_check
        %p171 = pneg %p170
      $region18: #{discriminator_forward.18} parent=5 // pred_check_branch
        %173 = sbr.rel (%p171) target = $region20
      $region19: #{discriminator_forward.18} parent=5 // pred_region
        // Predicated region
        $region21: #{discriminator_forward.18} parent=19 // pred_check
          %p174 = pneg %p54
        $region22: #{discriminator_forward.18} parent=19 // pred_check_branch
          %176 = sbr.rel (%p174) target = $region24
        $region23: #{discriminator_forward.18} parent=19 // pred_region
          %s177 = sand.u32 %s44, 1
          %s178 = sand.u32 %s44, 1
          %s179 = smul.addr %s178, 64
          %s180 = scalar_lea.vmem [#allocation3], %s179
          %s181 = smul.u32 16, %s20
          %s182 = smul.addr %s181, 5
          %s183 = sadd.s32 %s22, %s182
          %s184 = smul.addr %s183, 4
          %s185 = scalar_lea.vmem %s0, %s184
          // Predicated region
          $region25: #{discriminator_forward.18} parent=23 // pred_check
            _
          $region26: #{discriminator_forward.18} parent=23 // pred_check_branch
            %187 = sbr.rel (0) target = $region28
          $region27: #{discriminator_forward.18} parent=23 // pred_region
            // Predicated region
            $region29: #{discriminator_forward.18} parent=27 // pred_check
              _
            $region30: #{discriminator_forward.18} parent=27 // pred_check_branch
              %189 = sbr.rel target = $region32
            $region31: #{discriminator_forward.18} parent=27 // pred_region
              // Predicated region
              $region44: #{discriminator_forward.18} parent=31 // pred_check
                _
              $region45: #{discriminator_forward.18} parent=31 // pred_check_branch
                %234 = sbr.rel (0) target = $region47
              $region46: #{discriminator_forward.18} parent=31 // pred_region
                loop: start=0, step=1, limit=1
                $region48: #{discriminator_forward.18} parent=46 // loop_pre_header
                  _
                $region49: #{discriminator_forward.18} parent=46 // loop_header
                  %s236 = sphi 0, %s240
                  %p237 = scmp.ge.s32.totalorder %s236, 1
                  %s241 = sphi %s185, %s185
                  %s242 = sphi %s180, %s180
                $region50: #{discriminator_forward.18} parent=46 // loop_header_branch
                  %239 = sbr.rel (%p237) target = $region54
                $region51: #{discriminator_forward.18} parent=46 // loop_body
                  _
                $region52: #{discriminator_forward.18} parent=46 // loop_footer
                  %s240 = sadd.s32 1, %s236
                $region53: #{discriminator_forward.18} parent=46 // loop_footer_branch
                  %235 = sbr.rel target = $region49
                $region54: #{discriminator_forward.18} parent=46 // loop_exit
                  _
                loop: start=0, step=1, limit=1
                $region55: #{discriminator_forward.18} parent=46 // loop_pre_header
                  _
                $region56: #{discriminator_forward.18} parent=46 // loop_header
                  %s245 = sphi 0, %s249
                  %p246 = scmp.ge.s32.totalorder %s245, 1
                  %s250 = sphi %s185, %s185
                  %s251 = sphi %s180, %s180
                $region57: #{discriminator_forward.18} parent=46 // loop_header_branch
                  %248 = sbr.rel (%p246) target = $region61
                $region58: #{discriminator_forward.18} parent=46 // loop_body
                  %v252 = vld [vmem:[%s250] sm:$0xf]
                  %253 = vst [vmem:[%s251] sm:$0xf] %v252
                  %v254 = vld [vmem:[%s250 + $0x14] sm:$0xf]
                  %255 = vst [vmem:[%s251 + $0x4] sm:$0xf] %v254
                  %v256 = vld [vmem:[%s250 + $0x28] sm:$0xf]
                  %257 = vst [vmem:[%s251 + $0x8] sm:$0xf] %v256
                  %v258 = vld [vmem:[%s250 + $0x3c] sm:$0xf]
                  %259 = vst [vmem:[%s251 + $0xc] sm:$0xf] %v258
                  %v260 = vld [vmem:[%s250 + $0x50] sm:$0xf]
                  %261 = vst [vmem:[%s251 + $0x10] sm:$0xf] %v260
                  %v262 = vld [vmem:[%s250 + $0x64] sm:$0xf]
                  %263 = vst [vmem:[%s251 + $0x14] sm:$0xf] %v262
                  %v264 = vld [vmem:[%s250 + $0x78] sm:$0xf]
                  %265 = vst [vmem:[%s251 + $0x18] sm:$0xf] %v264
                  %v266 = vld [vmem:[%s250 + $0x8c] sm:$0xf]
                  %267 = vst [vmem:[%s251 + $0x1c] sm:$0xf] %v266
                  %v268 = vld [vmem:[%s250 + $0xa0] sm:$0xf]
                  %269 = vst [vmem:[%s251 + $0x20] sm:$0xf] %v268
                  %v270 = vld [vmem:[%s250 + $0xb4] sm:$0xf]
                  %271 = vst [vmem:[%s251 + $0x24] sm:$0xf] %v270
                  %v272 = vld [vmem:[%s250 + $0xc8] sm:$0xf]
                  %273 = vst [vmem:[%s251 + $0x28] sm:$0xf] %v272
                  %v274 = vld [vmem:[%s250 + $0xdc] sm:$0xf]
                  %275 = vst [vmem:[%s251 + $0x2c] sm:$0xf] %v274
                  %v276 = vld [vmem:[%s250 + $0xf0] sm:$0xf]
                  %277 = vst [vmem:[%s251 + $0x30] sm:$0xf] %v276
                  %v278 = vld [vmem:[%s250 + $0x104] sm:$0xf]
                  %279 = vst [vmem:[%s251 + $0x34] sm:$0xf] %v278
                  %v280 = vld [vmem:[%s250 + $0x118] sm:$0xf]
                  %281 = vst [vmem:[%s251 + $0x38] sm:$0xf] %v280
                  %v282 = vld [vmem:[%s250 + $0x12c] sm:$0xf]
                  %283 = vst [vmem:[%s251 + $0x3c] sm:$0xf] %v282
                $region59: #{discriminator_forward.18} parent=46 // loop_footer
                  %s249 = sadd.s32 1, %s245
                $region60: #{discriminator_forward.18} parent=46 // loop_footer_branch
                  %244 = sbr.rel target = $region56
                $region61: #{discriminator_forward.18} parent=46 // loop_exit
                  _
              $region47: #{discriminator_forward.18} parent=31 // pred_fallthru
                _
            $region32: #{discriminator_forward.18} parent=27 // pred_fallthru
              _
            // Predicated region
            $region33: #{discriminator_forward.18} parent=27 // pred_check
              _
            $region34: #{discriminator_forward.18} parent=27 // pred_check_branch
              %191 = sbr.rel (0) target = $region36
            $region35: #{discriminator_forward.18} parent=27 // pred_region
              loop: start=0, step=1, limit=1
              $region37: #{discriminator_forward.18} parent=35 // loop_pre_header
                _
              $region38: #{discriminator_forward.18} parent=35 // loop_header
                %s194 = sphi 0, %s198
                %p195 = scmp.ge.s32.totalorder %s194, 1
                %s199 = sphi %s185, %s185
                %s200 = sphi %s180, %s180
              $region39: #{discriminator_forward.18} parent=35 // loop_header_branch
                %197 = sbr.rel (%p195) target = $region43
              $region40: #{discriminator_forward.18} parent=35 // loop_body
                %v201 = vld [vmem:[%s199] sm:$0xf]
                %202 = vst [vmem:[%s200] sm:$0xf] %v201
                %v203 = vld [vmem:[%s199 + $0x14] sm:$0xf]
                %204 = vst [vmem:[%s200 + $0x4] sm:$0xf] %v203
                %v205 = vld [vmem:[%s199 + $0x28] sm:$0xf]
                %206 = vst [vmem:[%s200 + $0x8] sm:$0xf] %v205
                %v207 = vld [vmem:[%s199 + $0x3c] sm:$0xf]
                %208 = vst [vmem:[%s200 + $0xc] sm:$0xf] %v207
                %v209 = vld [vmem:[%s199 + $0x50] sm:$0xf]
                %210 = vst [vmem:[%s200 + $0x10] sm:$0xf] %v209
                %v211 = vld [vmem:[%s199 + $0x64] sm:$0xf]
                %212 = vst [vmem:[%s200 + $0x14] sm:$0xf] %v211
                %v213 = vld [vmem:[%s199 + $0x78] sm:$0xf]
                %214 = vst [vmem:[%s200 + $0x18] sm:$0xf] %v213
                %v215 = vld [vmem:[%s199 + $0x8c] sm:$0xf]
                %216 = vst [vmem:[%s200 + $0x1c] sm:$0xf] %v215
                %v217 = vld [vmem:[%s199 + $0xa0] sm:$0xf]
                %218 = vst [vmem:[%s200 + $0x20] sm:$0xf] %v217
                %v219 = vld [vmem:[%s199 + $0xb4] sm:$0xf]
                %220 = vst [vmem:[%s200 + $0x24] sm:$0xf] %v219
                %v221 = vld [vmem:[%s199 + $0xc8] sm:$0xf]
                %222 = vst [vmem:[%s200 + $0x28] sm:$0xf] %v221
                %v223 = vld [vmem:[%s199 + $0xdc] sm:$0xf]
                %224 = vst [vmem:[%s200 + $0x2c] sm:$0xf] %v223
                %v225 = vld [vmem:[%s199 + $0xf0] sm:$0xf]
                %226 = vst [vmem:[%s200 + $0x30] sm:$0xf] %v225
                %v227 = vld [vmem:[%s199 + $0x104] sm:$0xf]
                %228 = vst [vmem:[%s200 + $0x34] sm:$0xf] %v227
                %v229 = vld [vmem:[%s199 + $0x118] sm:$0xf]
                %230 = vst [vmem:[%s200 + $0x38] sm:$0xf] %v229
                %v231 = vld [vmem:[%s199 + $0x12c] sm:$0xf]
                %232 = vst [vmem:[%s200 + $0x3c] sm:$0xf] %v231
              $region41: #{discriminator_forward.18} parent=35 // loop_footer
                %s198 = sadd.s32 1, %s194
              $region42: #{discriminator_forward.18} parent=35 // loop_footer_branch
                %193 = sbr.rel target = $region38
              $region43: #{discriminator_forward.18} parent=35 // loop_exit
                _
            $region36: #{discriminator_forward.18} parent=27 // pred_fallthru
              _
          $region28: #{discriminator_forward.18} parent=23 // pred_fallthru
            _
          %284 = vnop
        $region24: #{discriminator_forward.18} parent=19 // pred_fallthru
          _
        // Predicated region
        $region62: #{discriminator_forward.18} parent=19 // pred_check
          %p285 = pneg %p82
        $region63: #{discriminator_forward.18} parent=19 // pred_check_branch
          %287 = sbr.rel (%p285) target = $region65
        $region64: #{discriminator_forward.18} parent=19 // pred_region
          %s288 = sand.u32 %s72, 1
          %s289 = scalar_lea.sflag [#allocation5], %s288
          %s290 = sand.u32 %s72, 1
          %s291 = smul.addr %s290, 64
          %s292 = scalar_lea.vmem [#allocation4], %s291
          %s293 = smul.u32 16, %s22
          %s295 = ssub.s32 1024, 1024
          %296 = vsyncadd %s289, %s295
          %s297 = sadd.s32 %s21, %s293
          %s298 = smul.addr %s297, 64
          %s299 = scalar_lea.hbm %s1, %s298
          %s300 = sshll.u32 %s292, 4
          %s301 = int_to_ptr.vmem [resolvable:$true] %s300
          %306 = dma.hbm_to_vmem [thread:$0]  %s299, 1024, %s301, %s289, 64, 64, 4
        $region65: #{discriminator_forward.18} parent=19 // pred_fallthru
          _
      $region20: #{discriminator_forward.18} parent=5 // pred_fallthru
        _
      %p307 = scmp.le.s32.totalorder 1, %s13
      %p308 = scmp.lt.s32.totalorder %s13, 6
      %p309 = pnand %p307, %p308
      %p310 = pneg %p309
      // Predicated region
      $region66: #{discriminator_forward.18} parent=5 // pred_check
        _
      $region67: #{discriminator_forward.18} parent=5 // pred_check_branch
        %312 = sbr.rel (%p309) target = $region69
      $region68: #{discriminator_forward.18} parent=5 // pred_region
        %s313 = ssub.s32 %s13, 1
        %s314 = sand.u32 %s47, 1
        %s315 = sand.u32 %s47, 1
        %s316 = smul.addr %s315, 64
        %s317 = scalar_lea.vmem [#allocation3], %s316
        // Predicated region
        $region70: #{discriminator_forward.18} parent=68 // pred_check
          %p318 = pneg %p60
        $region71: #{discriminator_forward.18} parent=68 // pred_check_branch
          %320 = sbr.rel (%p318) target = $region73
        $region72: #{discriminator_forward.18} parent=68 // pred_region
          _
        $region73: #{discriminator_forward.18} parent=68 // pred_fallthru
          _
        %s321 = sand.u32 %s75, 1
        %s322 = scalar_lea.sflag [#allocation5], %s321
        %s323 = sand.u32 %s75, 1
        %s324 = smul.addr %s323, 64
        %s325 = scalar_lea.vmem [#allocation4], %s324
        // Predicated region
        $region74: #{discriminator_forward.18} parent=68 // pred_check
          %p326 = pneg %p88
        $region75: #{discriminator_forward.18} parent=68 // pred_check_branch
          %328 = sbr.rel (%p326) target = $region77
        $region76: #{discriminator_forward.18} parent=68 // pred_region
          %329 = dma.done %s322, 1024
        $region77: #{discriminator_forward.18} parent=68 // pred_fallthru
          _
        // Predicated region
        $region78: #{discriminator_forward.18} parent=68 // pred_check
          %p330 = pneg %p114
        $region79: #{discriminator_forward.18} parent=68 // pred_check_branch
          %332 = sbr.rel (%p330) target = $region81
        $region80: #{discriminator_forward.18} parent=68 // pred_region
          %333 = dma.done [#allocation7], 16
        $region81: #{discriminator_forward.18} parent=68 // pred_fallthru
          _
        %s334 = sand.u32 %s47, 1
        %s335 = sand.u32 %s47, 1
        %s336 = smul.addr %s335, 64
        %s337 = scalar_lea.vmem [#allocation3], %s336
        %p338 = pneg %p60
        %p339 = pneg %p57
        %s340 = sand.u32 %s75, 1
        %s341 = scalar_lea.sflag [#allocation5], %s340
        %s342 = sand.u32 %s75, 1
        %s343 = smul.addr %s342, 64
        %s344 = scalar_lea.vmem [#allocation4], %s343
        %p345 = pneg %p88
        %p346 = pneg %p85
        %p347 = pneg %p114
        %p348 = pneg %p111
        %p349 = pneg %p142
        %p350 = pneg %p139
        %s351 = smul.u32 16, %s23
        %p352 = scmp.lt.s32.totalorder %s351, 15
        %s353 = scalar_select %p352, %s351, 15
        %p354 = scmp.lt.s32.totalorder %s24, 0
        %s355 = scalar_select %p354, %s24, 0
        %s356 = sadd.s32 %s355, %s353
        %s357 = smul.addr %s356, 8
        %s358 = scalar_lea.vmem %s3, %s357
        %s359 = smul.u32 16, %s23
        %s360 = smul.u32 16, %s25
        %s361 = smul.u32 16, %s23
        %p362 = scmp.lt.s32.totalorder %s361, 15
        %s363 = scalar_select %p362, %s361, 15
        %p364 = scmp.lt.s32.totalorder %s24, 0
        %s365 = scalar_select %p364, %s24, 0
        %s366 = sadd.s32 %s365, %s363
        %s367 = smul.addr %s366, 8
        %s368 = scalar_lea.vmem %s3, %s367
        %s369 = smul.u32 16, %s23
        %p371 = scmp.eq.s32.totalorder %s25, 0
        // Predicated region
        $region82: #{discriminator_forward.18} parent=68 // pred_check
          %p372 = pneg %p371
        $region83: #{discriminator_forward.18} parent=68 // pred_check_branch
          %374 = sbr.rel (%p372) target = $region85
        $region84: #{discriminator_forward.18} parent=68 // pred_region
          %375 = vst [vmem:[#allocation2] sm:$0xff] 0.0
          %376 = vst [vmem:[#allocation2 + $0x8] sm:$0xff] 0.0
          %377 = vst [vmem:[#allocation2 + $0x10] sm:$0xff] 0.0
          %378 = vst [vmem:[#allocation2 + $0x18] sm:$0xff] 0.0
          %379 = vst [vmem:[#allocation2 + $0x20] sm:$0xff] 0.0
          %380 = vst [vmem:[#allocation2 + $0x28] sm:$0xff] 0.0
          %381 = vst [vmem:[#allocation2 + $0x30] sm:$0xff] 0.0
          %382 = vst [vmem:[#allocation2 + $0x38] sm:$0xff] 0.0
          %383 = vst [vmem:[#allocation2 + $0x40] sm:$0xff] 0.0
          %384 = vst [vmem:[#allocation2 + $0x48] sm:$0xff] 0.0
          %385 = vst [vmem:[#allocation2 + $0x50] sm:$0xff] 0.0
          %386 = vst [vmem:[#allocation2 + $0x58] sm:$0xff] 0.0
          %387 = vst [vmem:[#allocation2 + $0x60] sm:$0xff] 0.0
          %388 = vst [vmem:[#allocation2 + $0x68] sm:$0xff] 0.0
          %389 = vst [vmem:[#allocation2 + $0x70] sm:$0xff] 0.0
          %390 = vst [vmem:[#allocation2 + $0x78] sm:$0xff] 0.0
        $region85: #{discriminator_forward.18} parent=68 // pred_fallthru
          _
        %v391 = vld [vmem:[#allocation2] sm:$0xff]
        %v392 = vld [vmem:[#allocation2 + $0x8] sm:$0xff]
        %v393 = vld [vmem:[#allocation2 + $0x10] sm:$0xff]
        %v394 = vld [vmem:[#allocation2 + $0x18] sm:$0xff]
        %v395 = vld [vmem:[#allocation2 + $0x20] sm:$0xff]
        %v396 = vld [vmem:[#allocation2 + $0x28] sm:$0xff]
        %v397 = vld [vmem:[#allocation2 + $0x30] sm:$0xff]
        %v398 = vld [vmem:[#allocation2 + $0x38] sm:$0xff]
        %v399 = vld [vmem:[#allocation2 + $0x40] sm:$0xff]
        %v400 = vld [vmem:[#allocation2 + $0x48] sm:$0xff]
        %v401 = vld [vmem:[#allocation2 + $0x50] sm:$0xff]
        %v402 = vld [vmem:[#allocation2 + $0x58] sm:$0xff]
        %v403 = vld [vmem:[#allocation2 + $0x60] sm:$0xff]
        %v404 = vld [vmem:[#allocation2 + $0x68] sm:$0xff]
        %v405 = vld [vmem:[#allocation2 + $0x70] sm:$0xff]
        %v406 = vld [vmem:[#allocation2 + $0x78] sm:$0xff]
        %v407 = vld [vmem:[%s317] sm:$0xf]
        %v408 = vld [vmem:[%s317 + $0x4] sm:$0xf]
        %v409 = vld [vmem:[%s317 + $0x8] sm:$0xf]
        %v410 = vld [vmem:[%s317 + $0xc] sm:$0xf]
        %v411 = vld [vmem:[%s317 + $0x10] sm:$0xf]
        %v412 = vld [vmem:[%s317 + $0x14] sm:$0xf]
        %v413 = vld [vmem:[%s317 + $0x18] sm:$0xf]
        %v414 = vld [vmem:[%s317 + $0x1c] sm:$0xf]
        %v415 = vld [vmem:[%s317 + $0x20] sm:$0xf]
        %v416 = vld [vmem:[%s317 + $0x24] sm:$0xf]
        %v417 = vld [vmem:[%s317 + $0x28] sm:$0xf]
        %v418 = vld [vmem:[%s317 + $0x2c] sm:$0xf]
        %v419 = vld [vmem:[%s317 + $0x30] sm:$0xf]
        %v420 = vld [vmem:[%s317 + $0x34] sm:$0xf]
        %v421 = vld [vmem:[%s317 + $0x38] sm:$0xf]
        %v422 = vld [vmem:[%s317 + $0x3c] sm:$0xf]
        %v423 = vld [vmem:[%s325] sm:$0xf]
        %v424 = vld [vmem:[%s325 + $0x4] sm:$0xf]
        %v425 = vld [vmem:[%s325 + $0x8] sm:$0xf]
        %v426 = vld [vmem:[%s325 + $0xc] sm:$0xf]
        %v427 = vld [vmem:[%s325 + $0x10] sm:$0xf]
        %v428 = vld [vmem:[%s325 + $0x14] sm:$0xf]
        %v429 = vld [vmem:[%s325 + $0x18] sm:$0xf]
        %v430 = vld [vmem:[%s325 + $0x1c] sm:$0xf]
        %v431 = vld [vmem:[%s325 + $0x20] sm:$0xf]
        %v432 = vld [vmem:[%s325 + $0x24] sm:$0xf]
        %v433 = vld [vmem:[%s325 + $0x28] sm:$0xf]
        %v434 = vld [vmem:[%s325 + $0x2c] sm:$0xf]
        %v435 = vld [vmem:[%s325 + $0x30] sm:$0xf]
        %v436 = vld [vmem:[%s325 + $0x34] sm:$0xf]
        %v437 = vld [vmem:[%s325 + $0x38] sm:$0xf]
        %v438 = vld [vmem:[%s325 + $0x3c] sm:$0xf]
        %v455 = vunpack.c.l.b16 %v407
        %v456 = vunpack.c.l.b16 %v408
        %v457 = vunpack.c.l.b16 %v409
        %v458 = vunpack.c.l.b16 %v410
        %v459 = vunpack.c.l.b16 %v411
        %v460 = vunpack.c.l.b16 %v412
        %v461 = vunpack.c.l.b16 %v413
        %v462 = vunpack.c.l.b16 %v414
        %v463 = vunpack.c.l.b16 %v415
        %v464 = vunpack.c.l.b16 %v416
        %v465 = vunpack.c.l.b16 %v417
        %v466 = vunpack.c.l.b16 %v418
        %v467 = vunpack.c.l.b16 %v419
        %v468 = vunpack.c.l.b16 %v420
        %v469 = vunpack.c.l.b16 %v421
        %v470 = vunpack.c.l.b16 %v422
        %v471 = vpack.c.b16 %v456, %v455
        %v472 = vpack.c.b16 %v458, %v457
        %v473 = vpack.c.b16 %v460, %v459
        %v474 = vpack.c.b16 %v462, %v461
        %v475 = vpack.c.b16 %v464, %v463
        %v476 = vpack.c.b16 %v466, %v465
        %v477 = vpack.c.b16 %v468, %v467
        %v478 = vpack.c.b16 %v470, %v469
        %v503 = vunpack.c.l.b16 %v423
        %v504 = vunpack.c.l.b16 %v424
        %v505 = vunpack.c.l.b16 %v425
        %v506 = vunpack.c.l.b16 %v426
        %v507 = vunpack.c.l.b16 %v427
        %v508 = vunpack.c.l.b16 %v428
        %v509 = vunpack.c.l.b16 %v429
        %v510 = vunpack.c.l.b16 %v430
        %v511 = vunpack.c.l.b16 %v431
        %v512 = vunpack.c.l.b16 %v432
        %v513 = vunpack.c.l.b16 %v433
        %v514 = vunpack.c.l.b16 %v434
        %v515 = vunpack.c.l.b16 %v435
        %v516 = vunpack.c.l.b16 %v436
        %v517 = vunpack.c.l.b16 %v437
        %v518 = vunpack.c.l.b16 %v438
        %v519 = vpack.c.b16 %v504, %v503
        %v520 = vpack.c.b16 %v506, %v505
        %v521 = vpack.c.b16 %v508, %v507
        %v522 = vpack.c.b16 %v510, %v509
        %v523 = vpack.c.b16 %v512, %v511
        %v524 = vpack.c.b16 %v514, %v513
        %v525 = vpack.c.b16 %v516, %v515
        %v526 = vpack.c.b16 %v518, %v517
        %535 = vmatprep.subr.bf16.mxu0 0
        %536 = vmatpush1.bf16.msra.mxu0 %v519
        %537 = vmatprep.subr.bf16.mxu0 0
        %538 = vmatpush1.bf16.msra.mxu0 %v520
        %539 = vmatprep.subr.bf16.mxu0 0
        %540 = vmatpush1.bf16.msra.mxu0 %v521
        %541 = vmatprep.subr.bf16.mxu0 0
        %542 = vmatpush1.bf16.msra.mxu0 %v522
        %543 = vmatprep.subr.bf16.mxu0 0
        %544 = vmatpush1.bf16.msra.mxu0 %v523
        %545 = vmatprep.subr.bf16.mxu0 0
        %546 = vmatpush1.bf16.msra.mxu0 %v524
        %547 = vmatprep.subr.bf16.mxu0 0
        %548 = vmatpush1.bf16.msra.mxu0 %v525
        %549 = vmatprep.subr.bf16.mxu0 0
        %550 = vmatpush1.bf16.msra.mxu0 %v526
        %551 = vmatprep.subr.bf16.mxu0 0
        %552 = vmatpush1.bf16.msra.mxu0 0
        %553 = vmatprep.subr.bf16.mxu0 0
        %554 = vmatpush1.bf16.msra.mxu0 0
        %555 = vmatprep.subr.bf16.mxu0 0
        %556 = vmatpush1.bf16.msra.mxu0 0
        %557 = vmatprep.subr.bf16.mxu0 0
        %558 = vmatpush1.bf16.msra.mxu0 0
        %559 = vmatprep.subr.bf16.mxu0 0
        %560 = vmatpush1.bf16.msra.mxu0 0
        %561 = vmatprep.subr.bf16.mxu0 0
        %562 = vmatpush1.bf16.msra.mxu0 0
        %563 = vmatprep.subr.bf16.mxu0 0
        %564 = vmatpush1.bf16.msra.mxu0 0
        %565 = vmatprep.subr.bf16.mxu0 0
        %566 = vmatpush1.bf16.msra.mxu0 0
        %567 = vmatprep.mubr.bf16.mxu0 0
        %568 = vmatmul.mubr.bf16.gmra.mrb[0].mxu0 %v471
        %v569 = vpop.f32.mrb[0].mxu0
        %v570 = vadd.f32 0.0, %v569
        %v571 = vpop.f32.mrb[0].mxu0
        %v572 = vpop.f32.mrb[0].mxu0
        %v573 = vadd.f32 0.0, %v572
        %v574 = vpop.f32.mrb[0].mxu0
        %575 = vmatprep.mubr.bf16.mxu0 0
        %576 = vmatmul.mubr.bf16.gmra.mrb[0].mxu0 %v472
        %v577 = vpop.f32.mrb[0].mxu0
        %v578 = vadd.f32 0.0, %v577
        %v579 = vpop.f32.mrb[0].mxu0
        %v580 = vpop.f32.mrb[0].mxu0
        %v581 = vadd.f32 0.0, %v580
        %v582 = vpop.f32.mrb[0].mxu0
        %583 = vmatprep.mubr.bf16.mxu0 0
        %584 = vmatmul.mubr.bf16.gmra.mrb[0].mxu0 %v473
        %v585 = vpop.f32.mrb[0].mxu0
        %v586 = vadd.f32 0.0, %v585
        %v587 = vpop.f32.mrb[0].mxu0
        %v588 = vpop.f32.mrb[0].mxu0
        %v589 = vadd.f32 0.0, %v588
        %v590 = vpop.f32.mrb[0].mxu0
        %591 = vmatprep.mubr.bf16.mxu0 0
        %592 = vmatmul.mubr.bf16.gmra.mrb[0].mxu0 %v474
        %v593 = vpop.f32.mrb[0].mxu0
        %v594 = vadd.f32 0.0, %v593
        %v595 = vpop.f32.mrb[0].mxu0
        %v596 = vpop.f32.mrb[0].mxu0
        %v597 = vadd.f32 0.0, %v596
        %v598 = vpop.f32.mrb[0].mxu0
        %599 = vmatprep.mubr.bf16.mxu0 0
        %600 = vmatmul.mubr.bf16.gmra.mrb[0].mxu0 %v475
        %v601 = vpop.f32.mrb[0].mxu0
        %v602 = vadd.f32 0.0, %v601
        %v603 = vpop.f32.mrb[0].mxu0
        %v604 = vpop.f32.mrb[0].mxu0
        %v605 = vadd.f32 0.0, %v604
        %v606 = vpop.f32.mrb[0].mxu0
        %607 = vmatprep.mubr.bf16.mxu0 0
        %608 = vmatmul.mubr.bf16.gmra.mrb[0].mxu0 %v476
        %v609 = vpop.f32.mrb[0].mxu0
        %v610 = vadd.f32 0.0, %v609
        %v611 = vpop.f32.mrb[0].mxu0
        %v612 = vpop.f32.mrb[0].mxu0
        %v613 = vadd.f32 0.0, %v612
        %v614 = vpop.f32.mrb[0].mxu0
        %615 = vmatprep.mubr.bf16.mxu0 0
        %616 = vmatmul.mubr.bf16.gmra.mrb[0].mxu0 %v477
        %v617 = vpop.f32.mrb[0].mxu0
        %v618 = vadd.f32 0.0, %v617
        %v619 = vpop.f32.mrb[0].mxu0
        %v620 = vpop.f32.mrb[0].mxu0
        %v621 = vadd.f32 0.0, %v620
        %v622 = vpop.f32.mrb[0].mxu0
        %623 = vmatprep.mubr.bf16.mxu0 0
        %624 = vmatmul.mubr.bf16.gmra.mrb[0].mxu0 %v478
        %v625 = vpop.f32.mrb[0].mxu0
        %v626 = vadd.f32 0.0, %v625
        %v627 = vpop.f32.mrb[0].mxu0
        %v628 = vpop.f32.mrb[0].mxu0
        %v629 = vadd.f32 0.0, %v628
        %v630 = vpop.f32.mrb[0].mxu0
        %631 = vdwg.mxu0
        %v632 = vadd.f32 %v391, %v570
        %v633 = vadd.f32 %v392, %v573
        %v634 = vadd.f32 %v393, %v578
        %v635 = vadd.f32 %v394, %v581
        %v636 = vadd.f32 %v395, %v586
        %v637 = vadd.f32 %v396, %v589
        %v638 = vadd.f32 %v397, %v594
        %v639 = vadd.f32 %v398, %v597
        %v640 = vadd.f32 %v399, %v602
        %v641 = vadd.f32 %v400, %v605
        %v642 = vadd.f32 %v401, %v610
        %v643 = vadd.f32 %v402, %v613
        %v644 = vadd.f32 %v403, %v618
        %v645 = vadd.f32 %v404, %v621
        %v646 = vadd.f32 %v405, %v626
        %v647 = vadd.f32 %v406, %v629
        %648 = vst [vmem:[#allocation2] sm:$0xff] %v632
        %649 = vst [vmem:[#allocation2 + $0x8] sm:$0xff] %v633
        %650 = vst [vmem:[#allocation2 + $0x10] sm:$0xff] %v634
        %651 = vst [vmem:[#allocation2 + $0x18] sm:$0xff] %v635
        %652 = vst [vmem:[#allocation2 + $0x20] sm:$0xff] %v636
        %653 = vst [vmem:[#allocation2 + $0x28] sm:$0xff] %v637
        %654 = vst [vmem:[#allocation2 + $0x30] sm:$0xff] %v638
        %655 = vst [vmem:[#allocation2 + $0x38] sm:$0xff] %v639
        %656 = vst [vmem:[#allocation2 + $0x40] sm:$0xff] %v640
        %657 = vst [vmem:[#allocation2 + $0x48] sm:$0xff] %v641
        %658 = vst [vmem:[#allocation2 + $0x50] sm:$0xff] %v642
        %659 = vst [vmem:[#allocation2 + $0x58] sm:$0xff] %v643
        %660 = vst [vmem:[#allocation2 + $0x60] sm:$0xff] %v644
        %661 = vst [vmem:[#allocation2 + $0x68] sm:$0xff] %v645
        %662 = vst [vmem:[#allocation2 + $0x70] sm:$0xff] %v646
        %663 = vst [vmem:[#allocation2 + $0x78] sm:$0xff] %v647
        %p664 = scmp.eq.s32.totalorder %s25, 4
        // Predicated region
        $region86: #{discriminator_forward.18} parent=68 // pred_check
          %p665 = pneg %p664
        $region87: #{discriminator_forward.18} parent=68 // pred_check_branch
          %667 = sbr.rel (%p665) target = $region89
        $region88: #{discriminator_forward.18} parent=68 // pred_region
          %v668 = vld [vmem:[#allocation2] sm:$0xff]
          %v669 = vld [vmem:[#allocation2 + $0x8] sm:$0xff]
          %v670 = vld [vmem:[#allocation2 + $0x10] sm:$0xff]
          %v671 = vld [vmem:[#allocation2 + $0x18] sm:$0xff]
          %v672 = vld [vmem:[#allocation2 + $0x20] sm:$0xff]
          %v673 = vld [vmem:[#allocation2 + $0x28] sm:$0xff]
          %v674 = vld [vmem:[#allocation2 + $0x30] sm:$0xff]
          %v675 = vld [vmem:[#allocation2 + $0x38] sm:$0xff]
          %v676 = vld [vmem:[#allocation2 + $0x40] sm:$0xff]
          %v677 = vld [vmem:[#allocation2 + $0x48] sm:$0xff]
          %v678 = vld [vmem:[#allocation2 + $0x50] sm:$0xff]
          %v679 = vld [vmem:[#allocation2 + $0x58] sm:$0xff]
          %v680 = vld [vmem:[#allocation2 + $0x60] sm:$0xff]
          %v681 = vld [vmem:[#allocation2 + $0x68] sm:$0xff]
          %v682 = vld [vmem:[#allocation2 + $0x70] sm:$0xff]
          %v683 = vld [vmem:[#allocation2 + $0x78] sm:$0xff]
          %v684 = vld [vmem:[#allocation6] sm:$0x1]
          %v686 = vlaneseq
          %v687 = vshrl.u32 %v686, 7
          %v688 = vsub.s32 0, %v687
          %v689 = vrot.slane %v684, %v688
          %v691 = vadd.f32 %v668, %v689
          %v692 = vadd.f32 %v669, %v689
          %v693 = vadd.f32 %v670, %v689
          %v694 = vadd.f32 %v671, %v689
          %v695 = vadd.f32 %v672, %v689
          %v696 = vadd.f32 %v673, %v689
          %v697 = vadd.f32 %v674, %v689
          %v698 = vadd.f32 %v675, %v689
          %v699 = vadd.f32 %v676, %v689
          %v700 = vadd.f32 %v677, %v689
          %v701 = vadd.f32 %v678, %v689
          %v702 = vadd.f32 %v679, %v689
          %v703 = vadd.f32 %v680, %v689
          %v704 = vadd.f32 %v681, %v689
          %v705 = vadd.f32 %v682, %v689
          %v706 = vadd.f32 %v683, %v689
          %707 = vst [vmem:[%s368] sm:$0xff] %v691
          %708 = vst [vmem:[%s368 + $0x8] sm:$0xff] %v692
          %709 = vst [vmem:[%s368 + $0x10] sm:$0xff] %v693
          %710 = vst [vmem:[%s368 + $0x18] sm:$0xff] %v694
          %711 = vst [vmem:[%s368 + $0x20] sm:$0xff] %v695
          %712 = vst [vmem:[%s368 + $0x28] sm:$0xff] %v696
          %713 = vst [vmem:[%s368 + $0x30] sm:$0xff] %v697
          %714 = vst [vmem:[%s368 + $0x38] sm:$0xff] %v698
          %715 = vst [vmem:[%s368 + $0x40] sm:$0xff] %v699
          %716 = vst [vmem:[%s368 + $0x48] sm:$0xff] %v700
          %717 = vst [vmem:[%s368 + $0x50] sm:$0xff] %v701
          %718 = vst [vmem:[%s368 + $0x58] sm:$0xff] %v702
          %719 = vst [vmem:[%s368 + $0x60] sm:$0xff] %v703
          %720 = vst [vmem:[%s368 + $0x68] sm:$0xff] %v704
          %721 = vst [vmem:[%s368 + $0x70] sm:$0xff] %v705
          %722 = vst [vmem:[%s368 + $0x78] sm:$0xff] %v706
        $region89: #{discriminator_forward.18} parent=68 // pred_fallthru
          _
        %s723 = smul.u32 16, %s23
        %p724 = scmp.lt.s32.totalorder %s723, 15
        %s725 = scalar_select %p724, %s723, 15
        %p726 = scmp.lt.s32.totalorder %s24, 0
        %s727 = scalar_select %p726, %s24, 0
        %s728 = sadd.s32 %s727, %s725
        %s729 = smul.addr %s728, 8
        %s730 = scalar_lea.vmem %s3, %s729
        // Predicated region
        $region90: #{discriminator_forward.18} parent=68 // pred_check
          %p731 = pneg %p139
        $region91: #{discriminator_forward.18} parent=68 // pred_check_branch
          %733 = sbr.rel (%p731) target = $region93
        $region92: #{discriminator_forward.18} parent=68 // pred_region
          %s734 = smul.u32 16, %s23
        $region93: #{discriminator_forward.18} parent=68 // pred_fallthru
          _
        // Predicated region
        $region94: #{discriminator_forward.18} parent=68 // pred_check
          %p735 = pneg %p139
        $region95: #{discriminator_forward.18} parent=68 // pred_check_branch
          %737 = sbr.rel (%p735) target = $region97
        $region96: #{discriminator_forward.18} parent=68 // pred_region
          %s738 = smul.u32 16, %s23
          %p739 = scmp.lt.s32.totalorder %s738, 15
          %s740 = scalar_select %p739, %s738, 15
          %p741 = scmp.lt.s32.totalorder %s24, 0
          %s742 = scalar_select %p741, %s24, 0
          %s743 = sadd.s32 %s742, %s740
          %s744 = smul.addr %s743, 8
          %s745 = scalar_lea.vmem %s3, %s744
        $region97: #{discriminator_forward.18} parent=68 // pred_fallthru
          _
      $region69: #{discriminator_forward.18} parent=5 // pred_fallthru
        _
      %p746 = scmp.le.s32.totalorder 2, %s13
      // Predicated region
      $region98: #{discriminator_forward.18} parent=5 // pred_check
        %p747 = pneg %p746
      $region99: #{discriminator_forward.18} parent=5 // pred_check_branch
        %749 = sbr.rel (%p747) target = $region101
      $region100: #{discriminator_forward.18} parent=5 // pred_region
        %s750 = ssub.s32 %s13, 2
      $region101: #{discriminator_forward.18} parent=5 // pred_fallthru
        _
    $region6: #{discriminator_forward.18} parent=1 // loop_footer
      %s17 = sadd.s32 1, %s13
    $region7: #{discriminator_forward.18} parent=1 // loop_footer_branch
      %12 = sbr.rel target = $region3
    $region8: #{discriminator_forward.18} parent=1 // loop_exit
      _
    %751 = vsyncpa [#allocation5], 1
    %s752 = scalar_lea.sflag [#allocation5], 1
    %753 = vsyncpa %s752, 1
    %754 = vsyncpa [#allocation7], 1

// kernel: discriminator_forward.19
$region0: #{discriminator_forward.19}
  #allocation0 [shape = 'u32[]', space=smem, size = 0x4, offset = 0x4, fixed_abs, tag = 'smem constant byte address 0x4 - core index']
  #allocation1 [shape = 'u32[144,128]{1,0:T(1,128)}', space=vmem, size = 0x12000, scoped, tag = 'internal scratch']
  #allocation2 [shape = 'f32[1,128]{1,0:T(1,128)}', space=vmem, size = 0x200, scoped, tag = 'scratch operand']
  #allocation3 [shape = 'f32[1,128]{1,0:T(1,128)}', space=vmem, size = 0x200, scoped, tag = 'scratch operand']
  %s0 = inlined_call_operand.vmem [shape: f32[128,128], index: 0, kind: input, shape index: {}]
  %s1 = inlined_call_operand.vmem [shape: f32[2,128], index: 1, kind: output, shape index: {}]
  %s2 = sld [smem:[#allocation0]]
  $region22: #{discriminator_forward.19} parent=0
    _
  %s4 = ssub.s32 1, %s2
  %s5 = scalar_select 0, %s4, %s2
  // Predicated region
  $region2: #{discriminator_forward.19} parent=0 // pred_check
    _
  $region3: #{discriminator_forward.19} parent=0 // pred_check_branch
    %7 = sbr.rel (0) target = $region5
  $region4: #{discriminator_forward.19} parent=0 // pred_region
    _
  $region5: #{discriminator_forward.19} parent=0 // pred_fallthru
    _
  %p8 = scmp.eq.s32.totalorder 0, 0
  // Predicated region
  $region6: #{discriminator_forward.19} parent=0 // pred_check
    %p9 = pneg %p8
  $region7: #{discriminator_forward.19} parent=0 // pred_check_branch
    %11 = sbr.rel (%p9) target = $region9
  $region8: #{discriminator_forward.19} parent=0 // pred_region
    %12 = vst [vmem:[#allocation2] sm:$0x1] 0.0
    %13 = vst [vmem:[#allocation3] sm:$0x1] 0.0
  $region9: #{discriminator_forward.19} parent=0 // pred_fallthru
    _
  %v14 = vld [vmem:[%s0] sm:$0xff]
  %v15 = vld [vmem:[%s0 + $0x8] sm:$0xff]
  %v16 = vld [vmem:[%s0 + $0x10] sm:$0xff]
  %v17 = vld [vmem:[%s0 + $0x18] sm:$0xff]
  %v18 = vld [vmem:[%s0 + $0x20] sm:$0xff]
  %v19 = vld [vmem:[%s0 + $0x28] sm:$0xff]
  %v20 = vld [vmem:[%s0 + $0x30] sm:$0xff]
  %v21 = vld [vmem:[%s0 + $0x38] sm:$0xff]
  %v22 = vld [vmem:[%s0 + $0x40] sm:$0xff]
  %v23 = vld [vmem:[%s0 + $0x48] sm:$0xff]
  %v24 = vld [vmem:[%s0 + $0x50] sm:$0xff]
  %v25 = vld [vmem:[%s0 + $0x58] sm:$0xff]
  %v26 = vld [vmem:[%s0 + $0x60] sm:$0xff]
  %v27 = vld [vmem:[%s0 + $0x68] sm:$0xff]
  %v28 = vld [vmem:[%s0 + $0x70] sm:$0xff]
  %v29 = vld [vmem:[%s0 + $0x78] sm:$0xff]
  %v30 = vlaneseq
  %v31 = vshrl.u32 %v30, 7
  %v32 = vadd.s32 %v31, 8
  %v33 = vadd.s32 %v31, 16
  %v34 = vadd.s32 %v31, 24
  %v35 = vadd.s32 %v31, 32
  %v36 = vadd.s32 %v31, 40
  %v37 = vadd.s32 %v31, 48
  %v38 = vadd.s32 %v31, 56
  %v39 = vadd.s32 %v31, 64
  %v40 = vadd.s32 %v31, 72
  %v41 = vadd.s32 %v31, 80
  %v42 = vadd.s32 %v31, 88
  %v43 = vadd.s32 %v31, 96
  %v44 = vadd.s32 %v31, 104
  %v45 = vadd.s32 %v31, 112
  %v46 = vadd.s32 %v31, 120
  %s47 = smul.u32 0, 128
  %v48 = vstv %s47
  %v49 = vadd.s32 %v31, %v48
  %v50 = vadd.s32 %v32, %v48
  %v51 = vadd.s32 %v33, %v48
  %v52 = vadd.s32 %v34, %v48
  %v53 = vadd.s32 %v35, %v48
  %v54 = vadd.s32 %v36, %v48
  %v55 = vadd.s32 %v37, %v48
  %v56 = vadd.s32 %v38, %v48
  %v57 = vadd.s32 %v39, %v48
  %v58 = vadd.s32 %v40, %v48
  %v59 = vadd.s32 %v41, %v48
  %v60 = vadd.s32 %v42, %v48
  %v61 = vadd.s32 %v43, %v48
  %v62 = vadd.s32 %v44, %v48
  %v63 = vadd.s32 %v45, %v48
  %v64 = vadd.s32 %v46, %v48
  %vm65 = vcmp.lt.s32.totalorder %v49, 128
  %vm66 = vcmp.lt.s32.totalorder %v50, 128
  %vm67 = vcmp.lt.s32.totalorder %v51, 128
  %vm68 = vcmp.lt.s32.totalorder %v52, 128
  %vm69 = vcmp.lt.s32.totalorder %v53, 128
  %vm70 = vcmp.lt.s32.totalorder %v54, 128
  %vm71 = vcmp.lt.s32.totalorder %v55, 128
  %vm72 = vcmp.lt.s32.totalorder %v56, 128
  %vm73 = vcmp.lt.s32.totalorder %v57, 128
  %vm74 = vcmp.lt.s32.totalorder %v58, 128
  %vm75 = vcmp.lt.s32.totalorder %v59, 128
  %vm76 = vcmp.lt.s32.totalorder %v60, 128
  %vm77 = vcmp.lt.s32.totalorder %v61, 128
  %vm78 = vcmp.lt.s32.totalorder %v62, 128
  %vm79 = vcmp.lt.s32.totalorder %v63, 128
  %vm80 = vcmp.lt.s32.totalorder %v64, 128
  %v81 = vsel %vm65, %v14, 0.0
  %v82 = vsel %vm66, %v15, 0.0
  %v83 = vsel %vm67, %v16, 0.0
  %v84 = vsel %vm68, %v17, 0.0
  %v85 = vsel %vm69, %v18, 0.0
  %v86 = vsel %vm70, %v19, 0.0
  %v87 = vsel %vm71, %v20, 0.0
  %v88 = vsel %vm72, %v21, 0.0
  %v89 = vsel %vm73, %v22, 0.0
  %v90 = vsel %vm74, %v23, 0.0
  %v91 = vsel %vm75, %v24, 0.0
  %v92 = vsel %vm76, %v25, 0.0
  %v93 = vsel %vm77, %v26, 0.0
  %v94 = vsel %vm78, %v27, 0.0
  %v95 = vsel %vm79, %v28, 0.0
  %v96 = vsel %vm80, %v29, 0.0
  %v97 = vld [vmem:[#allocation2] sm:$0x1]
  %v98 = vadd.f32 %v81, %v82
  %v99 = vadd.f32 %v98, %v83
  %v100 = vadd.f32 %v99, %v84
  %v101 = vadd.f32 %v100, %v85
  %v102 = vadd.f32 %v101, %v86
  %v103 = vadd.f32 %v102, %v87
  %v104 = vadd.f32 %v103, %v88
  %v105 = vadd.f32 %v104, %v89
  %v106 = vadd.f32 %v105, %v90
  %v107 = vadd.f32 %v106, %v91
  %v108 = vadd.f32 %v107, %v92
  %v109 = vadd.f32 %v108, %v93
  %v110 = vadd.f32 %v109, %v94
  %v111 = vadd.f32 %v110, %v95
  %v112 = vadd.f32 %v111, %v96
  %v113 = vrot.slane %v112, 4
  %v114 = vadd.f32 %v112, %v113
  %v115 = vrot.slane %v114, 2
  %v116 = vadd.f32 %v114, %v115
  %v117 = vrot.slane %v116, 1
  %v118 = vadd.f32 %v116, %v117
  %v119 = vadd.f32 %v97, %v118
  %120 = vst [vmem:[#allocation2] sm:$0x1] %v119
  %v121 = vld [vmem:[#allocation3] sm:$0x1]
  %v122 = vmul.f32 %v81, %v81
  %v123 = vmul.f32 %v82, %v82
  %v124 = vmul.f32 %v83, %v83
  %v125 = vmul.f32 %v84, %v84
  %v126 = vmul.f32 %v85, %v85
  %v127 = vmul.f32 %v86, %v86
  %v128 = vmul.f32 %v87, %v87
  %v129 = vmul.f32 %v88, %v88
  %v130 = vmul.f32 %v89, %v89
  %v131 = vmul.f32 %v90, %v90
  %v132 = vmul.f32 %v91, %v91
  %v133 = vmul.f32 %v92, %v92
  %v134 = vmul.f32 %v93, %v93
  %v135 = vmul.f32 %v94, %v94
  %v136 = vmul.f32 %v95, %v95
  %v137 = vmul.f32 %v96, %v96
  %v138 = vadd.f32 %v122, %v123
  %v139 = vadd.f32 %v138, %v124
  %v140 = vadd.f32 %v139, %v125
  %v141 = vadd.f32 %v140, %v126
  %v142 = vadd.f32 %v141, %v127
  %v143 = vadd.f32 %v142, %v128
  %v144 = vadd.f32 %v143, %v129
  %v145 = vadd.f32 %v144, %v130
  %v146 = vadd.f32 %v145, %v131
  %v147 = vadd.f32 %v146, %v132
  %v148 = vadd.f32 %v147, %v133
  %v149 = vadd.f32 %v148, %v134
  %v150 = vadd.f32 %v149, %v135
  %v151 = vadd.f32 %v150, %v136
  %v152 = vadd.f32 %v151, %v137
  %v153 = vrot.slane %v152, 4
  %v154 = vadd.f32 %v152, %v153
  %v155 = vrot.slane %v154, 2
  %v156 = vadd.f32 %v154, %v155
  %v157 = vrot.slane %v156, 1
  %v158 = vadd.f32 %v156, %v157
  %v159 = vadd.f32 %v121, %v158
  %160 = vst [vmem:[#allocation3] sm:$0x1] %v159
  // Predicated region
  $region10: #{discriminator_forward.19} parent=0 // pred_check
    %p161 = pneg %p8
  $region11: #{discriminator_forward.19} parent=0 // pred_check_branch
    %163 = sbr.rel (%p161) target = $region13
  $region12: #{discriminator_forward.19} parent=0 // pred_region
    %v164 = vld [vmem:[#allocation2] sm:$0x1]
    %165 = vst [vmem:[%s1] sm:$0x1] %v164
    %v166 = vld [vmem:[#allocation3] sm:$0x1]
    %167 = vst [vmem:[%s1 + $0x1] sm:$0x1] %v166
  $region13: #{discriminator_forward.19} parent=0 // pred_fallthru
    _
  // Predicated region
  $region14: #{discriminator_forward.19} parent=0 // pred_check
    _
  $region15: #{discriminator_forward.19} parent=0 // pred_check_branch
    %169 = sbr.rel (0) target = $region17
  $region16: #{discriminator_forward.19} parent=0 // pred_region
    _
  $region17: #{discriminator_forward.19} parent=0 // pred_fallthru
    _
  // Predicated region
  $region18: #{discriminator_forward.19} parent=0 // pred_check
    _
  $region19: #{discriminator_forward.19} parent=0 // pred_check_branch
    %171 = sbr.rel (0) target = $region21
  $region20: #{discriminator_forward.19} parent=0 // pred_region
    _
  $region21: #{discriminator_forward.19} parent=0 // pred_fallthru
    _

// kernel: discriminator_forward.20
$region0: #{discriminator_forward.20}
  #allocation0 [shape = 'u32[]', space=smem, size = 0x4, offset = 0x4, fixed_abs, tag = 'smem constant byte address 0x4 - core index']
  #allocation1 [shape = 'u32[144,128]{1,0:T(1,128)}', space=vmem, size = 0x12000, scoped, tag = 'internal scratch']
  %s0 = inlined_call_operand.vmem [shape: f32[128,128], index: 0, kind: input, shape index: {}]
  %s1 = inlined_call_operand.vmem [shape: f32[2,128], index: 1, kind: input, shape index: {}]
  %s2 = inlined_call_operand.vmem [shape: f32[1,128], index: 2, kind: input, shape index: {}]
  %s3 = inlined_call_operand.vmem [shape: f32[1,128], index: 3, kind: input, shape index: {}]
  %s4 = inlined_call_operand.vmem [shape: f32[128,128], index: 4, kind: output, shape index: {}]
  %s5 = sld [smem:[#allocation0]]
  $region26: #{discriminator_forward.20} parent=0
    _
  %s7 = ssub.s32 1, %s5
  %s8 = scalar_select 0, %s7, %s5
  // Predicated region
  $region2: #{discriminator_forward.20} parent=0 // pred_check
    _
  $region3: #{discriminator_forward.20} parent=0 // pred_check_branch
    %10 = sbr.rel (0) target = $region5
  $region4: #{discriminator_forward.20} parent=0 // pred_region
    _
  $region5: #{discriminator_forward.20} parent=0 // pred_fallthru
    _
  // Predicated region
  $region6: #{discriminator_forward.20} parent=0 // pred_check
    _
  $region7: #{discriminator_forward.20} parent=0 // pred_check_branch
    %12 = sbr.rel (0) target = $region9
  $region8: #{discriminator_forward.20} parent=0 // pred_region
    _
  $region9: #{discriminator_forward.20} parent=0 // pred_fallthru
    _
  // Predicated region
  $region10: #{discriminator_forward.20} parent=0 // pred_check
    _
  $region11: #{discriminator_forward.20} parent=0 // pred_check_branch
    %14 = sbr.rel (0) target = $region13
  $region12: #{discriminator_forward.20} parent=0 // pred_region
    _
  $region13: #{discriminator_forward.20} parent=0 // pred_fallthru
    _
  // Predicated region
  $region14: #{discriminator_forward.20} parent=0 // pred_check
    _
  $region15: #{discriminator_forward.20} parent=0 // pred_check_branch
    %16 = sbr.rel (0) target = $region17
  $region16: #{discriminator_forward.20} parent=0 // pred_region
    _
  $region17: #{discriminator_forward.20} parent=0 // pred_fallthru
    _
  %v17 = vld [vmem:[%s0] sm:$0xff]
  %v18 = vld [vmem:[%s0 + $0x8] sm:$0xff]
  %v19 = vld [vmem:[%s0 + $0x10] sm:$0xff]
  %v20 = vld [vmem:[%s0 + $0x18] sm:$0xff]
  %v21 = vld [vmem:[%s0 + $0x20] sm:$0xff]
  %v22 = vld [vmem:[%s0 + $0x28] sm:$0xff]
  %v23 = vld [vmem:[%s0 + $0x30] sm:$0xff]
  %v24 = vld [vmem:[%s0 + $0x38] sm:$0xff]
  %v25 = vld [vmem:[%s0 + $0x40] sm:$0xff]
  %v26 = vld [vmem:[%s0 + $0x48] sm:$0xff]
  %v27 = vld [vmem:[%s0 + $0x50] sm:$0xff]
  %v28 = vld [vmem:[%s0 + $0x58] sm:$0xff]
  %v29 = vld [vmem:[%s0 + $0x60] sm:$0xff]
  %v30 = vld [vmem:[%s0 + $0x68] sm:$0xff]
  %v31 = vld [vmem:[%s0 + $0x70] sm:$0xff]
  %v32 = vld [vmem:[%s0 + $0x78] sm:$0xff]
  %v33 = vld [vmem:[%s1] sm:$0x1]
  %v34 = vmul.f32 %v33, 0.0078125
  %v35 = vld [vmem:[%s1 + $0x1] sm:$0x1]
  %v36 = vmul.f32 %v35, 0.0078125
  %v37 = vmul.f32 %v34, %v34
  %v38 = vsub.f32 %v36, %v37
  %v39 = vld [vmem:[%s2] sm:$0x1]
  %v40 = vadd.f32 %v38, 1e-05
  %v41 = vrsqrt.pop %v40
  %v42 = vmul.f32 %v39, %v41
  %v43 = vld [vmem:[%s3] sm:$0x1]
  %v44 = vmul.f32 %v34, %v42
  %v45 = vsub.f32 %v43, %v44
  %v47 = vlaneseq
  %v48 = vshrl.u32 %v47, 7
  %v49 = vsub.s32 0, %v48
  %v50 = vrot.slane %v42, %v49
  %v52 = vmul.f32 %v17, %v50
  %v53 = vmul.f32 %v18, %v50
  %v54 = vmul.f32 %v19, %v50
  %v55 = vmul.f32 %v20, %v50
  %v56 = vmul.f32 %v21, %v50
  %v57 = vmul.f32 %v22, %v50
  %v58 = vmul.f32 %v23, %v50
  %v59 = vmul.f32 %v24, %v50
  %v60 = vmul.f32 %v25, %v50
  %v61 = vmul.f32 %v26, %v50
  %v62 = vmul.f32 %v27, %v50
  %v63 = vmul.f32 %v28, %v50
  %v64 = vmul.f32 %v29, %v50
  %v65 = vmul.f32 %v30, %v50
  %v66 = vmul.f32 %v31, %v50
  %v67 = vmul.f32 %v32, %v50
  %v69 = vlaneseq
  %v70 = vshrl.u32 %v69, 7
  %v71 = vsub.s32 0, %v70
  %v72 = vrot.slane %v45, %v71
  %v74 = vadd.f32 %v52, %v72
  %v75 = vadd.f32 %v53, %v72
  %v76 = vadd.f32 %v54, %v72
  %v77 = vadd.f32 %v55, %v72
  %v78 = vadd.f32 %v56, %v72
  %v79 = vadd.f32 %v57, %v72
  %v80 = vadd.f32 %v58, %v72
  %v81 = vadd.f32 %v59, %v72
  %v82 = vadd.f32 %v60, %v72
  %v83 = vadd.f32 %v61, %v72
  %v84 = vadd.f32 %v62, %v72
  %v85 = vadd.f32 %v63, %v72
  %v86 = vadd.f32 %v64, %v72
  %v87 = vadd.f32 %v65, %v72
  %v88 = vadd.f32 %v66, %v72
  %v89 = vadd.f32 %v67, %v72
  %vm90 = vcmp.gt.f32.partialorder %v74, 0.0
  %vm91 = vcmp.gt.f32.partialorder %v75, 0.0
  %vm92 = vcmp.gt.f32.partialorder %v76, 0.0
  %vm93 = vcmp.gt.f32.partialorder %v77, 0.0
  %vm94 = vcmp.gt.f32.partialorder %v78, 0.0
  %vm95 = vcmp.gt.f32.partialorder %v79, 0.0
  %vm96 = vcmp.gt.f32.partialorder %v80, 0.0
  %vm97 = vcmp.gt.f32.partialorder %v81, 0.0
  %vm98 = vcmp.gt.f32.partialorder %v82, 0.0
  %vm99 = vcmp.gt.f32.partialorder %v83, 0.0
  %vm100 = vcmp.gt.f32.partialorder %v84, 0.0
  %vm101 = vcmp.gt.f32.partialorder %v85, 0.0
  %vm102 = vcmp.gt.f32.partialorder %v86, 0.0
  %vm103 = vcmp.gt.f32.partialorder %v87, 0.0
  %vm104 = vcmp.gt.f32.partialorder %v88, 0.0
  %vm105 = vcmp.gt.f32.partialorder %v89, 0.0
  %v106 = vmul.f32 %v74, 0.2
  %v107 = vmul.f32 %v75, 0.2
  %v108 = vmul.f32 %v76, 0.2
  %v109 = vmul.f32 %v77, 0.2
  %v110 = vmul.f32 %v78, 0.2
  %v111 = vmul.f32 %v79, 0.2
  %v112 = vmul.f32 %v80, 0.2
  %v113 = vmul.f32 %v81, 0.2
  %v114 = vmul.f32 %v82, 0.2
  %v115 = vmul.f32 %v83, 0.2
  %v116 = vmul.f32 %v84, 0.2
  %v117 = vmul.f32 %v85, 0.2
  %v118 = vmul.f32 %v86, 0.2
  %v119 = vmul.f32 %v87, 0.2
  %v120 = vmul.f32 %v88, 0.2
  %v121 = vmul.f32 %v89, 0.2
  %v122 = vsel %vm90, %v74, %v106
  %v123 = vsel %vm91, %v75, %v107
  %v124 = vsel %vm92, %v76, %v108
  %v125 = vsel %vm93, %v77, %v109
  %v126 = vsel %vm94, %v78, %v110
  %v127 = vsel %vm95, %v79, %v111
  %v128 = vsel %vm96, %v80, %v112
  %v129 = vsel %vm97, %v81, %v113
  %v130 = vsel %vm98, %v82, %v114
  %v131 = vsel %vm99, %v83, %v115
  %v132 = vsel %vm100, %v84, %v116
  %v133 = vsel %vm101, %v85, %v117
  %v134 = vsel %vm102, %v86, %v118
  %v135 = vsel %vm103, %v87, %v119
  %v136 = vsel %vm104, %v88, %v120
  %v137 = vsel %vm105, %v89, %v121
  %138 = vst [vmem:[%s4] sm:$0xff] %v122
  %139 = vst [vmem:[%s4 + $0x8] sm:$0xff] %v123
  %140 = vst [vmem:[%s4 + $0x10] sm:$0xff] %v124
  %141 = vst [vmem:[%s4 + $0x18] sm:$0xff] %v125
  %142 = vst [vmem:[%s4 + $0x20] sm:$0xff] %v126
  %143 = vst [vmem:[%s4 + $0x28] sm:$0xff] %v127
  %144 = vst [vmem:[%s4 + $0x30] sm:$0xff] %v128
  %145 = vst [vmem:[%s4 + $0x38] sm:$0xff] %v129
  %146 = vst [vmem:[%s4 + $0x40] sm:$0xff] %v130
  %147 = vst [vmem:[%s4 + $0x48] sm:$0xff] %v131
  %148 = vst [vmem:[%s4 + $0x50] sm:$0xff] %v132
  %149 = vst [vmem:[%s4 + $0x58] sm:$0xff] %v133
  %150 = vst [vmem:[%s4 + $0x60] sm:$0xff] %v134
  %151 = vst [vmem:[%s4 + $0x68] sm:$0xff] %v135
  %152 = vst [vmem:[%s4 + $0x70] sm:$0xff] %v136
  %153 = vst [vmem:[%s4 + $0x78] sm:$0xff] %v137
  // Predicated region
  $region18: #{discriminator_forward.20} parent=0 // pred_check
    _
  $region19: #{discriminator_forward.20} parent=0 // pred_check_branch
    %155 = sbr.rel (0) target = $region21
  $region20: #{discriminator_forward.20} parent=0 // pred_region
    _
  $region21: #{discriminator_forward.20} parent=0 // pred_fallthru
    _
  // Predicated region
  $region22: #{discriminator_forward.20} parent=0 // pred_check
    _
  $region23: #{discriminator_forward.20} parent=0 // pred_check_branch
    %157 = sbr.rel (0) target = $region25
  $region24: #{discriminator_forward.20} parent=0 // pred_region
    _
  $region25: #{discriminator_forward.20} parent=0 // pred_fallthru
    _

// kernel: discriminator_forward.22
$region0: #{discriminator_forward.22}
  #allocation0 [shape = 'u32[]', space=smem, size = 0x4, offset = 0x4, fixed_abs, tag = 'smem constant byte address 0x4 - core index']
  #allocation1 [shape = 'u32[144,128]{1,0:T(1,128)}', space=vmem, size = 0x12000, scoped, tag = 'internal scratch']
  #allocation2 [shape = 'f32[1,256]{1,0:T(1,128)}', space=vmem, size = 0x400, scoped, tag = 'scratch operand']
  #allocation3 [shape = 'f32[1,256]{1,0:T(1,128)}', space=vmem, size = 0x400, scoped, tag = 'scratch operand']
  %s0 = inlined_call_operand.vmem [shape: f32[32,256], index: 0, kind: input, shape index: {}]
  %s1 = inlined_call_operand.vmem [shape: f32[2,256], index: 1, kind: output, shape index: {}]
  %s2 = sld [smem:[#allocation0]]
  $region22: #{discriminator_forward.22} parent=0
    _
  %s4 = ssub.s32 1, %s2
  %s5 = scalar_select 0, %s4, %s2
  // Predicated region
  $region2: #{discriminator_forward.22} parent=0 // pred_check
    _
  $region3: #{discriminator_forward.22} parent=0 // pred_check_branch
    %7 = sbr.rel (0) target = $region5
  $region4: #{discriminator_forward.22} parent=0 // pred_region
    _
  $region5: #{discriminator_forward.22} parent=0 // pred_fallthru
    _
  %p8 = scmp.eq.s32.totalorder 0, 0
  // Predicated region
  $region6: #{discriminator_forward.22} parent=0 // pred_check
    %p9 = pneg %p8
  $region7: #{discriminator_forward.22} parent=0 // pred_check_branch
    %11 = sbr.rel (%p9) target = $region9
  $region8: #{discriminator_forward.22} parent=0 // pred_region
    %v12 = vlaneseq
    %vm13 = vcmp.ge.s32.totalorder %v12, 0
    %vm14 = vcmp.lt.s32.totalorder %v12, 256
    %vm15 = vmand %vm13, %vm14
    %16 = vst.msk [vmem:[#allocation2] sm:$0x3] %vm15, 0.0
    %17 = vst.msk [vmem:[#allocation3] sm:$0x3] %vm15, 0.0
  $region9: #{discriminator_forward.22} parent=0 // pred_fallthru
    _
  %v18 = vld [vmem:[%s0] sm:$0xff]
  %v19 = vld [vmem:[%s0 + $0x8] sm:$0xff]
  %v20 = vld [vmem:[%s0 + $0x10] sm:$0xff]
  %v21 = vld [vmem:[%s0 + $0x18] sm:$0xff]
  %v22 = vld [vmem:[%s0 + $0x20] sm:$0xff]
  %v23 = vld [vmem:[%s0 + $0x28] sm:$0xff]
  %v24 = vld [vmem:[%s0 + $0x30] sm:$0xff]
  %v25 = vld [vmem:[%s0 + $0x38] sm:$0xff]
  %v26 = vlaneseq
  %v27 = vshrl.u32 %v26, 7
  %v28 = vadd.s32 %v27, 8
  %v29 = vadd.s32 %v27, 16
  %v30 = vadd.s32 %v27, 24
  %s31 = smul.u32 0, 32
  %v32 = vstv %s31
  %v33 = vadd.s32 %v27, %v32
  %v34 = vadd.s32 %v28, %v32
  %v35 = vadd.s32 %v29, %v32
  %v36 = vadd.s32 %v30, %v32
  %vm37 = vcmp.lt.s32.totalorder %v33, 32
  %vm38 = vcmp.lt.s32.totalorder %v34, 32
  %vm39 = vcmp.lt.s32.totalorder %v35, 32
  %vm40 = vcmp.lt.s32.totalorder %v36, 32
  %v41 = vsel %vm37, %v18, 0.0
  %v42 = vsel %vm37, %v19, 0.0
  %v43 = vsel %vm38, %v20, 0.0
  %v44 = vsel %vm38, %v21, 0.0
  %v45 = vsel %vm39, %v22, 0.0
  %v46 = vsel %vm39, %v23, 0.0
  %v47 = vsel %vm40, %v24, 0.0
  %v48 = vsel %vm40, %v25, 0.0
  %v49 = vld [vmem:[#allocation2] sm:$0x3]
  %v50 = vadd.f32 %v41, %v43
  %v51 = vadd.f32 %v50, %v45
  %v52 = vadd.f32 %v51, %v47
  %v53 = vrot.slane %v52, 4
  %v54 = vadd.f32 %v52, %v53
  %v55 = vrot.slane %v54, 2
  %v56 = vadd.f32 %v54, %v55
  %v57 = vrot.slane %v56, 1
  %v58 = vadd.f32 %v56, %v57
  %v59 = vadd.f32 %v42, %v44
  %v60 = vadd.f32 %v59, %v46
  %v61 = vadd.f32 %v60, %v48
  %v62 = vrot.slane %v61, 4
  %v63 = vadd.f32 %v61, %v62
  %v64 = vrot.slane %v63, 2
  %v65 = vadd.f32 %v63, %v64
  %v66 = vrot.slane %v65, 1
  %v67 = vadd.f32 %v65, %v66
  %v70 = vcombine.low %v58, %v67
  %v72 = vunpack.c.l.s4 1966171168
  %v73 = vunpack.c.0.s8 %v72
  %v74 = vlaneseq
  %v75 = vshrl.u32 %v74, 7
  %v76 = vsub.s32 %v73, %v75
  %v77 = vrot.slane %v70, %v76
  %v79 = vunpack.c.l.s4 1966171168
  %v80 = vunpack.c.0.s8 %v79
  %v81 = vlaneseq
  %v82 = vshrl.u32 %v81, 7
  %v83 = vsub.s32 %v80, %v82
  %v84 = vrot.slane %v77, %v83
  %v86 = vadd.f32 %v49, %v84
  %v87 = vlaneseq
  %vm88 = vcmp.ge.s32.totalorder %v87, 0
  %vm89 = vcmp.lt.s32.totalorder %v87, 256
  %vm90 = vmand %vm88, %vm89
  %91 = vst.msk [vmem:[#allocation2] sm:$0x3] %vm90, %v86
  %v92 = vld [vmem:[#allocation3] sm:$0x3]
  %v93 = vmul.f32 %v41, %v41
  %v94 = vmul.f32 %v42, %v42
  %v95 = vmul.f32 %v43, %v43
  %v96 = vmul.f32 %v44, %v44
  %v97 = vmul.f32 %v45, %v45
  %v98 = vmul.f32 %v46, %v46
  %v99 = vmul.f32 %v47, %v47
  %v100 = vmul.f32 %v48, %v48
  %v101 = vadd.f32 %v93, %v95
  %v102 = vadd.f32 %v101, %v97
  %v103 = vadd.f32 %v102, %v99
  %v104 = vrot.slane %v103, 4
  %v105 = vadd.f32 %v103, %v104
  %v106 = vrot.slane %v105, 2
  %v107 = vadd.f32 %v105, %v106
  %v108 = vrot.slane %v107, 1
  %v109 = vadd.f32 %v107, %v108
  %v110 = vadd.f32 %v94, %v96
  %v111 = vadd.f32 %v110, %v98
  %v112 = vadd.f32 %v111, %v100
  %v113 = vrot.slane %v112, 4
  %v114 = vadd.f32 %v112, %v113
  %v115 = vrot.slane %v114, 2
  %v116 = vadd.f32 %v114, %v115
  %v117 = vrot.slane %v116, 1
  %v118 = vadd.f32 %v116, %v117
  %v121 = vcombine.low %v109, %v118
  %v123 = vunpack.c.l.s4 1966171168
  %v124 = vunpack.c.0.s8 %v123
  %v125 = vlaneseq
  %v126 = vshrl.u32 %v125, 7
  %v127 = vsub.s32 %v124, %v126
  %v128 = vrot.slane %v121, %v127
  %v130 = vunpack.c.l.s4 1966171168
  %v131 = vunpack.c.0.s8 %v130
  %v132 = vlaneseq
  %v133 = vshrl.u32 %v132, 7
  %v134 = vsub.s32 %v131, %v133
  %v135 = vrot.slane %v128, %v134
  %v137 = vadd.f32 %v92, %v135
  %138 = vst.msk [vmem:[#allocation3] sm:$0x3] %vm90, %v137
  // Predicated region
  $region10: #{discriminator_forward.22} parent=0 // pred_check
    %p139 = pneg %p8
  $region11: #{discriminator_forward.22} parent=0 // pred_check_branch
    %141 = sbr.rel (%p139) target = $region13
  $region12: #{discriminator_forward.22} parent=0 // pred_region
    %v142 = vld [vmem:[#allocation2] sm:$0x3]
    %143 = vst.msk [vmem:[%s1] ss:$2 sm:$0x3] %vm90, %v142
    %v144 = vld [vmem:[#allocation3] sm:$0x3]
    %s145 = scalar_lea.vmem %s1, 1
    %146 = vst.msk [vmem:[%s145] ss:$2 sm:$0x3] %vm90, %v144
  $region13: #{discriminator_forward.22} parent=0 // pred_fallthru
    _
  // Predicated region
  $region14: #{discriminator_forward.22} parent=0 // pred_check
    _
  $region15: #{discriminator_forward.22} parent=0 // pred_check_branch
    %148 = sbr.rel (0) target = $region17
  $region16: #{discriminator_forward.22} parent=0 // pred_region
    _
  $region17: #{discriminator_forward.22} parent=0 // pred_fallthru
    _
  // Predicated region
  $region18: #{discriminator_forward.22} parent=0 // pred_check
    _
  $region19: #{discriminator_forward.22} parent=0 // pred_check_branch
    %150 = sbr.rel (0) target = $region21
  $region20: #{discriminator_forward.22} parent=0 // pred_region
    _
  $region21: #{discriminator_forward.22} parent=0 // pred_fallthru
    _

// kernel: discriminator_forward.21
$region0: #{discriminator_forward.21}
  #allocation0 [shape = 'u32[]', space=smem, size = 0x4, offset = 0x4, fixed_abs, tag = 'smem constant byte address 0x4 - core index']
  #allocation1 [shape = 'u32[144,128]{1,0:T(1,128)}', space=vmem, size = 0x12000, scoped, tag = 'internal scratch']
  #allocation2 [shape = 'f32[32,256]{1,0:T(8,128)}', space=vmem, size = 0x8000, scoped, tag = 'scratch operand']
  %s0 = inlined_call_operand.vmem [shape: bf16[32,1152], index: 0, kind: input, shape index: {}]
  %s1 = inlined_call_operand.vmem [shape: bf16[1152,256], index: 1, kind: input, shape index: {}]
  %s2 = inlined_call_operand.vmem [shape: f32[1,256], index: 2, kind: input, shape index: {}]
  %s3 = inlined_call_operand.vmem [shape: f32[32,256], index: 3, kind: output, shape index: {}]
  %s4 = sld [smem:[#allocation0]]
  $region94: #{discriminator_forward.21} parent=0
    _
  %s6 = ssub.s32 1, %s4
  %s7 = scalar_select 0, %s6, %s4
  $region1: #{discriminator_forward.21} parent=0
    #allocation3 [shape = 'u8[16384]{0}', space=vmem, size = 0x4000, scoped, tag = 'input window, operand 0']
    loop: start=0, step=1, limit=11
    $region2: #{discriminator_forward.21} parent=1 // loop_pre_header
      _
    $region3: #{discriminator_forward.21} parent=1 // loop_header
      %s9 = sphi 0, %s13
      %p10 = scmp.ge.s32.totalorder %s9, 11
      %s16 = sphi 0, %s35
      %s17 = sphi 0, %s31
      %s18 = sphi 0, %s27
      %s19 = sphi 0, %s16
      %s20 = sphi 0, %s17
      %s21 = sphi 0, %s18
      %s22 = sphi 0, %s19
      %s23 = sphi 0, %s20
      %s24 = sphi 0, %s21
      %s40 = sphi 0, %s42
      %s43 = sphi 0, %s40
      %s44 = sphi 0, %s43
      %s60 = sphi 0, %s44
      %s68 = sphi 0, %s70
      %s71 = sphi 0, %s68
      %s72 = sphi 0, %s71
      %s88 = sphi 0, %s72
      %s94 = sphi 0, %s96
      %s97 = sphi 0, %s94
      %s98 = sphi 0, %s97
      %s114 = sphi 0, %s98
      %s122 = sphi 0, %s124
      %s125 = sphi 0, %s122
      %s126 = sphi 0, %s125
      %s142 = sphi 0, %s126
    $region4: #{discriminator_forward.21} parent=1 // loop_header_branch
      %12 = sbr.rel (%p10) target = $region8
    $region5: #{discriminator_forward.21} parent=1 // loop_body
      %s14 = ssub.s32 %s9, 1
      %s15 = ssub.s32 %s9, 2
      %s25 = sadd.s32 1, %s18
      %p26 = scmp.ge.s32.totalorder %s25, 9
      %s27 = scalar_select %p26, 0, %s25
      %s28 = sadd.s32 1, %s17
      %s29 = scalar_select %p26, %s28, %s17
      %p30 = scmp.ge.s32.totalorder %s29, 1
      %s31 = scalar_select %p30, 0, %s29
      %s32 = sadd.s32 1, %s16
      %s33 = scalar_select %p30, %s32, %s16
      %p34 = scmp.ge.s32.totalorder %s33, 1
      %s35 = scalar_select %p34, 0, %s33
      %s36 = ssub.s32 %s16, %s35
      %s37 = ssub.s32 %s18, %s27
      %s38 = sor.u32 %s36, %s37
      %p39 = scmp.eq.s32.totalorder %s38, 0
      %s41 = sadd.s32 %s40, 1
      %s42 = scalar_select %p39, %s40, %s41
      %p45 = pneg %p39
      %p46 = scmp.eq.s32.totalorder %s9, 8
      %p47 = por %p45, %p46
      %p48 = scmp.ne.s32.totalorder %s40, %s43
      %p49 = scmp.eq.s32.totalorder %s9, 0
      %p50 = por %p48, %p49
      %p51 = scmp.ne.s32.totalorder %s40, %s43
      %p52 = scmp.eq.s32.totalorder %s14, 8
      %p53 = por %p51, %p52
      %p54 = scmp.ne.s32.totalorder %s43, %s44
      %p55 = scmp.eq.s32.totalorder %s14, 0
      %p56 = por %p54, %p55
      %p57 = scmp.ne.s32.totalorder %s43, %s44
      %p58 = scmp.eq.s32.totalorder %s15, 8
      %p59 = por %p57, %p58
      %p61 = scmp.ne.s32.totalorder %s44, %s60
      %p62 = scmp.eq.s32.totalorder %s15, 0
      %p63 = por %p61, %p62
      %s64 = ssub.s32 %s18, %s27
      %s65 = ssub.s32 %s17, %s31
      %s66 = sor.u32 %s64, %s65
      %p67 = scmp.eq.s32.totalorder %s66, 0
      %s69 = sadd.s32 %s68, 1
      %s70 = scalar_select %p67, %s68, %s69
      %p73 = pneg %p67
      %p74 = scmp.eq.s32.totalorder %s9, 8
      %p75 = por %p73, %p74
      %p76 = scmp.ne.s32.totalorder %s68, %s71
      %p77 = scmp.eq.s32.totalorder %s9, 0
      %p78 = por %p76, %p77
      %p79 = scmp.ne.s32.totalorder %s68, %s71
      %p80 = scmp.eq.s32.totalorder %s14, 8
      %p81 = por %p79, %p80
      %p82 = scmp.ne.s32.totalorder %s71, %s72
      %p83 = scmp.eq.s32.totalorder %s14, 0
      %p84 = por %p82, %p83
      %p85 = scmp.ne.s32.totalorder %s71, %s72
      %p86 = scmp.eq.s32.totalorder %s15, 8
      %p87 = por %p85, %p86
      %p89 = scmp.ne.s32.totalorder %s72, %s88
      %p90 = scmp.eq.s32.totalorder %s15, 0
      %p91 = por %p89, %p90
      %s92 = ssub.s32 %s17, %s31
      %p93 = scmp.eq.s32.totalorder %s92, 0
      %s95 = sadd.s32 %s94, 1
      %s96 = scalar_select %p93, %s94, %s95
      %p99 = pneg %p93
      %p100 = scmp.eq.s32.totalorder %s9, 8
      %p101 = por %p99, %p100
      %p102 = scmp.ne.s32.totalorder %s94, %s97
      %p103 = scmp.eq.s32.totalorder %s9, 0
      %p104 = por %p102, %p103
      %p105 = scmp.ne.s32.totalorder %s94, %s97
      %p106 = scmp.eq.s32.totalorder %s14, 8
      %p107 = por %p105, %p106
      %p108 = scmp.ne.s32.totalorder %s97, %s98
      %p109 = scmp.eq.s32.totalorder %s14, 0
      %p110 = por %p108, %p109
      %p111 = scmp.ne.s32.totalorder %s97, %s98
      %p112 = scmp.eq.s32.totalorder %s15, 8
      %p113 = por %p111, %p112
      %p115 = scmp.ne.s32.totalorder %s98, %s114
      %p116 = scmp.eq.s32.totalorder %s15, 0
      %p117 = por %p115, %p116
      %s118 = ssub.s32 %s16, %s35
      %s119 = ssub.s32 %s17, %s31
      %s120 = sor.u32 %s118, %s119
      %p121 = scmp.eq.s32.totalorder %s120, 0
      %s123 = sadd.s32 %s122, 1
      %s124 = scalar_select %p121, %s122, %s123
      %p127 = pneg %p121
      %p128 = scmp.eq.s32.totalorder %s9, 8
      %p129 = por %p127, %p128
      %p130 = scmp.ne.s32.totalorder %s122, %s125
      %p131 = scmp.eq.s32.totalorder %s9, 0
      %p132 = por %p130, %p131
      %p133 = scmp.ne.s32.totalorder %s122, %s125
      %p134 = scmp.eq.s32.totalorder %s14, 8
      %p135 = por %p133, %p134
      %p136 = scmp.ne.s32.totalorder %s125, %s126
      %p137 = scmp.eq.s32.totalorder %s14, 0
      %p138 = por %p136, %p137
      %p139 = scmp.ne.s32.totalorder %s125, %s126
      %p140 = scmp.eq.s32.totalorder %s15, 8
      %p141 = por %p139, %p140
      %p143 = scmp.ne.s32.totalorder %s126, %s142
      %p144 = scmp.eq.s32.totalorder %s15, 0
      %p145 = por %p143, %p144
      %p146 = scmp.le.s32.totalorder 1, %s9
      %p147 = scmp.lt.s32.totalorder %s9, 10
      %p148 = pnand %p146, %p147
      %p149 = pneg %p148
      // Predicated region
      $region9: #{discriminator_forward.21} parent=5 // pred_check
        _
      $region10: #{discriminator_forward.21} parent=5 // pred_check_branch
        %151 = sbr.rel (%p148) target = $region12
      $region11: #{discriminator_forward.21} parent=5 // pred_region
        %s152 = ssub.s32 %s9, 1
        // Predicated region
        $region13: #{discriminator_forward.21} parent=11 // pred_check
          %p153 = pneg %p110
        $region14: #{discriminator_forward.21} parent=11 // pred_check_branch
          %155 = sbr.rel (%p153) target = $region16
        $region15: #{discriminator_forward.21} parent=11 // pred_region
          %s156 = smul.u32 2, %s20
          %p157 = scmp.lt.s32.totalorder %s156, 1
          %s158 = scalar_select %p157, %s156, 1
          %s159 = scalar_lea.vmem %s2, %s158
          %s160 = smul.u32 2, %s20
        $region16: #{discriminator_forward.21} parent=11 // pred_fallthru
          _
      $region12: #{discriminator_forward.21} parent=5 // pred_fallthru
        _
      %p161 = scmp.lt.s32.totalorder %s9, 9
      // Predicated region
      $region17: #{discriminator_forward.21} parent=5 // pred_check
        %p162 = pneg %p161
      $region18: #{discriminator_forward.21} parent=5 // pred_check_branch
        %164 = sbr.rel (%p162) target = $region20
      $region19: #{discriminator_forward.21} parent=5 // pred_region
        // Predicated region
        $region21: #{discriminator_forward.21} parent=19 // pred_check
          %p165 = pneg %p50
        $region22: #{discriminator_forward.21} parent=19 // pred_check_branch
          %167 = sbr.rel (%p165) target = $region24
        $region23: #{discriminator_forward.21} parent=19 // pred_region
          %s168 = sand.u32 %s40, 1
          %s169 = sand.u32 %s40, 1
          %s170 = smul.addr %s169, 16
          %s171 = scalar_lea.vmem [#allocation3], %s170
          %s172 = smul.u32 4, %s16
          %s173 = smul.addr %s172, 9
          %s174 = sadd.s32 %s18, %s173
          %s175 = smul.addr %s174, 4
          %s176 = scalar_lea.vmem %s0, %s175
          // Predicated region
          $region25: #{discriminator_forward.21} parent=23 // pred_check
            _
          $region26: #{discriminator_forward.21} parent=23 // pred_check_branch
            %178 = sbr.rel (0) target = $region28
          $region27: #{discriminator_forward.21} parent=23 // pred_region
            // Predicated region
            $region29: #{discriminator_forward.21} parent=27 // pred_check
              _
            $region30: #{discriminator_forward.21} parent=27 // pred_check_branch
              %180 = sbr.rel target = $region32
            $region31: #{discriminator_forward.21} parent=27 // pred_region
              // Predicated region
              $region44: #{discriminator_forward.21} parent=31 // pred_check
                _
              $region45: #{discriminator_forward.21} parent=31 // pred_check_branch
                %201 = sbr.rel (0) target = $region47
              $region46: #{discriminator_forward.21} parent=31 // pred_region
                loop: start=0, step=1, limit=1
                $region48: #{discriminator_forward.21} parent=46 // loop_pre_header
                  _
                $region49: #{discriminator_forward.21} parent=46 // loop_header
                  %s203 = sphi 0, %s207
                  %p204 = scmp.ge.s32.totalorder %s203, 1
                  %s208 = sphi %s176, %s176
                  %s209 = sphi %s171, %s171
                $region50: #{discriminator_forward.21} parent=46 // loop_header_branch
                  %206 = sbr.rel (%p204) target = $region54
                $region51: #{discriminator_forward.21} parent=46 // loop_body
                  _
                $region52: #{discriminator_forward.21} parent=46 // loop_footer
                  %s207 = sadd.s32 1, %s203
                $region53: #{discriminator_forward.21} parent=46 // loop_footer_branch
                  %202 = sbr.rel target = $region49
                $region54: #{discriminator_forward.21} parent=46 // loop_exit
                  _
                loop: start=0, step=1, limit=1
                $region55: #{discriminator_forward.21} parent=46 // loop_pre_header
                  _
                $region56: #{discriminator_forward.21} parent=46 // loop_header
                  %s212 = sphi 0, %s216
                  %p213 = scmp.ge.s32.totalorder %s212, 1
                  %s217 = sphi %s176, %s176
                  %s218 = sphi %s171, %s171
                $region57: #{discriminator_forward.21} parent=46 // loop_header_branch
                  %215 = sbr.rel (%p213) target = $region61
                $region58: #{discriminator_forward.21} parent=46 // loop_body
                  %v219 = vld [vmem:[%s217] sm:$0xf]
                  %220 = vst [vmem:[%s218] sm:$0xf] %v219
                  %v221 = vld [vmem:[%s217 + $0x24] sm:$0xf]
                  %222 = vst [vmem:[%s218 + $0x4] sm:$0xf] %v221
                  %v223 = vld [vmem:[%s217 + $0x48] sm:$0xf]
                  %224 = vst [vmem:[%s218 + $0x8] sm:$0xf] %v223
                  %v225 = vld [vmem:[%s217 + $0x6c] sm:$0xf]
                  %226 = vst [vmem:[%s218 + $0xc] sm:$0xf] %v225
                $region59: #{discriminator_forward.21} parent=46 // loop_footer
                  %s216 = sadd.s32 1, %s212
                $region60: #{discriminator_forward.21} parent=46 // loop_footer_branch
                  %211 = sbr.rel target = $region56
                $region61: #{discriminator_forward.21} parent=46 // loop_exit
                  _
              $region47: #{discriminator_forward.21} parent=31 // pred_fallthru
                _
            $region32: #{discriminator_forward.21} parent=27 // pred_fallthru
              _
            // Predicated region
            $region33: #{discriminator_forward.21} parent=27 // pred_check
              _
            $region34: #{discriminator_forward.21} parent=27 // pred_check_branch
              %182 = sbr.rel (0) target = $region36
            $region35: #{discriminator_forward.21} parent=27 // pred_region
              loop: start=0, step=1, limit=1
              $region37: #{discriminator_forward.21} parent=35 // loop_pre_header
                _
              $region38: #{discriminator_forward.21} parent=35 // loop_header
                %s185 = sphi 0, %s189
                %p186 = scmp.ge.s32.totalorder %s185, 1
                %s190 = sphi %s176, %s176
                %s191 = sphi %s171, %s171
              $region39: #{discriminator_forward.21} parent=35 // loop_header_branch
                %188 = sbr.rel (%p186) target = $region43
              $region40: #{discriminator_forward.21} parent=35 // loop_body
                %v192 = vld [vmem:[%s190] sm:$0xf]
                %193 = vst [vmem:[%s191] sm:$0xf] %v192
                %v194 = vld [vmem:[%s190 + $0x24] sm:$0xf]
                %195 = vst [vmem:[%s191 + $0x4] sm:$0xf] %v194
                %v196 = vld [vmem:[%s190 + $0x48] sm:$0xf]
                %197 = vst [vmem:[%s191 + $0x8] sm:$0xf] %v196
                %v198 = vld [vmem:[%s190 + $0x6c] sm:$0xf]
                %199 = vst [vmem:[%s191 + $0xc] sm:$0xf] %v198
              $region41: #{discriminator_forward.21} parent=35 // loop_footer
                %s189 = sadd.s32 1, %s185
              $region42: #{discriminator_forward.21} parent=35 // loop_footer_branch
                %184 = sbr.rel target = $region38
              $region43: #{discriminator_forward.21} parent=35 // loop_exit
                _
            $region36: #{discriminator_forward.21} parent=27 // pred_fallthru
              _
          $region28: #{discriminator_forward.21} parent=23 // pred_fallthru
            _
          %227 = vnop
        $region24: #{discriminator_forward.21} parent=19 // pred_fallthru
          _
        // Predicated region
        $region62: #{discriminator_forward.21} parent=19 // pred_check
          %p228 = pneg %p78
        $region63: #{discriminator_forward.21} parent=19 // pred_check_branch
          %230 = sbr.rel (%p228) target = $region65
        $region64: #{discriminator_forward.21} parent=19 // pred_region
          %s231 = smul.u32 16, %s18
          %s232 = smul.u32 2, %s17
          %p233 = scmp.lt.s32.totalorder %s231, 143
          %s234 = scalar_select %p233, %s231, 143
          %p235 = scmp.lt.s32.totalorder %s232, 1
          %s236 = scalar_select %p235, %s232, 1
          %s237 = smul.addr %s234, 2
          %s238 = sadd.s32 %s236, %s237
          %s239 = smul.addr %s238, 4
          %s240 = scalar_lea.vmem %s1, %s239
          %s241 = smul.u32 16, %s18
          %s242 = smul.u32 2, %s17
        $region65: #{discriminator_forward.21} parent=19 // pred_fallthru
          _
      $region20: #{discriminator_forward.21} parent=5 // pred_fallthru
        _
      %p243 = scmp.le.s32.totalorder 1, %s9
      %p244 = scmp.lt.s32.totalorder %s9, 10
      %p245 = pnand %p243, %p244
      %p246 = pneg %p245
      // Predicated region
      $region66: #{discriminator_forward.21} parent=5 // pred_check
        _
      $region67: #{discriminator_forward.21} parent=5 // pred_check_branch
        %248 = sbr.rel (%p245) target = $region69
      $region68: #{discriminator_forward.21} parent=5 // pred_region
        %s249 = ssub.s32 %s9, 1
        %s250 = sand.u32 %s43, 1
        %s251 = sand.u32 %s43, 1
        %s252 = smul.addr %s251, 16
        %s253 = scalar_lea.vmem [#allocation3], %s252
        // Predicated region
        $region70: #{discriminator_forward.21} parent=68 // pred_check
          %p254 = pneg %p56
        $region71: #{discriminator_forward.21} parent=68 // pred_check_branch
          %256 = sbr.rel (%p254) target = $region73
        $region72: #{discriminator_forward.21} parent=68 // pred_region
          _
        $region73: #{discriminator_forward.21} parent=68 // pred_fallthru
          _
        %s257 = sand.u32 %s43, 1
        %s258 = sand.u32 %s43, 1
        %s259 = smul.addr %s258, 16
        %s260 = scalar_lea.vmem [#allocation3], %s259
        %p261 = pneg %p56
        %p262 = pneg %p53
        %s263 = smul.u32 16, %s21
        %s264 = smul.u32 2, %s20
        %p265 = scmp.lt.s32.totalorder %s263, 143
        %s266 = scalar_select %p265, %s263, 143
        %p267 = scmp.lt.s32.totalorder %s264, 1
        %s268 = scalar_select %p267, %s264, 1
        %s269 = smul.addr %s266, 2
        %s270 = sadd.s32 %s268, %s269
        %s271 = smul.addr %s270, 4
        %s272 = scalar_lea.vmem %s1, %s271
        %p273 = pneg %p84
        %p274 = pneg %p81
        %s275 = smul.u32 2, %s20
        %p276 = scmp.lt.s32.totalorder %s275, 1
        %s277 = scalar_select %p276, %s275, 1
        %s278 = scalar_lea.vmem %s2, %s277
        %p279 = pneg %p110
        %p280 = pneg %p107
        %p281 = pneg %p138
        %p282 = pneg %p135
        %s283 = smul.u32 4, %s19
        %s284 = smul.u32 2, %s20
        %p285 = scmp.lt.s32.totalorder %s283, 3
        %s286 = scalar_select %p285, %s283, 3
        %p287 = scmp.lt.s32.totalorder %s284, 1
        %s288 = scalar_select %p287, %s284, 1
        %s289 = smul.addr %s286, 2
        %s290 = sadd.s32 %s288, %s289
        %s291 = smul.addr %s290, 8
        %s292 = scalar_lea.vmem %s3, %s291
        %s293 = smul.u32 4, %s19
        %s294 = smul.u32 16, %s21
        %s295 = smul.u32 2, %s20
        %p296 = scmp.lt.s32.totalorder %s294, 143
        %s297 = scalar_select %p296, %s294, 143
        %p298 = scmp.lt.s32.totalorder %s295, 1
        %s299 = scalar_select %p298, %s295, 1
        %s300 = smul.addr %s297, 2
        %s301 = sadd.s32 %s299, %s300
        %s302 = smul.addr %s301, 4
        %s303 = scalar_lea.vmem %s1, %s302
        %s304 = smul.u32 16, %s21
        %s305 = smul.u32 2, %s20
        %s306 = smul.u32 2, %s20
        %p307 = scmp.lt.s32.totalorder %s306, 1
        %s308 = scalar_select %p307, %s306, 1
        %s309 = scalar_lea.vmem %s2, %s308
        %s310 = smul.u32 2, %s20
        %s311 = smul.u32 4, %s19
        %s312 = smul.u32 2, %s20
        %p313 = scmp.lt.s32.totalorder %s311, 3
        %s314 = scalar_select %p313, %s311, 3
        %p315 = scmp.lt.s32.totalorder %s312, 1
        %s316 = scalar_select %p315, %s312, 1
        %s317 = smul.addr %s314, 2
        %s318 = sadd.s32 %s316, %s317
        %s319 = smul.addr %s318, 8
        %s320 = scalar_lea.vmem %s3, %s319
        %s321 = smul.u32 4, %s19
        %s322 = smul.u32 2, %s20
        %p324 = scmp.eq.s32.totalorder %s21, 0
        // Predicated region
        $region74: #{discriminator_forward.21} parent=68 // pred_check
          %p325 = pneg %p324
        $region75: #{discriminator_forward.21} parent=68 // pred_check_branch
          %327 = sbr.rel (%p325) target = $region77
        $region76: #{discriminator_forward.21} parent=68 // pred_region
          %328 = vst [vmem:[#allocation2] sm:$0xff] 0.0
          %329 = vst [vmem:[#allocation2 + $0x8] sm:$0xff] 0.0
          %330 = vst [vmem:[#allocation2 + $0x10] sm:$0xff] 0.0
          %331 = vst [vmem:[#allocation2 + $0x18] sm:$0xff] 0.0
          %332 = vst [vmem:[#allocation2 + $0x20] sm:$0xff] 0.0
          %333 = vst [vmem:[#allocation2 + $0x28] sm:$0xff] 0.0
          %334 = vst [vmem:[#allocation2 + $0x30] sm:$0xff] 0.0
          %335 = vst [vmem:[#allocation2 + $0x38] sm:$0xff] 0.0
        $region77: #{discriminator_forward.21} parent=68 // pred_fallthru
          _
        %v336 = vld [vmem:[#allocation2] sm:$0xff]
        %v337 = vld [vmem:[#allocation2 + $0x8] sm:$0xff]
        %v338 = vld [vmem:[#allocation2 + $0x10] sm:$0xff]
        %v339 = vld [vmem:[#allocation2 + $0x18] sm:$0xff]
        %v340 = vld [vmem:[#allocation2 + $0x20] sm:$0xff]
        %v341 = vld [vmem:[#allocation2 + $0x28] sm:$0xff]
        %v342 = vld [vmem:[#allocation2 + $0x30] sm:$0xff]
        %v343 = vld [vmem:[#allocation2 + $0x38] sm:$0xff]
        %v344 = vld [vmem:[%s253] sm:$0xf]
        %v345 = vld [vmem:[%s253 + $0x4] sm:$0xf]
        %v346 = vld [vmem:[%s253 + $0x8] sm:$0xf]
        %v347 = vld [vmem:[%s253 + $0xc] sm:$0xf]
        %v348 = vld [vmem:[%s303] sm:$0xff]
        %v349 = vld [vmem:[%s303 + $0x8] sm:$0xff]
        %v350 = vld [vmem:[%s303 + $0x10] sm:$0xff]
        %v351 = vld [vmem:[%s303 + $0x18] sm:$0xff]
        %v352 = vld [vmem:[%s303 + $0x20] sm:$0xff]
        %v353 = vld [vmem:[%s303 + $0x28] sm:$0xff]
        %v354 = vld [vmem:[%s303 + $0x30] sm:$0xff]
        %v355 = vld [vmem:[%s303 + $0x38] sm:$0xff]
        %v356 = vld [vmem:[%s303 + $0x40] sm:$0xff]
        %v357 = vld [vmem:[%s303 + $0x48] sm:$0xff]
        %v358 = vld [vmem:[%s303 + $0x50] sm:$0xff]
        %v359 = vld [vmem:[%s303 + $0x58] sm:$0xff]
        %v360 = vld [vmem:[%s303 + $0x60] sm:$0xff]
        %v361 = vld [vmem:[%s303 + $0x68] sm:$0xff]
        %v362 = vld [vmem:[%s303 + $0x70] sm:$0xff]
        %v363 = vld [vmem:[%s303 + $0x78] sm:$0xff]
        %v368 = vunpack.c.l.b16 %v344
        %v369 = vunpack.c.l.b16 %v345
        %v370 = vunpack.c.l.b16 %v346
        %v371 = vunpack.c.l.b16 %v347
        %v372 = vpack.c.b16 %v369, %v368
        %v373 = vpack.c.b16 %v371, %v370
        %v392 = vunpack.c.l.b16 %v348
        %v393 = vunpack.c.h.b16 %v348
        %v394 = vunpack.c.l.b16 %v349
        %v395 = vunpack.c.h.b16 %v349
        %v396 = vunpack.c.l.b16 %v350
        %v397 = vunpack.c.h.b16 %v350
        %v398 = vunpack.c.l.b16 %v351
        %v399 = vunpack.c.h.b16 %v351
        %v400 = vunpack.c.l.b16 %v352
        %v401 = vunpack.c.h.b16 %v352
        %v402 = vunpack.c.l.b16 %v353
        %v403 = vunpack.c.h.b16 %v353
        %v404 = vunpack.c.l.b16 %v354
        %v405 = vunpack.c.h.b16 %v354
        %v406 = vunpack.c.l.b16 %v355
        %v407 = vunpack.c.h.b16 %v355
        %v408 = vunpack.c.l.b16 %v356
        %v409 = vunpack.c.h.b16 %v356
        %v410 = vunpack.c.l.b16 %v357
        %v411 = vunpack.c.h.b16 %v357
        %v412 = vunpack.c.l.b16 %v358
        %v413 = vunpack.c.h.b16 %v358
        %v414 = vunpack.c.l.b16 %v359
        %v415 = vunpack.c.h.b16 %v359
        %v416 = vunpack.c.l.b16 %v360
        %v417 = vunpack.c.h.b16 %v360
        %v418 = vunpack.c.l.b16 %v361
        %v419 = vunpack.c.h.b16 %v361
        %v420 = vunpack.c.l.b16 %v362
        %v421 = vunpack.c.h.b16 %v362
        %v422 = vunpack.c.l.b16 %v363
        %v423 = vunpack.c.h.b16 %v363
        %v424 = vpack.c.b16 %v394, %v392
        %v425 = vpack.c.b16 %v395, %v393
        %v426 = vpack.c.b16 %v398, %v396
        %v427 = vpack.c.b16 %v399, %v397
        %v428 = vpack.c.b16 %v402, %v400
        %v429 = vpack.c.b16 %v403, %v401
        %v430 = vpack.c.b16 %v406, %v404
        %v431 = vpack.c.b16 %v407, %v405
        %v432 = vpack.c.b16 %v410, %v408
        %v433 = vpack.c.b16 %v411, %v409
        %v434 = vpack.c.b16 %v414, %v412
        %v435 = vpack.c.b16 %v415, %v413
        %v436 = vpack.c.b16 %v418, %v416
        %v437 = vpack.c.b16 %v419, %v417
        %v438 = vpack.c.b16 %v422, %v420
        %v439 = vpack.c.b16 %v423, %v421
        %456 = vmatprep.subr.bf16.mxu0 %v425
        %457 = vmatpush1.bf16.msra.mxu0 %v424
        %458 = vmatprep.subr.bf16.mxu0 %v427
        %459 = vmatpush1.bf16.msra.mxu0 %v426
        %460 = vmatprep.subr.bf16.mxu0 %v429
        %461 = vmatpush1.bf16.msra.mxu0 %v428
        %462 = vmatprep.subr.bf16.mxu0 %v431
        %463 = vmatpush1.bf16.msra.mxu0 %v430
        %464 = vmatprep.subr.bf16.mxu0 %v433
        %465 = vmatpush1.bf16.msra.mxu0 %v432
        %466 = vmatprep.subr.bf16.mxu0 %v435
        %467 = vmatpush1.bf16.msra.mxu0 %v434
        %468 = vmatprep.subr.bf16.mxu0 %v437
        %469 = vmatpush1.bf16.msra.mxu0 %v436
        %470 = vmatprep.subr.bf16.mxu0 %v439
        %471 = vmatpush1.bf16.msra.mxu0 %v438
        %472 = vmatprep.subr.bf16.mxu0 0
        %473 = vmatpush1.bf16.msra.mxu0 0
        %474 = vmatprep.subr.bf16.mxu0 0
        %475 = vmatpush1.bf16.msra.mxu0 0
        %476 = vmatprep.subr.bf16.mxu0 0
        %477 = vmatpush1.bf16.msra.mxu0 0
        %478 = vmatprep.subr.bf16.mxu0 0
        %479 = vmatpush1.bf16.msra.mxu0 0
        %480 = vmatprep.subr.bf16.mxu0 0
        %481 = vmatpush1.bf16.msra.mxu0 0
        %482 = vmatprep.subr.bf16.mxu0 0
        %483 = vmatpush1.bf16.msra.mxu0 0
        %484 = vmatprep.subr.bf16.mxu0 0
        %485 = vmatpush1.bf16.msra.mxu0 0
        %486 = vmatprep.subr.bf16.mxu0 0
        %487 = vmatpush1.bf16.msra.mxu0 0
        %488 = vmatprep.mubr.bf16.mxu0 0
        %489 = vmatmul.mubr.bf16.gmra.mrb[0].mxu0 %v372
        %v490 = vpop.f32.mrb[0].mxu0
        %v491 = vadd.f32 0.0, %v490
        %v492 = vpop.f32.mrb[0].mxu0
        %v493 = vadd.f32 0.0, %v492
        %v494 = vpop.f32.mrb[0].mxu0
        %v495 = vadd.f32 0.0, %v494
        %v496 = vpop.f32.mrb[0].mxu0
        %v497 = vadd.f32 0.0, %v496
        %498 = vmatprep.mubr.bf16.mxu0 0
        %499 = vmatmul.mubr.bf16.gmra.mrb[0].mxu0 %v373
        %v500 = vpop.f32.mrb[0].mxu0
        %v501 = vadd.f32 0.0, %v500
        %v502 = vpop.f32.mrb[0].mxu0
        %v503 = vadd.f32 0.0, %v502
        %v504 = vpop.f32.mrb[0].mxu0
        %v505 = vadd.f32 0.0, %v504
        %v506 = vpop.f32.mrb[0].mxu0
        %v507 = vadd.f32 0.0, %v506
        %508 = vdwg.mxu0
        %v509 = vadd.f32 %v336, %v491
        %v510 = vadd.f32 %v337, %v493
        %v511 = vadd.f32 %v338, %v495
        %v512 = vadd.f32 %v339, %v497
        %v513 = vadd.f32 %v340, %v501
        %v514 = vadd.f32 %v341, %v503
        %v515 = vadd.f32 %v342, %v505
        %v516 = vadd.f32 %v343, %v507
        %517 = vst [vmem:[#allocation2] sm:$0xff] %v509
        %518 = vst [vmem:[#allocation2 + $0x8] sm:$0xff] %v510
        %519 = vst [vmem:[#allocation2 + $0x10] sm:$0xff] %v511
        %520 = vst [vmem:[#allocation2 + $0x18] sm:$0xff] %v512
        %521 = vst [vmem:[#allocation2 + $0x20] sm:$0xff] %v513
        %522 = vst [vmem:[#allocation2 + $0x28] sm:$0xff] %v514
        %523 = vst [vmem:[#allocation2 + $0x30] sm:$0xff] %v515
        %524 = vst [vmem:[#allocation2 + $0x38] sm:$0xff] %v516
        %p525 = scmp.eq.s32.totalorder %s21, 8
        // Predicated region
        $region78: #{discriminator_forward.21} parent=68 // pred_check
          %p526 = pneg %p525
        $region79: #{discriminator_forward.21} parent=68 // pred_check_branch
          %528 = sbr.rel (%p526) target = $region81
        $region80: #{discriminator_forward.21} parent=68 // pred_region
          %v529 = vld [vmem:[#allocation2] sm:$0xff]
          %v530 = vld [vmem:[#allocation2 + $0x8] sm:$0xff]
          %v531 = vld [vmem:[#allocation2 + $0x10] sm:$0xff]
          %v532 = vld [vmem:[#allocation2 + $0x18] sm:$0xff]
          %v533 = vld [vmem:[#allocation2 + $0x20] sm:$0xff]
          %v534 = vld [vmem:[#allocation2 + $0x28] sm:$0xff]
          %v535 = vld [vmem:[#allocation2 + $0x30] sm:$0xff]
          %v536 = vld [vmem:[#allocation2 + $0x38] sm:$0xff]
          %v537 = vld [vmem:[%s309] sm:$0x3]
          %v539 = vlaneseq
          %v540 = vshrl.u32 %v539, 7
          %v541 = vsub.s32 0, %v540
          %v542 = vrot.slane %v537, %v541
          %v543 = vlaneseq
          %v544 = vshrl.u32 %v543, 7
          %v545 = vsub.s32 1, %v544
          %v546 = vrot.slane %v537, %v545
          %v549 = vadd.f32 %v529, %v542
          %v550 = vadd.f32 %v530, %v546
          %v551 = vadd.f32 %v531, %v542
          %v552 = vadd.f32 %v532, %v546
          %v553 = vadd.f32 %v533, %v542
          %v554 = vadd.f32 %v534, %v546
          %v555 = vadd.f32 %v535, %v542
          %v556 = vadd.f32 %v536, %v546
          %557 = vst [vmem:[%s320] sm:$0xff] %v549
          %558 = vst [vmem:[%s320 + $0x8] sm:$0xff] %v550
          %559 = vst [vmem:[%s320 + $0x10] sm:$0xff] %v551
          %560 = vst [vmem:[%s320 + $0x18] sm:$0xff] %v552
          %561 = vst [vmem:[%s320 + $0x20] sm:$0xff] %v553
          %562 = vst [vmem:[%s320 + $0x28] sm:$0xff] %v554
          %563 = vst [vmem:[%s320 + $0x30] sm:$0xff] %v555
          %564 = vst [vmem:[%s320 + $0x38] sm:$0xff] %v556
        $region81: #{discriminator_forward.21} parent=68 // pred_fallthru
          _
        %s565 = smul.u32 4, %s19
        %s566 = smul.u32 2, %s20
        %p567 = scmp.lt.s32.totalorder %s565, 3
        %s568 = scalar_select %p567, %s565, 3
        %p569 = scmp.lt.s32.totalorder %s566, 1
        %s570 = scalar_select %p569, %s566, 1
        %s571 = smul.addr %s568, 2
        %s572 = sadd.s32 %s570, %s571
        %s573 = smul.addr %s572, 8
        %s574 = scalar_lea.vmem %s3, %s573
        // Predicated region
        $region82: #{discriminator_forward.21} parent=68 // pred_check
          %p575 = pneg %p135
        $region83: #{discriminator_forward.21} parent=68 // pred_check_branch
          %577 = sbr.rel (%p575) target = $region85
        $region84: #{discriminator_forward.21} parent=68 // pred_region
          %s578 = smul.u32 4, %s19
          %s579 = smul.u32 2, %s20
        $region85: #{discriminator_forward.21} parent=68 // pred_fallthru
          _
        // Predicated region
        $region86: #{discriminator_forward.21} parent=68 // pred_check
          %p580 = pneg %p135
        $region87: #{discriminator_forward.21} parent=68 // pred_check_branch
          %582 = sbr.rel (%p580) target = $region89
        $region88: #{discriminator_forward.21} parent=68 // pred_region
          %s583 = smul.u32 4, %s19
          %s584 = smul.u32 2, %s20
          %p585 = scmp.lt.s32.totalorder %s583, 3
          %s586 = scalar_select %p585, %s583, 3
          %p587 = scmp.lt.s32.totalorder %s584, 1
          %s588 = scalar_select %p587, %s584, 1
          %s589 = smul.addr %s586, 2
          %s590 = sadd.s32 %s588, %s589
          %s591 = smul.addr %s590, 8
          %s592 = scalar_lea.vmem %s3, %s591
        $region89: #{discriminator_forward.21} parent=68 // pred_fallthru
          _
      $region69: #{discriminator_forward.21} parent=5 // pred_fallthru
        _
      %p593 = scmp.le.s32.totalorder 2, %s9
      // Predicated region
      $region90: #{discriminator_forward.21} parent=5 // pred_check
        %p594 = pneg %p593
      $region91: #{discriminator_forward.21} parent=5 // pred_check_branch
        %596 = sbr.rel (%p594) target = $region93
      $region92: #{discriminator_forward.21} parent=5 // pred_region
        %s597 = ssub.s32 %s9, 2
      $region93: #{discriminator_forward.21} parent=5 // pred_fallthru
        _
    $region6: #{discriminator_forward.21} parent=1 // loop_footer
      %s13 = sadd.s32 1, %s9
    $region7: #{discriminator_forward.21} parent=1 // loop_footer_branch
      %8 = sbr.rel target = $region3
    $region8: #{discriminator_forward.21} parent=1 // loop_exit
      _

// kernel: discriminator_forward.23
$region0: #{discriminator_forward.23}
  #allocation0 [shape = 'u32[]', space=smem, size = 0x4, offset = 0x4, fixed_abs, tag = 'smem constant byte address 0x4 - core index']
  #allocation1 [shape = 'u32[144,128]{1,0:T(1,128)}', space=vmem, size = 0x12000, scoped, tag = 'internal scratch']
  %s0 = inlined_call_operand.vmem [shape: f32[32,256], index: 0, kind: input, shape index: {}]
  %s1 = inlined_call_operand.vmem [shape: f32[2,256], index: 1, kind: input, shape index: {}]
  %s2 = inlined_call_operand.vmem [shape: f32[1,256], index: 2, kind: input, shape index: {}]
  %s3 = inlined_call_operand.vmem [shape: f32[1,256], index: 3, kind: input, shape index: {}]
  %s4 = inlined_call_operand.vmem [shape: f32[32,256], index: 4, kind: output, shape index: {}]
  %s5 = sld [smem:[#allocation0]]
  $region26: #{discriminator_forward.23} parent=0
    _
  %s7 = ssub.s32 1, %s5
  %s8 = scalar_select 0, %s7, %s5
  // Predicated region
  $region2: #{discriminator_forward.23} parent=0 // pred_check
    _
  $region3: #{discriminator_forward.23} parent=0 // pred_check_branch
    %10 = sbr.rel (0) target = $region5
  $region4: #{discriminator_forward.23} parent=0 // pred_region
    _
  $region5: #{discriminator_forward.23} parent=0 // pred_fallthru
    _
  // Predicated region
  $region6: #{discriminator_forward.23} parent=0 // pred_check
    _
  $region7: #{discriminator_forward.23} parent=0 // pred_check_branch
    %12 = sbr.rel (0) target = $region9
  $region8: #{discriminator_forward.23} parent=0 // pred_region
    _
  $region9: #{discriminator_forward.23} parent=0 // pred_fallthru
    _
  // Predicated region
  $region10: #{discriminator_forward.23} parent=0 // pred_check
    _
  $region11: #{discriminator_forward.23} parent=0 // pred_check_branch
    %14 = sbr.rel (0) target = $region13
  $region12: #{discriminator_forward.23} parent=0 // pred_region
    _
  $region13: #{discriminator_forward.23} parent=0 // pred_fallthru
    _
  // Predicated region
  $region14: #{discriminator_forward.23} parent=0 // pred_check
    _
  $region15: #{discriminator_forward.23} parent=0 // pred_check_branch
    %16 = sbr.rel (0) target = $region17
  $region16: #{discriminator_forward.23} parent=0 // pred_region
    _
  $region17: #{discriminator_forward.23} parent=0 // pred_fallthru
    _
  %v17 = vld [vmem:[%s0] sm:$0xff]
  %v18 = vld [vmem:[%s0 + $0x8] sm:$0xff]
  %v19 = vld [vmem:[%s0 + $0x10] sm:$0xff]
  %v20 = vld [vmem:[%s0 + $0x18] sm:$0xff]
  %v21 = vld [vmem:[%s0 + $0x20] sm:$0xff]
  %v22 = vld [vmem:[%s0 + $0x28] sm:$0xff]
  %v23 = vld [vmem:[%s0 + $0x30] sm:$0xff]
  %v24 = vld [vmem:[%s0 + $0x38] sm:$0xff]
  %v25 = vld [vmem:[%s1] ss:$2 sm:$0x3]
  %v26 = vmul.f32 %v25, 0.03125
  %s27 = scalar_lea.vmem %s1, 1
  %v28 = vld [vmem:[%s27] ss:$2 sm:$0x3]
  %v29 = vmul.f32 %v28, 0.03125
  %v30 = vmul.f32 %v26, %v26
  %v31 = vsub.f32 %v29, %v30
  %v32 = vld [vmem:[%s2] sm:$0x3]
  %v33 = vadd.f32 %v31, 1e-05
  %v34 = vrsqrt.pop %v33
  %v35 = vmul.f32 %v32, %v34
  %v36 = vld [vmem:[%s3] sm:$0x3]
  %v37 = vmul.f32 %v26, %v35
  %v38 = vsub.f32 %v36, %v37
  %v40 = vlaneseq
  %v41 = vshrl.u32 %v40, 7
  %v42 = vsub.s32 0, %v41
  %v43 = vrot.slane %v35, %v42
  %v44 = vlaneseq
  %v45 = vshrl.u32 %v44, 7
  %v46 = vsub.s32 1, %v45
  %v47 = vrot.slane %v35, %v46
  %v50 = vmul.f32 %v17, %v43
  %v51 = vmul.f32 %v18, %v47
  %v52 = vmul.f32 %v19, %v43
  %v53 = vmul.f32 %v20, %v47
  %v54 = vmul.f32 %v21, %v43
  %v55 = vmul.f32 %v22, %v47
  %v56 = vmul.f32 %v23, %v43
  %v57 = vmul.f32 %v24, %v47
  %v59 = vlaneseq
  %v60 = vshrl.u32 %v59, 7
  %v61 = vsub.s32 0, %v60
  %v62 = vrot.slane %v38, %v61
  %v63 = vlaneseq
  %v64 = vshrl.u32 %v63, 7
  %v65 = vsub.s32 1, %v64
  %v66 = vrot.slane %v38, %v65
  %v69 = vadd.f32 %v50, %v62
  %v70 = vadd.f32 %v51, %v66
  %v71 = vadd.f32 %v52, %v62
  %v72 = vadd.f32 %v53, %v66
  %v73 = vadd.f32 %v54, %v62
  %v74 = vadd.f32 %v55, %v66
  %v75 = vadd.f32 %v56, %v62
  %v76 = vadd.f32 %v57, %v66
  %vm77 = vcmp.gt.f32.partialorder %v69, 0.0
  %vm78 = vcmp.gt.f32.partialorder %v70, 0.0
  %vm79 = vcmp.gt.f32.partialorder %v71, 0.0
  %vm80 = vcmp.gt.f32.partialorder %v72, 0.0
  %vm81 = vcmp.gt.f32.partialorder %v73, 0.0
  %vm82 = vcmp.gt.f32.partialorder %v74, 0.0
  %vm83 = vcmp.gt.f32.partialorder %v75, 0.0
  %vm84 = vcmp.gt.f32.partialorder %v76, 0.0
  %v85 = vmul.f32 %v69, 0.2
  %v86 = vmul.f32 %v70, 0.2
  %v87 = vmul.f32 %v71, 0.2
  %v88 = vmul.f32 %v72, 0.2
  %v89 = vmul.f32 %v73, 0.2
  %v90 = vmul.f32 %v74, 0.2
  %v91 = vmul.f32 %v75, 0.2
  %v92 = vmul.f32 %v76, 0.2
  %v93 = vsel %vm77, %v69, %v85
  %v94 = vsel %vm78, %v70, %v86
  %v95 = vsel %vm79, %v71, %v87
  %v96 = vsel %vm80, %v72, %v88
  %v97 = vsel %vm81, %v73, %v89
  %v98 = vsel %vm82, %v74, %v90
  %v99 = vsel %vm83, %v75, %v91
  %v100 = vsel %vm84, %v76, %v92
  %101 = vst [vmem:[%s4] sm:$0xff] %v93
  %102 = vst [vmem:[%s4 + $0x8] sm:$0xff] %v94
  %103 = vst [vmem:[%s4 + $0x10] sm:$0xff] %v95
  %104 = vst [vmem:[%s4 + $0x18] sm:$0xff] %v96
  %105 = vst [vmem:[%s4 + $0x20] sm:$0xff] %v97
  %106 = vst [vmem:[%s4 + $0x28] sm:$0xff] %v98
  %107 = vst [vmem:[%s4 + $0x30] sm:$0xff] %v99
  %108 = vst [vmem:[%s4 + $0x38] sm:$0xff] %v100
  // Predicated region
  $region18: #{discriminator_forward.23} parent=0 // pred_check
    _
  $region19: #{discriminator_forward.23} parent=0 // pred_check_branch
    %110 = sbr.rel (0) target = $region21
  $region20: #{discriminator_forward.23} parent=0 // pred_region
    _
  $region21: #{discriminator_forward.23} parent=0 // pred_fallthru
    _
  // Predicated region
  $region22: #{discriminator_forward.23} parent=0 // pred_check
    _
  $region23: #{discriminator_forward.23} parent=0 // pred_check_branch
    %112 = sbr.rel (0) target = $region25
  $region24: #{discriminator_forward.23} parent=0 // pred_region
    _
  $region25: #{discriminator_forward.23} parent=0 // pred_fallthru
    _

// kernel: discriminator_forward.24
$region0: #{discriminator_forward.24}
  #allocation0 [shape = 'u32[]', space=smem, size = 0x4, offset = 0x4, fixed_abs, tag = 'smem constant byte address 0x4 - core index']
  #allocation1 [shape = 'u32[144,128]{1,0:T(1,128)}', space=vmem, size = 0x12000, scoped, tag = 'internal scratch']
  #allocation2 [shape = 'f32[8,256]{1,0:T(8,128)}', space=vmem, size = 0x2000, scoped, tag = 'scratch operand']
  %s0 = inlined_call_operand.vmem [shape: bf16[8,2304], index: 0, kind: input, shape index: {}]
  %s1 = inlined_call_operand.vmem [shape: bf16[2304,512], index: 1, kind: input, shape index: {}]
  %s2 = inlined_call_operand.vmem [shape: f32[1,512], index: 2, kind: input, shape index: {}]
  %s3 = inlined_call_operand.vmem [shape: f32[8,512], index: 3, kind: output, shape index: {}]
  %s4 = sld [smem:[#allocation0]]
  $region91: #{discriminator_forward.24} parent=0
    _
  %s6 = ssub.s32 1, %s4
  %s7 = scalar_select 0, %s6, %s4
  $region1: #{discriminator_forward.24} parent=0
    #allocation3 [shape = 'u8[262144]{0}', space=vmem, size = 0x40000, scoped, tag = 'input window, operand 1']
    loop: start=0, step=1, limit=20
    $region2: #{discriminator_forward.24} parent=1 // loop_pre_header
      _
    $region3: #{discriminator_forward.24} parent=1 // loop_header
      %s9 = sphi 0, %s13
      %p10 = scmp.ge.s32.totalorder %s9, 20
      %s16 = sphi 0, %s35
      %s17 = sphi 0, %s31
      %s18 = sphi 0, %s27
      %s19 = sphi 0, %s16
      %s20 = sphi 0, %s17
      %s21 = sphi 0, %s18
      %s22 = sphi 0, %s19
      %s23 = sphi 0, %s20
      %s24 = sphi 0, %s21
      %s40 = sphi 0, %s42
      %s43 = sphi 0, %s40
      %s44 = sphi 0, %s43
      %s60 = sphi 0, %s44
      %s68 = sphi 0, %s70
      %s71 = sphi 0, %s68
      %s72 = sphi 0, %s71
      %s88 = sphi 0, %s72
      %s94 = sphi 0, %s96
      %s97 = sphi 0, %s94
      %s98 = sphi 0, %s97
      %s114 = sphi 0, %s98
      %s122 = sphi 0, %s124
      %s125 = sphi 0, %s122
      %s126 = sphi 0, %s125
      %s142 = sphi 0, %s126
    $region4: #{discriminator_forward.24} parent=1 // loop_header_branch
      %12 = sbr.rel (%p10) target = $region8
    $region5: #{discriminator_forward.24} parent=1 // loop_body
      %s14 = ssub.s32 %s9, 1
      %s15 = ssub.s32 %s9, 2
      %s25 = sadd.s32 1, %s18
      %p26 = scmp.ge.s32.totalorder %s25, 9
      %s27 = scalar_select %p26, 0, %s25
      %s28 = sadd.s32 1, %s17
      %s29 = scalar_select %p26, %s28, %s17
      %p30 = scmp.ge.s32.totalorder %s29, 2
      %s31 = scalar_select %p30, 0, %s29
      %s32 = sadd.s32 1, %s16
      %s33 = scalar_select %p30, %s32, %s16
      %p34 = scmp.ge.s32.totalorder %s33, 1
      %s35 = scalar_select %p34, 0, %s33
      %s36 = ssub.s32 %s16, %s35
      %s37 = ssub.s32 %s18, %s27
      %s38 = sor.u32 %s36, %s37
      %p39 = scmp.eq.s32.totalorder %s38, 0
      %s41 = sadd.s32 %s40, 1
      %s42 = scalar_select %p39, %s40, %s41
      %p45 = pneg %p39
      %p46 = scmp.eq.s32.totalorder %s9, 17
      %p47 = por %p45, %p46
      %p48 = scmp.ne.s32.totalorder %s40, %s43
      %p49 = scmp.eq.s32.totalorder %s9, 0
      %p50 = por %p48, %p49
      %p51 = scmp.ne.s32.totalorder %s40, %s43
      %p52 = scmp.eq.s32.totalorder %s14, 17
      %p53 = por %p51, %p52
      %p54 = scmp.ne.s32.totalorder %s43, %s44
      %p55 = scmp.eq.s32.totalorder %s14, 0
      %p56 = por %p54, %p55
      %p57 = scmp.ne.s32.totalorder %s43, %s44
      %p58 = scmp.eq.s32.totalorder %s15, 17
      %p59 = por %p57, %p58
      %p61 = scmp.ne.s32.totalorder %s44, %s60
      %p62 = scmp.eq.s32.totalorder %s15, 0
      %p63 = por %p61, %p62
      %s64 = ssub.s32 %s18, %s27
      %s65 = ssub.s32 %s17, %s31
      %s66 = sor.u32 %s64, %s65
      %p67 = scmp.eq.s32.totalorder %s66, 0
      %s69 = sadd.s32 %s68, 1
      %s70 = scalar_select %p67, %s68, %s69
      %p73 = pneg %p67
      %p74 = scmp.eq.s32.totalorder %s9, 17
      %p75 = por %p73, %p74
      %p76 = scmp.ne.s32.totalorder %s68, %s71
      %p77 = scmp.eq.s32.totalorder %s9, 0
      %p78 = por %p76, %p77
      %p79 = scmp.ne.s32.totalorder %s68, %s71
      %p80 = scmp.eq.s32.totalorder %s14, 17
      %p81 = por %p79, %p80
      %p82 = scmp.ne.s32.totalorder %s71, %s72
      %p83 = scmp.eq.s32.totalorder %s14, 0
      %p84 = por %p82, %p83
      %p85 = scmp.ne.s32.totalorder %s71, %s72
      %p86 = scmp.eq.s32.totalorder %s15, 17
      %p87 = por %p85, %p86
      %p89 = scmp.ne.s32.totalorder %s72, %s88
      %p90 = scmp.eq.s32.totalorder %s15, 0
      %p91 = por %p89, %p90
      %s92 = ssub.s32 %s17, %s31
      %p93 = scmp.eq.s32.totalorder %s92, 0
      %s95 = sadd.s32 %s94, 1
      %s96 = scalar_select %p93, %s94, %s95
      %p99 = pneg %p93
      %p100 = scmp.eq.s32.totalorder %s9, 17
      %p101 = por %p99, %p100
      %p102 = scmp.ne.s32.totalorder %s94, %s97
      %p103 = scmp.eq.s32.totalorder %s9, 0
      %p104 = por %p102, %p103
      %p105 = scmp.ne.s32.totalorder %s94, %s97
      %p106 = scmp.eq.s32.totalorder %s14, 17
      %p107 = por %p105, %p106
      %p108 = scmp.ne.s32.totalorder %s97, %s98
      %p109 = scmp.eq.s32.totalorder %s14, 0
      %p110 = por %p108, %p109
      %p111 = scmp.ne.s32.totalorder %s97, %s98
      %p112 = scmp.eq.s32.totalorder %s15, 17
      %p113 = por %p111, %p112
      %p115 = scmp.ne.s32.totalorder %s98, %s114
      %p116 = scmp.eq.s32.totalorder %s15, 0
      %p117 = por %p115, %p116
      %s118 = ssub.s32 %s16, %s35
      %s119 = ssub.s32 %s17, %s31
      %s120 = sor.u32 %s118, %s119
      %p121 = scmp.eq.s32.totalorder %s120, 0
      %s123 = sadd.s32 %s122, 1
      %s124 = scalar_select %p121, %s122, %s123
      %p127 = pneg %p121
      %p128 = scmp.eq.s32.totalorder %s9, 17
      %p129 = por %p127, %p128
      %p130 = scmp.ne.s32.totalorder %s122, %s125
      %p131 = scmp.eq.s32.totalorder %s9, 0
      %p132 = por %p130, %p131
      %p133 = scmp.ne.s32.totalorder %s122, %s125
      %p134 = scmp.eq.s32.totalorder %s14, 17
      %p135 = por %p133, %p134
      %p136 = scmp.ne.s32.totalorder %s125, %s126
      %p137 = scmp.eq.s32.totalorder %s14, 0
      %p138 = por %p136, %p137
      %p139 = scmp.ne.s32.totalorder %s125, %s126
      %p140 = scmp.eq.s32.totalorder %s15, 17
      %p141 = por %p139, %p140
      %p143 = scmp.ne.s32.totalorder %s126, %s142
      %p144 = scmp.eq.s32.totalorder %s15, 0
      %p145 = por %p143, %p144
      %p146 = scmp.le.s32.totalorder 1, %s9
      %p147 = scmp.lt.s32.totalorder %s9, 19
      %p148 = pnand %p146, %p147
      %p149 = pneg %p148
      // Predicated region
      $region9: #{discriminator_forward.24} parent=5 // pred_check
        _
      $region10: #{discriminator_forward.24} parent=5 // pred_check_branch
        %151 = sbr.rel (%p148) target = $region12
      $region11: #{discriminator_forward.24} parent=5 // pred_region
        %s152 = ssub.s32 %s9, 1
      $region12: #{discriminator_forward.24} parent=5 // pred_fallthru
        _
      %p153 = scmp.lt.s32.totalorder %s9, 18
      // Predicated region
      $region13: #{discriminator_forward.24} parent=5 // pred_check
        %p154 = pneg %p153
      $region14: #{discriminator_forward.24} parent=5 // pred_check_branch
        %156 = sbr.rel (%p154) target = $region16
      $region15: #{discriminator_forward.24} parent=5 // pred_region
        // Predicated region
        $region17: #{discriminator_forward.24} parent=15 // pred_check
          %p157 = pneg %p50
        $region18: #{discriminator_forward.24} parent=15 // pred_check_branch
          %159 = sbr.rel (%p157) target = $region20
        $region19: #{discriminator_forward.24} parent=15 // pred_region
          %s160 = smul.u32 2, %s18
          %p161 = scmp.lt.s32.totalorder %s16, 0
          %s162 = scalar_select %p161, %s16, 0
          %p163 = scmp.lt.s32.totalorder %s160, 17
          %s164 = scalar_select %p163, %s160, 17
          %s165 = smul.addr %s162, 18
          %s166 = sadd.s32 %s164, %s165
          %s167 = smul.addr %s166, 4
          %s168 = scalar_lea.vmem %s0, %s167
          %s169 = smul.u32 2, %s18
        $region20: #{discriminator_forward.24} parent=15 // pred_fallthru
          _
        // Predicated region
        $region21: #{discriminator_forward.24} parent=15 // pred_check
          %p170 = pneg %p78
        $region22: #{discriminator_forward.24} parent=15 // pred_check_branch
          %172 = sbr.rel (%p170) target = $region24
        $region23: #{discriminator_forward.24} parent=15 // pred_region
          %s173 = sand.u32 %s68, 1
          %s174 = sand.u32 %s68, 1
          %s175 = smul.addr %s174, 256
          %s176 = scalar_lea.vmem [#allocation3], %s175
          %s177 = smul.u32 32, %s18
          %s178 = smul.u32 2, %s17
          %s179 = smul.addr %s177, 4
          %s180 = sadd.s32 %s178, %s179
          %s181 = smul.addr %s180, 4
          %s182 = scalar_lea.vmem %s1, %s181
          // Predicated region
          $region25: #{discriminator_forward.24} parent=23 // pred_check
            _
          $region26: #{discriminator_forward.24} parent=23 // pred_check_branch
            %184 = sbr.rel (0) target = $region28
          $region27: #{discriminator_forward.24} parent=23 // pred_region
            // Predicated region
            $region29: #{discriminator_forward.24} parent=27 // pred_check
              _
            $region30: #{discriminator_forward.24} parent=27 // pred_check_branch
              %186 = sbr.rel (0) target = $region32
            $region31: #{discriminator_forward.24} parent=27 // pred_region
              // Predicated region
              $region44: #{discriminator_forward.24} parent=31 // pred_check
                _
              $region45: #{discriminator_forward.24} parent=31 // pred_check_branch
                %263 = sbr.rel (0) target = $region47
              $region46: #{discriminator_forward.24} parent=31 // pred_region
                loop: start=0, step=1, limit=1
                $region48: #{discriminator_forward.24} parent=46 // loop_pre_header
                  _
                $region49: #{discriminator_forward.24} parent=46 // loop_header
                  %s265 = sphi 0, %s269
                  %p266 = scmp.ge.s32.totalorder %s265, 1
                  %s270 = sphi %s182, %s182
                  %s271 = sphi %s176, %s176
                $region50: #{discriminator_forward.24} parent=46 // loop_header_branch
                  %268 = sbr.rel (%p266) target = $region54
                $region51: #{discriminator_forward.24} parent=46 // loop_body
                  %v272 = vld [vmem:[%s270] sm:$0xff]
                  %273 = vst [vmem:[%s271] sm:$0xff] %v272
                  %v274 = vld [vmem:[%s270 + $0x10] sm:$0xff]
                  %275 = vst [vmem:[%s271 + $0x8] sm:$0xff] %v274
                  %v276 = vld [vmem:[%s270 + $0x20] sm:$0xff]
                  %277 = vst [vmem:[%s271 + $0x10] sm:$0xff] %v276
                  %v278 = vld [vmem:[%s270 + $0x30] sm:$0xff]
                  %279 = vst [vmem:[%s271 + $0x18] sm:$0xff] %v278
                  %v280 = vld [vmem:[%s270 + $0x40] sm:$0xff]
                  %281 = vst [vmem:[%s271 + $0x20] sm:$0xff] %v280
                  %v282 = vld [vmem:[%s270 + $0x50] sm:$0xff]
                  %283 = vst [vmem:[%s271 + $0x28] sm:$0xff] %v282
                  %v284 = vld [vmem:[%s270 + $0x60] sm:$0xff]
                  %285 = vst [vmem:[%s271 + $0x30] sm:$0xff] %v284
                  %v286 = vld [vmem:[%s270 + $0x70] sm:$0xff]
                  %287 = vst [vmem:[%s271 + $0x38] sm:$0xff] %v286
                  %v288 = vld [vmem:[%s270 + $0x80] sm:$0xff]
                  %289 = vst [vmem:[%s271 + $0x40] sm:$0xff] %v288
                  %v290 = vld [vmem:[%s270 + $0x90] sm:$0xff]
                  %291 = vst [vmem:[%s271 + $0x48] sm:$0xff] %v290
                  %v292 = vld [vmem:[%s270 + $0xa0] sm:$0xff]
                  %293 = vst [vmem:[%s271 + $0x50] sm:$0xff] %v292
                  %v294 = vld [vmem:[%s270 + $0xb0] sm:$0xff]
                  %295 = vst [vmem:[%s271 + $0x58] sm:$0xff] %v294
                  %v296 = vld [vmem:[%s270 + $0xc0] sm:$0xff]
                  %297 = vst [vmem:[%s271 + $0x60] sm:$0xff] %v296
                  %v298 = vld [vmem:[%s270 + $0xd0] sm:$0xff]
                  %299 = vst [vmem:[%s271 + $0x68] sm:$0xff] %v298
                  %v300 = vld [vmem:[%s270 + $0xe0] sm:$0xff]
                  %301 = vst [vmem:[%s271 + $0x70] sm:$0xff] %v300
                  %v302 = vld [vmem:[%s270 + $0xf0] sm:$0xff]
                  %303 = vst [vmem:[%s271 + $0x78] sm:$0xff] %v302
                  %v304 = vld [vmem:[%s270 + $0x100] sm:$0xff]
                  %305 = vst [vmem:[%s271 + $0x80] sm:$0xff] %v304
                  %v306 = vld [vmem:[%s270 + $0x110] sm:$0xff]
                  %307 = vst [vmem:[%s271 + $0x88] sm:$0xff] %v306
                  %v308 = vld [vmem:[%s270 + $0x120] sm:$0xff]
                  %309 = vst [vmem:[%s271 + $0x90] sm:$0xff] %v308
                  %v310 = vld [vmem:[%s270 + $0x130] sm:$0xff]
                  %311 = vst [vmem:[%s271 + $0x98] sm:$0xff] %v310
                  %v312 = vld [vmem:[%s270 + $0x140] sm:$0xff]
                  %313 = vst [vmem:[%s271 + $0xa0] sm:$0xff] %v312
                  %v314 = vld [vmem:[%s270 + $0x150] sm:$0xff]
                  %315 = vst [vmem:[%s271 + $0xa8] sm:$0xff] %v314
                  %v316 = vld [vmem:[%s270 + $0x160] sm:$0xff]
                  %317 = vst [vmem:[%s271 + $0xb0] sm:$0xff] %v316
                  %v318 = vld [vmem:[%s270 + $0x170] sm:$0xff]
                  %319 = vst [vmem:[%s271 + $0xb8] sm:$0xff] %v318
                  %v320 = vld [vmem:[%s270 + $0x180] sm:$0xff]
                  %321 = vst [vmem:[%s271 + $0xc0] sm:$0xff] %v320
                  %v322 = vld [vmem:[%s270 + $0x190] sm:$0xff]
                  %323 = vst [vmem:[%s271 + $0xc8] sm:$0xff] %v322
                  %v324 = vld [vmem:[%s270 + $0x1a0] sm:$0xff]
                  %325 = vst [vmem:[%s271 + $0xd0] sm:$0xff] %v324
                  %v326 = vld [vmem:[%s270 + $0x1b0] sm:$0xff]
                  %327 = vst [vmem:[%s271 + $0xd8] sm:$0xff] %v326
                  %v328 = vld [vmem:[%s270 + $0x1c0] sm:$0xff]
                  %329 = vst [vmem:[%s271 + $0xe0] sm:$0xff] %v328
                  %v330 = vld [vmem:[%s270 + $0x1d0] sm:$0xff]
                  %331 = vst [vmem:[%s271 + $0xe8] sm:$0xff] %v330
                  %v332 = vld [vmem:[%s270 + $0x1e0] sm:$0xff]
                  %333 = vst [vmem:[%s271 + $0xf0] sm:$0xff] %v332
                  %v334 = vld [vmem:[%s270 + $0x1f0] sm:$0xff]
                  %335 = vst [vmem:[%s271 + $0xf8] sm:$0xff] %v334
                $region52: #{discriminator_forward.24} parent=46 // loop_footer
                  %s269 = sadd.s32 1, %s265
                $region53: #{discriminator_forward.24} parent=46 // loop_footer_branch
                  %264 = sbr.rel target = $region49
                $region54: #{discriminator_forward.24} parent=46 // loop_exit
                  _
              $region47: #{discriminator_forward.24} parent=31 // pred_fallthru
                _
              // Predicated region
              $region55: #{discriminator_forward.24} parent=31 // pred_check
                _
              $region56: #{discriminator_forward.24} parent=31 // pred_check_branch
                %337 = sbr.rel target = $region58
              $region57: #{discriminator_forward.24} parent=31 // pred_region
                _
              $region58: #{discriminator_forward.24} parent=31 // pred_fallthru
                _
            $region32: #{discriminator_forward.24} parent=27 // pred_fallthru
              _
            // Predicated region
            $region33: #{discriminator_forward.24} parent=27 // pred_check
              _
            $region34: #{discriminator_forward.24} parent=27 // pred_check_branch
              %188 = sbr.rel target = $region36
            $region35: #{discriminator_forward.24} parent=27 // pred_region
              loop: start=0, step=1, limit=1
              $region37: #{discriminator_forward.24} parent=35 // loop_pre_header
                _
              $region38: #{discriminator_forward.24} parent=35 // loop_header
                %s191 = sphi 0, %s195
                %p192 = scmp.ge.s32.totalorder %s191, 1
                %s196 = sphi %s182, %s182
                %s197 = sphi %s176, %s176
              $region39: #{discriminator_forward.24} parent=35 // loop_header_branch
                %194 = sbr.rel (%p192) target = $region43
              $region40: #{discriminator_forward.24} parent=35 // loop_body
                %v198 = vld [vmem:[%s196] sm:$0xff]
                %199 = vst [vmem:[%s197] sm:$0xff] %v198
                %v200 = vld [vmem:[%s196 + $0x10] sm:$0xff]
                %201 = vst [vmem:[%s197 + $0x8] sm:$0xff] %v200
                %v202 = vld [vmem:[%s196 + $0x20] sm:$0xff]
                %203 = vst [vmem:[%s197 + $0x10] sm:$0xff] %v202
                %v204 = vld [vmem:[%s196 + $0x30] sm:$0xff]
                %205 = vst [vmem:[%s197 + $0x18] sm:$0xff] %v204
                %v206 = vld [vmem:[%s196 + $0x40] sm:$0xff]
                %207 = vst [vmem:[%s197 + $0x20] sm:$0xff] %v206
                %v208 = vld [vmem:[%s196 + $0x50] sm:$0xff]
                %209 = vst [vmem:[%s197 + $0x28] sm:$0xff] %v208
                %v210 = vld [vmem:[%s196 + $0x60] sm:$0xff]
                %211 = vst [vmem:[%s197 + $0x30] sm:$0xff] %v210
                %v212 = vld [vmem:[%s196 + $0x70] sm:$0xff]
                %213 = vst [vmem:[%s197 + $0x38] sm:$0xff] %v212
                %v214 = vld [vmem:[%s196 + $0x80] sm:$0xff]
                %215 = vst [vmem:[%s197 + $0x40] sm:$0xff] %v214
                %v216 = vld [vmem:[%s196 + $0x90] sm:$0xff]
                %217 = vst [vmem:[%s197 + $0x48] sm:$0xff] %v216
                %v218 = vld [vmem:[%s196 + $0xa0] sm:$0xff]
                %219 = vst [vmem:[%s197 + $0x50] sm:$0xff] %v218
                %v220 = vld [vmem:[%s196 + $0xb0] sm:$0xff]
                %221 = vst [vmem:[%s197 + $0x58] sm:$0xff] %v220
                %v222 = vld [vmem:[%s196 + $0xc0] sm:$0xff]
                %223 = vst [vmem:[%s197 + $0x60] sm:$0xff] %v222
                %v224 = vld [vmem:[%s196 + $0xd0] sm:$0xff]
                %225 = vst [vmem:[%s197 + $0x68] sm:$0xff] %v224
                %v226 = vld [vmem:[%s196 + $0xe0] sm:$0xff]
                %227 = vst [vmem:[%s197 + $0x70] sm:$0xff] %v226
                %v228 = vld [vmem:[%s196 + $0xf0] sm:$0xff]
                %229 = vst [vmem:[%s197 + $0x78] sm:$0xff] %v228
                %v230 = vld [vmem:[%s196 + $0x100] sm:$0xff]
                %231 = vst [vmem:[%s197 + $0x80] sm:$0xff] %v230
                %v232 = vld [vmem:[%s196 + $0x110] sm:$0xff]
                %233 = vst [vmem:[%s197 + $0x88] sm:$0xff] %v232
                %v234 = vld [vmem:[%s196 + $0x120] sm:$0xff]
                %235 = vst [vmem:[%s197 + $0x90] sm:$0xff] %v234
                %v236 = vld [vmem:[%s196 + $0x130] sm:$0xff]
                %237 = vst [vmem:[%s197 + $0x98] sm:$0xff] %v236
                %v238 = vld [vmem:[%s196 + $0x140] sm:$0xff]
                %239 = vst [vmem:[%s197 + $0xa0] sm:$0xff] %v238
                %v240 = vld [vmem:[%s196 + $0x150] sm:$0xff]
                %241 = vst [vmem:[%s197 + $0xa8] sm:$0xff] %v240
                %v242 = vld [vmem:[%s196 + $0x160] sm:$0xff]
                %243 = vst [vmem:[%s197 + $0xb0] sm:$0xff] %v242
                %v244 = vld [vmem:[%s196 + $0x170] sm:$0xff]
                %245 = vst [vmem:[%s197 + $0xb8] sm:$0xff] %v244
                %v246 = vld [vmem:[%s196 + $0x180] sm:$0xff]
                %247 = vst [vmem:[%s197 + $0xc0] sm:$0xff] %v246
                %v248 = vld [vmem:[%s196 + $0x190] sm:$0xff]
                %249 = vst [vmem:[%s197 + $0xc8] sm:$0xff] %v248
                %v250 = vld [vmem:[%s196 + $0x1a0] sm:$0xff]
                %251 = vst [vmem:[%s197 + $0xd0] sm:$0xff] %v250
                %v252 = vld [vmem:[%s196 + $0x1b0] sm:$0xff]
                %253 = vst [vmem:[%s197 + $0xd8] sm:$0xff] %v252
                %v254 = vld [vmem:[%s196 + $0x1c0] sm:$0xff]
                %255 = vst [vmem:[%s197 + $0xe0] sm:$0xff] %v254
                %v256 = vld [vmem:[%s196 + $0x1d0] sm:$0xff]
                %257 = vst [vmem:[%s197 + $0xe8] sm:$0xff] %v256
                %v258 = vld [vmem:[%s196 + $0x1e0] sm:$0xff]
                %259 = vst [vmem:[%s197 + $0xf0] sm:$0xff] %v258
                %v260 = vld [vmem:[%s196 + $0x1f0] sm:$0xff]
                %261 = vst [vmem:[%s197 + $0xf8] sm:$0xff] %v260
              $region41: #{discriminator_forward.24} parent=35 // loop_footer
                %s195 = sadd.s32 1, %s191
              $region42: #{discriminator_forward.24} parent=35 // loop_footer_branch
                %190 = sbr.rel target = $region38
              $region43: #{discriminator_forward.24} parent=35 // loop_exit
                _
            $region36: #{discriminator_forward.24} parent=27 // pred_fallthru
              _
          $region28: #{discriminator_forward.24} parent=23 // pred_fallthru
            _
          %338 = vnop
        $region24: #{discriminator_forward.24} parent=15 // pred_fallthru
          _
        // Predicated region
        $region59: #{discriminator_forward.24} parent=15 // pred_check
          %p339 = pneg %p104
        $region60: #{discriminator_forward.24} parent=15 // pred_check_branch
          %341 = sbr.rel (%p339) target = $region62
        $region61: #{discriminator_forward.24} parent=15 // pred_region
          %s342 = smul.u32 2, %s17
          %p343 = scmp.lt.s32.totalorder %s342, 3
          %s344 = scalar_select %p343, %s342, 3
          %s345 = scalar_lea.vmem %s2, %s344
          %s346 = smul.u32 2, %s17
        $region62: #{discriminator_forward.24} parent=15 // pred_fallthru
          _
      $region16: #{discriminator_forward.24} parent=5 // pred_fallthru
        _
      %p347 = scmp.le.s32.totalorder 1, %s9
      %p348 = scmp.lt.s32.totalorder %s9, 19
      %p349 = pnand %p347, %p348
      %p350 = pneg %p349
      // Predicated region
      $region63: #{discriminator_forward.24} parent=5 // pred_check
        _
      $region64: #{discriminator_forward.24} parent=5 // pred_check_branch
        %352 = sbr.rel (%p349) target = $region66
      $region65: #{discriminator_forward.24} parent=5 // pred_region
        %s353 = ssub.s32 %s9, 1
        %s354 = sand.u32 %s71, 1
        %s355 = sand.u32 %s71, 1
        %s356 = smul.addr %s355, 256
        %s357 = scalar_lea.vmem [#allocation3], %s356
        // Predicated region
        $region67: #{discriminator_forward.24} parent=65 // pred_check
          %p358 = pneg %p84
        $region68: #{discriminator_forward.24} parent=65 // pred_check_branch
          %360 = sbr.rel (%p358) target = $region70
        $region69: #{discriminator_forward.24} parent=65 // pred_region
          _
        $region70: #{discriminator_forward.24} parent=65 // pred_fallthru
          _
        %s361 = smul.u32 2, %s21
        %p362 = scmp.lt.s32.totalorder %s19, 0
        %s363 = scalar_select %p362, %s19, 0
        %p364 = scmp.lt.s32.totalorder %s361, 17
        %s365 = scalar_select %p364, %s361, 17
        %s366 = smul.addr %s363, 18
        %s367 = sadd.s32 %s365, %s366
        %s368 = smul.addr %s367, 4
        %s369 = scalar_lea.vmem %s0, %s368
        %p370 = pneg %p56
        %p371 = pneg %p53
        %s372 = sand.u32 %s71, 1
        %s373 = sand.u32 %s71, 1
        %s374 = smul.addr %s373, 256
        %s375 = scalar_lea.vmem [#allocation3], %s374
        %p376 = pneg %p84
        %p377 = pneg %p81
        %s378 = smul.u32 2, %s20
        %p379 = scmp.lt.s32.totalorder %s378, 3
        %s380 = scalar_select %p379, %s378, 3
        %s381 = scalar_lea.vmem %s2, %s380
        %p382 = pneg %p110
        %p383 = pneg %p107
        %p384 = pneg %p138
        %p385 = pneg %p135
        %s386 = smul.u32 2, %s20
        %p387 = scmp.lt.s32.totalorder %s19, 0
        %s388 = scalar_select %p387, %s19, 0
        %p389 = scmp.lt.s32.totalorder %s386, 3
        %s390 = scalar_select %p389, %s386, 3
        %s391 = smul.addr %s388, 4
        %s392 = sadd.s32 %s390, %s391
        %s393 = smul.addr %s392, 8
        %s394 = scalar_lea.vmem %s3, %s393
        %s395 = smul.u32 2, %s21
        %p396 = scmp.lt.s32.totalorder %s19, 0
        %s397 = scalar_select %p396, %s19, 0
        %p398 = scmp.lt.s32.totalorder %s395, 17
        %s399 = scalar_select %p398, %s395, 17
        %s400 = smul.addr %s397, 18
        %s401 = sadd.s32 %s399, %s400
        %s402 = smul.addr %s401, 4
        %s403 = scalar_lea.vmem %s0, %s402
        %s404 = smul.u32 2, %s21
        %s405 = smul.u32 32, %s21
        %s406 = smul.u32 2, %s20
        %s407 = smul.u32 2, %s20
        %p408 = scmp.lt.s32.totalorder %s407, 3
        %s409 = scalar_select %p408, %s407, 3
        %s410 = scalar_lea.vmem %s2, %s409
        %s411 = smul.u32 2, %s20
        %s412 = smul.u32 2, %s20
        %p413 = scmp.lt.s32.totalorder %s19, 0
        %s414 = scalar_select %p413, %s19, 0
        %p415 = scmp.lt.s32.totalorder %s412, 3
        %s416 = scalar_select %p415, %s412, 3
        %s417 = smul.addr %s414, 4
        %s418 = sadd.s32 %s416, %s417
        %s419 = smul.addr %s418, 8
        %s420 = scalar_lea.vmem %s3, %s419
        %s421 = smul.u32 2, %s20
        %p422 = scmp.eq.s32.totalorder %s21, 0
        // Predicated region
        $region71: #{discriminator_forward.24} parent=65 // pred_check
          %p423 = pneg %p422
        $region72: #{discriminator_forward.24} parent=65 // pred_check_branch
          %425 = sbr.rel (%p423) target = $region74
        $region73: #{discriminator_forward.24} parent=65 // pred_region
          %426 = vst [vmem:[#allocation2] sm:$0xff] 0.0
          %427 = vst [vmem:[#allocation2 + $0x8] sm:$0xff] 0.0
        $region74: #{discriminator_forward.24} parent=65 // pred_fallthru
          _
        %v428 = vld [vmem:[#allocation2] sm:$0xff]
        %v429 = vld [vmem:[#allocation2 + $0x8] sm:$0xff]
        %v430 = vld [vmem:[%s403] sm:$0xff]
        %v431 = vld [vmem:[%s357] sm:$0xff]
        %v432 = vld [vmem:[%s357 + $0x8] sm:$0xff]
        %v433 = vld [vmem:[%s357 + $0x10] sm:$0xff]
        %v434 = vld [vmem:[%s357 + $0x18] sm:$0xff]
        %v435 = vld [vmem:[%s357 + $0x20] sm:$0xff]
        %v436 = vld [vmem:[%s357 + $0x28] sm:$0xff]
        %v437 = vld [vmem:[%s357 + $0x30] sm:$0xff]
        %v438 = vld [vmem:[%s357 + $0x38] sm:$0xff]
        %v439 = vld [vmem:[%s357 + $0x40] sm:$0xff]
        %v440 = vld [vmem:[%s357 + $0x48] sm:$0xff]
        %v441 = vld [vmem:[%s357 + $0x50] sm:$0xff]
        %v442 = vld [vmem:[%s357 + $0x58] sm:$0xff]
        %v443 = vld [vmem:[%s357 + $0x60] sm:$0xff]
        %v444 = vld [vmem:[%s357 + $0x68] sm:$0xff]
        %v445 = vld [vmem:[%s357 + $0x70] sm:$0xff]
        %v446 = vld [vmem:[%s357 + $0x78] sm:$0xff]
        %v447 = vld [vmem:[%s357 + $0x80] sm:$0xff]
        %v448 = vld [vmem:[%s357 + $0x88] sm:$0xff]
        %v449 = vld [vmem:[%s357 + $0x90] sm:$0xff]
        %v450 = vld [vmem:[%s357 + $0x98] sm:$0xff]
        %v451 = vld [vmem:[%s357 + $0xa0] sm:$0xff]
        %v452 = vld [vmem:[%s357 + $0xa8] sm:$0xff]
        %v453 = vld [vmem:[%s357 + $0xb0] sm:$0xff]
        %v454 = vld [vmem:[%s357 + $0xb8] sm:$0xff]
        %v455 = vld [vmem:[%s357 + $0xc0] sm:$0xff]
        %v456 = vld [vmem:[%s357 + $0xc8] sm:$0xff]
        %v457 = vld [vmem:[%s357 + $0xd0] sm:$0xff]
        %v458 = vld [vmem:[%s357 + $0xd8] sm:$0xff]
        %v459 = vld [vmem:[%s357 + $0xe0] sm:$0xff]
        %v460 = vld [vmem:[%s357 + $0xe8] sm:$0xff]
        %v461 = vld [vmem:[%s357 + $0xf0] sm:$0xff]
        %v462 = vld [vmem:[%s357 + $0xf8] sm:$0xff]
        %v464 = vunpack.c.l.b16 %v430
        %v465 = vunpack.c.h.b16 %v430
        %v466 = vpack.c.b16 %v464, %v464
        %v467 = vpack.c.b16 %v465, %v465
        %v502 = vunpack.c.l.b16 %v431
        %v503 = vunpack.c.h.b16 %v431
        %v504 = vunpack.c.l.b16 %v432
        %v505 = vunpack.c.h.b16 %v432
        %v506 = vunpack.c.l.b16 %v433
        %v507 = vunpack.c.h.b16 %v433
        %v508 = vunpack.c.l.b16 %v434
        %v509 = vunpack.c.h.b16 %v434
        %v510 = vunpack.c.l.b16 %v435
        %v511 = vunpack.c.h.b16 %v435
        %v512 = vunpack.c.l.b16 %v436
        %v513 = vunpack.c.h.b16 %v436
        %v514 = vunpack.c.l.b16 %v437
        %v515 = vunpack.c.h.b16 %v437
        %v516 = vunpack.c.l.b16 %v438
        %v517 = vunpack.c.h.b16 %v438
        %v518 = vunpack.c.l.b16 %v439
        %v519 = vunpack.c.h.b16 %v439
        %v520 = vunpack.c.l.b16 %v440
        %v521 = vunpack.c.h.b16 %v440
        %v522 = vunpack.c.l.b16 %v441
        %v523 = vunpack.c.h.b16 %v441
        %v524 = vunpack.c.l.b16 %v442
        %v525 = vunpack.c.h.b16 %v442
        %v526 = vunpack.c.l.b16 %v443
        %v527 = vunpack.c.h.b16 %v443
        %v528 = vunpack.c.l.b16 %v444
        %v529 = vunpack.c.h.b16 %v444
        %v530 = vunpack.c.l.b16 %v445
        %v531 = vunpack.c.h.b16 %v445
        %v532 = vunpack.c.l.b16 %v446
        %v533 = vunpack.c.h.b16 %v446
        %v534 = vunpack.c.l.b16 %v447
        %v535 = vunpack.c.h.b16 %v447
        %v536 = vunpack.c.l.b16 %v448
        %v537 = vunpack.c.h.b16 %v448
        %v538 = vunpack.c.l.b16 %v449
        %v539 = vunpack.c.h.b16 %v449
        %v540 = vunpack.c.l.b16 %v450
        %v541 = vunpack.c.h.b16 %v450
        %v542 = vunpack.c.l.b16 %v451
        %v543 = vunpack.c.h.b16 %v451
        %v544 = vunpack.c.l.b16 %v452
        %v545 = vunpack.c.h.b16 %v452
        %v546 = vunpack.c.l.b16 %v453
        %v547 = vunpack.c.h.b16 %v453
        %v548 = vunpack.c.l.b16 %v454
        %v549 = vunpack.c.h.b16 %v454
        %v550 = vunpack.c.l.b16 %v455
        %v551 = vunpack.c.h.b16 %v455
        %v552 = vunpack.c.l.b16 %v456
        %v553 = vunpack.c.h.b16 %v456
        %v554 = vunpack.c.l.b16 %v457
        %v555 = vunpack.c.h.b16 %v457
        %v556 = vunpack.c.l.b16 %v458
        %v557 = vunpack.c.h.b16 %v458
        %v558 = vunpack.c.l.b16 %v459
        %v559 = vunpack.c.h.b16 %v459
        %v560 = vunpack.c.l.b16 %v460
        %v561 = vunpack.c.h.b16 %v460
        %v562 = vunpack.c.l.b16 %v461
        %v563 = vunpack.c.h.b16 %v461
        %v564 = vunpack.c.l.b16 %v462
        %v565 = vunpack.c.h.b16 %v462
        %v566 = vpack.c.b16 %v504, %v502
        %v567 = vpack.c.b16 %v505, %v503
        %v568 = vpack.c.b16 %v508, %v506
        %v569 = vpack.c.b16 %v509, %v507
        %v570 = vpack.c.b16 %v512, %v510
        %v571 = vpack.c.b16 %v513, %v511
        %v572 = vpack.c.b16 %v516, %v514
        %v573 = vpack.c.b16 %v517, %v515
        %v574 = vpack.c.b16 %v520, %v518
        %v575 = vpack.c.b16 %v521, %v519
        %v576 = vpack.c.b16 %v524, %v522
        %v577 = vpack.c.b16 %v525, %v523
        %v578 = vpack.c.b16 %v528, %v526
        %v579 = vpack.c.b16 %v529, %v527
        %v580 = vpack.c.b16 %v532, %v530
        %v581 = vpack.c.b16 %v533, %v531
        %v582 = vpack.c.b16 %v536, %v534
        %v583 = vpack.c.b16 %v537, %v535
        %v584 = vpack.c.b16 %v540, %v538
        %v585 = vpack.c.b16 %v541, %v539
        %v586 = vpack.c.b16 %v544, %v542
        %v587 = vpack.c.b16 %v545, %v543
        %v588 = vpack.c.b16 %v548, %v546
        %v589 = vpack.c.b16 %v549, %v547
        %v590 = vpack.c.b16 %v552, %v550
        %v591 = vpack.c.b16 %v553, %v551
        %v592 = vpack.c.b16 %v556, %v554
        %v593 = vpack.c.b16 %v557, %v555
        %v594 = vpack.c.b16 %v560, %v558
        %v595 = vpack.c.b16 %v561, %v559
        %v596 = vpack.c.b16 %v564, %v562
        %v597 = vpack.c.b16 %v565, %v563
        %630 = vmatprep.subr.bf16.mxu0 %v567
        %631 = vmatpush1.bf16.msra.mxu0 %v566
        %632 = vmatprep.subr.bf16.mxu0 %v569
        %633 = vmatpush1.bf16.msra.mxu0 %v568
        %634 = vmatprep.subr.bf16.mxu0 %v571
        %635 = vmatpush1.bf16.msra.mxu0 %v570
        %636 = vmatprep.subr.bf16.mxu0 %v573
        %637 = vmatpush1.bf16.msra.mxu0 %v572
        %638 = vmatprep.subr.bf16.mxu0 %v575
        %639 = vmatpush1.bf16.msra.mxu0 %v574
        %640 = vmatprep.subr.bf16.mxu0 %v577
        %641 = vmatpush1.bf16.msra.mxu0 %v576
        %642 = vmatprep.subr.bf16.mxu0 %v579
        %643 = vmatpush1.bf16.msra.mxu0 %v578
        %644 = vmatprep.subr.bf16.mxu0 %v581
        %645 = vmatpush1.bf16.msra.mxu0 %v580
        %646 = vmatprep.subr.bf16.mxu0 %v583
        %647 = vmatpush1.bf16.msra.mxu0 %v582
        %648 = vmatprep.subr.bf16.mxu0 %v585
        %649 = vmatpush1.bf16.msra.mxu0 %v584
        %650 = vmatprep.subr.bf16.mxu0 %v587
        %651 = vmatpush1.bf16.msra.mxu0 %v586
        %652 = vmatprep.subr.bf16.mxu0 %v589
        %653 = vmatpush1.bf16.msra.mxu0 %v588
        %654 = vmatprep.subr.bf16.mxu0 %v591
        %655 = vmatpush1.bf16.msra.mxu0 %v590
        %656 = vmatprep.subr.bf16.mxu0 %v593
        %657 = vmatpush1.bf16.msra.mxu0 %v592
        %658 = vmatprep.subr.bf16.mxu0 %v595
        %659 = vmatpush1.bf16.msra.mxu0 %v594
        %660 = vmatprep.subr.bf16.mxu0 %v597
        %661 = vmatpush1.bf16.msra.mxu0 %v596
        %662 = vmatprep.mubr.bf16.mxu0 %v467
        %663 = vmatmul.mubr.bf16.gmra.mrb[0].mxu0 %v466
        %v664 = vpop.f32.mrb[0].mxu0
        %v665 = vadd.f32 0.0, %v664
        %v666 = vpop.f32.mrb[0].mxu0
        %v667 = vadd.f32 0.0, %v666
        %v668 = vpop.f32.mrb[0].mxu0
        %v669 = vpop.f32.mrb[0].mxu0
        %670 = vdwg.mxu0
        %v671 = vadd.f32 %v428, %v665
        %v672 = vadd.f32 %v429, %v667
        %673 = vst [vmem:[#allocation2] sm:$0xff] %v671
        %674 = vst [vmem:[#allocation2 + $0x8] sm:$0xff] %v672
        %p675 = scmp.eq.s32.totalorder %s21, 8
        // Predicated region
        $region75: #{discriminator_forward.24} parent=65 // pred_check
          %p676 = pneg %p675
        $region76: #{discriminator_forward.24} parent=65 // pred_check_branch
          %678 = sbr.rel (%p676) target = $region78
        $region77: #{discriminator_forward.24} parent=65 // pred_region
          %v679 = vld [vmem:[#allocation2] sm:$0xff]
          %v680 = vld [vmem:[#allocation2 + $0x8] sm:$0xff]
          %v681 = vld [vmem:[%s410] sm:$0x3]
          %v683 = vlaneseq
          %v684 = vshrl.u32 %v683, 7
          %v685 = vsub.s32 0, %v684
          %v686 = vrot.slane %v681, %v685
          %v687 = vlaneseq
          %v688 = vshrl.u32 %v687, 7
          %v689 = vsub.s32 1, %v688
          %v690 = vrot.slane %v681, %v689
          %v693 = vadd.f32 %v679, %v686
          %v694 = vadd.f32 %v680, %v690
          %695 = vst [vmem:[%s420] sm:$0xff] %v693
          %696 = vst [vmem:[%s420 + $0x8] sm:$0xff] %v694
        $region78: #{discriminator_forward.24} parent=65 // pred_fallthru
          _
        %s697 = smul.u32 2, %s20
        %p698 = scmp.lt.s32.totalorder %s19, 0
        %s699 = scalar_select %p698, %s19, 0
        %p700 = scmp.lt.s32.totalorder %s697, 3
        %s701 = scalar_select %p700, %s697, 3
        %s702 = smul.addr %s699, 4
        %s703 = sadd.s32 %s701, %s702
        %s704 = smul.addr %s703, 8
        %s705 = scalar_lea.vmem %s3, %s704
        // Predicated region
        $region79: #{discriminator_forward.24} parent=65 // pred_check
          %p706 = pneg %p135
        $region80: #{discriminator_forward.24} parent=65 // pred_check_branch
          %708 = sbr.rel (%p706) target = $region82
        $region81: #{discriminator_forward.24} parent=65 // pred_region
          %s709 = smul.u32 2, %s20
        $region82: #{discriminator_forward.24} parent=65 // pred_fallthru
          _
      $region66: #{discriminator_forward.24} parent=5 // pred_fallthru
        _
      %p710 = scmp.le.s32.totalorder 2, %s9
      // Predicated region
      $region83: #{discriminator_forward.24} parent=5 // pred_check
        %p711 = pneg %p710
      $region84: #{discriminator_forward.24} parent=5 // pred_check_branch
        %713 = sbr.rel (%p711) target = $region86
      $region85: #{discriminator_forward.24} parent=5 // pred_region
        %s714 = ssub.s32 %s9, 2
        // Predicated region
        $region87: #{discriminator_forward.24} parent=85 // pred_check
          %p715 = pneg %p141
        $region88: #{discriminator_forward.24} parent=85 // pred_check_branch
          %717 = sbr.rel (%p715) target = $region90
        $region89: #{discriminator_forward.24} parent=85 // pred_region
          %s718 = smul.u32 2, %s23
          %p719 = scmp.lt.s32.totalorder %s22, 0
          %s720 = scalar_select %p719, %s22, 0
          %p721 = scmp.lt.s32.totalorder %s718, 3
          %s722 = scalar_select %p721, %s718, 3
          %s723 = smul.addr %s720, 4
          %s724 = sadd.s32 %s722, %s723
          %s725 = smul.addr %s724, 8
          %s726 = scalar_lea.vmem %s3, %s725
        $region90: #{discriminator_forward.24} parent=85 // pred_fallthru
          _
      $region86: #{discriminator_forward.24} parent=5 // pred_fallthru
        _
    $region6: #{discriminator_forward.24} parent=1 // loop_footer
      %s13 = sadd.s32 1, %s9
    $region7: #{discriminator_forward.24} parent=1 // loop_footer_branch
      %8 = sbr.rel target = $region3
    $region8: #{discriminator_forward.24} parent=1 // loop_exit
      _

// kernel: discriminator_forward.25
$region0: #{discriminator_forward.25}
  #allocation0 [shape = 'u32[]', space=smem, size = 0x4, offset = 0x4, fixed_abs, tag = 'smem constant byte address 0x4 - core index']
  #allocation1 [shape = 'u32[144,128]{1,0:T(1,128)}', space=vmem, size = 0x12000, scoped, tag = 'internal scratch']
  #allocation2 [shape = 'f32[1,512]{1,0:T(1,128)}', space=vmem, size = 0x800, scoped, tag = 'scratch operand']
  #allocation3 [shape = 'f32[1,512]{1,0:T(1,128)}', space=vmem, size = 0x800, scoped, tag = 'scratch operand']
  %s0 = inlined_call_operand.vmem [shape: f32[8,512], index: 0, kind: input, shape index: {}]
  %s1 = inlined_call_operand.vmem [shape: f32[2,512], index: 1, kind: output, shape index: {}]
  %s2 = sld [smem:[#allocation0]]
  $region22: #{discriminator_forward.25} parent=0
    _
  %s4 = ssub.s32 1, %s2
  %s5 = scalar_select 0, %s4, %s2
  // Predicated region
  $region2: #{discriminator_forward.25} parent=0 // pred_check
    _
  $region3: #{discriminator_forward.25} parent=0 // pred_check_branch
    %7 = sbr.rel (0) target = $region5
  $region4: #{discriminator_forward.25} parent=0 // pred_region
    _
  $region5: #{discriminator_forward.25} parent=0 // pred_fallthru
    _
  %p8 = scmp.eq.s32.totalorder 0, 0
  // Predicated region
  $region6: #{discriminator_forward.25} parent=0 // pred_check
    %p9 = pneg %p8
  $region7: #{discriminator_forward.25} parent=0 // pred_check_branch
    %11 = sbr.rel (%p9) target = $region9
  $region8: #{discriminator_forward.25} parent=0 // pred_region
    %v12 = vlaneseq
    %vm13 = vcmp.ge.s32.totalorder %v12, 0
    %vm14 = vcmp.lt.s32.totalorder %v12, 512
    %vm15 = vmand %vm13, %vm14
    %16 = vst.msk [vmem:[#allocation2] sm:$0xf] %vm15, 0.0
    %17 = vst.msk [vmem:[#allocation3] sm:$0xf] %vm15, 0.0
  $region9: #{discriminator_forward.25} parent=0 // pred_fallthru
    _
  %v18 = vld [vmem:[%s0] sm:$0xff]
  %v19 = vld [vmem:[%s0 + $0x8] sm:$0xff]
  %v20 = vld [vmem:[%s0 + $0x10] sm:$0xff]
  %v21 = vld [vmem:[%s0 + $0x18] sm:$0xff]
  %v22 = vlaneseq
  %v23 = vshrl.u32 %v22, 7
  %s24 = smul.u32 0, 8
  %v25 = vstv %s24
  %v26 = vadd.s32 %v23, %v25
  %vm27 = vcmp.lt.s32.totalorder %v26, 8
  %v28 = vsel %vm27, %v18, 0.0
  %v29 = vsel %vm27, %v19, 0.0
  %v30 = vsel %vm27, %v20, 0.0
  %v31 = vsel %vm27, %v21, 0.0
  %v32 = vld [vmem:[#allocation2] sm:$0xf]
  %v33 = vrot.slane %v28, 4
  %v34 = vadd.f32 %v28, %v33
  %v35 = vrot.slane %v34, 2
  %v36 = vadd.f32 %v34, %v35
  %v37 = vrot.slane %v36, 1
  %v38 = vadd.f32 %v36, %v37
  %v39 = vrot.slane %v29, 4
  %v40 = vadd.f32 %v29, %v39
  %v41 = vrot.slane %v40, 2
  %v42 = vadd.f32 %v40, %v41
  %v43 = vrot.slane %v42, 1
  %v44 = vadd.f32 %v42, %v43
  %v45 = vrot.slane %v30, 4
  %v46 = vadd.f32 %v30, %v45
  %v47 = vrot.slane %v46, 2
  %v48 = vadd.f32 %v46, %v47
  %v49 = vrot.slane %v48, 1
  %v50 = vadd.f32 %v48, %v49
  %v51 = vrot.slane %v31, 4
  %v52 = vadd.f32 %v31, %v51
  %v53 = vrot.slane %v52, 2
  %v54 = vadd.f32 %v52, %v53
  %v55 = vrot.slane %v54, 1
  %v56 = vadd.f32 %v54, %v55
  %v61 = vcombine.low %v38, %v44
  %v62 = vcombine.low %v50, %v56
  %v64 = vunpack.c.l.s4 1966171168
  %v65 = vunpack.c.0.s8 %v64
  %v66 = vlaneseq
  %v67 = vshrl.u32 %v66, 7
  %v68 = vsub.s32 %v65, %v67
  %v69 = vrot.slane %v61, %v68
  %v71 = vunpack.c.l.s4 1966171168
  %v72 = vunpack.c.0.s8 %v71
  %v73 = vlaneseq
  %v74 = vshrl.u32 %v73, 7
  %v75 = vsub.s32 %v72, %v74
  %v76 = vrot.slane %v62, %v75
  %v77 = vcombine.low %v69, %v76
  %v79 = vunpack.c.l.s4 1966171168
  %v80 = vunpack.c.0.s8 %v79
  %v81 = vlaneseq
  %v82 = vshrl.u32 %v81, 7
  %v83 = vsub.s32 %v80, %v82
  %v84 = vrot.slane %v77, %v83
  %v86 = vadd.f32 %v32, %v84
  %v87 = vlaneseq
  %vm88 = vcmp.ge.s32.totalorder %v87, 0
  %vm89 = vcmp.lt.s32.totalorder %v87, 512
  %vm90 = vmand %vm88, %vm89
  %91 = vst.msk [vmem:[#allocation2] sm:$0xf] %vm90, %v86
  %v92 = vld [vmem:[#allocation3] sm:$0xf]
  %v93 = vmul.f32 %v28, %v28
  %v94 = vmul.f32 %v29, %v29
  %v95 = vmul.f32 %v30, %v30
  %v96 = vmul.f32 %v31, %v31
  %v97 = vrot.slane %v93, 4
  %v98 = vadd.f32 %v93, %v97
  %v99 = vrot.slane %v98, 2
  %v100 = vadd.f32 %v98, %v99
  %v101 = vrot.slane %v100, 1
  %v102 = vadd.f32 %v100, %v101
  %v103 = vrot.slane %v94, 4
  %v104 = vadd.f32 %v94, %v103
  %v105 = vrot.slane %v104, 2
  %v106 = vadd.f32 %v104, %v105
  %v107 = vrot.slane %v106, 1
  %v108 = vadd.f32 %v106, %v107
  %v109 = vrot.slane %v95, 4
  %v110 = vadd.f32 %v95, %v109
  %v111 = vrot.slane %v110, 2
  %v112 = vadd.f32 %v110, %v111
  %v113 = vrot.slane %v112, 1
  %v114 = vadd.f32 %v112, %v113
  %v115 = vrot.slane %v96, 4
  %v116 = vadd.f32 %v96, %v115
  %v117 = vrot.slane %v116, 2
  %v118 = vadd.f32 %v116, %v117
  %v119 = vrot.slane %v118, 1
  %v120 = vadd.f32 %v118, %v119
  %v125 = vcombine.low %v102, %v108
  %v126 = vcombine.low %v114, %v120
  %v128 = vunpack.c.l.s4 1966171168
  %v129 = vunpack.c.0.s8 %v128
  %v130 = vlaneseq
  %v131 = vshrl.u32 %v130, 7
  %v132 = vsub.s32 %v129, %v131
  %v133 = vrot.slane %v125, %v132
  %v135 = vunpack.c.l.s4 1966171168
  %v136 = vunpack.c.0.s8 %v135
  %v137 = vlaneseq
  %v138 = vshrl.u32 %v137, 7
  %v139 = vsub.s32 %v136, %v138
  %v140 = vrot.slane %v126, %v139
  %v141 = vcombine.low %v133, %v140
  %v143 = vunpack.c.l.s4 1966171168
  %v144 = vunpack.c.0.s8 %v143
  %v145 = vlaneseq
  %v146 = vshrl.u32 %v145, 7
  %v147 = vsub.s32 %v144, %v146
  %v148 = vrot.slane %v141, %v147
  %v150 = vadd.f32 %v92, %v148
  %151 = vst.msk [vmem:[#allocation3] sm:$0xf] %vm90, %v150
  // Predicated region
  $region10: #{discriminator_forward.25} parent=0 // pred_check
    %p152 = pneg %p8
  $region11: #{discriminator_forward.25} parent=0 // pred_check_branch
    %154 = sbr.rel (%p152) target = $region13
  $region12: #{discriminator_forward.25} parent=0 // pred_region
    %v155 = vld [vmem:[#allocation2] sm:$0xf]
    %156 = vst.msk [vmem:[%s1] ss:$2 sm:$0xf] %vm90, %v155
    %v157 = vld [vmem:[#allocation3] sm:$0xf]
    %s158 = scalar_lea.vmem %s1, 1
    %159 = vst.msk [vmem:[%s158] ss:$2 sm:$0xf] %vm90, %v157
  $region13: #{discriminator_forward.25} parent=0 // pred_fallthru
    _
  // Predicated region
  $region14: #{discriminator_forward.25} parent=0 // pred_check
    _
  $region15: #{discriminator_forward.25} parent=0 // pred_check_branch
    %161 = sbr.rel (0) target = $region17
  $region16: #{discriminator_forward.25} parent=0 // pred_region
    _
  $region17: #{discriminator_forward.25} parent=0 // pred_fallthru
    _
  // Predicated region
  $region18: #{discriminator_forward.25} parent=0 // pred_check
    _
  $region19: #{discriminator_forward.25} parent=0 // pred_check_branch
    %163 = sbr.rel (0) target = $region21
  $region20: #{discriminator_forward.25} parent=0 // pred_region
    _
  $region21: #{discriminator_forward.25} parent=0 // pred_fallthru
    _

// kernel: discriminator_forward.26
$region0: #{discriminator_forward.26}
  #allocation0 [shape = 'u32[]', space=smem, size = 0x4, offset = 0x4, fixed_abs, tag = 'smem constant byte address 0x4 - core index']
  #allocation1 [shape = 'u32[144,128]{1,0:T(1,128)}', space=vmem, size = 0x12000, scoped, tag = 'internal scratch']
  %s0 = inlined_call_operand.vmem [shape: f32[8,512], index: 0, kind: input, shape index: {}]
  %s1 = inlined_call_operand.vmem [shape: f32[2,512], index: 1, kind: input, shape index: {}]
  %s2 = inlined_call_operand.vmem [shape: f32[1,512], index: 2, kind: input, shape index: {}]
  %s3 = inlined_call_operand.vmem [shape: f32[1,512], index: 3, kind: input, shape index: {}]
  %s4 = inlined_call_operand.vmem [shape: f32[8,512], index: 4, kind: output, shape index: {}]
  %s5 = sld [smem:[#allocation0]]
  $region26: #{discriminator_forward.26} parent=0
    _
  %s7 = ssub.s32 1, %s5
  %s8 = scalar_select 0, %s7, %s5
  // Predicated region
  $region2: #{discriminator_forward.26} parent=0 // pred_check
    _
  $region3: #{discriminator_forward.26} parent=0 // pred_check_branch
    %10 = sbr.rel (0) target = $region5
  $region4: #{discriminator_forward.26} parent=0 // pred_region
    _
  $region5: #{discriminator_forward.26} parent=0 // pred_fallthru
    _
  // Predicated region
  $region6: #{discriminator_forward.26} parent=0 // pred_check
    _
  $region7: #{discriminator_forward.26} parent=0 // pred_check_branch
    %12 = sbr.rel (0) target = $region9
  $region8: #{discriminator_forward.26} parent=0 // pred_region
    _
  $region9: #{discriminator_forward.26} parent=0 // pred_fallthru
    _
  // Predicated region
  $region10: #{discriminator_forward.26} parent=0 // pred_check
    _
  $region11: #{discriminator_forward.26} parent=0 // pred_check_branch
    %14 = sbr.rel (0) target = $region13
  $region12: #{discriminator_forward.26} parent=0 // pred_region
    _
  $region13: #{discriminator_forward.26} parent=0 // pred_fallthru
    _
  // Predicated region
  $region14: #{discriminator_forward.26} parent=0 // pred_check
    _
  $region15: #{discriminator_forward.26} parent=0 // pred_check_branch
    %16 = sbr.rel (0) target = $region17
  $region16: #{discriminator_forward.26} parent=0 // pred_region
    _
  $region17: #{discriminator_forward.26} parent=0 // pred_fallthru
    _
  %v17 = vld [vmem:[%s0] sm:$0xff]
  %v18 = vld [vmem:[%s0 + $0x8] sm:$0xff]
  %v19 = vld [vmem:[%s0 + $0x10] sm:$0xff]
  %v20 = vld [vmem:[%s0 + $0x18] sm:$0xff]
  %v21 = vld [vmem:[%s1] ss:$2 sm:$0xf]
  %v22 = vmul.f32 %v21, 0.125
  %s23 = scalar_lea.vmem %s1, 1
  %v24 = vld [vmem:[%s23] ss:$2 sm:$0xf]
  %v25 = vmul.f32 %v24, 0.125
  %v26 = vmul.f32 %v22, %v22
  %v27 = vsub.f32 %v25, %v26
  %v28 = vld [vmem:[%s2] sm:$0xf]
  %v29 = vadd.f32 %v27, 1e-05
  %v30 = vrsqrt.pop %v29
  %v31 = vmul.f32 %v28, %v30
  %v32 = vld [vmem:[%s3] sm:$0xf]
  %v33 = vmul.f32 %v22, %v31
  %v34 = vsub.f32 %v32, %v33
  %v36 = vlaneseq
  %v37 = vshrl.u32 %v36, 7
  %v38 = vsub.s32 0, %v37
  %v39 = vrot.slane %v31, %v38
  %v40 = vlaneseq
  %v41 = vshrl.u32 %v40, 7
  %v42 = vsub.s32 1, %v41
  %v43 = vrot.slane %v31, %v42
  %v44 = vlaneseq
  %v45 = vshrl.u32 %v44, 7
  %v46 = vsub.s32 2, %v45
  %v47 = vrot.slane %v31, %v46
  %v48 = vlaneseq
  %v49 = vshrl.u32 %v48, 7
  %v50 = vsub.s32 3, %v49
  %v51 = vrot.slane %v31, %v50
  %v56 = vmul.f32 %v17, %v39
  %v57 = vmul.f32 %v18, %v43
  %v58 = vmul.f32 %v19, %v47
  %v59 = vmul.f32 %v20, %v51
  %v61 = vlaneseq
  %v62 = vshrl.u32 %v61, 7
  %v63 = vsub.s32 0, %v62
  %v64 = vrot.slane %v34, %v63
  %v65 = vlaneseq
  %v66 = vshrl.u32 %v65, 7
  %v67 = vsub.s32 1, %v66
  %v68 = vrot.slane %v34, %v67
  %v69 = vlaneseq
  %v70 = vshrl.u32 %v69, 7
  %v71 = vsub.s32 2, %v70
  %v72 = vrot.slane %v34, %v71
  %v73 = vlaneseq
  %v74 = vshrl.u32 %v73, 7
  %v75 = vsub.s32 3, %v74
  %v76 = vrot.slane %v34, %v75
  %v81 = vadd.f32 %v56, %v64
  %v82 = vadd.f32 %v57, %v68
  %v83 = vadd.f32 %v58, %v72
  %v84 = vadd.f32 %v59, %v76
  %vm85 = vcmp.gt.f32.partialorder %v81, 0.0
  %vm86 = vcmp.gt.f32.partialorder %v82, 0.0
  %vm87 = vcmp.gt.f32.partialorder %v83, 0.0
  %vm88 = vcmp.gt.f32.partialorder %v84, 0.0
  %v89 = vmul.f32 %v81, 0.2
  %v90 = vmul.f32 %v82, 0.2
  %v91 = vmul.f32 %v83, 0.2
  %v92 = vmul.f32 %v84, 0.2
  %v93 = vsel %vm85, %v81, %v89
  %v94 = vsel %vm86, %v82, %v90
  %v95 = vsel %vm87, %v83, %v91
  %v96 = vsel %vm88, %v84, %v92
  %97 = vst [vmem:[%s4] sm:$0xff] %v93
  %98 = vst [vmem:[%s4 + $0x8] sm:$0xff] %v94
  %99 = vst [vmem:[%s4 + $0x10] sm:$0xff] %v95
  %100 = vst [vmem:[%s4 + $0x18] sm:$0xff] %v96
  // Predicated region
  $region18: #{discriminator_forward.26} parent=0 // pred_check
    _
  $region19: #{discriminator_forward.26} parent=0 // pred_check_branch
    %102 = sbr.rel (0) target = $region21
  $region20: #{discriminator_forward.26} parent=0 // pred_region
    _
  $region21: #{discriminator_forward.26} parent=0 // pred_fallthru
    _
  // Predicated region
  $region22: #{discriminator_forward.26} parent=0 // pred_check
    _
  $region23: #{discriminator_forward.26} parent=0 // pred_check_branch
    %104 = sbr.rel (0) target = $region25
  $region24: #{discriminator_forward.26} parent=0 // pred_region
    _
  $region25: #{discriminator_forward.26} parent=0 // pred_fallthru
    _

// kernel: discriminator_forward.27
$region0: #{discriminator_forward.27}
  #allocation0 [shape = 'u32[]', space=smem, size = 0x4, offset = 0x4, fixed_abs, tag = 'smem constant byte address 0x4 - core index']
  #allocation1 [shape = 'u32[144,128]{1,0:T(1,128)}', space=vmem, size = 0x12000, scoped, tag = 'internal scratch']
  #allocation2 [shape = 'f32[8,256]{1,0:T(8,128)}', space=vmem, size = 0x2000, scoped, tag = 'scratch operand']
  %s0 = inlined_call_operand.vmem [shape: bf16[8,4608], index: 0, kind: input, shape index: {}]
  %s1 = inlined_call_operand.vmem [shape: bf16[4608,1024], index: 1, kind: input, shape index: {}]
  %s2 = inlined_call_operand.vmem [shape: f32[1,1024], index: 2, kind: input, shape index: {}]
  %s3 = inlined_call_operand.vmem [shape: f32[8,1024], index: 3, kind: output, shape index: {}]
  %s4 = sld [smem:[#allocation0]]
  $region91: #{discriminator_forward.27} parent=0
    _
  %s6 = ssub.s32 1, %s4
  %s7 = scalar_select 0, %s6, %s4
  $region1: #{discriminator_forward.27} parent=0
    #allocation3 [shape = 'u8[262144]{0}', space=vmem, size = 0x40000, scoped, tag = 'input window, operand 1']
    loop: start=0, step=1, limit=74
    $region2: #{discriminator_forward.27} parent=1 // loop_pre_header
      _
    $region3: #{discriminator_forward.27} parent=1 // loop_header
      %s9 = sphi 0, %s13
      %p10 = scmp.ge.s32.totalorder %s9, 74
      %s16 = sphi 0, %s35
      %s17 = sphi 0, %s31
      %s18 = sphi 0, %s27
      %s19 = sphi 0, %s16
      %s20 = sphi 0, %s17
      %s21 = sphi 0, %s18
      %s22 = sphi 0, %s19
      %s23 = sphi 0, %s20
      %s24 = sphi 0, %s21
      %s40 = sphi 0, %s42
      %s43 = sphi 0, %s40
      %s44 = sphi 0, %s43
      %s60 = sphi 0, %s44
      %s68 = sphi 0, %s70
      %s71 = sphi 0, %s68
      %s72 = sphi 0, %s71
      %s88 = sphi 0, %s72
      %s94 = sphi 0, %s96
      %s97 = sphi 0, %s94
      %s98 = sphi 0, %s97
      %s114 = sphi 0, %s98
      %s122 = sphi 0, %s124
      %s125 = sphi 0, %s122
      %s126 = sphi 0, %s125
      %s142 = sphi 0, %s126
    $region4: #{discriminator_forward.27} parent=1 // loop_header_branch
      %12 = sbr.rel (%p10) target = $region8
    $region5: #{discriminator_forward.27} parent=1 // loop_body
      %s14 = ssub.s32 %s9, 1
      %s15 = ssub.s32 %s9, 2
      %s25 = sadd.s32 1, %s18
      %p26 = scmp.ge.s32.totalorder %s25, 18
      %s27 = scalar_select %p26, 0, %s25
      %s28 = sadd.s32 1, %s17
      %s29 = scalar_select %p26, %s28, %s17
      %p30 = scmp.ge.s32.totalorder %s29, 4
      %s31 = scalar_select %p30, 0, %s29
      %s32 = sadd.s32 1, %s16
      %s33 = scalar_select %p30, %s32, %s16
      %p34 = scmp.ge.s32.totalorder %s33, 1
      %s35 = scalar_select %p34, 0, %s33
      %s36 = ssub.s32 %s16, %s35
      %s37 = ssub.s32 %s18, %s27
      %s38 = sor.u32 %s36, %s37
      %p39 = scmp.eq.s32.totalorder %s38, 0
      %s41 = sadd.s32 %s40, 1
      %s42 = scalar_select %p39, %s40, %s41
      %p45 = pneg %p39
      %p46 = scmp.eq.s32.totalorder %s9, 71
      %p47 = por %p45, %p46
      %p48 = scmp.ne.s32.totalorder %s40, %s43
      %p49 = scmp.eq.s32.totalorder %s9, 0
      %p50 = por %p48, %p49
      %p51 = scmp.ne.s32.totalorder %s40, %s43
      %p52 = scmp.eq.s32.totalorder %s14, 71
      %p53 = por %p51, %p52
      %p54 = scmp.ne.s32.totalorder %s43, %s44
      %p55 = scmp.eq.s32.totalorder %s14, 0
      %p56 = por %p54, %p55
      %p57 = scmp.ne.s32.totalorder %s43, %s44
      %p58 = scmp.eq.s32.totalorder %s15, 71
      %p59 = por %p57, %p58
      %p61 = scmp.ne.s32.totalorder %s44, %s60
      %p62 = scmp.eq.s32.totalorder %s15, 0
      %p63 = por %p61, %p62
      %s64 = ssub.s32 %s18, %s27
      %s65 = ssub.s32 %s17, %s31
      %s66 = sor.u32 %s64, %s65
      %p67 = scmp.eq.s32.totalorder %s66, 0
      %s69 = sadd.s32 %s68, 1
      %s70 = scalar_select %p67, %s68, %s69
      %p73 = pneg %p67
      %p74 = scmp.eq.s32.totalorder %s9, 71
      %p75 = por %p73, %p74
      %p76 = scmp.ne.s32.totalorder %s68, %s71
      %p77 = scmp.eq.s32.totalorder %s9, 0
      %p78 = por %p76, %p77
      %p79 = scmp.ne.s32.totalorder %s68, %s71
      %p80 = scmp.eq.s32.totalorder %s14, 71
      %p81 = por %p79, %p80
      %p82 = scmp.ne.s32.totalorder %s71, %s72
      %p83 = scmp.eq.s32.totalorder %s14, 0
      %p84 = por %p82, %p83
      %p85 = scmp.ne.s32.totalorder %s71, %s72
      %p86 = scmp.eq.s32.totalorder %s15, 71
      %p87 = por %p85, %p86
      %p89 = scmp.ne.s32.totalorder %s72, %s88
      %p90 = scmp.eq.s32.totalorder %s15, 0
      %p91 = por %p89, %p90
      %s92 = ssub.s32 %s17, %s31
      %p93 = scmp.eq.s32.totalorder %s92, 0
      %s95 = sadd.s32 %s94, 1
      %s96 = scalar_select %p93, %s94, %s95
      %p99 = pneg %p93
      %p100 = scmp.eq.s32.totalorder %s9, 71
      %p101 = por %p99, %p100
      %p102 = scmp.ne.s32.totalorder %s94, %s97
      %p103 = scmp.eq.s32.totalorder %s9, 0
      %p104 = por %p102, %p103
      %p105 = scmp.ne.s32.totalorder %s94, %s97
      %p106 = scmp.eq.s32.totalorder %s14, 71
      %p107 = por %p105, %p106
      %p108 = scmp.ne.s32.totalorder %s97, %s98
      %p109 = scmp.eq.s32.totalorder %s14, 0
      %p110 = por %p108, %p109
      %p111 = scmp.ne.s32.totalorder %s97, %s98
      %p112 = scmp.eq.s32.totalorder %s15, 71
      %p113 = por %p111, %p112
      %p115 = scmp.ne.s32.totalorder %s98, %s114
      %p116 = scmp.eq.s32.totalorder %s15, 0
      %p117 = por %p115, %p116
      %s118 = ssub.s32 %s16, %s35
      %s119 = ssub.s32 %s17, %s31
      %s120 = sor.u32 %s118, %s119
      %p121 = scmp.eq.s32.totalorder %s120, 0
      %s123 = sadd.s32 %s122, 1
      %s124 = scalar_select %p121, %s122, %s123
      %p127 = pneg %p121
      %p128 = scmp.eq.s32.totalorder %s9, 71
      %p129 = por %p127, %p128
      %p130 = scmp.ne.s32.totalorder %s122, %s125
      %p131 = scmp.eq.s32.totalorder %s9, 0
      %p132 = por %p130, %p131
      %p133 = scmp.ne.s32.totalorder %s122, %s125
      %p134 = scmp.eq.s32.totalorder %s14, 71
      %p135 = por %p133, %p134
      %p136 = scmp.ne.s32.totalorder %s125, %s126
      %p137 = scmp.eq.s32.totalorder %s14, 0
      %p138 = por %p136, %p137
      %p139 = scmp.ne.s32.totalorder %s125, %s126
      %p140 = scmp.eq.s32.totalorder %s15, 71
      %p141 = por %p139, %p140
      %p143 = scmp.ne.s32.totalorder %s126, %s142
      %p144 = scmp.eq.s32.totalorder %s15, 0
      %p145 = por %p143, %p144
      %p146 = scmp.le.s32.totalorder 1, %s9
      %p147 = scmp.lt.s32.totalorder %s9, 73
      %p148 = pnand %p146, %p147
      %p149 = pneg %p148
      // Predicated region
      $region9: #{discriminator_forward.27} parent=5 // pred_check
        _
      $region10: #{discriminator_forward.27} parent=5 // pred_check_branch
        %151 = sbr.rel (%p148) target = $region12
      $region11: #{discriminator_forward.27} parent=5 // pred_region
        %s152 = ssub.s32 %s9, 1
      $region12: #{discriminator_forward.27} parent=5 // pred_fallthru
        _
      %p153 = scmp.lt.s32.totalorder %s9, 72
      // Predicated region
      $region13: #{discriminator_forward.27} parent=5 // pred_check
        %p154 = pneg %p153
      $region14: #{discriminator_forward.27} parent=5 // pred_check_branch
        %156 = sbr.rel (%p154) target = $region16
      $region15: #{discriminator_forward.27} parent=5 // pred_region
        // Predicated region
        $region17: #{discriminator_forward.27} parent=15 // pred_check
          %p157 = pneg %p50
        $region18: #{discriminator_forward.27} parent=15 // pred_check_branch
          %159 = sbr.rel (%p157) target = $region20
        $region19: #{discriminator_forward.27} parent=15 // pred_region
          %s160 = smul.u32 2, %s18
          %p161 = scmp.lt.s32.totalorder %s16, 0
          %s162 = scalar_select %p161, %s16, 0
          %p163 = scmp.lt.s32.totalorder %s160, 35
          %s164 = scalar_select %p163, %s160, 35
          %s165 = smul.addr %s162, 36
          %s166 = sadd.s32 %s164, %s165
          %s167 = smul.addr %s166, 4
          %s168 = scalar_lea.vmem %s0, %s167
          %s169 = smul.u32 2, %s18
        $region20: #{discriminator_forward.27} parent=15 // pred_fallthru
          _
        // Predicated region
        $region21: #{discriminator_forward.27} parent=15 // pred_check
          %p170 = pneg %p78
        $region22: #{discriminator_forward.27} parent=15 // pred_check_branch
          %172 = sbr.rel (%p170) target = $region24
        $region23: #{discriminator_forward.27} parent=15 // pred_region
          %s173 = sand.u32 %s68, 1
          %s174 = sand.u32 %s68, 1
          %s175 = smul.addr %s174, 256
          %s176 = scalar_lea.vmem [#allocation3], %s175
          %s177 = smul.u32 32, %s18
          %s178 = smul.u32 2, %s17
          %s179 = smul.addr %s177, 8
          %s180 = sadd.s32 %s178, %s179
          %s181 = smul.addr %s180, 4
          %s182 = scalar_lea.vmem %s1, %s181
          // Predicated region
          $region25: #{discriminator_forward.27} parent=23 // pred_check
            _
          $region26: #{discriminator_forward.27} parent=23 // pred_check_branch
            %184 = sbr.rel (0) target = $region28
          $region27: #{discriminator_forward.27} parent=23 // pred_region
            // Predicated region
            $region29: #{discriminator_forward.27} parent=27 // pred_check
              _
            $region30: #{discriminator_forward.27} parent=27 // pred_check_branch
              %186 = sbr.rel (0) target = $region32
            $region31: #{discriminator_forward.27} parent=27 // pred_region
              // Predicated region
              $region44: #{discriminator_forward.27} parent=31 // pred_check
                _
              $region45: #{discriminator_forward.27} parent=31 // pred_check_branch
                %263 = sbr.rel (0) target = $region47
              $region46: #{discriminator_forward.27} parent=31 // pred_region
                loop: start=0, step=1, limit=1
                $region48: #{discriminator_forward.27} parent=46 // loop_pre_header
                  _
                $region49: #{discriminator_forward.27} parent=46 // loop_header
                  %s265 = sphi 0, %s269
                  %p266 = scmp.ge.s32.totalorder %s265, 1
                  %s270 = sphi %s182, %s182
                  %s271 = sphi %s176, %s176
                $region50: #{discriminator_forward.27} parent=46 // loop_header_branch
                  %268 = sbr.rel (%p266) target = $region54
                $region51: #{discriminator_forward.27} parent=46 // loop_body
                  %v272 = vld [vmem:[%s270] sm:$0xff]
                  %273 = vst [vmem:[%s271] sm:$0xff] %v272
                  %v274 = vld [vmem:[%s270 + $0x20] sm:$0xff]
                  %275 = vst [vmem:[%s271 + $0x8] sm:$0xff] %v274
                  %v276 = vld [vmem:[%s270 + $0x40] sm:$0xff]
                  %277 = vst [vmem:[%s271 + $0x10] sm:$0xff] %v276
                  %v278 = vld [vmem:[%s270 + $0x60] sm:$0xff]
                  %279 = vst [vmem:[%s271 + $0x18] sm:$0xff] %v278
                  %v280 = vld [vmem:[%s270 + $0x80] sm:$0xff]
                  %281 = vst [vmem:[%s271 + $0x20] sm:$0xff] %v280
                  %v282 = vld [vmem:[%s270 + $0xa0] sm:$0xff]
                  %283 = vst [vmem:[%s271 + $0x28] sm:$0xff] %v282
                  %v284 = vld [vmem:[%s270 + $0xc0] sm:$0xff]
                  %285 = vst [vmem:[%s271 + $0x30] sm:$0xff] %v284
                  %v286 = vld [vmem:[%s270 + $0xe0] sm:$0xff]
                  %287 = vst [vmem:[%s271 + $0x38] sm:$0xff] %v286
                  %v288 = vld [vmem:[%s270 + $0x100] sm:$0xff]
                  %289 = vst [vmem:[%s271 + $0x40] sm:$0xff] %v288
                  %v290 = vld [vmem:[%s270 + $0x120] sm:$0xff]
                  %291 = vst [vmem:[%s271 + $0x48] sm:$0xff] %v290
                  %v292 = vld [vmem:[%s270 + $0x140] sm:$0xff]
                  %293 = vst [vmem:[%s271 + $0x50] sm:$0xff] %v292
                  %v294 = vld [vmem:[%s270 + $0x160] sm:$0xff]
                  %295 = vst [vmem:[%s271 + $0x58] sm:$0xff] %v294
                  %v296 = vld [vmem:[%s270 + $0x180] sm:$0xff]
                  %297 = vst [vmem:[%s271 + $0x60] sm:$0xff] %v296
                  %v298 = vld [vmem:[%s270 + $0x1a0] sm:$0xff]
                  %299 = vst [vmem:[%s271 + $0x68] sm:$0xff] %v298
                  %v300 = vld [vmem:[%s270 + $0x1c0] sm:$0xff]
                  %301 = vst [vmem:[%s271 + $0x70] sm:$0xff] %v300
                  %v302 = vld [vmem:[%s270 + $0x1e0] sm:$0xff]
                  %303 = vst [vmem:[%s271 + $0x78] sm:$0xff] %v302
                  %v304 = vld [vmem:[%s270 + $0x200] sm:$0xff]
                  %305 = vst [vmem:[%s271 + $0x80] sm:$0xff] %v304
                  %v306 = vld [vmem:[%s270 + $0x220] sm:$0xff]
                  %307 = vst [vmem:[%s271 + $0x88] sm:$0xff] %v306
                  %v308 = vld [vmem:[%s270 + $0x240] sm:$0xff]
                  %309 = vst [vmem:[%s271 + $0x90] sm:$0xff] %v308
                  %v310 = vld [vmem:[%s270 + $0x260] sm:$0xff]
                  %311 = vst [vmem:[%s271 + $0x98] sm:$0xff] %v310
                  %v312 = vld [vmem:[%s270 + $0x280] sm:$0xff]
                  %313 = vst [vmem:[%s271 + $0xa0] sm:$0xff] %v312
                  %v314 = vld [vmem:[%s270 + $0x2a0] sm:$0xff]
                  %315 = vst [vmem:[%s271 + $0xa8] sm:$0xff] %v314
                  %v316 = vld [vmem:[%s270 + $0x2c0] sm:$0xff]
                  %317 = vst [vmem:[%s271 + $0xb0] sm:$0xff] %v316
                  %v318 = vld [vmem:[%s270 + $0x2e0] sm:$0xff]
                  %319 = vst [vmem:[%s271 + $0xb8] sm:$0xff] %v318
                  %v320 = vld [vmem:[%s270 + $0x300] sm:$0xff]
                  %321 = vst [vmem:[%s271 + $0xc0] sm:$0xff] %v320
                  %v322 = vld [vmem:[%s270 + $0x320] sm:$0xff]
                  %323 = vst [vmem:[%s271 + $0xc8] sm:$0xff] %v322
                  %v324 = vld [vmem:[%s270 + $0x340] sm:$0xff]
                  %325 = vst [vmem:[%s271 + $0xd0] sm:$0xff] %v324
                  %v326 = vld [vmem:[%s270 + $0x360] sm:$0xff]
                  %327 = vst [vmem:[%s271 + $0xd8] sm:$0xff] %v326
                  %v328 = vld [vmem:[%s270 + $0x380] sm:$0xff]
                  %329 = vst [vmem:[%s271 + $0xe0] sm:$0xff] %v328
                  %v330 = vld [vmem:[%s270 + $0x3a0] sm:$0xff]
                  %331 = vst [vmem:[%s271 + $0xe8] sm:$0xff] %v330
                  %v332 = vld [vmem:[%s270 + $0x3c0] sm:$0xff]
                  %333 = vst [vmem:[%s271 + $0xf0] sm:$0xff] %v332
                  %v334 = vld [vmem:[%s270 + $0x3e0] sm:$0xff]
                  %335 = vst [vmem:[%s271 + $0xf8] sm:$0xff] %v334
                $region52: #{discriminator_forward.27} parent=46 // loop_footer
                  %s269 = sadd.s32 1, %s265
                $region53: #{discriminator_forward.27} parent=46 // loop_footer_branch
                  %264 = sbr.rel target = $region49
                $region54: #{discriminator_forward.27} parent=46 // loop_exit
                  _
              $region47: #{discriminator_forward.27} parent=31 // pred_fallthru
                _
              // Predicated region
              $region55: #{discriminator_forward.27} parent=31 // pred_check
                _
              $region56: #{discriminator_forward.27} parent=31 // pred_check_branch
                %337 = sbr.rel target = $region58
              $region57: #{discriminator_forward.27} parent=31 // pred_region
                _
              $region58: #{discriminator_forward.27} parent=31 // pred_fallthru
                _
            $region32: #{discriminator_forward.27} parent=27 // pred_fallthru
              _
            // Predicated region
            $region33: #{discriminator_forward.27} parent=27 // pred_check
              _
            $region34: #{discriminator_forward.27} parent=27 // pred_check_branch
              %188 = sbr.rel target = $region36
            $region35: #{discriminator_forward.27} parent=27 // pred_region
              loop: start=0, step=1, limit=1
              $region37: #{discriminator_forward.27} parent=35 // loop_pre_header
                _
              $region38: #{discriminator_forward.27} parent=35 // loop_header
                %s191 = sphi 0, %s195
                %p192 = scmp.ge.s32.totalorder %s191, 1
                %s196 = sphi %s182, %s182
                %s197 = sphi %s176, %s176
              $region39: #{discriminator_forward.27} parent=35 // loop_header_branch
                %194 = sbr.rel (%p192) target = $region43
              $region40: #{discriminator_forward.27} parent=35 // loop_body
                %v198 = vld [vmem:[%s196] sm:$0xff]
                %199 = vst [vmem:[%s197] sm:$0xff] %v198
                %v200 = vld [vmem:[%s196 + $0x20] sm:$0xff]
                %201 = vst [vmem:[%s197 + $0x8] sm:$0xff] %v200
                %v202 = vld [vmem:[%s196 + $0x40] sm:$0xff]
                %203 = vst [vmem:[%s197 + $0x10] sm:$0xff] %v202
                %v204 = vld [vmem:[%s196 + $0x60] sm:$0xff]
                %205 = vst [vmem:[%s197 + $0x18] sm:$0xff] %v204
                %v206 = vld [vmem:[%s196 + $0x80] sm:$0xff]
                %207 = vst [vmem:[%s197 + $0x20] sm:$0xff] %v206
                %v208 = vld [vmem:[%s196 + $0xa0] sm:$0xff]
                %209 = vst [vmem:[%s197 + $0x28] sm:$0xff] %v208
                %v210 = vld [vmem:[%s196 + $0xc0] sm:$0xff]
                %211 = vst [vmem:[%s197 + $0x30] sm:$0xff] %v210
                %v212 = vld [vmem:[%s196 + $0xe0] sm:$0xff]
                %213 = vst [vmem:[%s197 + $0x38] sm:$0xff] %v212
                %v214 = vld [vmem:[%s196 + $0x100] sm:$0xff]
                %215 = vst [vmem:[%s197 + $0x40] sm:$0xff] %v214
                %v216 = vld [vmem:[%s196 + $0x120] sm:$0xff]
                %217 = vst [vmem:[%s197 + $0x48] sm:$0xff] %v216
                %v218 = vld [vmem:[%s196 + $0x140] sm:$0xff]
                %219 = vst [vmem:[%s197 + $0x50] sm:$0xff] %v218
                %v220 = vld [vmem:[%s196 + $0x160] sm:$0xff]
                %221 = vst [vmem:[%s197 + $0x58] sm:$0xff] %v220
                %v222 = vld [vmem:[%s196 + $0x180] sm:$0xff]
                %223 = vst [vmem:[%s197 + $0x60] sm:$0xff] %v222
                %v224 = vld [vmem:[%s196 + $0x1a0] sm:$0xff]
                %225 = vst [vmem:[%s197 + $0x68] sm:$0xff] %v224
                %v226 = vld [vmem:[%s196 + $0x1c0] sm:$0xff]
                %227 = vst [vmem:[%s197 + $0x70] sm:$0xff] %v226
                %v228 = vld [vmem:[%s196 + $0x1e0] sm:$0xff]
                %229 = vst [vmem:[%s197 + $0x78] sm:$0xff] %v228
                %v230 = vld [vmem:[%s196 + $0x200] sm:$0xff]
                %231 = vst [vmem:[%s197 + $0x80] sm:$0xff] %v230
                %v232 = vld [vmem:[%s196 + $0x220] sm:$0xff]
                %233 = vst [vmem:[%s197 + $0x88] sm:$0xff] %v232
                %v234 = vld [vmem:[%s196 + $0x240] sm:$0xff]
                %235 = vst [vmem:[%s197 + $0x90] sm:$0xff] %v234
                %v236 = vld [vmem:[%s196 + $0x260] sm:$0xff]
                %237 = vst [vmem:[%s197 + $0x98] sm:$0xff] %v236
                %v238 = vld [vmem:[%s196 + $0x280] sm:$0xff]
                %239 = vst [vmem:[%s197 + $0xa0] sm:$0xff] %v238
                %v240 = vld [vmem:[%s196 + $0x2a0] sm:$0xff]
                %241 = vst [vmem:[%s197 + $0xa8] sm:$0xff] %v240
                %v242 = vld [vmem:[%s196 + $0x2c0] sm:$0xff]
                %243 = vst [vmem:[%s197 + $0xb0] sm:$0xff] %v242
                %v244 = vld [vmem:[%s196 + $0x2e0] sm:$0xff]
                %245 = vst [vmem:[%s197 + $0xb8] sm:$0xff] %v244
                %v246 = vld [vmem:[%s196 + $0x300] sm:$0xff]
                %247 = vst [vmem:[%s197 + $0xc0] sm:$0xff] %v246
                %v248 = vld [vmem:[%s196 + $0x320] sm:$0xff]
                %249 = vst [vmem:[%s197 + $0xc8] sm:$0xff] %v248
                %v250 = vld [vmem:[%s196 + $0x340] sm:$0xff]
                %251 = vst [vmem:[%s197 + $0xd0] sm:$0xff] %v250
                %v252 = vld [vmem:[%s196 + $0x360] sm:$0xff]
                %253 = vst [vmem:[%s197 + $0xd8] sm:$0xff] %v252
                %v254 = vld [vmem:[%s196 + $0x380] sm:$0xff]
                %255 = vst [vmem:[%s197 + $0xe0] sm:$0xff] %v254
                %v256 = vld [vmem:[%s196 + $0x3a0] sm:$0xff]
                %257 = vst [vmem:[%s197 + $0xe8] sm:$0xff] %v256
                %v258 = vld [vmem:[%s196 + $0x3c0] sm:$0xff]
                %259 = vst [vmem:[%s197 + $0xf0] sm:$0xff] %v258
                %v260 = vld [vmem:[%s196 + $0x3e0] sm:$0xff]
                %261 = vst [vmem:[%s197 + $0xf8] sm:$0xff] %v260
              $region41: #{discriminator_forward.27} parent=35 // loop_footer
                %s195 = sadd.s32 1, %s191
              $region42: #{discriminator_forward.27} parent=35 // loop_footer_branch
                %190 = sbr.rel target = $region38
              $region43: #{discriminator_forward.27} parent=35 // loop_exit
                _
            $region36: #{discriminator_forward.27} parent=27 // pred_fallthru
              _
          $region28: #{discriminator_forward.27} parent=23 // pred_fallthru
            _
          %338 = vnop
        $region24: #{discriminator_forward.27} parent=15 // pred_fallthru
          _
        // Predicated region
        $region59: #{discriminator_forward.27} parent=15 // pred_check
          %p339 = pneg %p104
        $region60: #{discriminator_forward.27} parent=15 // pred_check_branch
          %341 = sbr.rel (%p339) target = $region62
        $region61: #{discriminator_forward.27} parent=15 // pred_region
          %s342 = smul.u32 2, %s17
          %p343 = scmp.lt.s32.totalorder %s342, 7
          %s344 = scalar_select %p343, %s342, 7
          %s345 = scalar_lea.vmem %s2, %s344
          %s346 = smul.u32 2, %s17
        $region62: #{discriminator_forward.27} parent=15 // pred_fallthru
          _
      $region16: #{discriminator_forward.27} parent=5 // pred_fallthru
        _
      %p347 = scmp.le.s32.totalorder 1, %s9
      %p348 = scmp.lt.s32.totalorder %s9, 73
      %p349 = pnand %p347, %p348
      %p350 = pneg %p349
      // Predicated region
      $region63: #{discriminator_forward.27} parent=5 // pred_check
        _
      $region64: #{discriminator_forward.27} parent=5 // pred_check_branch
        %352 = sbr.rel (%p349) target = $region66
      $region65: #{discriminator_forward.27} parent=5 // pred_region
        %s353 = ssub.s32 %s9, 1
        %s354 = sand.u32 %s71, 1
        %s355 = sand.u32 %s71, 1
        %s356 = smul.addr %s355, 256
        %s357 = scalar_lea.vmem [#allocation3], %s356
        // Predicated region
        $region67: #{discriminator_forward.27} parent=65 // pred_check
          %p358 = pneg %p84
        $region68: #{discriminator_forward.27} parent=65 // pred_check_branch
          %360 = sbr.rel (%p358) target = $region70
        $region69: #{discriminator_forward.27} parent=65 // pred_region
          _
        $region70: #{discriminator_forward.27} parent=65 // pred_fallthru
          _
        %s361 = smul.u32 2, %s21
        %p362 = scmp.lt.s32.totalorder %s19, 0
        %s363 = scalar_select %p362, %s19, 0
        %p364 = scmp.lt.s32.totalorder %s361, 35
        %s365 = scalar_select %p364, %s361, 35
        %s366 = smul.addr %s363, 36
        %s367 = sadd.s32 %s365, %s366
        %s368 = smul.addr %s367, 4
        %s369 = scalar_lea.vmem %s0, %s368
        %p370 = pneg %p56
        %p371 = pneg %p53
        %s372 = sand.u32 %s71, 1
        %s373 = sand.u32 %s71, 1
        %s374 = smul.addr %s373, 256
        %s375 = scalar_lea.vmem [#allocation3], %s374
        %p376 = pneg %p84
        %p377 = pneg %p81
        %s378 = smul.u32 2, %s20
        %p379 = scmp.lt.s32.totalorder %s378, 7
        %s380 = scalar_select %p379, %s378, 7
        %s381 = scalar_lea.vmem %s2, %s380
        %p382 = pneg %p110
        %p383 = pneg %p107
        %p384 = pneg %p138
        %p385 = pneg %p135
        %s386 = smul.u32 2, %s20
        %p387 = scmp.lt.s32.totalorder %s19, 0
        %s388 = scalar_select %p387, %s19, 0
        %p389 = scmp.lt.s32.totalorder %s386, 7
        %s390 = scalar_select %p389, %s386, 7
        %s391 = smul.addr %s388, 8
        %s392 = sadd.s32 %s390, %s391
        %s393 = smul.addr %s392, 8
        %s394 = scalar_lea.vmem %s3, %s393
        %s395 = smul.u32 2, %s21
        %p396 = scmp.lt.s32.totalorder %s19, 0
        %s397 = scalar_select %p396, %s19, 0
        %p398 = scmp.lt.s32.totalorder %s395, 35
        %s399 = scalar_select %p398, %s395, 35
        %s400 = smul.addr %s397, 36
        %s401 = sadd.s32 %s399, %s400
        %s402 = smul.addr %s401, 4
        %s403 = scalar_lea.vmem %s0, %s402
        %s404 = smul.u32 2, %s21
        %s405 = smul.u32 32, %s21
        %s406 = smul.u32 2, %s20
        %s407 = smul.u32 2, %s20
        %p408 = scmp.lt.s32.totalorder %s407, 7
        %s409 = scalar_select %p408, %s407, 7
        %s410 = scalar_lea.vmem %s2, %s409
        %s411 = smul.u32 2, %s20
        %s412 = smul.u32 2, %s20
        %p413 = scmp.lt.s32.totalorder %s19, 0
        %s414 = scalar_select %p413, %s19, 0
        %p415 = scmp.lt.s32.totalorder %s412, 7
        %s416 = scalar_select %p415, %s412, 7
        %s417 = smul.addr %s414, 8
        %s418 = sadd.s32 %s416, %s417
        %s419 = smul.addr %s418, 8
        %s420 = scalar_lea.vmem %s3, %s419
        %s421 = smul.u32 2, %s20
        %p422 = scmp.eq.s32.totalorder %s21, 0
        // Predicated region
        $region71: #{discriminator_forward.27} parent=65 // pred_check
          %p423 = pneg %p422
        $region72: #{discriminator_forward.27} parent=65 // pred_check_branch
          %425 = sbr.rel (%p423) target = $region74
        $region73: #{discriminator_forward.27} parent=65 // pred_region
          %426 = vst [vmem:[#allocation2] sm:$0xff] 0.0
          %427 = vst [vmem:[#allocation2 + $0x8] sm:$0xff] 0.0
        $region74: #{discriminator_forward.27} parent=65 // pred_fallthru
          _
        %v428 = vld [vmem:[#allocation2] sm:$0xff]
        %v429 = vld [vmem:[#allocation2 + $0x8] sm:$0xff]
        %v430 = vld [vmem:[%s403] sm:$0xff]
        %v431 = vld [vmem:[%s357] sm:$0xff]
        %v432 = vld [vmem:[%s357 + $0x8] sm:$0xff]
        %v433 = vld [vmem:[%s357 + $0x10] sm:$0xff]
        %v434 = vld [vmem:[%s357 + $0x18] sm:$0xff]
        %v435 = vld [vmem:[%s357 + $0x20] sm:$0xff]
        %v436 = vld [vmem:[%s357 + $0x28] sm:$0xff]
        %v437 = vld [vmem:[%s357 + $0x30] sm:$0xff]
        %v438 = vld [vmem:[%s357 + $0x38] sm:$0xff]
        %v439 = vld [vmem:[%s357 + $0x40] sm:$0xff]
        %v440 = vld [vmem:[%s357 + $0x48] sm:$0xff]
        %v441 = vld [vmem:[%s357 + $0x50] sm:$0xff]
        %v442 = vld [vmem:[%s357 + $0x58] sm:$0xff]
        %v443 = vld [vmem:[%s357 + $0x60] sm:$0xff]
        %v444 = vld [vmem:[%s357 + $0x68] sm:$0xff]
        %v445 = vld [vmem:[%s357 + $0x70] sm:$0xff]
        %v446 = vld [vmem:[%s357 + $0x78] sm:$0xff]
        %v447 = vld [vmem:[%s357 + $0x80] sm:$0xff]
        %v448 = vld [vmem:[%s357 + $0x88] sm:$0xff]
        %v449 = vld [vmem:[%s357 + $0x90] sm:$0xff]
        %v450 = vld [vmem:[%s357 + $0x98] sm:$0xff]
        %v451 = vld [vmem:[%s357 + $0xa0] sm:$0xff]
        %v452 = vld [vmem:[%s357 + $0xa8] sm:$0xff]
        %v453 = vld [vmem:[%s357 + $0xb0] sm:$0xff]
        %v454 = vld [vmem:[%s357 + $0xb8] sm:$0xff]
        %v455 = vld [vmem:[%s357 + $0xc0] sm:$0xff]
        %v456 = vld [vmem:[%s357 + $0xc8] sm:$0xff]
        %v457 = vld [vmem:[%s357 + $0xd0] sm:$0xff]
        %v458 = vld [vmem:[%s357 + $0xd8] sm:$0xff]
        %v459 = vld [vmem:[%s357 + $0xe0] sm:$0xff]
        %v460 = vld [vmem:[%s357 + $0xe8] sm:$0xff]
        %v461 = vld [vmem:[%s357 + $0xf0] sm:$0xff]
        %v462 = vld [vmem:[%s357 + $0xf8] sm:$0xff]
        %v464 = vunpack.c.l.b16 %v430
        %v465 = vunpack.c.h.b16 %v430
        %v466 = vpack.c.b16 %v464, %v464
        %v467 = vpack.c.b16 %v465, %v465
        %v502 = vunpack.c.l.b16 %v431
        %v503 = vunpack.c.h.b16 %v431
        %v504 = vunpack.c.l.b16 %v432
        %v505 = vunpack.c.h.b16 %v432
        %v506 = vunpack.c.l.b16 %v433
        %v507 = vunpack.c.h.b16 %v433
        %v508 = vunpack.c.l.b16 %v434
        %v509 = vunpack.c.h.b16 %v434
        %v510 = vunpack.c.l.b16 %v435
        %v511 = vunpack.c.h.b16 %v435
        %v512 = vunpack.c.l.b16 %v436
        %v513 = vunpack.c.h.b16 %v436
        %v514 = vunpack.c.l.b16 %v437
        %v515 = vunpack.c.h.b16 %v437
        %v516 = vunpack.c.l.b16 %v438
        %v517 = vunpack.c.h.b16 %v438
        %v518 = vunpack.c.l.b16 %v439
        %v519 = vunpack.c.h.b16 %v439
        %v520 = vunpack.c.l.b16 %v440
        %v521 = vunpack.c.h.b16 %v440
        %v522 = vunpack.c.l.b16 %v441
        %v523 = vunpack.c.h.b16 %v441
        %v524 = vunpack.c.l.b16 %v442
        %v525 = vunpack.c.h.b16 %v442
        %v526 = vunpack.c.l.b16 %v443
        %v527 = vunpack.c.h.b16 %v443
        %v528 = vunpack.c.l.b16 %v444
        %v529 = vunpack.c.h.b16 %v444
        %v530 = vunpack.c.l.b16 %v445
        %v531 = vunpack.c.h.b16 %v445
        %v532 = vunpack.c.l.b16 %v446
        %v533 = vunpack.c.h.b16 %v446
        %v534 = vunpack.c.l.b16 %v447
        %v535 = vunpack.c.h.b16 %v447
        %v536 = vunpack.c.l.b16 %v448
        %v537 = vunpack.c.h.b16 %v448
        %v538 = vunpack.c.l.b16 %v449
        %v539 = vunpack.c.h.b16 %v449
        %v540 = vunpack.c.l.b16 %v450
        %v541 = vunpack.c.h.b16 %v450
        %v542 = vunpack.c.l.b16 %v451
        %v543 = vunpack.c.h.b16 %v451
        %v544 = vunpack.c.l.b16 %v452
        %v545 = vunpack.c.h.b16 %v452
        %v546 = vunpack.c.l.b16 %v453
        %v547 = vunpack.c.h.b16 %v453
        %v548 = vunpack.c.l.b16 %v454
        %v549 = vunpack.c.h.b16 %v454
        %v550 = vunpack.c.l.b16 %v455
        %v551 = vunpack.c.h.b16 %v455
        %v552 = vunpack.c.l.b16 %v456
        %v553 = vunpack.c.h.b16 %v456
        %v554 = vunpack.c.l.b16 %v457
        %v555 = vunpack.c.h.b16 %v457
        %v556 = vunpack.c.l.b16 %v458
        %v557 = vunpack.c.h.b16 %v458
        %v558 = vunpack.c.l.b16 %v459
        %v559 = vunpack.c.h.b16 %v459
        %v560 = vunpack.c.l.b16 %v460
        %v561 = vunpack.c.h.b16 %v460
        %v562 = vunpack.c.l.b16 %v461
        %v563 = vunpack.c.h.b16 %v461
        %v564 = vunpack.c.l.b16 %v462
        %v565 = vunpack.c.h.b16 %v462
        %v566 = vpack.c.b16 %v504, %v502
        %v567 = vpack.c.b16 %v505, %v503
        %v568 = vpack.c.b16 %v508, %v506
        %v569 = vpack.c.b16 %v509, %v507
        %v570 = vpack.c.b16 %v512, %v510
        %v571 = vpack.c.b16 %v513, %v511
        %v572 = vpack.c.b16 %v516, %v514
        %v573 = vpack.c.b16 %v517, %v515
        %v574 = vpack.c.b16 %v520, %v518
        %v575 = vpack.c.b16 %v521, %v519
        %v576 = vpack.c.b16 %v524, %v522
        %v577 = vpack.c.b16 %v525, %v523
        %v578 = vpack.c.b16 %v528, %v526
        %v579 = vpack.c.b16 %v529, %v527
        %v580 = vpack.c.b16 %v532, %v530
        %v581 = vpack.c.b16 %v533, %v531
        %v582 = vpack.c.b16 %v536, %v534
        %v583 = vpack.c.b16 %v537, %v535
        %v584 = vpack.c.b16 %v540, %v538
        %v585 = vpack.c.b16 %v541, %v539
        %v586 = vpack.c.b16 %v544, %v542
        %v587 = vpack.c.b16 %v545, %v543
        %v588 = vpack.c.b16 %v548, %v546
        %v589 = vpack.c.b16 %v549, %v547
        %v590 = vpack.c.b16 %v552, %v550
        %v591 = vpack.c.b16 %v553, %v551
        %v592 = vpack.c.b16 %v556, %v554
        %v593 = vpack.c.b16 %v557, %v555
        %v594 = vpack.c.b16 %v560, %v558
        %v595 = vpack.c.b16 %v561, %v559
        %v596 = vpack.c.b16 %v564, %v562
        %v597 = vpack.c.b16 %v565, %v563
        %630 = vmatprep.subr.bf16.mxu0 %v567
        %631 = vmatpush1.bf16.msra.mxu0 %v566
        %632 = vmatprep.subr.bf16.mxu0 %v569
        %633 = vmatpush1.bf16.msra.mxu0 %v568
        %634 = vmatprep.subr.bf16.mxu0 %v571
        %635 = vmatpush1.bf16.msra.mxu0 %v570
        %636 = vmatprep.subr.bf16.mxu0 %v573
        %637 = vmatpush1.bf16.msra.mxu0 %v572
        %638 = vmatprep.subr.bf16.mxu0 %v575
        %639 = vmatpush1.bf16.msra.mxu0 %v574
        %640 = vmatprep.subr.bf16.mxu0 %v577
        %641 = vmatpush1.bf16.msra.mxu0 %v576
        %642 = vmatprep.subr.bf16.mxu0 %v579
        %643 = vmatpush1.bf16.msra.mxu0 %v578
        %644 = vmatprep.subr.bf16.mxu0 %v581
        %645 = vmatpush1.bf16.msra.mxu0 %v580
        %646 = vmatprep.subr.bf16.mxu0 %v583
        %647 = vmatpush1.bf16.msra.mxu0 %v582
        %648 = vmatprep.subr.bf16.mxu0 %v585
        %649 = vmatpush1.bf16.msra.mxu0 %v584
        %650 = vmatprep.subr.bf16.mxu0 %v587
        %651 = vmatpush1.bf16.msra.mxu0 %v586
        %652 = vmatprep.subr.bf16.mxu0 %v589
        %653 = vmatpush1.bf16.msra.mxu0 %v588
        %654 = vmatprep.subr.bf16.mxu0 %v591
        %655 = vmatpush1.bf16.msra.mxu0 %v590
        %656 = vmatprep.subr.bf16.mxu0 %v593
        %657 = vmatpush1.bf16.msra.mxu0 %v592
        %658 = vmatprep.subr.bf16.mxu0 %v595
        %659 = vmatpush1.bf16.msra.mxu0 %v594
        %660 = vmatprep.subr.bf16.mxu0 %v597
        %661 = vmatpush1.bf16.msra.mxu0 %v596
        %662 = vmatprep.mubr.bf16.mxu0 %v467
        %663 = vmatmul.mubr.bf16.gmra.mrb[0].mxu0 %v466
        %v664 = vpop.f32.mrb[0].mxu0
        %v665 = vadd.f32 0.0, %v664
        %v666 = vpop.f32.mrb[0].mxu0
        %v667 = vadd.f32 0.0, %v666
        %v668 = vpop.f32.mrb[0].mxu0
        %v669 = vpop.f32.mrb[0].mxu0
        %670 = vdwg.mxu0
        %v671 = vadd.f32 %v428, %v665
        %v672 = vadd.f32 %v429, %v667
        %673 = vst [vmem:[#allocation2] sm:$0xff] %v671
        %674 = vst [vmem:[#allocation2 + $0x8] sm:$0xff] %v672
        %p675 = scmp.eq.s32.totalorder %s21, 17
        // Predicated region
        $region75: #{discriminator_forward.27} parent=65 // pred_check
          %p676 = pneg %p675
        $region76: #{discriminator_forward.27} parent=65 // pred_check_branch
          %678 = sbr.rel (%p676) target = $region78
        $region77: #{discriminator_forward.27} parent=65 // pred_region
          %v679 = vld [vmem:[#allocation2] sm:$0xff]
          %v680 = vld [vmem:[#allocation2 + $0x8] sm:$0xff]
          %v681 = vld [vmem:[%s410] sm:$0x3]
          %v683 = vlaneseq
          %v684 = vshrl.u32 %v683, 7
          %v685 = vsub.s32 0, %v684
          %v686 = vrot.slane %v681, %v685
          %v687 = vlaneseq
          %v688 = vshrl.u32 %v687, 7
          %v689 = vsub.s32 1, %v688
          %v690 = vrot.slane %v681, %v689
          %v693 = vadd.f32 %v679, %v686
          %v694 = vadd.f32 %v680, %v690
          %695 = vst [vmem:[%s420] sm:$0xff] %v693
          %696 = vst [vmem:[%s420 + $0x8] sm:$0xff] %v694
        $region78: #{discriminator_forward.27} parent=65 // pred_fallthru
          _
        %s697 = smul.u32 2, %s20
        %p698 = scmp.lt.s32.totalorder %s19, 0
        %s699 = scalar_select %p698, %s19, 0
        %p700 = scmp.lt.s32.totalorder %s697, 7
        %s701 = scalar_select %p700, %s697, 7
        %s702 = smul.addr %s699, 8
        %s703 = sadd.s32 %s701, %s702
        %s704 = smul.addr %s703, 8
        %s705 = scalar_lea.vmem %s3, %s704
        // Predicated region
        $region79: #{discriminator_forward.27} parent=65 // pred_check
          %p706 = pneg %p135
        $region80: #{discriminator_forward.27} parent=65 // pred_check_branch
          %708 = sbr.rel (%p706) target = $region82
        $region81: #{discriminator_forward.27} parent=65 // pred_region
          %s709 = smul.u32 2, %s20
        $region82: #{discriminator_forward.27} parent=65 // pred_fallthru
          _
      $region66: #{discriminator_forward.27} parent=5 // pred_fallthru
        _
      %p710 = scmp.le.s32.totalorder 2, %s9
      // Predicated region
      $region83: #{discriminator_forward.27} parent=5 // pred_check
        %p711 = pneg %p710
      $region84: #{discriminator_forward.27} parent=5 // pred_check_branch
        %713 = sbr.rel (%p711) target = $region86
      $region85: #{discriminator_forward.27} parent=5 // pred_region
        %s714 = ssub.s32 %s9, 2
        // Predicated region
        $region87: #{discriminator_forward.27} parent=85 // pred_check
          %p715 = pneg %p141
        $region88: #{discriminator_forward.27} parent=85 // pred_check_branch
          %717 = sbr.rel (%p715) target = $region90
        $region89: #{discriminator_forward.27} parent=85 // pred_region
          %s718 = smul.u32 2, %s23
          %p719 = scmp.lt.s32.totalorder %s22, 0
          %s720 = scalar_select %p719, %s22, 0
          %p721 = scmp.lt.s32.totalorder %s718, 7
          %s722 = scalar_select %p721, %s718, 7
          %s723 = smul.addr %s720, 8
          %s724 = sadd.s32 %s722, %s723
          %s725 = smul.addr %s724, 8
          %s726 = scalar_lea.vmem %s3, %s725
        $region90: #{discriminator_forward.27} parent=85 // pred_fallthru
          _
      $region86: #{discriminator_forward.27} parent=5 // pred_fallthru
        _
    $region6: #{discriminator_forward.27} parent=1 // loop_footer
      %s13 = sadd.s32 1, %s9
    $region7: #{discriminator_forward.27} parent=1 // loop_footer_branch
      %8 = sbr.rel target = $region3
    $region8: #{discriminator_forward.27} parent=1 // loop_exit
      _

// kernel: discriminator_forward.28
$region0: #{discriminator_forward.28}
  #allocation0 [shape = 'u32[]', space=smem, size = 0x4, offset = 0x4, fixed_abs, tag = 'smem constant byte address 0x4 - core index']
  #allocation1 [shape = 'u32[144,128]{1,0:T(1,128)}', space=vmem, size = 0x12000, scoped, tag = 'internal scratch']
  #allocation2 [shape = 'f32[1,1024]{1,0:T(1,128)}', space=vmem, size = 0x1000, scoped, tag = 'scratch operand']
  #allocation3 [shape = 'f32[1,1024]{1,0:T(1,128)}', space=vmem, size = 0x1000, scoped, tag = 'scratch operand']
  %s0 = inlined_call_operand.vmem [shape: f32[8,1024], index: 0, kind: input, shape index: {}]
  %s1 = inlined_call_operand.vmem [shape: f32[2,1024], index: 1, kind: output, shape index: {}]
  %s2 = sld [smem:[#allocation0]]
  $region22: #{discriminator_forward.28} parent=0
    _
  %s4 = ssub.s32 1, %s2
  %s5 = scalar_select 0, %s4, %s2
  // Predicated region
  $region2: #{discriminator_forward.28} parent=0 // pred_check
    _
  $region3: #{discriminator_forward.28} parent=0 // pred_check_branch
    %7 = sbr.rel (0) target = $region5
  $region4: #{discriminator_forward.28} parent=0 // pred_region
    _
  $region5: #{discriminator_forward.28} parent=0 // pred_fallthru
    _
  %p8 = scmp.eq.s32.totalorder 0, 0
  // Predicated region
  $region6: #{discriminator_forward.28} parent=0 // pred_check
    %p9 = pneg %p8
  $region7: #{discriminator_forward.28} parent=0 // pred_check_branch
    %11 = sbr.rel (%p9) target = $region9
  $region8: #{discriminator_forward.28} parent=0 // pred_region
    %12 = vst [vmem:[#allocation2] sm:$0xff] 0.0
    %13 = vst [vmem:[#allocation3] sm:$0xff] 0.0
  $region9: #{discriminator_forward.28} parent=0 // pred_fallthru
    _
  %v14 = vld [vmem:[%s0] sm:$0xff]
  %v15 = vld [vmem:[%s0 + $0x8] sm:$0xff]
  %v16 = vld [vmem:[%s0 + $0x10] sm:$0xff]
  %v17 = vld [vmem:[%s0 + $0x18] sm:$0xff]
  %v18 = vld [vmem:[%s0 + $0x20] sm:$0xff]
  %v19 = vld [vmem:[%s0 + $0x28] sm:$0xff]
  %v20 = vld [vmem:[%s0 + $0x30] sm:$0xff]
  %v21 = vld [vmem:[%s0 + $0x38] sm:$0xff]
  %v22 = vlaneseq
  %v23 = vshrl.u32 %v22, 7
  %s24 = smul.u32 0, 8
  %v25 = vstv %s24
  %v26 = vadd.s32 %v23, %v25
  %vm27 = vcmp.lt.s32.totalorder %v26, 2
  %v28 = vsel %vm27, %v14, 0.0
  %v29 = vsel %vm27, %v15, 0.0
  %v30 = vsel %vm27, %v16, 0.0
  %v31 = vsel %vm27, %v17, 0.0
  %v32 = vsel %vm27, %v18, 0.0
  %v33 = vsel %vm27, %v19, 0.0
  %v34 = vsel %vm27, %v20, 0.0
  %v35 = vsel %vm27, %v21, 0.0
  %v36 = vld [vmem:[#allocation2] sm:$0xff]
  %v37 = vrot.slane %v28, 4
  %v38 = vadd.f32 %v28, %v37
  %v39 = vrot.slane %v38, 2
  %v40 = vadd.f32 %v38, %v39
  %v41 = vrot.slane %v40, 1
  %v42 = vadd.f32 %v40, %v41
  %v43 = vrot.slane %v29, 4
  %v44 = vadd.f32 %v29, %v43
  %v45 = vrot.slane %v44, 2
  %v46 = vadd.f32 %v44, %v45
  %v47 = vrot.slane %v46, 1
  %v48 = vadd.f32 %v46, %v47
  %v49 = vrot.slane %v30, 4
  %v50 = vadd.f32 %v30, %v49
  %v51 = vrot.slane %v50, 2
  %v52 = vadd.f32 %v50, %v51
  %v53 = vrot.slane %v52, 1
  %v54 = vadd.f32 %v52, %v53
  %v55 = vrot.slane %v31, 4
  %v56 = vadd.f32 %v31, %v55
  %v57 = vrot.slane %v56, 2
  %v58 = vadd.f32 %v56, %v57
  %v59 = vrot.slane %v58, 1
  %v60 = vadd.f32 %v58, %v59
  %v61 = vrot.slane %v32, 4
  %v62 = vadd.f32 %v32, %v61
  %v63 = vrot.slane %v62, 2
  %v64 = vadd.f32 %v62, %v63
  %v65 = vrot.slane %v64, 1
  %v66 = vadd.f32 %v64, %v65
  %v67 = vrot.slane %v33, 4
  %v68 = vadd.f32 %v33, %v67
  %v69 = vrot.slane %v68, 2
  %v70 = vadd.f32 %v68, %v69
  %v71 = vrot.slane %v70, 1
  %v72 = vadd.f32 %v70, %v71
  %v73 = vrot.slane %v34, 4
  %v74 = vadd.f32 %v34, %v73
  %v75 = vrot.slane %v74, 2
  %v76 = vadd.f32 %v74, %v75
  %v77 = vrot.slane %v76, 1
  %v78 = vadd.f32 %v76, %v77
  %v79 = vrot.slane %v35, 4
  %v80 = vadd.f32 %v35, %v79
  %v81 = vrot.slane %v80, 2
  %v82 = vadd.f32 %v80, %v81
  %v83 = vrot.slane %v82, 1
  %v84 = vadd.f32 %v82, %v83
  %v93 = vcombine.low %v42, %v48
  %v94 = vcombine.low %v54, %v60
  %v95 = vcombine.low %v66, %v72
  %v96 = vcombine.low %v78, %v84
  %v98 = vunpack.c.l.s4 1966171168
  %v99 = vunpack.c.0.s8 %v98
  %v100 = vlaneseq
  %v101 = vshrl.u32 %v100, 7
  %v102 = vsub.s32 %v99, %v101
  %v103 = vrot.slane %v93, %v102
  %v105 = vunpack.c.l.s4 1966171168
  %v106 = vunpack.c.0.s8 %v105
  %v107 = vlaneseq
  %v108 = vshrl.u32 %v107, 7
  %v109 = vsub.s32 %v106, %v108
  %v110 = vrot.slane %v94, %v109
  %v112 = vunpack.c.l.s4 1966171168
  %v113 = vunpack.c.0.s8 %v112
  %v114 = vlaneseq
  %v115 = vshrl.u32 %v114, 7
  %v116 = vsub.s32 %v113, %v115
  %v117 = vrot.slane %v95, %v116
  %v119 = vunpack.c.l.s4 1966171168
  %v120 = vunpack.c.0.s8 %v119
  %v121 = vlaneseq
  %v122 = vshrl.u32 %v121, 7
  %v123 = vsub.s32 %v120, %v122
  %v124 = vrot.slane %v96, %v123
  %v125 = vcombine.low %v103, %v110
  %v126 = vcombine.low %v117, %v124
  %v128 = vunpack.c.l.s4 1966171168
  %v129 = vunpack.c.0.s8 %v128
  %v130 = vlaneseq
  %v131 = vshrl.u32 %v130, 7
  %v132 = vsub.s32 %v129, %v131
  %v133 = vrot.slane %v125, %v132
  %v135 = vunpack.c.l.s4 1966171168
  %v136 = vunpack.c.0.s8 %v135
  %v137 = vlaneseq
  %v138 = vshrl.u32 %v137, 7
  %v139 = vsub.s32 %v136, %v138
  %v140 = vrot.slane %v126, %v139
  %v141 = vcombine.low %v133, %v140
  %v143 = vadd.f32 %v36, %v141
  %144 = vst [vmem:[#allocation2] sm:$0xff] %v143
  %v145 = vld [vmem:[#allocation3] sm:$0xff]
  %v146 = vmul.f32 %v28, %v28
  %v147 = vmul.f32 %v29, %v29
  %v148 = vmul.f32 %v30, %v30
  %v149 = vmul.f32 %v31, %v31
  %v150 = vmul.f32 %v32, %v32
  %v151 = vmul.f32 %v33, %v33
  %v152 = vmul.f32 %v34, %v34
  %v153 = vmul.f32 %v35, %v35
  %v154 = vrot.slane %v146, 4
  %v155 = vadd.f32 %v146, %v154
  %v156 = vrot.slane %v155, 2
  %v157 = vadd.f32 %v155, %v156
  %v158 = vrot.slane %v157, 1
  %v159 = vadd.f32 %v157, %v158
  %v160 = vrot.slane %v147, 4
  %v161 = vadd.f32 %v147, %v160
  %v162 = vrot.slane %v161, 2
  %v163 = vadd.f32 %v161, %v162
  %v164 = vrot.slane %v163, 1
  %v165 = vadd.f32 %v163, %v164
  %v166 = vrot.slane %v148, 4
  %v167 = vadd.f32 %v148, %v166
  %v168 = vrot.slane %v167, 2
  %v169 = vadd.f32 %v167, %v168
  %v170 = vrot.slane %v169, 1
  %v171 = vadd.f32 %v169, %v170
  %v172 = vrot.slane %v149, 4
  %v173 = vadd.f32 %v149, %v172
  %v174 = vrot.slane %v173, 2
  %v175 = vadd.f32 %v173, %v174
  %v176 = vrot.slane %v175, 1
  %v177 = vadd.f32 %v175, %v176
  %v178 = vrot.slane %v150, 4
  %v179 = vadd.f32 %v150, %v178
  %v180 = vrot.slane %v179, 2
  %v181 = vadd.f32 %v179, %v180
  %v182 = vrot.slane %v181, 1
  %v183 = vadd.f32 %v181, %v182
  %v184 = vrot.slane %v151, 4
  %v185 = vadd.f32 %v151, %v184
  %v186 = vrot.slane %v185, 2
  %v187 = vadd.f32 %v185, %v186
  %v188 = vrot.slane %v187, 1
  %v189 = vadd.f32 %v187, %v188
  %v190 = vrot.slane %v152, 4
  %v191 = vadd.f32 %v152, %v190
  %v192 = vrot.slane %v191, 2
  %v193 = vadd.f32 %v191, %v192
  %v194 = vrot.slane %v193, 1
  %v195 = vadd.f32 %v193, %v194
  %v196 = vrot.slane %v153, 4
  %v197 = vadd.f32 %v153, %v196
  %v198 = vrot.slane %v197, 2
  %v199 = vadd.f32 %v197, %v198
  %v200 = vrot.slane %v199, 1
  %v201 = vadd.f32 %v199, %v200
  %v210 = vcombine.low %v159, %v165
  %v211 = vcombine.low %v171, %v177
  %v212 = vcombine.low %v183, %v189
  %v213 = vcombine.low %v195, %v201
  %v215 = vunpack.c.l.s4 1966171168
  %v216 = vunpack.c.0.s8 %v215
  %v217 = vlaneseq
  %v218 = vshrl.u32 %v217, 7
  %v219 = vsub.s32 %v216, %v218
  %v220 = vrot.slane %v210, %v219
  %v222 = vunpack.c.l.s4 1966171168
  %v223 = vunpack.c.0.s8 %v222
  %v224 = vlaneseq
  %v225 = vshrl.u32 %v224, 7
  %v226 = vsub.s32 %v223, %v225
  %v227 = vrot.slane %v211, %v226
  %v229 = vunpack.c.l.s4 1966171168
  %v230 = vunpack.c.0.s8 %v229
  %v231 = vlaneseq
  %v232 = vshrl.u32 %v231, 7
  %v233 = vsub.s32 %v230, %v232
  %v234 = vrot.slane %v212, %v233
  %v236 = vunpack.c.l.s4 1966171168
  %v237 = vunpack.c.0.s8 %v236
  %v238 = vlaneseq
  %v239 = vshrl.u32 %v238, 7
  %v240 = vsub.s32 %v237, %v239
  %v241 = vrot.slane %v213, %v240
  %v242 = vcombine.low %v220, %v227
  %v243 = vcombine.low %v234, %v241
  %v245 = vunpack.c.l.s4 1966171168
  %v246 = vunpack.c.0.s8 %v245
  %v247 = vlaneseq
  %v248 = vshrl.u32 %v247, 7
  %v249 = vsub.s32 %v246, %v248
  %v250 = vrot.slane %v242, %v249
  %v252 = vunpack.c.l.s4 1966171168
  %v253 = vunpack.c.0.s8 %v252
  %v254 = vlaneseq
  %v255 = vshrl.u32 %v254, 7
  %v256 = vsub.s32 %v253, %v255
  %v257 = vrot.slane %v243, %v256
  %v258 = vcombine.low %v250, %v257
  %v260 = vadd.f32 %v145, %v258
  %261 = vst [vmem:[#allocation3] sm:$0xff] %v260
  // Predicated region
  $region10: #{discriminator_forward.28} parent=0 // pred_check
    %p262 = pneg %p8
  $region11: #{discriminator_forward.28} parent=0 // pred_check_branch
    %264 = sbr.rel (%p262) target = $region13
  $region12: #{discriminator_forward.28} parent=0 // pred_region
    %v265 = vld [vmem:[#allocation2] sm:$0xff]
    %266 = vst [vmem:[%s1] ss:$2 sm:$0xff] %v265
    %v267 = vld [vmem:[#allocation3] sm:$0xff]
    %s268 = scalar_lea.vmem %s1, 1
    %269 = vst [vmem:[%s268] ss:$2 sm:$0xff] %v267
  $region13: #{discriminator_forward.28} parent=0 // pred_fallthru
    _
  // Predicated region
  $region14: #{discriminator_forward.28} parent=0 // pred_check
    _
  $region15: #{discriminator_forward.28} parent=0 // pred_check_branch
    %271 = sbr.rel (0) target = $region17
  $region16: #{discriminator_forward.28} parent=0 // pred_region
    _
  $region17: #{discriminator_forward.28} parent=0 // pred_fallthru
    _
  // Predicated region
  $region18: #{discriminator_forward.28} parent=0 // pred_check
    _
  $region19: #{discriminator_forward.28} parent=0 // pred_check_branch
    %273 = sbr.rel (0) target = $region21
  $region20: #{discriminator_forward.28} parent=0 // pred_region
    _
  $region21: #{discriminator_forward.28} parent=0 // pred_fallthru
    _

// kernel: discriminator_forward.29
$region0: #{discriminator_forward.29}
  #allocation0 [shape = 'u32[]', space=smem, size = 0x4, offset = 0x4, fixed_abs, tag = 'smem constant byte address 0x4 - core index']
  #allocation1 [shape = 'u32[144,128]{1,0:T(1,128)}', space=vmem, size = 0x12000, scoped, tag = 'internal scratch']
  %s0 = inlined_call_operand.vmem [shape: f32[8,1024], index: 0, kind: input, shape index: {}]
  %s1 = inlined_call_operand.vmem [shape: f32[2,1024], index: 1, kind: input, shape index: {}]
  %s2 = inlined_call_operand.vmem [shape: f32[1,1024], index: 2, kind: input, shape index: {}]
  %s3 = inlined_call_operand.vmem [shape: f32[1,1024], index: 3, kind: input, shape index: {}]
  %s4 = inlined_call_operand.vmem [shape: f32[8,1024], index: 4, kind: output, shape index: {}]
  %s5 = sld [smem:[#allocation0]]
  $region26: #{discriminator_forward.29} parent=0
    _
  %s7 = ssub.s32 1, %s5
  %s8 = scalar_select 0, %s7, %s5
  // Predicated region
  $region2: #{discriminator_forward.29} parent=0 // pred_check
    _
  $region3: #{discriminator_forward.29} parent=0 // pred_check_branch
    %10 = sbr.rel (0) target = $region5
  $region4: #{discriminator_forward.29} parent=0 // pred_region
    _
  $region5: #{discriminator_forward.29} parent=0 // pred_fallthru
    _
  // Predicated region
  $region6: #{discriminator_forward.29} parent=0 // pred_check
    _
  $region7: #{discriminator_forward.29} parent=0 // pred_check_branch
    %12 = sbr.rel (0) target = $region9
  $region8: #{discriminator_forward.29} parent=0 // pred_region
    _
  $region9: #{discriminator_forward.29} parent=0 // pred_fallthru
    _
  // Predicated region
  $region10: #{discriminator_forward.29} parent=0 // pred_check
    _
  $region11: #{discriminator_forward.29} parent=0 // pred_check_branch
    %14 = sbr.rel (0) target = $region13
  $region12: #{discriminator_forward.29} parent=0 // pred_region
    _
  $region13: #{discriminator_forward.29} parent=0 // pred_fallthru
    _
  // Predicated region
  $region14: #{discriminator_forward.29} parent=0 // pred_check
    _
  $region15: #{discriminator_forward.29} parent=0 // pred_check_branch
    %16 = sbr.rel (0) target = $region17
  $region16: #{discriminator_forward.29} parent=0 // pred_region
    _
  $region17: #{discriminator_forward.29} parent=0 // pred_fallthru
    _
  %v17 = vld [vmem:[%s0] sm:$0xff]
  %v18 = vld [vmem:[%s0 + $0x8] sm:$0xff]
  %v19 = vld [vmem:[%s0 + $0x10] sm:$0xff]
  %v20 = vld [vmem:[%s0 + $0x18] sm:$0xff]
  %v21 = vld [vmem:[%s0 + $0x20] sm:$0xff]
  %v22 = vld [vmem:[%s0 + $0x28] sm:$0xff]
  %v23 = vld [vmem:[%s0 + $0x30] sm:$0xff]
  %v24 = vld [vmem:[%s0 + $0x38] sm:$0xff]
  %v25 = vld [vmem:[%s1] ss:$2 sm:$0xff]
  %v26 = vmul.f32 %v25, 0.5
  %s27 = scalar_lea.vmem %s1, 1
  %v28 = vld [vmem:[%s27] ss:$2 sm:$0xff]
  %v29 = vmul.f32 %v28, 0.5
  %v30 = vmul.f32 %v26, %v26
  %v31 = vsub.f32 %v29, %v30
  %v32 = vld [vmem:[%s2] sm:$0xff]
  %v33 = vadd.f32 %v31, 1e-05
  %v34 = vrsqrt.pop %v33
  %v35 = vmul.f32 %v32, %v34
  %v36 = vld [vmem:[%s3] sm:$0xff]
  %v37 = vmul.f32 %v26, %v35
  %v38 = vsub.f32 %v36, %v37
  %v40 = vlaneseq
  %v41 = vshrl.u32 %v40, 7
  %v42 = vsub.s32 0, %v41
  %v43 = vrot.slane %v35, %v42
  %v44 = vlaneseq
  %v45 = vshrl.u32 %v44, 7
  %v46 = vsub.s32 1, %v45
  %v47 = vrot.slane %v35, %v46
  %v48 = vlaneseq
  %v49 = vshrl.u32 %v48, 7
  %v50 = vsub.s32 2, %v49
  %v51 = vrot.slane %v35, %v50
  %v52 = vlaneseq
  %v53 = vshrl.u32 %v52, 7
  %v54 = vsub.s32 3, %v53
  %v55 = vrot.slane %v35, %v54
  %v56 = vlaneseq
  %v57 = vshrl.u32 %v56, 7
  %v58 = vsub.s32 4, %v57
  %v59 = vrot.slane %v35, %v58
  %v60 = vlaneseq
  %v61 = vshrl.u32 %v60, 7
  %v62 = vsub.s32 5, %v61
  %v63 = vrot.slane %v35, %v62
  %v64 = vlaneseq
  %v65 = vshrl.u32 %v64, 7
  %v66 = vsub.s32 6, %v65
  %v67 = vrot.slane %v35, %v66
  %v68 = vlaneseq
  %v69 = vshrl.u32 %v68, 7
  %v70 = vsub.s32 7, %v69
  %v71 = vrot.slane %v35, %v70
  %v80 = vmul.f32 %v17, %v43
  %v81 = vmul.f32 %v18, %v47
  %v82 = vmul.f32 %v19, %v51
  %v83 = vmul.f32 %v20, %v55
  %v84 = vmul.f32 %v21, %v59
  %v85 = vmul.f32 %v22, %v63
  %v86 = vmul.f32 %v23, %v67
  %v87 = vmul.f32 %v24, %v71
  %v89 = vlaneseq
  %v90 = vshrl.u32 %v89, 7
  %v91 = vsub.s32 0, %v90
  %v92 = vrot.slane %v38, %v91
  %v93 = vlaneseq
  %v94 = vshrl.u32 %v93, 7
  %v95 = vsub.s32 1, %v94
  %v96 = vrot.slane %v38, %v95
  %v97 = vlaneseq
  %v98 = vshrl.u32 %v97, 7
  %v99 = vsub.s32 2, %v98
  %v100 = vrot.slane %v38, %v99
  %v101 = vlaneseq
  %v102 = vshrl.u32 %v101, 7
  %v103 = vsub.s32 3, %v102
  %v104 = vrot.slane %v38, %v103
  %v105 = vlaneseq
  %v106 = vshrl.u32 %v105, 7
  %v107 = vsub.s32 4, %v106
  %v108 = vrot.slane %v38, %v107
  %v109 = vlaneseq
  %v110 = vshrl.u32 %v109, 7
  %v111 = vsub.s32 5, %v110
  %v112 = vrot.slane %v38, %v111
  %v113 = vlaneseq
  %v114 = vshrl.u32 %v113, 7
  %v115 = vsub.s32 6, %v114
  %v116 = vrot.slane %v38, %v115
  %v117 = vlaneseq
  %v118 = vshrl.u32 %v117, 7
  %v119 = vsub.s32 7, %v118
  %v120 = vrot.slane %v38, %v119
  %v129 = vadd.f32 %v80, %v92
  %v130 = vadd.f32 %v81, %v96
  %v131 = vadd.f32 %v82, %v100
  %v132 = vadd.f32 %v83, %v104
  %v133 = vadd.f32 %v84, %v108
  %v134 = vadd.f32 %v85, %v112
  %v135 = vadd.f32 %v86, %v116
  %v136 = vadd.f32 %v87, %v120
  %vm137 = vcmp.gt.f32.partialorder %v129, 0.0
  %vm138 = vcmp.gt.f32.partialorder %v130, 0.0
  %vm139 = vcmp.gt.f32.partialorder %v131, 0.0
  %vm140 = vcmp.gt.f32.partialorder %v132, 0.0
  %vm141 = vcmp.gt.f32.partialorder %v133, 0.0
  %vm142 = vcmp.gt.f32.partialorder %v134, 0.0
  %vm143 = vcmp.gt.f32.partialorder %v135, 0.0
  %vm144 = vcmp.gt.f32.partialorder %v136, 0.0
  %v145 = vmul.f32 %v129, 0.2
  %v146 = vmul.f32 %v130, 0.2
  %v147 = vmul.f32 %v131, 0.2
  %v148 = vmul.f32 %v132, 0.2
  %v149 = vmul.f32 %v133, 0.2
  %v150 = vmul.f32 %v134, 0.2
  %v151 = vmul.f32 %v135, 0.2
  %v152 = vmul.f32 %v136, 0.2
  %v153 = vsel %vm137, %v129, %v145
  %v154 = vsel %vm138, %v130, %v146
  %v155 = vsel %vm139, %v131, %v147
  %v156 = vsel %vm140, %v132, %v148
  %v157 = vsel %vm141, %v133, %v149
  %v158 = vsel %vm142, %v134, %v150
  %v159 = vsel %vm143, %v135, %v151
  %v160 = vsel %vm144, %v136, %v152
  %161 = vst [vmem:[%s4] sm:$0xff] %v153
  %162 = vst [vmem:[%s4 + $0x8] sm:$0xff] %v154
  %163 = vst [vmem:[%s4 + $0x10] sm:$0xff] %v155
  %164 = vst [vmem:[%s4 + $0x18] sm:$0xff] %v156
  %165 = vst [vmem:[%s4 + $0x20] sm:$0xff] %v157
  %166 = vst [vmem:[%s4 + $0x28] sm:$0xff] %v158
  %167 = vst [vmem:[%s4 + $0x30] sm:$0xff] %v159
  %168 = vst [vmem:[%s4 + $0x38] sm:$0xff] %v160
  // Predicated region
  $region18: #{discriminator_forward.29} parent=0 // pred_check
    _
  $region19: #{discriminator_forward.29} parent=0 // pred_check_branch
    %170 = sbr.rel (0) target = $region21
  $region20: #{discriminator_forward.29} parent=0 // pred_region
    _
  $region21: #{discriminator_forward.29} parent=0 // pred_fallthru
    _
  // Predicated region
  $region22: #{discriminator_forward.29} parent=0 // pred_check
    _
  $region23: #{discriminator_forward.29} parent=0 // pred_check_branch
    %172 = sbr.rel (0) target = $region25
  $region24: #{discriminator_forward.29} parent=0 // pred_region
    _
  $region25: #{discriminator_forward.29} parent=0 // pred_fallthru
    _

// kernel: discriminator_forward.30
$region0: #{discriminator_forward.30}
  #allocation0 [shape = 'u32[]', space=smem, size = 0x4, offset = 0x4, fixed_abs, tag = 'smem constant byte address 0x4 - core index']
  #allocation1 [shape = 'u32[144,128]{1,0:T(1,128)}', space=vmem, size = 0x12000, scoped, tag = 'internal scratch']
  #allocation2 [shape = 'f32[8,256]{1,0:T(8,128)}', space=vmem, size = 0x2000, scoped, tag = 'scratch operand']
  %s0 = inlined_call_operand.vmem [shape: bf16[8,9216], index: 0, kind: input, shape index: {}]
  %s1 = inlined_call_operand.hbm [shape: bf16[9216,2048], index: 1, kind: input, shape index: {}]
  %s2 = inlined_call_operand.vmem [shape: f32[1,2048], index: 2, kind: input, shape index: {}]
  %s3 = inlined_call_operand.vmem [shape: f32[8,2048], index: 3, kind: output, shape index: {}]
  %s4 = sld [smem:[#allocation0]]
  $region57: #{discriminator_forward.30} parent=0
    _
  %s6 = ssub.s32 1, %s4
  %s7 = scalar_select 0, %s6, %s4
  $region1: #{discriminator_forward.30} parent=0
    #allocation3 [shape = 'u8[262144]{0}', space=vmem, size = 0x40000, scoped, tag = 'input window, operand 1']
    #allocation4 [shape = 's32[2]{0}', space=sflag, size = 0x8, scoped, tag = 'scoped memory for discriminator_forward.30']
    %8 = vsyncpa [#allocation4], 0
    %s9 = scalar_lea.sflag [#allocation4], 1
    %10 = vsyncpa %s9, 0
    loop: start=0, step=1, limit=290
    $region2: #{discriminator_forward.30} parent=1 // loop_pre_header
      _
    $region3: #{discriminator_forward.30} parent=1 // loop_header
      %s12 = sphi 0, %s16
      %p13 = scmp.ge.s32.totalorder %s12, 290
      %s19 = sphi 0, %s38
      %s20 = sphi 0, %s34
      %s21 = sphi 0, %s30
      %s22 = sphi 0, %s19
      %s23 = sphi 0, %s20
      %s24 = sphi 0, %s21
      %s25 = sphi 0, %s22
      %s26 = sphi 0, %s23
      %s27 = sphi 0, %s24
      %s43 = sphi 0, %s45
      %s46 = sphi 0, %s43
      %s47 = sphi 0, %s46
      %s63 = sphi 0, %s47
      %s71 = sphi 0, %s73
      %s74 = sphi 0, %s71
      %s75 = sphi 0, %s74
      %s91 = sphi 0, %s75
      %s97 = sphi 0, %s99
      %s100 = sphi 0, %s97
      %s101 = sphi 0, %s100
      %s117 = sphi 0, %s101
      %s125 = sphi 0, %s127
      %s128 = sphi 0, %s125
      %s129 = sphi 0, %s128
      %s145 = sphi 0, %s129
    $region4: #{discriminator_forward.30} parent=1 // loop_header_branch
      %15 = sbr.rel (%p13) target = $region8
    $region5: #{discriminator_forward.30} parent=1 // loop_body
      %s17 = ssub.s32 %s12, 1
      %s18 = ssub.s32 %s12, 2
      %s28 = sadd.s32 1, %s21
      %p29 = scmp.ge.s32.totalorder %s28, 36
      %s30 = scalar_select %p29, 0, %s28
      %s31 = sadd.s32 1, %s20
      %s32 = scalar_select %p29, %s31, %s20
      %p33 = scmp.ge.s32.totalorder %s32, 8
      %s34 = scalar_select %p33, 0, %s32
      %s35 = sadd.s32 1, %s19
      %s36 = scalar_select %p33, %s35, %s19
      %p37 = scmp.ge.s32.totalorder %s36, 1
      %s38 = scalar_select %p37, 0, %s36
      %s39 = ssub.s32 %s19, %s38
      %s40 = ssub.s32 %s21, %s30
      %s41 = sor.u32 %s39, %s40
      %p42 = scmp.eq.s32.totalorder %s41, 0
      %s44 = sadd.s32 %s43, 1
      %s45 = scalar_select %p42, %s43, %s44
      %p48 = pneg %p42
      %p49 = scmp.eq.s32.totalorder %s12, 287
      %p50 = por %p48, %p49
      %p51 = scmp.ne.s32.totalorder %s43, %s46
      %p52 = scmp.eq.s32.totalorder %s12, 0
      %p53 = por %p51, %p52
      %p54 = scmp.ne.s32.totalorder %s43, %s46
      %p55 = scmp.eq.s32.totalorder %s17, 287
      %p56 = por %p54, %p55
      %p57 = scmp.ne.s32.totalorder %s46, %s47
      %p58 = scmp.eq.s32.totalorder %s17, 0
      %p59 = por %p57, %p58
      %p60 = scmp.ne.s32.totalorder %s46, %s47
      %p61 = scmp.eq.s32.totalorder %s18, 287
      %p62 = por %p60, %p61
      %p64 = scmp.ne.s32.totalorder %s47, %s63
      %p65 = scmp.eq.s32.totalorder %s18, 0
      %p66 = por %p64, %p65
      %s67 = ssub.s32 %s21, %s30
      %s68 = ssub.s32 %s20, %s34
      %s69 = sor.u32 %s67, %s68
      %p70 = scmp.eq.s32.totalorder %s69, 0
      %s72 = sadd.s32 %s71, 1
      %s73 = scalar_select %p70, %s71, %s72
      %p76 = pneg %p70
      %p77 = scmp.eq.s32.totalorder %s12, 287
      %p78 = por %p76, %p77
      %p79 = scmp.ne.s32.totalorder %s71, %s74
      %p80 = scmp.eq.s32.totalorder %s12, 0
      %p81 = por %p79, %p80
      %p82 = scmp.ne.s32.totalorder %s71, %s74
      %p83 = scmp.eq.s32.totalorder %s17, 287
      %p84 = por %p82, %p83
      %p85 = scmp.ne.s32.totalorder %s74, %s75
      %p86 = scmp.eq.s32.totalorder %s17, 0
      %p87 = por %p85, %p86
      %p88 = scmp.ne.s32.totalorder %s74, %s75
      %p89 = scmp.eq.s32.totalorder %s18, 287
      %p90 = por %p88, %p89
      %p92 = scmp.ne.s32.totalorder %s75, %s91
      %p93 = scmp.eq.s32.totalorder %s18, 0
      %p94 = por %p92, %p93
      %s95 = ssub.s32 %s20, %s34
      %p96 = scmp.eq.s32.totalorder %s95, 0
      %s98 = sadd.s32 %s97, 1
      %s99 = scalar_select %p96, %s97, %s98
      %p102 = pneg %p96
      %p103 = scmp.eq.s32.totalorder %s12, 287
      %p104 = por %p102, %p103
      %p105 = scmp.ne.s32.totalorder %s97, %s100
      %p106 = scmp.eq.s32.totalorder %s12, 0
      %p107 = por %p105, %p106
      %p108 = scmp.ne.s32.totalorder %s97, %s100
      %p109 = scmp.eq.s32.totalorder %s17, 287
      %p110 = por %p108, %p109
      %p111 = scmp.ne.s32.totalorder %s100, %s101
      %p112 = scmp.eq.s32.totalorder %s17, 0
      %p113 = por %p111, %p112
      %p114 = scmp.ne.s32.totalorder %s100, %s101
      %p115 = scmp.eq.s32.totalorder %s18, 287
      %p116 = por %p114, %p115
      %p118 = scmp.ne.s32.totalorder %s101, %s117
      %p119 = scmp.eq.s32.totalorder %s18, 0
      %p120 = por %p118, %p119
      %s121 = ssub.s32 %s19, %s38
      %s122 = ssub.s32 %s20, %s34
      %s123 = sor.u32 %s121, %s122
      %p124 = scmp.eq.s32.totalorder %s123, 0
      %s126 = sadd.s32 %s125, 1
      %s127 = scalar_select %p124, %s125, %s126
      %p130 = pneg %p124
      %p131 = scmp.eq.s32.totalorder %s12, 287
      %p132 = por %p130, %p131
      %p133 = scmp.ne.s32.totalorder %s125, %s128
      %p134 = scmp.eq.s32.totalorder %s12, 0
      %p135 = por %p133, %p134
      %p136 = scmp.ne.s32.totalorder %s125, %s128
      %p137 = scmp.eq.s32.totalorder %s17, 287
      %p138 = por %p136, %p137
      %p139 = scmp.ne.s32.totalorder %s128, %s129
      %p140 = scmp.eq.s32.totalorder %s17, 0
      %p141 = por %p139, %p140
      %p142 = scmp.ne.s32.totalorder %s128, %s129
      %p143 = scmp.eq.s32.totalorder %s18, 287
      %p144 = por %p142, %p143
      %p146 = scmp.ne.s32.totalorder %s129, %s145
      %p147 = scmp.eq.s32.totalorder %s18, 0
      %p148 = por %p146, %p147
      %p149 = scmp.le.s32.totalorder 1, %s12
      %p150 = scmp.lt.s32.totalorder %s12, 289
      %p151 = pnand %p149, %p150
      %p152 = pneg %p151
      // Predicated region
      $region9: #{discriminator_forward.30} parent=5 // pred_check
        _
      $region10: #{discriminator_forward.30} parent=5 // pred_check_branch
        %154 = sbr.rel (%p151) target = $region12
      $region11: #{discriminator_forward.30} parent=5 // pred_region
        %s155 = ssub.s32 %s12, 1
      $region12: #{discriminator_forward.30} parent=5 // pred_fallthru
        _
      %p156 = scmp.lt.s32.totalorder %s12, 288
      // Predicated region
      $region13: #{discriminator_forward.30} parent=5 // pred_check
        %p157 = pneg %p156
      $region14: #{discriminator_forward.30} parent=5 // pred_check_branch
        %159 = sbr.rel (%p157) target = $region16
      $region15: #{discriminator_forward.30} parent=5 // pred_region
        // Predicated region
        $region17: #{discriminator_forward.30} parent=15 // pred_check
          %p160 = pneg %p53
        $region18: #{discriminator_forward.30} parent=15 // pred_check_branch
          %162 = sbr.rel (%p160) target = $region20
        $region19: #{discriminator_forward.30} parent=15 // pred_region
          %s163 = smul.u32 2, %s21
          %p164 = scmp.lt.s32.totalorder %s19, 0
          %s165 = scalar_select %p164, %s19, 0
          %p166 = scmp.lt.s32.totalorder %s163, 71
          %s167 = scalar_select %p166, %s163, 71
          %s168 = smul.addr %s165, 72
          %s169 = sadd.s32 %s167, %s168
          %s170 = smul.addr %s169, 4
          %s171 = scalar_lea.vmem %s0, %s170
          %s172 = smul.u32 2, %s21
        $region20: #{discriminator_forward.30} parent=15 // pred_fallthru
          _
        // Predicated region
        $region21: #{discriminator_forward.30} parent=15 // pred_check
          %p173 = pneg %p81
        $region22: #{discriminator_forward.30} parent=15 // pred_check_branch
          %175 = sbr.rel (%p173) target = $region24
        $region23: #{discriminator_forward.30} parent=15 // pred_region
          %s176 = sand.u32 %s71, 1
          %s177 = scalar_lea.sflag [#allocation4], %s176
          %s178 = sand.u32 %s71, 1
          %s179 = smul.addr %s178, 256
          %s180 = scalar_lea.vmem [#allocation3], %s179
          %s181 = smul.u32 32, %s21
          %s182 = smul.u32 2, %s20
          %s184 = ssub.s32 4096, 4096
          %185 = vsyncadd %s177, %s184
          %s186 = smul.addr %s181, 16
          %s187 = sadd.s32 %s182, %s186
          %s188 = smul.addr %s187, 64
          %s189 = scalar_lea.hbm %s1, %s188
          %s190 = sshll.u32 %s180, 4
          %s191 = int_to_ptr.vmem [resolvable:$true] %s190
          %196 = dma.hbm_to_vmem [thread:$0]  %s189, 4096, %s191, %s177, 1024, 128, 8
        $region24: #{discriminator_forward.30} parent=15 // pred_fallthru
          _
        // Predicated region
        $region25: #{discriminator_forward.30} parent=15 // pred_check
          %p197 = pneg %p107
        $region26: #{discriminator_forward.30} parent=15 // pred_check_branch
          %199 = sbr.rel (%p197) target = $region28
        $region27: #{discriminator_forward.30} parent=15 // pred_region
          %s200 = smul.u32 2, %s20
          %p201 = scmp.lt.s32.totalorder %s200, 15
          %s202 = scalar_select %p201, %s200, 15
          %s203 = scalar_lea.vmem %s2, %s202
          %s204 = smul.u32 2, %s20
        $region28: #{discriminator_forward.30} parent=15 // pred_fallthru
          _
      $region16: #{discriminator_forward.30} parent=5 // pred_fallthru
        _
      %p205 = scmp.le.s32.totalorder 1, %s12
      %p206 = scmp.lt.s32.totalorder %s12, 289
      %p207 = pnand %p205, %p206
      %p208 = pneg %p207
      // Predicated region
      $region29: #{discriminator_forward.30} parent=5 // pred_check
        _
      $region30: #{discriminator_forward.30} parent=5 // pred_check_branch
        %210 = sbr.rel (%p207) target = $region32
      $region31: #{discriminator_forward.30} parent=5 // pred_region
        %s211 = ssub.s32 %s12, 1
        %s212 = sand.u32 %s74, 1
        %s213 = scalar_lea.sflag [#allocation4], %s212
        %s214 = sand.u32 %s74, 1
        %s215 = smul.addr %s214, 256
        %s216 = scalar_lea.vmem [#allocation3], %s215
        // Predicated region
        $region33: #{discriminator_forward.30} parent=31 // pred_check
          %p217 = pneg %p87
        $region34: #{discriminator_forward.30} parent=31 // pred_check_branch
          %219 = sbr.rel (%p217) target = $region36
        $region35: #{discriminator_forward.30} parent=31 // pred_region
          %220 = dma.done %s213, 4096
        $region36: #{discriminator_forward.30} parent=31 // pred_fallthru
          _
        %s221 = smul.u32 2, %s24
        %p222 = scmp.lt.s32.totalorder %s22, 0
        %s223 = scalar_select %p222, %s22, 0
        %p224 = scmp.lt.s32.totalorder %s221, 71
        %s225 = scalar_select %p224, %s221, 71
        %s226 = smul.addr %s223, 72
        %s227 = sadd.s32 %s225, %s226
        %s228 = smul.addr %s227, 4
        %s229 = scalar_lea.vmem %s0, %s228
        %p230 = pneg %p59
        %p231 = pneg %p56
        %s232 = sand.u32 %s74, 1
        %s233 = scalar_lea.sflag [#allocation4], %s232
        %s234 = sand.u32 %s74, 1
        %s235 = smul.addr %s234, 256
        %s236 = scalar_lea.vmem [#allocation3], %s235
        %p237 = pneg %p87
        %p238 = pneg %p84
        %s239 = smul.u32 2, %s23
        %p240 = scmp.lt.s32.totalorder %s239, 15
        %s241 = scalar_select %p240, %s239, 15
        %s242 = scalar_lea.vmem %s2, %s241
        %p243 = pneg %p113
        %p244 = pneg %p110
        %p245 = pneg %p141
        %p246 = pneg %p138
        %s247 = smul.u32 2, %s23
        %p248 = scmp.lt.s32.totalorder %s22, 0
        %s249 = scalar_select %p248, %s22, 0
        %p250 = scmp.lt.s32.totalorder %s247, 15
        %s251 = scalar_select %p250, %s247, 15
        %s252 = smul.addr %s249, 16
        %s253 = sadd.s32 %s251, %s252
        %s254 = smul.addr %s253, 8
        %s255 = scalar_lea.vmem %s3, %s254
        %s256 = smul.u32 2, %s24
        %p257 = scmp.lt.s32.totalorder %s22, 0
        %s258 = scalar_select %p257, %s22, 0
        %p259 = scmp.lt.s32.totalorder %s256, 71
        %s260 = scalar_select %p259, %s256, 71
        %s261 = smul.addr %s258, 72
        %s262 = sadd.s32 %s260, %s261
        %s263 = smul.addr %s262, 4
        %s264 = scalar_lea.vmem %s0, %s263
        %s265 = smul.u32 2, %s24
        %s266 = smul.u32 32, %s24
        %s267 = smul.u32 2, %s23
        %s268 = smul.u32 2, %s23
        %p269 = scmp.lt.s32.totalorder %s268, 15
        %s270 = scalar_select %p269, %s268, 15
        %s271 = scalar_lea.vmem %s2, %s270
        %s272 = smul.u32 2, %s23
        %s273 = smul.u32 2, %s23
        %p274 = scmp.lt.s32.totalorder %s22, 0
        %s275 = scalar_select %p274, %s22, 0
        %p276 = scmp.lt.s32.totalorder %s273, 15
        %s277 = scalar_select %p276, %s273, 15
        %s278 = smul.addr %s275, 16
        %s279 = sadd.s32 %s277, %s278
        %s280 = smul.addr %s279, 8
        %s281 = scalar_lea.vmem %s3, %s280
        %s282 = smul.u32 2, %s23
        %p283 = scmp.eq.s32.totalorder %s24, 0
        // Predicated region
        $region37: #{discriminator_forward.30} parent=31 // pred_check
          %p284 = pneg %p283
        $region38: #{discriminator_forward.30} parent=31 // pred_check_branch
          %286 = sbr.rel (%p284) target = $region40
        $region39: #{discriminator_forward.30} parent=31 // pred_region
          %287 = vst [vmem:[#allocation2] sm:$0xff] 0.0
          %288 = vst [vmem:[#allocation2 + $0x8] sm:$0xff] 0.0
        $region40: #{discriminator_forward.30} parent=31 // pred_fallthru
          _
        %v289 = vld [vmem:[#allocation2] sm:$0xff]
        %v290 = vld [vmem:[#allocation2 + $0x8] sm:$0xff]
        %v291 = vld [vmem:[%s264] sm:$0xff]
        %v292 = vld [vmem:[%s216] sm:$0xff]
        %v293 = vld [vmem:[%s216 + $0x8] sm:$0xff]
        %v294 = vld [vmem:[%s216 + $0x10] sm:$0xff]
        %v295 = vld [vmem:[%s216 + $0x18] sm:$0xff]
        %v296 = vld [vmem:[%s216 + $0x20] sm:$0xff]
        %v297 = vld [vmem:[%s216 + $0x28] sm:$0xff]
        %v298 = vld [vmem:[%s216 + $0x30] sm:$0xff]
        %v299 = vld [vmem:[%s216 + $0x38] sm:$0xff]
        %v300 = vld [vmem:[%s216 + $0x40] sm:$0xff]
        %v301 = vld [vmem:[%s216 + $0x48] sm:$0xff]
        %v302 = vld [vmem:[%s216 + $0x50] sm:$0xff]
        %v303 = vld [vmem:[%s216 + $0x58] sm:$0xff]
        %v304 = vld [vmem:[%s216 + $0x60] sm:$0xff]
        %v305 = vld [vmem:[%s216 + $0x68] sm:$0xff]
        %v306 = vld [vmem:[%s216 + $0x70] sm:$0xff]
        %v307 = vld [vmem:[%s216 + $0x78] sm:$0xff]
        %v308 = vld [vmem:[%s216 + $0x80] sm:$0xff]
        %v309 = vld [vmem:[%s216 + $0x88] sm:$0xff]
        %v310 = vld [vmem:[%s216 + $0x90] sm:$0xff]
        %v311 = vld [vmem:[%s216 + $0x98] sm:$0xff]
        %v312 = vld [vmem:[%s216 + $0xa0] sm:$0xff]
        %v313 = vld [vmem:[%s216 + $0xa8] sm:$0xff]
        %v314 = vld [vmem:[%s216 + $0xb0] sm:$0xff]
        %v315 = vld [vmem:[%s216 + $0xb8] sm:$0xff]
        %v316 = vld [vmem:[%s216 + $0xc0] sm:$0xff]
        %v317 = vld [vmem:[%s216 + $0xc8] sm:$0xff]
        %v318 = vld [vmem:[%s216 + $0xd0] sm:$0xff]
        %v319 = vld [vmem:[%s216 + $0xd8] sm:$0xff]
        %v320 = vld [vmem:[%s216 + $0xe0] sm:$0xff]
        %v321 = vld [vmem:[%s216 + $0xe8] sm:$0xff]
        %v322 = vld [vmem:[%s216 + $0xf0] sm:$0xff]
        %v323 = vld [vmem:[%s216 + $0xf8] sm:$0xff]
        %v325 = vunpack.c.l.b16 %v291
        %v326 = vunpack.c.h.b16 %v291
        %v327 = vpack.c.b16 %v325, %v325
        %v328 = vpack.c.b16 %v326, %v326
        %v363 = vunpack.c.l.b16 %v292
        %v364 = vunpack.c.h.b16 %v292
        %v365 = vunpack.c.l.b16 %v293
        %v366 = vunpack.c.h.b16 %v293
        %v367 = vunpack.c.l.b16 %v294
        %v368 = vunpack.c.h.b16 %v294
        %v369 = vunpack.c.l.b16 %v295
        %v370 = vunpack.c.h.b16 %v295
        %v371 = vunpack.c.l.b16 %v296
        %v372 = vunpack.c.h.b16 %v296
        %v373 = vunpack.c.l.b16 %v297
        %v374 = vunpack.c.h.b16 %v297
        %v375 = vunpack.c.l.b16 %v298
        %v376 = vunpack.c.h.b16 %v298
        %v377 = vunpack.c.l.b16 %v299
        %v378 = vunpack.c.h.b16 %v299
        %v379 = vunpack.c.l.b16 %v300
        %v380 = vunpack.c.h.b16 %v300
        %v381 = vunpack.c.l.b16 %v301
        %v382 = vunpack.c.h.b16 %v301
        %v383 = vunpack.c.l.b16 %v302
        %v384 = vunpack.c.h.b16 %v302
        %v385 = vunpack.c.l.b16 %v303
        %v386 = vunpack.c.h.b16 %v303
        %v387 = vunpack.c.l.b16 %v304
        %v388 = vunpack.c.h.b16 %v304
        %v389 = vunpack.c.l.b16 %v305
        %v390 = vunpack.c.h.b16 %v305
        %v391 = vunpack.c.l.b16 %v306
        %v392 = vunpack.c.h.b16 %v306
        %v393 = vunpack.c.l.b16 %v307
        %v394 = vunpack.c.h.b16 %v307
        %v395 = vunpack.c.l.b16 %v308
        %v396 = vunpack.c.h.b16 %v308
        %v397 = vunpack.c.l.b16 %v309
        %v398 = vunpack.c.h.b16 %v309
        %v399 = vunpack.c.l.b16 %v310
        %v400 = vunpack.c.h.b16 %v310
        %v401 = vunpack.c.l.b16 %v311
        %v402 = vunpack.c.h.b16 %v311
        %v403 = vunpack.c.l.b16 %v312
        %v404 = vunpack.c.h.b16 %v312
        %v405 = vunpack.c.l.b16 %v313
        %v406 = vunpack.c.h.b16 %v313
        %v407 = vunpack.c.l.b16 %v314
        %v408 = vunpack.c.h.b16 %v314
        %v409 = vunpack.c.l.b16 %v315
        %v410 = vunpack.c.h.b16 %v315
        %v411 = vunpack.c.l.b16 %v316
        %v412 = vunpack.c.h.b16 %v316
        %v413 = vunpack.c.l.b16 %v317
        %v414 = vunpack.c.h.b16 %v317
        %v415 = vunpack.c.l.b16 %v318
        %v416 = vunpack.c.h.b16 %v318
        %v417 = vunpack.c.l.b16 %v319
        %v418 = vunpack.c.h.b16 %v319
        %v419 = vunpack.c.l.b16 %v320
        %v420 = vunpack.c.h.b16 %v320
        %v421 = vunpack.c.l.b16 %v321
        %v422 = vunpack.c.h.b16 %v321
        %v423 = vunpack.c.l.b16 %v322
        %v424 = vunpack.c.h.b16 %v322
        %v425 = vunpack.c.l.b16 %v323
        %v426 = vunpack.c.h.b16 %v323
        %v427 = vpack.c.b16 %v365, %v363
        %v428 = vpack.c.b16 %v366, %v364
        %v429 = vpack.c.b16 %v369, %v367
        %v430 = vpack.c.b16 %v370, %v368
        %v431 = vpack.c.b16 %v373, %v371
        %v432 = vpack.c.b16 %v374, %v372
        %v433 = vpack.c.b16 %v377, %v375
        %v434 = vpack.c.b16 %v378, %v376
        %v435 = vpack.c.b16 %v381, %v379
        %v436 = vpack.c.b16 %v382, %v380
        %v437 = vpack.c.b16 %v385, %v383
        %v438 = vpack.c.b16 %v386, %v384
        %v439 = vpack.c.b16 %v389, %v387
        %v440 = vpack.c.b16 %v390, %v388
        %v441 = vpack.c.b16 %v393, %v391
        %v442 = vpack.c.b16 %v394, %v392
        %v443 = vpack.c.b16 %v397, %v395
        %v444 = vpack.c.b16 %v398, %v396
        %v445 = vpack.c.b16 %v401, %v399
        %v446 = vpack.c.b16 %v402, %v400
        %v447 = vpack.c.b16 %v405, %v403
        %v448 = vpack.c.b16 %v406, %v404
        %v449 = vpack.c.b16 %v409, %v407
        %v450 = vpack.c.b16 %v410, %v408
        %v451 = vpack.c.b16 %v413, %v411
        %v452 = vpack.c.b16 %v414, %v412
        %v453 = vpack.c.b16 %v417, %v415
        %v454 = vpack.c.b16 %v418, %v416
        %v455 = vpack.c.b16 %v421, %v419
        %v456 = vpack.c.b16 %v422, %v420
        %v457 = vpack.c.b16 %v425, %v423
        %v458 = vpack.c.b16 %v426, %v424
        %491 = vmatprep.subr.bf16.mxu0 %v428
        %492 = vmatpush1.bf16.msra.mxu0 %v427
        %493 = vmatprep.subr.bf16.mxu0 %v430
        %494 = vmatpush1.bf16.msra.mxu0 %v429
        %495 = vmatprep.subr.bf16.mxu0 %v432
        %496 = vmatpush1.bf16.msra.mxu0 %v431
        %497 = vmatprep.subr.bf16.mxu0 %v434
        %498 = vmatpush1.bf16.msra.mxu0 %v433
        %499 = vmatprep.subr.bf16.mxu0 %v436
        %500 = vmatpush1.bf16.msra.mxu0 %v435
        %501 = vmatprep.subr.bf16.mxu0 %v438
        %502 = vmatpush1.bf16.msra.mxu0 %v437
        %503 = vmatprep.subr.bf16.mxu0 %v440
        %504 = vmatpush1.bf16.msra.mxu0 %v439
        %505 = vmatprep.subr.bf16.mxu0 %v442
        %506 = vmatpush1.bf16.msra.mxu0 %v441
        %507 = vmatprep.subr.bf16.mxu0 %v444
        %508 = vmatpush1.bf16.msra.mxu0 %v443
        %509 = vmatprep.subr.bf16.mxu0 %v446
        %510 = vmatpush1.bf16.msra.mxu0 %v445
        %511 = vmatprep.subr.bf16.mxu0 %v448
        %512 = vmatpush1.bf16.msra.mxu0 %v447
        %513 = vmatprep.subr.bf16.mxu0 %v450
        %514 = vmatpush1.bf16.msra.mxu0 %v449
        %515 = vmatprep.subr.bf16.mxu0 %v452
        %516 = vmatpush1.bf16.msra.mxu0 %v451
        %517 = vmatprep.subr.bf16.mxu0 %v454
        %518 = vmatpush1.bf16.msra.mxu0 %v453
        %519 = vmatprep.subr.bf16.mxu0 %v456
        %520 = vmatpush1.bf16.msra.mxu0 %v455
        %521 = vmatprep.subr.bf16.mxu0 %v458
        %522 = vmatpush1.bf16.msra.mxu0 %v457
        %523 = vmatprep.mubr.bf16.mxu0 %v328
        %524 = vmatmul.mubr.bf16.gmra.mrb[0].mxu0 %v327
        %v525 = vpop.f32.mrb[0].mxu0
        %v526 = vadd.f32 0.0, %v525
        %v527 = vpop.f32.mrb[0].mxu0
        %v528 = vadd.f32 0.0, %v527
        %v529 = vpop.f32.mrb[0].mxu0
        %v530 = vpop.f32.mrb[0].mxu0
        %531 = vdwg.mxu0
        %v532 = vadd.f32 %v289, %v526
        %v533 = vadd.f32 %v290, %v528
        %534 = vst [vmem:[#allocation2] sm:$0xff] %v532
        %535 = vst [vmem:[#allocation2 + $0x8] sm:$0xff] %v533
        %p536 = scmp.eq.s32.totalorder %s24, 35
        // Predicated region
        $region41: #{discriminator_forward.30} parent=31 // pred_check
          %p537 = pneg %p536
        $region42: #{discriminator_forward.30} parent=31 // pred_check_branch
          %539 = sbr.rel (%p537) target = $region44
        $region43: #{discriminator_forward.30} parent=31 // pred_region
          %v540 = vld [vmem:[#allocation2] sm:$0xff]
          %v541 = vld [vmem:[#allocation2 + $0x8] sm:$0xff]
          %v542 = vld [vmem:[%s271] sm:$0x3]
          %v544 = vlaneseq
          %v545 = vshrl.u32 %v544, 7
          %v546 = vsub.s32 0, %v545
          %v547 = vrot.slane %v542, %v546
          %v548 = vlaneseq
          %v549 = vshrl.u32 %v548, 7
          %v550 = vsub.s32 1, %v549
          %v551 = vrot.slane %v542, %v550
          %v554 = vadd.f32 %v540, %v547
          %v555 = vadd.f32 %v541, %v551
          %556 = vst [vmem:[%s281] sm:$0xff] %v554
          %557 = vst [vmem:[%s281 + $0x8] sm:$0xff] %v555
        $region44: #{discriminator_forward.30} parent=31 // pred_fallthru
          _
        %s558 = smul.u32 2, %s23
        %p559 = scmp.lt.s32.totalorder %s22, 0
        %s560 = scalar_select %p559, %s22, 0
        %p561 = scmp.lt.s32.totalorder %s558, 15
        %s562 = scalar_select %p561, %s558, 15
        %s563 = smul.addr %s560, 16
        %s564 = sadd.s32 %s562, %s563
        %s565 = smul.addr %s564, 8
        %s566 = scalar_lea.vmem %s3, %s565
        // Predicated region
        $region45: #{discriminator_forward.30} parent=31 // pred_check
          %p567 = pneg %p138
        $region46: #{discriminator_forward.30} parent=31 // pred_check_branch
          %569 = sbr.rel (%p567) target = $region48
        $region47: #{discriminator_forward.30} parent=31 // pred_region
          %s570 = smul.u32 2, %s23
        $region48: #{discriminator_forward.30} parent=31 // pred_fallthru
          _
      $region32: #{discriminator_forward.30} parent=5 // pred_fallthru
        _
      %p571 = scmp.le.s32.totalorder 2, %s12
      // Predicated region
      $region49: #{discriminator_forward.30} parent=5 // pred_check
        %p572 = pneg %p571
      $region50: #{discriminator_forward.30} parent=5 // pred_check_branch
        %574 = sbr.rel (%p572) target = $region52
      $region51: #{discriminator_forward.30} parent=5 // pred_region
        %s575 = ssub.s32 %s12, 2
        // Predicated region
        $region53: #{discriminator_forward.30} parent=51 // pred_check
          %p576 = pneg %p144
        $region54: #{discriminator_forward.30} parent=51 // pred_check_branch
          %578 = sbr.rel (%p576) target = $region56
        $region55: #{discriminator_forward.30} parent=51 // pred_region
          %s579 = smul.u32 2, %s26
          %p580 = scmp.lt.s32.totalorder %s25, 0
          %s581 = scalar_select %p580, %s25, 0
          %p582 = scmp.lt.s32.totalorder %s579, 15
          %s583 = scalar_select %p582, %s579, 15
          %s584 = smul.addr %s581, 16
          %s585 = sadd.s32 %s583, %s584
          %s586 = smul.addr %s585, 8
          %s587 = scalar_lea.vmem %s3, %s586
        $region56: #{discriminator_forward.30} parent=51 // pred_fallthru
          _
      $region52: #{discriminator_forward.30} parent=5 // pred_fallthru
        _
    $region6: #{discriminator_forward.30} parent=1 // loop_footer
      %s16 = sadd.s32 1, %s12
    $region7: #{discriminator_forward.30} parent=1 // loop_footer_branch
      %11 = sbr.rel target = $region3
    $region8: #{discriminator_forward.30} parent=1 // loop_exit
      _
    %588 = vsyncpa [#allocation4], 1
    %s589 = scalar_lea.sflag [#allocation4], 1
    %590 = vsyncpa %s589, 1

// kernel: discriminator_forward.31
$region0: #{discriminator_forward.31}
  #allocation0 [shape = 'u32[]', space=smem, size = 0x4, offset = 0x4, fixed_abs, tag = 'smem constant byte address 0x4 - core index']
  #allocation1 [shape = 'u32[144,128]{1,0:T(1,128)}', space=vmem, size = 0x12000, scoped, tag = 'internal scratch']
  #allocation2 [shape = 'f32[1,2048]{1,0:T(1,128)}', space=vmem, size = 0x2000, scoped, tag = 'scratch operand']
  #allocation3 [shape = 'f32[1,2048]{1,0:T(1,128)}', space=vmem, size = 0x2000, scoped, tag = 'scratch operand']
  %s0 = inlined_call_operand.vmem [shape: f32[8,2048], index: 0, kind: input, shape index: {}]
  %s1 = inlined_call_operand.vmem [shape: f32[2,2048], index: 1, kind: output, shape index: {}]
  %s2 = sld [smem:[#allocation0]]
  $region22: #{discriminator_forward.31} parent=0
    _
  %s4 = ssub.s32 1, %s2
  %s5 = scalar_select 0, %s4, %s2
  // Predicated region
  $region2: #{discriminator_forward.31} parent=0 // pred_check
    _
  $region3: #{discriminator_forward.31} parent=0 // pred_check_branch
    %7 = sbr.rel (0) target = $region5
  $region4: #{discriminator_forward.31} parent=0 // pred_region
    _
  $region5: #{discriminator_forward.31} parent=0 // pred_fallthru
    _
  %p8 = scmp.eq.s32.totalorder 0, 0
  // Predicated region
  $region6: #{discriminator_forward.31} parent=0 // pred_check
    %p9 = pneg %p8
  $region7: #{discriminator_forward.31} parent=0 // pred_check_branch
    %11 = sbr.rel (%p9) target = $region9
  $region8: #{discriminator_forward.31} parent=0 // pred_region
    %12 = vst [vmem:[#allocation2] sm:$0xff] 0.0
    %13 = vst [vmem:[#allocation2 + $0x8] sm:$0xff] 0.0
    %14 = vst [vmem:[#allocation3] sm:$0xff] 0.0
    %15 = vst [vmem:[#allocation3 + $0x8] sm:$0xff] 0.0
  $region9: #{discriminator_forward.31} parent=0 // pred_fallthru
    _
  %v16 = vld [vmem:[%s0] sm:$0xff]
  %v17 = vld [vmem:[%s0 + $0x8] sm:$0xff]
  %v18 = vld [vmem:[%s0 + $0x10] sm:$0xff]
  %v19 = vld [vmem:[%s0 + $0x18] sm:$0xff]
  %v20 = vld [vmem:[%s0 + $0x20] sm:$0xff]
  %v21 = vld [vmem:[%s0 + $0x28] sm:$0xff]
  %v22 = vld [vmem:[%s0 + $0x30] sm:$0xff]
  %v23 = vld [vmem:[%s0 + $0x38] sm:$0xff]
  %v24 = vld [vmem:[%s0 + $0x40] sm:$0xff]
  %v25 = vld [vmem:[%s0 + $0x48] sm:$0xff]
  %v26 = vld [vmem:[%s0 + $0x50] sm:$0xff]
  %v27 = vld [vmem:[%s0 + $0x58] sm:$0xff]
  %v28 = vld [vmem:[%s0 + $0x60] sm:$0xff]
  %v29 = vld [vmem:[%s0 + $0x68] sm:$0xff]
  %v30 = vld [vmem:[%s0 + $0x70] sm:$0xff]
  %v31 = vld [vmem:[%s0 + $0x78] sm:$0xff]
  %v32 = vlaneseq
  %v33 = vshrl.u32 %v32, 7
  %s34 = smul.u32 0, 8
  %v35 = vstv %s34
  %v36 = vadd.s32 %v33, %v35
  %vm37 = vcmp.lt.s32.totalorder %v36, 2
  %v38 = vsel %vm37, %v16, 0.0
  %v39 = vsel %vm37, %v17, 0.0
  %v40 = vsel %vm37, %v18, 0.0
  %v41 = vsel %vm37, %v19, 0.0
  %v42 = vsel %vm37, %v20, 0.0
  %v43 = vsel %vm37, %v21, 0.0
  %v44 = vsel %vm37, %v22, 0.0
  %v45 = vsel %vm37, %v23, 0.0
  %v46 = vsel %vm37, %v24, 0.0
  %v47 = vsel %vm37, %v25, 0.0
  %v48 = vsel %vm37, %v26, 0.0
  %v49 = vsel %vm37, %v27, 0.0
  %v50 = vsel %vm37, %v28, 0.0
  %v51 = vsel %vm37, %v29, 0.0
  %v52 = vsel %vm37, %v30, 0.0
  %v53 = vsel %vm37, %v31, 0.0
  %v54 = vld [vmem:[#allocation2] sm:$0xff]
  %v55 = vld [vmem:[#allocation2 + $0x8] sm:$0xff]
  %v56 = vrot.slane %v38, 4
  %v57 = vadd.f32 %v38, %v56
  %v58 = vrot.slane %v57, 2
  %v59 = vadd.f32 %v57, %v58
  %v60 = vrot.slane %v59, 1
  %v61 = vadd.f32 %v59, %v60
  %v62 = vrot.slane %v39, 4
  %v63 = vadd.f32 %v39, %v62
  %v64 = vrot.slane %v63, 2
  %v65 = vadd.f32 %v63, %v64
  %v66 = vrot.slane %v65, 1
  %v67 = vadd.f32 %v65, %v66
  %v68 = vrot.slane %v40, 4
  %v69 = vadd.f32 %v40, %v68
  %v70 = vrot.slane %v69, 2
  %v71 = vadd.f32 %v69, %v70
  %v72 = vrot.slane %v71, 1
  %v73 = vadd.f32 %v71, %v72
  %v74 = vrot.slane %v41, 4
  %v75 = vadd.f32 %v41, %v74
  %v76 = vrot.slane %v75, 2
  %v77 = vadd.f32 %v75, %v76
  %v78 = vrot.slane %v77, 1
  %v79 = vadd.f32 %v77, %v78
  %v80 = vrot.slane %v42, 4
  %v81 = vadd.f32 %v42, %v80
  %v82 = vrot.slane %v81, 2
  %v83 = vadd.f32 %v81, %v82
  %v84 = vrot.slane %v83, 1
  %v85 = vadd.f32 %v83, %v84
  %v86 = vrot.slane %v43, 4
  %v87 = vadd.f32 %v43, %v86
  %v88 = vrot.slane %v87, 2
  %v89 = vadd.f32 %v87, %v88
  %v90 = vrot.slane %v89, 1
  %v91 = vadd.f32 %v89, %v90
  %v92 = vrot.slane %v44, 4
  %v93 = vadd.f32 %v44, %v92
  %v94 = vrot.slane %v93, 2
  %v95 = vadd.f32 %v93, %v94
  %v96 = vrot.slane %v95, 1
  %v97 = vadd.f32 %v95, %v96
  %v98 = vrot.slane %v45, 4
  %v99 = vadd.f32 %v45, %v98
  %v100 = vrot.slane %v99, 2
  %v101 = vadd.f32 %v99, %v100
  %v102 = vrot.slane %v101, 1
  %v103 = vadd.f32 %v101, %v102
  %v104 = vrot.slane %v46, 4
  %v105 = vadd.f32 %v46, %v104
  %v106 = vrot.slane %v105, 2
  %v107 = vadd.f32 %v105, %v106
  %v108 = vrot.slane %v107, 1
  %v109 = vadd.f32 %v107, %v108
  %v110 = vrot.slane %v47, 4
  %v111 = vadd.f32 %v47, %v110
  %v112 = vrot.slane %v111, 2
  %v113 = vadd.f32 %v111, %v112
  %v114 = vrot.slane %v113, 1
  %v115 = vadd.f32 %v113, %v114
  %v116 = vrot.slane %v48, 4
  %v117 = vadd.f32 %v48, %v116
  %v118 = vrot.slane %v117, 2
  %v119 = vadd.f32 %v117, %v118
  %v120 = vrot.slane %v119, 1
  %v121 = vadd.f32 %v119, %v120
  %v122 = vrot.slane %v49, 4
  %v123 = vadd.f32 %v49, %v122
  %v124 = vrot.slane %v123, 2
  %v125 = vadd.f32 %v123, %v124
  %v126 = vrot.slane %v125, 1
  %v127 = vadd.f32 %v125, %v126
  %v128 = vrot.slane %v50, 4
  %v129 = vadd.f32 %v50, %v128
  %v130 = vrot.slane %v129, 2
  %v131 = vadd.f32 %v129, %v130
  %v132 = vrot.slane %v131, 1
  %v133 = vadd.f32 %v131, %v132
  %v134 = vrot.slane %v51, 4
  %v135 = vadd.f32 %v51, %v134
  %v136 = vrot.slane %v135, 2
  %v137 = vadd.f32 %v135, %v136
  %v138 = vrot.slane %v137, 1
  %v139 = vadd.f32 %v137, %v138
  %v140 = vrot.slane %v52, 4
  %v141 = vadd.f32 %v52, %v140
  %v142 = vrot.slane %v141, 2
  %v143 = vadd.f32 %v141, %v142
  %v144 = vrot.slane %v143, 1
  %v145 = vadd.f32 %v143, %v144
  %v146 = vrot.slane %v53, 4
  %v147 = vadd.f32 %v53, %v146
  %v148 = vrot.slane %v147, 2
  %v149 = vadd.f32 %v147, %v148
  %v150 = vrot.slane %v149, 1
  %v151 = vadd.f32 %v149, %v150
  %v168 = vcombine.low %v61, %v67
  %v169 = vcombine.low %v73, %v79
  %v170 = vcombine.low %v85, %v91
  %v171 = vcombine.low %v97, %v103
  %v173 = vunpack.c.l.s4 1966171168
  %v174 = vunpack.c.0.s8 %v173
  %v175 = vlaneseq
  %v176 = vshrl.u32 %v175, 7
  %v177 = vsub.s32 %v174, %v176
  %v178 = vrot.slane %v168, %v177
  %v180 = vunpack.c.l.s4 1966171168
  %v181 = vunpack.c.0.s8 %v180
  %v182 = vlaneseq
  %v183 = vshrl.u32 %v182, 7
  %v184 = vsub.s32 %v181, %v183
  %v185 = vrot.slane %v169, %v184
  %v187 = vunpack.c.l.s4 1966171168
  %v188 = vunpack.c.0.s8 %v187
  %v189 = vlaneseq
  %v190 = vshrl.u32 %v189, 7
  %v191 = vsub.s32 %v188, %v190
  %v192 = vrot.slane %v170, %v191
  %v194 = vunpack.c.l.s4 1966171168
  %v195 = vunpack.c.0.s8 %v194
  %v196 = vlaneseq
  %v197 = vshrl.u32 %v196, 7
  %v198 = vsub.s32 %v195, %v197
  %v199 = vrot.slane %v171, %v198
  %v200 = vcombine.low %v178, %v185
  %v201 = vcombine.low %v192, %v199
  %v203 = vunpack.c.l.s4 1966171168
  %v204 = vunpack.c.0.s8 %v203
  %v205 = vlaneseq
  %v206 = vshrl.u32 %v205, 7
  %v207 = vsub.s32 %v204, %v206
  %v208 = vrot.slane %v200, %v207
  %v210 = vunpack.c.l.s4 1966171168
  %v211 = vunpack.c.0.s8 %v210
  %v212 = vlaneseq
  %v213 = vshrl.u32 %v212, 7
  %v214 = vsub.s32 %v211, %v213
  %v215 = vrot.slane %v201, %v214
  %v216 = vcombine.low %v208, %v215
  %v217 = vcombine.low %v109, %v115
  %v218 = vcombine.low %v121, %v127
  %v219 = vcombine.low %v133, %v139
  %v220 = vcombine.low %v145, %v151
  %v222 = vunpack.c.l.s4 1966171168
  %v223 = vunpack.c.0.s8 %v222
  %v224 = vlaneseq
  %v225 = vshrl.u32 %v224, 7
  %v226 = vsub.s32 %v223, %v225
  %v227 = vrot.slane %v217, %v226
  %v229 = vunpack.c.l.s4 1966171168
  %v230 = vunpack.c.0.s8 %v229
  %v231 = vlaneseq
  %v232 = vshrl.u32 %v231, 7
  %v233 = vsub.s32 %v230, %v232
  %v234 = vrot.slane %v218, %v233
  %v236 = vunpack.c.l.s4 1966171168
  %v237 = vunpack.c.0.s8 %v236
  %v238 = vlaneseq
  %v239 = vshrl.u32 %v238, 7
  %v240 = vsub.s32 %v237, %v239
  %v241 = vrot.slane %v219, %v240
  %v243 = vunpack.c.l.s4 1966171168
  %v244 = vunpack.c.0.s8 %v243
  %v245 = vlaneseq
  %v246 = vshrl.u32 %v245, 7
  %v247 = vsub.s32 %v244, %v246
  %v248 = vrot.slane %v220, %v247
  %v249 = vcombine.low %v227, %v234
  %v250 = vcombine.low %v241, %v248
  %v252 = vunpack.c.l.s4 1966171168
  %v253 = vunpack.c.0.s8 %v252
  %v254 = vlaneseq
  %v255 = vshrl.u32 %v254, 7
  %v256 = vsub.s32 %v253, %v255
  %v257 = vrot.slane %v249, %v256
  %v259 = vunpack.c.l.s4 1966171168
  %v260 = vunpack.c.0.s8 %v259
  %v261 = vlaneseq
  %v262 = vshrl.u32 %v261, 7
  %v263 = vsub.s32 %v260, %v262
  %v264 = vrot.slane %v250, %v263
  %v265 = vcombine.low %v257, %v264
  %v268 = vadd.f32 %v54, %v216
  %v269 = vadd.f32 %v55, %v265
  %270 = vst [vmem:[#allocation2] sm:$0xff] %v268
  %271 = vst [vmem:[#allocation2 + $0x8] sm:$0xff] %v269
  %v272 = vld [vmem:[#allocation3] sm:$0xff]
  %v273 = vld [vmem:[#allocation3 + $0x8] sm:$0xff]
  %v274 = vmul.f32 %v38, %v38
  %v275 = vmul.f32 %v39, %v39
  %v276 = vmul.f32 %v40, %v40
  %v277 = vmul.f32 %v41, %v41
  %v278 = vmul.f32 %v42, %v42
  %v279 = vmul.f32 %v43, %v43
  %v280 = vmul.f32 %v44, %v44
  %v281 = vmul.f32 %v45, %v45
  %v282 = vmul.f32 %v46, %v46
  %v283 = vmul.f32 %v47, %v47
  %v284 = vmul.f32 %v48, %v48
  %v285 = vmul.f32 %v49, %v49
  %v286 = vmul.f32 %v50, %v50
  %v287 = vmul.f32 %v51, %v51
  %v288 = vmul.f32 %v52, %v52
  %v289 = vmul.f32 %v53, %v53
  %v290 = vrot.slane %v274, 4
  %v291 = vadd.f32 %v274, %v290
  %v292 = vrot.slane %v291, 2
  %v293 = vadd.f32 %v291, %v292
  %v294 = vrot.slane %v293, 1
  %v295 = vadd.f32 %v293, %v294
  %v296 = vrot.slane %v275, 4
  %v297 = vadd.f32 %v275, %v296
  %v298 = vrot.slane %v297, 2
  %v299 = vadd.f32 %v297, %v298
  %v300 = vrot.slane %v299, 1
  %v301 = vadd.f32 %v299, %v300
  %v302 = vrot.slane %v276, 4
  %v303 = vadd.f32 %v276, %v302
  %v304 = vrot.slane %v303, 2
  %v305 = vadd.f32 %v303, %v304
  %v306 = vrot.slane %v305, 1
  %v307 = vadd.f32 %v305, %v306
  %v308 = vrot.slane %v277, 4
  %v309 = vadd.f32 %v277, %v308
  %v310 = vrot.slane %v309, 2
  %v311 = vadd.f32 %v309, %v310
  %v312 = vrot.slane %v311, 1
  %v313 = vadd.f32 %v311, %v312
  %v314 = vrot.slane %v278, 4
  %v315 = vadd.f32 %v278, %v314
  %v316 = vrot.slane %v315, 2
  %v317 = vadd.f32 %v315, %v316
  %v318 = vrot.slane %v317, 1
  %v319 = vadd.f32 %v317, %v318
  %v320 = vrot.slane %v279, 4
  %v321 = vadd.f32 %v279, %v320
  %v322 = vrot.slane %v321, 2
  %v323 = vadd.f32 %v321, %v322
  %v324 = vrot.slane %v323, 1
  %v325 = vadd.f32 %v323, %v324
  %v326 = vrot.slane %v280, 4
  %v327 = vadd.f32 %v280, %v326
  %v328 = vrot.slane %v327, 2
  %v329 = vadd.f32 %v327, %v328
  %v330 = vrot.slane %v329, 1
  %v331 = vadd.f32 %v329, %v330
  %v332 = vrot.slane %v281, 4
  %v333 = vadd.f32 %v281, %v332
  %v334 = vrot.slane %v333, 2
  %v335 = vadd.f32 %v333, %v334
  %v336 = vrot.slane %v335, 1
  %v337 = vadd.f32 %v335, %v336
  %v338 = vrot.slane %v282, 4
  %v339 = vadd.f32 %v282, %v338
  %v340 = vrot.slane %v339, 2
  %v341 = vadd.f32 %v339, %v340
  %v342 = vrot.slane %v341, 1
  %v343 = vadd.f32 %v341, %v342
  %v344 = vrot.slane %v283, 4
  %v345 = vadd.f32 %v283, %v344
  %v346 = vrot.slane %v345, 2
  %v347 = vadd.f32 %v345, %v346
  %v348 = vrot.slane %v347, 1
  %v349 = vadd.f32 %v347, %v348
  %v350 = vrot.slane %v284, 4
  %v351 = vadd.f32 %v284, %v350
  %v352 = vrot.slane %v351, 2
  %v353 = vadd.f32 %v351, %v352
  %v354 = vrot.slane %v353, 1
  %v355 = vadd.f32 %v353, %v354
  %v356 = vrot.slane %v285, 4
  %v357 = vadd.f32 %v285, %v356
  %v358 = vrot.slane %v357, 2
  %v359 = vadd.f32 %v357, %v358
  %v360 = vrot.slane %v359, 1
  %v361 = vadd.f32 %v359, %v360
  %v362 = vrot.slane %v286, 4
  %v363 = vadd.f32 %v286, %v362
  %v364 = vrot.slane %v363, 2
  %v365 = vadd.f32 %v363, %v364
  %v366 = vrot.slane %v365, 1
  %v367 = vadd.f32 %v365, %v366
  %v368 = vrot.slane %v287, 4
  %v369 = vadd.f32 %v287, %v368
  %v370 = vrot.slane %v369, 2
  %v371 = vadd.f32 %v369, %v370
  %v372 = vrot.slane %v371, 1
  %v373 = vadd.f32 %v371, %v372
  %v374 = vrot.slane %v288, 4
  %v375 = vadd.f32 %v288, %v374
  %v376 = vrot.slane %v375, 2
  %v377 = vadd.f32 %v375, %v376
  %v378 = vrot.slane %v377, 1
  %v379 = vadd.f32 %v377, %v378
  %v380 = vrot.slane %v289, 4
  %v381 = vadd.f32 %v289, %v380
  %v382 = vrot.slane %v381, 2
  %v383 = vadd.f32 %v381, %v382
  %v384 = vrot.slane %v383, 1
  %v385 = vadd.f32 %v383, %v384
  %v402 = vcombine.low %v295, %v301
  %v403 = vcombine.low %v307, %v313
  %v404 = vcombine.low %v319, %v325
  %v405 = vcombine.low %v331, %v337
  %v407 = vunpack.c.l.s4 1966171168
  %v408 = vunpack.c.0.s8 %v407
  %v409 = vlaneseq
  %v410 = vshrl.u32 %v409, 7
  %v411 = vsub.s32 %v408, %v410
  %v412 = vrot.slane %v402, %v411
  %v414 = vunpack.c.l.s4 1966171168
  %v415 = vunpack.c.0.s8 %v414
  %v416 = vlaneseq
  %v417 = vshrl.u32 %v416, 7
  %v418 = vsub.s32 %v415, %v417
  %v419 = vrot.slane %v403, %v418
  %v421 = vunpack.c.l.s4 1966171168
  %v422 = vunpack.c.0.s8 %v421
  %v423 = vlaneseq
  %v424 = vshrl.u32 %v423, 7
  %v425 = vsub.s32 %v422, %v424
  %v426 = vrot.slane %v404, %v425
  %v428 = vunpack.c.l.s4 1966171168
  %v429 = vunpack.c.0.s8 %v428
  %v430 = vlaneseq
  %v431 = vshrl.u32 %v430, 7
  %v432 = vsub.s32 %v429, %v431
  %v433 = vrot.slane %v405, %v432
  %v434 = vcombine.low %v412, %v419
  %v435 = vcombine.low %v426, %v433
  %v437 = vunpack.c.l.s4 1966171168
  %v438 = vunpack.c.0.s8 %v437
  %v439 = vlaneseq
  %v440 = vshrl.u32 %v439, 7
  %v441 = vsub.s32 %v438, %v440
  %v442 = vrot.slane %v434, %v441
  %v444 = vunpack.c.l.s4 1966171168
  %v445 = vunpack.c.0.s8 %v444
  %v446 = vlaneseq
  %v447 = vshrl.u32 %v446, 7
  %v448 = vsub.s32 %v445, %v447
  %v449 = vrot.slane %v435, %v448
  %v450 = vcombine.low %v442, %v449
  %v451 = vcombine.low %v343, %v349
  %v452 = vcombine.low %v355, %v361
  %v453 = vcombine.low %v367, %v373
  %v454 = vcombine.low %v379, %v385
  %v456 = vunpack.c.l.s4 1966171168
  %v457 = vunpack.c.0.s8 %v456
  %v458 = vlaneseq
  %v459 = vshrl.u32 %v458, 7
  %v460 = vsub.s32 %v457, %v459
  %v461 = vrot.slane %v451, %v460
  %v463 = vunpack.c.l.s4 1966171168
  %v464 = vunpack.c.0.s8 %v463
  %v465 = vlaneseq
  %v466 = vshrl.u32 %v465, 7
  %v467 = vsub.s32 %v464, %v466
  %v468 = vrot.slane %v452, %v467
  %v470 = vunpack.c.l.s4 1966171168
  %v471 = vunpack.c.0.s8 %v470
  %v472 = vlaneseq
  %v473 = vshrl.u32 %v472, 7
  %v474 = vsub.s32 %v471, %v473
  %v475 = vrot.slane %v453, %v474
  %v477 = vunpack.c.l.s4 1966171168
  %v478 = vunpack.c.0.s8 %v477
  %v479 = vlaneseq
  %v480 = vshrl.u32 %v479, 7
  %v481 = vsub.s32 %v478, %v480
  %v482 = vrot.slane %v454, %v481
  %v483 = vcombine.low %v461, %v468
  %v484 = vcombine.low %v475, %v482
  %v486 = vunpack.c.l.s4 1966171168
  %v487 = vunpack.c.0.s8 %v486
  %v488 = vlaneseq
  %v489 = vshrl.u32 %v488, 7
  %v490 = vsub.s32 %v487, %v489
  %v491 = vrot.slane %v483, %v490
  %v493 = vunpack.c.l.s4 1966171168
  %v494 = vunpack.c.0.s8 %v493
  %v495 = vlaneseq
  %v496 = vshrl.u32 %v495, 7
  %v497 = vsub.s32 %v494, %v496
  %v498 = vrot.slane %v484, %v497
  %v499 = vcombine.low %v491, %v498
  %v502 = vadd.f32 %v272, %v450
  %v503 = vadd.f32 %v273, %v499
  %504 = vst [vmem:[#allocation3] sm:$0xff] %v502
  %505 = vst [vmem:[#allocation3 + $0x8] sm:$0xff] %v503
  // Predicated region
  $region10: #{discriminator_forward.31} parent=0 // pred_check
    %p506 = pneg %p8
  $region11: #{discriminator_forward.31} parent=0 // pred_check_branch
    %508 = sbr.rel (%p506) target = $region13
  $region12: #{discriminator_forward.31} parent=0 // pred_region
    %v509 = vld [vmem:[#allocation2] sm:$0xff]
    %v510 = vld [vmem:[#allocation2 + $0x8] sm:$0xff]
    %511 = vst [vmem:[%s1] ss:$2 sm:$0xff] %v509
    %s512 = scalar_lea.vmem %s1, 16
    %513 = vst [vmem:[%s512] ss:$2 sm:$0xff] %v510
    %v514 = vld [vmem:[#allocation3] sm:$0xff]
    %v515 = vld [vmem:[#allocation3 + $0x8] sm:$0xff]
    %s516 = scalar_lea.vmem %s1, 1
    %517 = vst [vmem:[%s516] ss:$2 sm:$0xff] %v514
    %s518 = scalar_lea.vmem %s1, 17
    %519 = vst [vmem:[%s518] ss:$2 sm:$0xff] %v515
  $region13: #{discriminator_forward.31} parent=0 // pred_fallthru
    _
  // Predicated region
  $region14: #{discriminator_forward.31} parent=0 // pred_check
    _
  $region15: #{discriminator_forward.31} parent=0 // pred_check_branch
    %521 = sbr.rel (0) target = $region17
  $region16: #{discriminator_forward.31} parent=0 // pred_region
    _
  $region17: #{discriminator_forward.31} parent=0 // pred_fallthru
    _
  // Predicated region
  $region18: #{discriminator_forward.31} parent=0 // pred_check
    _
  $region19: #{discriminator_forward.31} parent=0 // pred_check_branch
    %523 = sbr.rel (0) target = $region21
  $region20: #{discriminator_forward.31} parent=0 // pred_region
    _
  $region21: #{discriminator_forward.31} parent=0 // pred_fallthru
    _

// kernel: discriminator_forward.32
$region0: #{discriminator_forward.32}
  #allocation0 [shape = 'u32[]', space=smem, size = 0x4, offset = 0x4, fixed_abs, tag = 'smem constant byte address 0x4 - core index']
  #allocation1 [shape = 'u32[144,128]{1,0:T(1,128)}', space=vmem, size = 0x12000, scoped, tag = 'internal scratch']
  %s0 = inlined_call_operand.vmem [shape: f32[8,2048], index: 0, kind: input, shape index: {}]
  %s1 = inlined_call_operand.vmem [shape: f32[2,2048], index: 1, kind: input, shape index: {}]
  %s2 = inlined_call_operand.vmem [shape: f32[1,2048], index: 2, kind: input, shape index: {}]
  %s3 = inlined_call_operand.vmem [shape: f32[1,2048], index: 3, kind: input, shape index: {}]
  %s4 = inlined_call_operand.vmem [shape: f32[8,2048], index: 4, kind: output, shape index: {}]
  %s5 = sld [smem:[#allocation0]]
  $region26: #{discriminator_forward.32} parent=0
    _
  %s7 = ssub.s32 1, %s5
  %s8 = scalar_select 0, %s7, %s5
  // Predicated region
  $region2: #{discriminator_forward.32} parent=0 // pred_check
    _
  $region3: #{discriminator_forward.32} parent=0 // pred_check_branch
    %10 = sbr.rel (0) target = $region5
  $region4: #{discriminator_forward.32} parent=0 // pred_region
    _
  $region5: #{discriminator_forward.32} parent=0 // pred_fallthru
    _
  // Predicated region
  $region6: #{discriminator_forward.32} parent=0 // pred_check
    _
  $region7: #{discriminator_forward.32} parent=0 // pred_check_branch
    %12 = sbr.rel (0) target = $region9
  $region8: #{discriminator_forward.32} parent=0 // pred_region
    _
  $region9: #{discriminator_forward.32} parent=0 // pred_fallthru
    _
  // Predicated region
  $region10: #{discriminator_forward.32} parent=0 // pred_check
    _
  $region11: #{discriminator_forward.32} parent=0 // pred_check_branch
    %14 = sbr.rel (0) target = $region13
  $region12: #{discriminator_forward.32} parent=0 // pred_region
    _
  $region13: #{discriminator_forward.32} parent=0 // pred_fallthru
    _
  // Predicated region
  $region14: #{discriminator_forward.32} parent=0 // pred_check
    _
  $region15: #{discriminator_forward.32} parent=0 // pred_check_branch
    %16 = sbr.rel (0) target = $region17
  $region16: #{discriminator_forward.32} parent=0 // pred_region
    _
  $region17: #{discriminator_forward.32} parent=0 // pred_fallthru
    _
  %v17 = vld [vmem:[%s0] sm:$0xff]
  %v18 = vld [vmem:[%s0 + $0x8] sm:$0xff]
  %v19 = vld [vmem:[%s0 + $0x10] sm:$0xff]
  %v20 = vld [vmem:[%s0 + $0x18] sm:$0xff]
  %v21 = vld [vmem:[%s0 + $0x20] sm:$0xff]
  %v22 = vld [vmem:[%s0 + $0x28] sm:$0xff]
  %v23 = vld [vmem:[%s0 + $0x30] sm:$0xff]
  %v24 = vld [vmem:[%s0 + $0x38] sm:$0xff]
  %v25 = vld [vmem:[%s0 + $0x40] sm:$0xff]
  %v26 = vld [vmem:[%s0 + $0x48] sm:$0xff]
  %v27 = vld [vmem:[%s0 + $0x50] sm:$0xff]
  %v28 = vld [vmem:[%s0 + $0x58] sm:$0xff]
  %v29 = vld [vmem:[%s0 + $0x60] sm:$0xff]
  %v30 = vld [vmem:[%s0 + $0x68] sm:$0xff]
  %v31 = vld [vmem:[%s0 + $0x70] sm:$0xff]
  %v32 = vld [vmem:[%s0 + $0x78] sm:$0xff]
  %v33 = vld [vmem:[%s1] ss:$2 sm:$0xff]
  %s34 = scalar_lea.vmem %s1, 16
  %v35 = vld [vmem:[%s34] ss:$2 sm:$0xff]
  %v36 = vmul.f32 %v33, 0.5
  %v37 = vmul.f32 %v35, 0.5
  %s38 = scalar_lea.vmem %s1, 1
  %v39 = vld [vmem:[%s38] ss:$2 sm:$0xff]
  %s40 = scalar_lea.vmem %s1, 17
  %v41 = vld [vmem:[%s40] ss:$2 sm:$0xff]
  %v42 = vmul.f32 %v39, 0.5
  %v43 = vmul.f32 %v41, 0.5
  %v44 = vmul.f32 %v36, %v36
  %v45 = vmul.f32 %v37, %v37
  %v46 = vsub.f32 %v42, %v44
  %v47 = vsub.f32 %v43, %v45
  %v48 = vld [vmem:[%s2] sm:$0xff]
  %v49 = vld [vmem:[%s2 + $0x8] sm:$0xff]
  %v50 = vadd.f32 %v46, 1e-05
  %v51 = vadd.f32 %v47, 1e-05
  %v52 = vrsqrt.pop %v50
  %v53 = vrsqrt.pop %v51
  %v54 = vmul.f32 %v48, %v52
  %v55 = vmul.f32 %v49, %v53
  %v56 = vld [vmem:[%s3] sm:$0xff]
  %v57 = vld [vmem:[%s3 + $0x8] sm:$0xff]
  %v58 = vmul.f32 %v36, %v54
  %v59 = vmul.f32 %v37, %v55
  %v60 = vsub.f32 %v56, %v58
  %v61 = vsub.f32 %v57, %v59
  %v64 = vlaneseq
  %v65 = vshrl.u32 %v64, 7
  %v66 = vsub.s32 0, %v65
  %v67 = vrot.slane %v54, %v66
  %v68 = vlaneseq
  %v69 = vshrl.u32 %v68, 7
  %v70 = vsub.s32 1, %v69
  %v71 = vrot.slane %v54, %v70
  %v72 = vlaneseq
  %v73 = vshrl.u32 %v72, 7
  %v74 = vsub.s32 2, %v73
  %v75 = vrot.slane %v54, %v74
  %v76 = vlaneseq
  %v77 = vshrl.u32 %v76, 7
  %v78 = vsub.s32 3, %v77
  %v79 = vrot.slane %v54, %v78
  %v80 = vlaneseq
  %v81 = vshrl.u32 %v80, 7
  %v82 = vsub.s32 4, %v81
  %v83 = vrot.slane %v54, %v82
  %v84 = vlaneseq
  %v85 = vshrl.u32 %v84, 7
  %v86 = vsub.s32 5, %v85
  %v87 = vrot.slane %v54, %v86
  %v88 = vlaneseq
  %v89 = vshrl.u32 %v88, 7
  %v90 = vsub.s32 6, %v89
  %v91 = vrot.slane %v54, %v90
  %v92 = vlaneseq
  %v93 = vshrl.u32 %v92, 7
  %v94 = vsub.s32 7, %v93
  %v95 = vrot.slane %v54, %v94
  %v96 = vlaneseq
  %v97 = vshrl.u32 %v96, 7
  %v98 = vsub.s32 0, %v97
  %v99 = vrot.slane %v55, %v98
  %v100 = vlaneseq
  %v101 = vshrl.u32 %v100, 7
  %v102 = vsub.s32 1, %v101
  %v103 = vrot.slane %v55, %v102
  %v104 = vlaneseq
  %v105 = vshrl.u32 %v104, 7
  %v106 = vsub.s32 2, %v105
  %v107 = vrot.slane %v55, %v106
  %v108 = vlaneseq
  %v109 = vshrl.u32 %v108, 7
  %v110 = vsub.s32 3, %v109
  %v111 = vrot.slane %v55, %v110
  %v112 = vlaneseq
  %v113 = vshrl.u32 %v112, 7
  %v114 = vsub.s32 4, %v113
  %v115 = vrot.slane %v55, %v114
  %v116 = vlaneseq
  %v117 = vshrl.u32 %v116, 7
  %v118 = vsub.s32 5, %v117
  %v119 = vrot.slane %v55, %v118
  %v120 = vlaneseq
  %v121 = vshrl.u32 %v120, 7
  %v122 = vsub.s32 6, %v121
  %v123 = vrot.slane %v55, %v122
  %v124 = vlaneseq
  %v125 = vshrl.u32 %v124, 7
  %v126 = vsub.s32 7, %v125
  %v127 = vrot.slane %v55, %v126
  %v144 = vmul.f32 %v17, %v67
  %v145 = vmul.f32 %v18, %v71
  %v146 = vmul.f32 %v19, %v75
  %v147 = vmul.f32 %v20, %v79
  %v148 = vmul.f32 %v21, %v83
  %v149 = vmul.f32 %v22, %v87
  %v150 = vmul.f32 %v23, %v91
  %v151 = vmul.f32 %v24, %v95
  %v152 = vmul.f32 %v25, %v99
  %v153 = vmul.f32 %v26, %v103
  %v154 = vmul.f32 %v27, %v107
  %v155 = vmul.f32 %v28, %v111
  %v156 = vmul.f32 %v29, %v115
  %v157 = vmul.f32 %v30, %v119
  %v158 = vmul.f32 %v31, %v123
  %v159 = vmul.f32 %v32, %v127
  %v162 = vlaneseq
  %v163 = vshrl.u32 %v162, 7
  %v164 = vsub.s32 0, %v163
  %v165 = vrot.slane %v60, %v164
  %v166 = vlaneseq
  %v167 = vshrl.u32 %v166, 7
  %v168 = vsub.s32 1, %v167
  %v169 = vrot.slane %v60, %v168
  %v170 = vlaneseq
  %v171 = vshrl.u32 %v170, 7
  %v172 = vsub.s32 2, %v171
  %v173 = vrot.slane %v60, %v172
  %v174 = vlaneseq
  %v175 = vshrl.u32 %v174, 7
  %v176 = vsub.s32 3, %v175
  %v177 = vrot.slane %v60, %v176
  %v178 = vlaneseq
  %v179 = vshrl.u32 %v178, 7
  %v180 = vsub.s32 4, %v179
  %v181 = vrot.slane %v60, %v180
  %v182 = vlaneseq
  %v183 = vshrl.u32 %v182, 7
  %v184 = vsub.s32 5, %v183
  %v185 = vrot.slane %v60, %v184
  %v186 = vlaneseq
  %v187 = vshrl.u32 %v186, 7
  %v188 = vsub.s32 6, %v187
  %v189 = vrot.slane %v60, %v188
  %v190 = vlaneseq
  %v191 = vshrl.u32 %v190, 7
  %v192 = vsub.s32 7, %v191
  %v193 = vrot.slane %v60, %v192
  %v194 = vlaneseq
  %v195 = vshrl.u32 %v194, 7
  %v196 = vsub.s32 0, %v195
  %v197 = vrot.slane %v61, %v196
  %v198 = vlaneseq
  %v199 = vshrl.u32 %v198, 7
  %v200 = vsub.s32 1, %v199
  %v201 = vrot.slane %v61, %v200
  %v202 = vlaneseq
  %v203 = vshrl.u32 %v202, 7
  %v204 = vsub.s32 2, %v203
  %v205 = vrot.slane %v61, %v204
  %v206 = vlaneseq
  %v207 = vshrl.u32 %v206, 7
  %v208 = vsub.s32 3, %v207
  %v209 = vrot.slane %v61, %v208
  %v210 = vlaneseq
  %v211 = vshrl.u32 %v210, 7
  %v212 = vsub.s32 4, %v211
  %v213 = vrot.slane %v61, %v212
  %v214 = vlaneseq
  %v215 = vshrl.u32 %v214, 7
  %v216 = vsub.s32 5, %v215
  %v217 = vrot.slane %v61, %v216
  %v218 = vlaneseq
  %v219 = vshrl.u32 %v218, 7
  %v220 = vsub.s32 6, %v219
  %v221 = vrot.slane %v61, %v220
  %v222 = vlaneseq
  %v223 = vshrl.u32 %v222, 7
  %v224 = vsub.s32 7, %v223
  %v225 = vrot.slane %v61, %v224
  %v242 = vadd.f32 %v144, %v165
  %v243 = vadd.f32 %v145, %v169
  %v244 = vadd.f32 %v146, %v173
  %v245 = vadd.f32 %v147, %v177
  %v246 = vadd.f32 %v148, %v181
  %v247 = vadd.f32 %v149, %v185
  %v248 = vadd.f32 %v150, %v189
  %v249 = vadd.f32 %v151, %v193
  %v250 = vadd.f32 %v152, %v197
  %v251 = vadd.f32 %v153, %v201
  %v252 = vadd.f32 %v154, %v205
  %v253 = vadd.f32 %v155, %v209
  %v254 = vadd.f32 %v156, %v213
  %v255 = vadd.f32 %v157, %v217
  %v256 = vadd.f32 %v158, %v221
  %v257 = vadd.f32 %v159, %v225
  %vm258 = vcmp.gt.f32.partialorder %v242, 0.0
  %vm259 = vcmp.gt.f32.partialorder %v243, 0.0
  %vm260 = vcmp.gt.f32.partialorder %v244, 0.0
  %vm261 = vcmp.gt.f32.partialorder %v245, 0.0
  %vm262 = vcmp.gt.f32.partialorder %v246, 0.0
  %vm263 = vcmp.gt.f32.partialorder %v247, 0.0
  %vm264 = vcmp.gt.f32.partialorder %v248, 0.0
  %vm265 = vcmp.gt.f32.partialorder %v249, 0.0
  %vm266 = vcmp.gt.f32.partialorder %v250, 0.0
  %vm267 = vcmp.gt.f32.partialorder %v251, 0.0
  %vm268 = vcmp.gt.f32.partialorder %v252, 0.0
  %vm269 = vcmp.gt.f32.partialorder %v253, 0.0
  %vm270 = vcmp.gt.f32.partialorder %v254, 0.0
  %vm271 = vcmp.gt.f32.partialorder %v255, 0.0
  %vm272 = vcmp.gt.f32.partialorder %v256, 0.0
  %vm273 = vcmp.gt.f32.partialorder %v257, 0.0
  %v274 = vmul.f32 %v242, 0.2
  %v275 = vmul.f32 %v243, 0.2
  %v276 = vmul.f32 %v244, 0.2
  %v277 = vmul.f32 %v245, 0.2
  %v278 = vmul.f32 %v246, 0.2
  %v279 = vmul.f32 %v247, 0.2
  %v280 = vmul.f32 %v248, 0.2
  %v281 = vmul.f32 %v249, 0.2
  %v282 = vmul.f32 %v250, 0.2
  %v283 = vmul.f32 %v251, 0.2
  %v284 = vmul.f32 %v252, 0.2
  %v285 = vmul.f32 %v253, 0.2
  %v286 = vmul.f32 %v254, 0.2
  %v287 = vmul.f32 %v255, 0.2
  %v288 = vmul.f32 %v256, 0.2
  %v289 = vmul.f32 %v257, 0.2
  %v290 = vsel %vm258, %v242, %v274
  %v291 = vsel %vm259, %v243, %v275
  %v292 = vsel %vm260, %v244, %v276
  %v293 = vsel %vm261, %v245, %v277
  %v294 = vsel %vm262, %v246, %v278
  %v295 = vsel %vm263, %v247, %v279
  %v296 = vsel %vm264, %v248, %v280
  %v297 = vsel %vm265, %v249, %v281
  %v298 = vsel %vm266, %v250, %v282
  %v299 = vsel %vm267, %v251, %v283
  %v300 = vsel %vm268, %v252, %v284
  %v301 = vsel %vm269, %v253, %v285
  %v302 = vsel %vm270, %v254, %v286
  %v303 = vsel %vm271, %v255, %v287
  %v304 = vsel %vm272, %v256, %v288
  %v305 = vsel %vm273, %v257, %v289
  %306 = vst [vmem:[%s4] sm:$0xff] %v290
  %307 = vst [vmem:[%s4 + $0x8] sm:$0xff] %v291
  %308 = vst [vmem:[%s4 + $0x10] sm:$0xff] %v292
  %309 = vst [vmem:[%s4 + $0x18] sm:$0xff] %v293
  %310 = vst [vmem:[%s4 + $0x20] sm:$0xff] %v294
  %311 = vst [vmem:[%s4 + $0x28] sm:$0xff] %v295
  %312 = vst [vmem:[%s4 + $0x30] sm:$0xff] %v296
  %313 = vst [vmem:[%s4 + $0x38] sm:$0xff] %v297
  %314 = vst [vmem:[%s4 + $0x40] sm:$0xff] %v298
  %315 = vst [vmem:[%s4 + $0x48] sm:$0xff] %v299
  %316 = vst [vmem:[%s4 + $0x50] sm:$0xff] %v300
  %317 = vst [vmem:[%s4 + $0x58] sm:$0xff] %v301
  %318 = vst [vmem:[%s4 + $0x60] sm:$0xff] %v302
  %319 = vst [vmem:[%s4 + $0x68] sm:$0xff] %v303
  %320 = vst [vmem:[%s4 + $0x70] sm:$0xff] %v304
  %321 = vst [vmem:[%s4 + $0x78] sm:$0xff] %v305
  // Predicated region
  $region18: #{discriminator_forward.32} parent=0 // pred_check
    _
  $region19: #{discriminator_forward.32} parent=0 // pred_check_branch
    %323 = sbr.rel (0) target = $region21
  $region20: #{discriminator_forward.32} parent=0 // pred_region
    _
  $region21: #{discriminator_forward.32} parent=0 // pred_fallthru
    _
  // Predicated region
  $region22: #{discriminator_forward.32} parent=0 // pred_check
    _
  $region23: #{discriminator_forward.32} parent=0 // pred_check_branch
    %325 = sbr.rel (0) target = $region25
  $region24: #{discriminator_forward.32} parent=0 // pred_region
    _
  $region25: #{discriminator_forward.32} parent=0 // pred_fallthru
    _

// kernel: discriminator_forward.33
$region0: #{discriminator_forward.33}
  #allocation0 [shape = 'u32[]', space=smem, size = 0x4, offset = 0x4, fixed_abs, tag = 'smem constant byte address 0x4 - core index']
  #allocation1 [shape = 'u32[144,128]{1,0:T(1,128)}', space=vmem, size = 0x12000, scoped, tag = 'internal scratch']
  #allocation2 [shape = 'f32[1,1]{1,0:T(1,128)S(1)}', space=vmem, size = 0x200, scoped, tag = 'scoped memory for discriminator_forward.33']
  %s0 = inlined_call_operand.vmem [shape: f32[2,1,2048], index: 0, kind: input, shape index: {}]
  %s1 = inlined_call_operand.vmem [shape: f32[1,2048], index: 1, kind: input, shape index: {}]
  %s2 = inlined_call_operand.<no memory space> [shape: f32[1,1], index: 2, kind: input, shape index: {}]
  %s3 = inlined_call_operand.vmem [shape: f32[2,1], index: 3, kind: output, shape index: {}]
  %s4 = sld [smem:[#allocation0]]
  $region22: #{discriminator_forward.33} parent=0
    _
  %s6 = ssub.s32 1, %s4
  %s7 = scalar_select 0, %s6, %s4
  %v8 = vstv %s2
  %9 = vst [vmem:[#allocation2] sm:$0x1] %v8
  // Predicated region
  $region2: #{discriminator_forward.33} parent=0 // pred_check
    _
  $region3: #{discriminator_forward.33} parent=0 // pred_check_branch
    %11 = sbr.rel (0) target = $region5
  $region4: #{discriminator_forward.33} parent=0 // pred_region
    _
  $region5: #{discriminator_forward.33} parent=0 // pred_fallthru
    _
  // Predicated region
  $region6: #{discriminator_forward.33} parent=0 // pred_check
    _
  $region7: #{discriminator_forward.33} parent=0 // pred_check_branch
    %13 = sbr.rel (0) target = $region9
  $region8: #{discriminator_forward.33} parent=0 // pred_region
    _
  $region9: #{discriminator_forward.33} parent=0 // pred_fallthru
    _
  // Predicated region
  $region10: #{discriminator_forward.33} parent=0 // pred_check
    _
  $region11: #{discriminator_forward.33} parent=0 // pred_check_branch
    %15 = sbr.rel (0) target = $region13
  $region12: #{discriminator_forward.33} parent=0 // pred_region
    _
  $region13: #{discriminator_forward.33} parent=0 // pred_fallthru
    _
  %v16 = vld [vmem:[%s0] sm:$0xff]
  %v17 = vld [vmem:[%s0 + $0x8] sm:$0xff]
  %v18 = vld [vmem:[%s0 + $0x10] sm:$0xff]
  %v19 = vld [vmem:[%s0 + $0x18] sm:$0xff]
  %v20 = vadd.f32 %v16, 0.0
  %v21 = vadd.f32 %v17, 0.0
  %v22 = vadd.f32 %v18, 0.0
  %v23 = vadd.f32 %v19, 0.0
  %v24 = vld [vmem:[%s1] sm:$0xff]
  %v25 = vld [vmem:[%s1 + $0x8] sm:$0xff]
  %v28 = vlaneseq
  %v29 = vshrl.u32 %v28, 7
  %v30 = vsub.s32 0, %v29
  %v31 = vrot.slane %v24, %v30
  %v32 = vlaneseq
  %v33 = vshrl.u32 %v32, 7
  %v34 = vsub.s32 1, %v33
  %v35 = vrot.slane %v24, %v34
  %v36 = vlaneseq
  %v37 = vshrl.u32 %v36, 7
  %v38 = vsub.s32 2, %v37
  %v39 = vrot.slane %v24, %v38
  %v40 = vlaneseq
  %v41 = vshrl.u32 %v40, 7
  %v42 = vsub.s32 3, %v41
  %v43 = vrot.slane %v24, %v42
  %v44 = vlaneseq
  %v45 = vshrl.u32 %v44, 7
  %v46 = vsub.s32 4, %v45
  %v47 = vrot.slane %v24, %v46
  %v48 = vlaneseq
  %v49 = vshrl.u32 %v48, 7
  %v50 = vsub.s32 5, %v49
  %v51 = vrot.slane %v24, %v50
  %v52 = vlaneseq
  %v53 = vshrl.u32 %v52, 7
  %v54 = vsub.s32 6, %v53
  %v55 = vrot.slane %v24, %v54
  %v56 = vlaneseq
  %v57 = vshrl.u32 %v56, 7
  %v58 = vsub.s32 7, %v57
  %v59 = vrot.slane %v24, %v58
  %v60 = vlaneseq
  %v61 = vshrl.u32 %v60, 7
  %v62 = vsub.s32 0, %v61
  %v63 = vrot.slane %v25, %v62
  %v64 = vlaneseq
  %v65 = vshrl.u32 %v64, 7
  %v66 = vsub.s32 1, %v65
  %v67 = vrot.slane %v25, %v66
  %v68 = vlaneseq
  %v69 = vshrl.u32 %v68, 7
  %v70 = vsub.s32 2, %v69
  %v71 = vrot.slane %v25, %v70
  %v72 = vlaneseq
  %v73 = vshrl.u32 %v72, 7
  %v74 = vsub.s32 3, %v73
  %v75 = vrot.slane %v25, %v74
  %v76 = vlaneseq
  %v77 = vshrl.u32 %v76, 7
  %v78 = vsub.s32 4, %v77
  %v79 = vrot.slane %v25, %v78
  %v80 = vlaneseq
  %v81 = vshrl.u32 %v80, 7
  %v82 = vsub.s32 5, %v81
  %v83 = vrot.slane %v25, %v82
  %v84 = vlaneseq
  %v85 = vshrl.u32 %v84, 7
  %v86 = vsub.s32 6, %v85
  %v87 = vrot.slane %v25, %v86
  %v88 = vlaneseq
  %v89 = vshrl.u32 %v88, 7
  %v90 = vsub.s32 7, %v89
  %v91 = vrot.slane %v25, %v90
  %v92 = vcombine.low %v31, %v35
  %v93 = vcombine.low %v39, %v43
  %v94 = vcombine.low %v47, %v51
  %v95 = vcombine.low %v55, %v59
  %v97 = vunpack.c.l.s4 1966171168
  %v98 = vunpack.c.0.s8 %v97
  %v99 = vlaneseq
  %v100 = vshrl.u32 %v99, 7
  %v101 = vsub.s32 %v98, %v100
  %v102 = vrot.slane %v92, %v101
  %v104 = vunpack.c.l.s4 1966171168
  %v105 = vunpack.c.0.s8 %v104
  %v106 = vlaneseq
  %v107 = vshrl.u32 %v106, 7
  %v108 = vsub.s32 %v105, %v107
  %v109 = vrot.slane %v93, %v108
  %v111 = vunpack.c.l.s4 1966171168
  %v112 = vunpack.c.0.s8 %v111
  %v113 = vlaneseq
  %v114 = vshrl.u32 %v113, 7
  %v115 = vsub.s32 %v112, %v114
  %v116 = vrot.slane %v94, %v115
  %v118 = vunpack.c.l.s4 1966171168
  %v119 = vunpack.c.0.s8 %v118
  %v120 = vlaneseq
  %v121 = vshrl.u32 %v120, 7
  %v122 = vsub.s32 %v119, %v121
  %v123 = vrot.slane %v95, %v122
  %v124 = vcombine.low %v102, %v109
  %v125 = vcombine.high %v102, %v109
  %v126 = vcombine.low %v116, %v123
  %v127 = vcombine.high %v116, %v123
  %v129 = vunpack.c.l.s4 1966171168
  %v130 = vunpack.c.0.s8 %v129
  %v131 = vlaneseq
  %v132 = vshrl.u32 %v131, 7
  %v133 = vsub.s32 %v130, %v132
  %v134 = vrot.slane %v124, %v133
  %v136 = vunpack.c.l.s4 1966171168
  %v137 = vunpack.c.0.s8 %v136
  %v138 = vlaneseq
  %v139 = vshrl.u32 %v138, 7
  %v140 = vsub.s32 %v137, %v139
  %v141 = vrot.slane %v125, %v140
  %v143 = vunpack.c.l.s4 1966171168
  %v144 = vunpack.c.0.s8 %v143
  %v145 = vlaneseq
  %v146 = vshrl.u32 %v145, 7
  %v147 = vsub.s32 %v144, %v146
  %v148 = vrot.slane %v126, %v147
  %v150 = vunpack.c.l.s4 1966171168
  %v151 = vunpack.c.0.s8 %v150
  %v152 = vlaneseq
  %v153 = vshrl.u32 %v152, 7
  %v154 = vsub.s32 %v151, %v153
  %v155 = vrot.slane %v127, %v154
  %v156 = vcombine.low %v134, %v148
  %v157 = vcombine.low %v141, %v155
  %v158 = vcombine.low %v63, %v67
  %v159 = vcombine.low %v71, %v75
  %v160 = vcombine.low %v79, %v83
  %v161 = vcombine.low %v87, %v91
  %v163 = vunpack.c.l.s4 1966171168
  %v164 = vunpack.c.0.s8 %v163
  %v165 = vlaneseq
  %v166 = vshrl.u32 %v165, 7
  %v167 = vsub.s32 %v164, %v166
  %v168 = vrot.slane %v158, %v167
  %v170 = vunpack.c.l.s4 1966171168
  %v171 = vunpack.c.0.s8 %v170
  %v172 = vlaneseq
  %v173 = vshrl.u32 %v172, 7
  %v174 = vsub.s32 %v171, %v173
  %v175 = vrot.slane %v159, %v174
  %v177 = vunpack.c.l.s4 1966171168
  %v178 = vunpack.c.0.s8 %v177
  %v179 = vlaneseq
  %v180 = vshrl.u32 %v179, 7
  %v181 = vsub.s32 %v178, %v180
  %v182 = vrot.slane %v160, %v181
  %v184 = vunpack.c.l.s4 1966171168
  %v185 = vunpack.c.0.s8 %v184
  %v186 = vlaneseq
  %v187 = vshrl.u32 %v186, 7
  %v188 = vsub.s32 %v185, %v187
  %v189 = vrot.slane %v161, %v188
  %v190 = vcombine.low %v168, %v175
  %v191 = vcombine.high %v168, %v175
  %v192 = vcombine.low %v182, %v189
  %v193 = vcombine.high %v182, %v189
  %v195 = vunpack.c.l.s4 1966171168
  %v196 = vunpack.c.0.s8 %v195
  %v197 = vlaneseq
  %v198 = vshrl.u32 %v197, 7
  %v199 = vsub.s32 %v196, %v198
  %v200 = vrot.slane %v190, %v199
  %v202 = vunpack.c.l.s4 1966171168
  %v203 = vunpack.c.0.s8 %v202
  %v204 = vlaneseq
  %v205 = vshrl.u32 %v204, 7
  %v206 = vsub.s32 %v203, %v205
  %v207 = vrot.slane %v191, %v206
  %v209 = vunpack.c.l.s4 1966171168
  %v210 = vunpack.c.0.s8 %v209
  %v211 = vlaneseq
  %v212 = vshrl.u32 %v211, 7
  %v213 = vsub.s32 %v210, %v212
  %v214 = vrot.slane %v192, %v213
  %v216 = vunpack.c.l.s4 1966171168
  %v217 = vunpack.c.0.s8 %v216
  %v218 = vlaneseq
  %v219 = vshrl.u32 %v218, 7
  %v220 = vsub.s32 %v217, %v219
  %v221 = vrot.slane %v193, %v220
  %v222 = vcombine.low %v200, %v214
  %v223 = vcombine.low %v207, %v221
  %v228 = vmul.f32 %v20, %v156
  %v229 = vmul.f32 %v21, %v222
  %v230 = vmul.f32 %v22, %v157
  %v231 = vmul.f32 %v23, %v223
  %v236 = vcombine.low %v228, %v230
  %v237 = vcombine.high %v228, %v230
  %v239 = vunpack.c.l.s4 1966171168
  %v240 = vunpack.c.0.s8 %v239
  %v241 = vlaneseq
  %v242 = vshrl.u32 %v241, 7
  %v243 = vsub.s32 %v240, %v242
  %v244 = vrot.slane %v236, %v243
  %v246 = vunpack.c.l.s4 1966171168
  %v247 = vunpack.c.0.s8 %v246
  %v248 = vlaneseq
  %v249 = vshrl.u32 %v248, 7
  %v250 = vsub.s32 %v247, %v249
  %v251 = vrot.slane %v237, %v250
  %v252 = vcombine.high %v244, %v244
  %v253 = vcombine.high %v251, %v251
  %v255 = vunpack.c.l.s4 1966171168
  %v256 = vunpack.c.0.s8 %v255
  %v257 = vlaneseq
  %v258 = vshrl.u32 %v257, 7
  %v259 = vsub.s32 %v256, %v258
  %v260 = vrot.slane %v244, %v259
  %v262 = vunpack.c.l.s4 1966171168
  %v263 = vunpack.c.0.s8 %v262
  %v264 = vlaneseq
  %v265 = vshrl.u32 %v264, 7
  %v266 = vsub.s32 %v263, %v265
  %v267 = vrot.slane %v251, %v266
  %v269 = vunpack.c.l.s4 1966171168
  %v270 = vunpack.c.0.s8 %v269
  %v271 = vlaneseq
  %v272 = vshrl.u32 %v271, 7
  %v273 = vsub.s32 %v270, %v272
  %v274 = vrot.slane %v252, %v273
  %v276 = vunpack.c.l.s4 1966171168
  %v277 = vunpack.c.0.s8 %v276
  %v278 = vlaneseq
  %v279 = vshrl.u32 %v278, 7
  %v280 = vsub.s32 %v277, %v279
  %v281 = vrot.slane %v253, %v280
  %v282 = vcombine.high %v260, %v260
  %v283 = vcombine.high %v267, %v267
  %v284 = vcombine.high %v274, %v274
  %v285 = vcombine.high %v281, %v281
  %v286 = vcombine.low %v229, %v231
  %v287 = vcombine.high %v229, %v231
  %v289 = vunpack.c.l.s4 1966171168
  %v290 = vunpack.c.0.s8 %v289
  %v291 = vlaneseq
  %v292 = vshrl.u32 %v291, 7
  %v293 = vsub.s32 %v290, %v292
  %v294 = vrot.slane %v286, %v293
  %v296 = vunpack.c.l.s4 1966171168
  %v297 = vunpack.c.0.s8 %v296
  %v298 = vlaneseq
  %v299 = vshrl.u32 %v298, 7
  %v300 = vsub.s32 %v297, %v299
  %v301 = vrot.slane %v287, %v300
  %v302 = vcombine.high %v294, %v294
  %v303 = vcombine.high %v301, %v301
  %v305 = vunpack.c.l.s4 1966171168
  %v306 = vunpack.c.0.s8 %v305
  %v307 = vlaneseq
  %v308 = vshrl.u32 %v307, 7
  %v309 = vsub.s32 %v306, %v308
  %v310 = vrot.slane %v294, %v309
  %v312 = vunpack.c.l.s4 1966171168
  %v313 = vunpack.c.0.s8 %v312
  %v314 = vlaneseq
  %v315 = vshrl.u32 %v314, 7
  %v316 = vsub.s32 %v313, %v315
  %v317 = vrot.slane %v301, %v316
  %v319 = vunpack.c.l.s4 1966171168
  %v320 = vunpack.c.0.s8 %v319
  %v321 = vlaneseq
  %v322 = vshrl.u32 %v321, 7
  %v323 = vsub.s32 %v320, %v322
  %v324 = vrot.slane %v302, %v323
  %v326 = vunpack.c.l.s4 1966171168
  %v327 = vunpack.c.0.s8 %v326
  %v328 = vlaneseq
  %v329 = vshrl.u32 %v328, 7
  %v330 = vsub.s32 %v327, %v329
  %v331 = vrot.slane %v303, %v330
  %v332 = vcombine.high %v310, %v310
  %v333 = vcombine.high %v317, %v317
  %v334 = vcombine.high %v324, %v324
  %v335 = vcombine.high %v331, %v331
  %vm352 = vcmask 1041408
  %v353 = vsel %vm352, %v260, 0.0
  %v354 = vsel %vm352, %v274, 0.0
  %v355 = vadd.f32 %v353, %v354
  %v356 = vsel %vm352, %v282, 0.0
  %v357 = vadd.f32 %v355, %v356
  %v358 = vsel %vm352, %v284, 0.0
  %v359 = vadd.f32 %v357, %v358
  %v360 = vsel %vm352, %v267, 0.0
  %v361 = vadd.f32 %v359, %v360
  %v362 = vsel %vm352, %v281, 0.0
  %v363 = vadd.f32 %v361, %v362
  %v364 = vsel %vm352, %v283, 0.0
  %v365 = vadd.f32 %v363, %v364
  %v366 = vsel %vm352, %v285, 0.0
  %v367 = vadd.f32 %v365, %v366
  %v368 = vsel %vm352, %v310, 0.0
  %v369 = vadd.f32 %v367, %v368
  %v370 = vsel %vm352, %v324, 0.0
  %v371 = vadd.f32 %v369, %v370
  %v372 = vsel %vm352, %v332, 0.0
  %v373 = vadd.f32 %v371, %v372
  %v374 = vsel %vm352, %v334, 0.0
  %v375 = vadd.f32 %v373, %v374
  %v376 = vsel %vm352, %v317, 0.0
  %v377 = vadd.f32 %v375, %v376
  %v378 = vsel %vm352, %v331, 0.0
  %v379 = vadd.f32 %v377, %v378
  %v380 = vsel %vm352, %v333, 0.0
  %v381 = vadd.f32 %v379, %v380
  %v382 = vsel %vm352, %v335, 0.0
  %v383 = vadd.f32 %v381, %v382
  %384 = vadd.xlane.f32.xlu0 %v383
  %v385 = vpop.xlane.xlu0 %384
  %v386 = vld [vmem:[#allocation2] sm:$0x1]
  %v388 = vlaneseq
  %v389 = vshrl.u32 %v388, 7
  %v390 = vsub.s32 0, %v389
  %v391 = vrot.slane %v386, %v390
  %v393 = vadd.f32 %v385, %v391
  %v394 = vmul.f32 %v393, 0.5
  %v395 = vtanh.pop %v394
  %v396 = vadd.f32 %v395, 1.0
  %v397 = vmul.f32 %v396, 0.5
  %vm398 = vcmask 1024
  %399 = vst.msk [vmem:[%s3] sm:$0x3] %vm398, %v397
  // Predicated region
  $region14: #{discriminator_forward.33} parent=0 // pred_check
    _
  $region15: #{discriminator_forward.33} parent=0 // pred_check_branch
    %401 = sbr.rel (0) target = $region17
  $region16: #{discriminator_forward.33} parent=0 // pred_region
    _
  $region17: #{discriminator_forward.33} parent=0 // pred_fallthru
    _
  // Predicated region
  $region18: #{discriminator_forward.33} parent=0 // pred_check
    _
  $region19: #{discriminator_forward.33} parent=0 // pred_check_branch
    %403 = sbr.rel (0) target = $region21
  $region20: #{discriminator_forward.33} parent=0 // pred_region
    _
  $region21: #{discriminator_forward.33} parent=0 // pred_fallthru
    _

</llo_original>
